<compile_context>
chip_gen: v6e
topology: v6e:2x2x1
jax: 0.10.0
libtpu: 0.0.40
codegen_flags: <defaults>
</compile_context>

<pallas_src>
import jax
import jax.numpy as jnp
from jax.experimental import pallas as pl
from jax.experimental.pallas import tpu as pltpu


def _round_up(v, m):
    return ((v + m - 1) // m) * m


# ----------------------------------------------------------------------------
# Conv GEMM kernel (lane-dense / transposed): o = relu(W @ P + b)
#   W: (C_out, K) bf16   P: (K, TM) bf16   b: (C_out, 1) f32   o: (C_out, TM) bf16
# ----------------------------------------------------------------------------
def _conv_gemm_kernel(w_ref, b_ref, x_ref, o_ref):
    acc = jnp.dot(w_ref[...], x_ref[...], preferred_element_type=jnp.float32)
    acc = acc + b_ref[...]                      # broadcast (C_out, 1) over lanes
    acc = jnp.maximum(acc, 0.0)
    o_ref[...] = acc.astype(o_ref.dtype)


def conv_gemm_relu(w_mat, bias, patches, tm=512):
    """w_mat: (C_out, K), bias: (C_out,), patches: (K, M) -> (C_out, M) bf16."""
    C_out, K = w_mat.shape
    K2, M = patches.shape
    assert K == K2
    tm = min(tm, _round_up(M, 128))
    b2 = bias.reshape(C_out, 1).astype(jnp.float32)
    return pl.pallas_call(
        _conv_gemm_kernel,
        out_shape=jax.ShapeDtypeStruct((C_out, M), jnp.bfloat16),
        grid=(pl.cdiv(M, tm),),
        in_specs=[
            pl.BlockSpec((C_out, K), lambda i: (0, 0)),   # resident weights
            pl.BlockSpec((C_out, 1), lambda i: (0, 0)),   # resident bias
            pl.BlockSpec((K, tm), lambda i: (0, i)),      # streamed patch tiles
        ],
        out_specs=pl.BlockSpec((C_out, tm), lambda i: (0, i)),
        compiler_params=pltpu.CompilerParams(
            dimension_semantics=("parallel",)),
    )(w_mat.astype(jnp.bfloat16), b2, patches.astype(jnp.bfloat16))


# ----------------------------------------------------------------------------
# im2col in CNHW order (VALID padding) — K index order (ci, kh, kw) matches
# PyTorch weight.reshape(C_out, C_in*KH*KW); no 6-D transposes needed.
# ----------------------------------------------------------------------------
def im2col_cnhw(x, kh, kw, stride):
    C, N, H, W = x.shape
    Ho = (H - kh) // stride + 1
    Wo = (W - kw) // stride + 1
    cols = []
    for i in range(kh):
        for j in range(kw):
            cols.append(x[:, :, i:i + stride * Ho:stride, j:j + stride * Wo:stride])
    p = jnp.stack(cols, axis=1)                 # (C, kh*kw, N, Ho, Wo)
    return p.reshape(C * kh * kw, N * Ho * Wo), Ho, Wo


def conv2d_relu_cnhw(x, weight, bias, stride):
    """x: (C_in, N, H, W) bf16; weight: (C_out, C_in, KH, KW) (PyTorch layout)."""
    C_out, C_in, KH, KW = weight.shape
    N = x.shape[1]
    patches, Ho, Wo = im2col_cnhw(x, KH, KW, stride)       # (K, N*Ho*Wo)
    w_mat = weight.reshape(C_out, C_in * KH * KW)
    out = conv_gemm_relu(w_mat, bias, patches)             # (C_out, N*Ho*Wo)
    return out.reshape(C_out, N, Ho, Wo)                   # stay CNHW


# ----------------------------------------------------------------------------
# Fused FC head: relu(x@W1+b1) -> relu(@W2+b2) -> softmax(@W3+b3)
# All weights resident in VMEM; single pallas_call.
# ----------------------------------------------------------------------------
def _mlp_head_kernel(x_ref, w1_ref, b1_ref, w2_ref, b2_ref, w3_ref, b3_ref, o_ref):
    h = jnp.dot(x_ref[...], w1_ref[...], preferred_element_type=jnp.float32)
    h = jnp.maximum(h + b1_ref[...], 0.0)
    h = jnp.dot(h.astype(jnp.bfloat16), w2_ref[...],
                preferred_element_type=jnp.float32)
    h = jnp.maximum(h + b2_ref[...], 0.0)
    h = jnp.dot(h.astype(jnp.bfloat16), w3_ref[...],
                preferred_element_type=jnp.float32)
    logits = h + b3_ref[...]
    m = jnp.max(logits, axis=-1, keepdims=True)
    e = jnp.exp(logits - m)
    denom = jnp.sum(e, axis=-1, keepdims=True)
    o_ref[...] = (e * pl.reciprocal(denom, approx=True)).astype(o_ref.dtype)


def mlp_head(x, w1, b1, w2, b2, w3, b3):
    N = x.shape[0]
    A = w3.shape[1]
    args = (
        x.astype(jnp.bfloat16),
        w1.astype(jnp.bfloat16), b1.reshape(1, -1).astype(jnp.float32),
        w2.astype(jnp.bfloat16), b2.reshape(1, -1).astype(jnp.float32),
        w3.astype(jnp.bfloat16), b3.reshape(1, -1).astype(jnp.float32),
    )

    def full_spec(shape):
        return pl.BlockSpec(shape, lambda i: (0,) * len(shape))

    return pl.pallas_call(
        _mlp_head_kernel,
        out_shape=jax.ShapeDtypeStruct((N, A), jnp.float32),
        grid=(1,),
        in_specs=[full_spec(a.shape) for a in args],
        out_specs=full_spec((N, A)),
    )(*args)


# ----------------------------------------------------------------------------
# Parameters (PyTorch default uniform init layout)
# ----------------------------------------------------------------------------
def init_params(key, no_frames):
    c = 3 * no_frames

    def uinit(key, shape, fan_in):
        bound = 1.0 / jnp.sqrt(jnp.float32(fan_in))
        return jax.random.uniform(key, shape, jnp.float32, -bound, bound)

    keys = jax.random.split(key, 16)
    p = {}
    # conv weights in PyTorch layout (C_out, C_in, KH, KW)
    p["w1"] = uinit(keys[0], (c, c, 5, 5), c * 25)
    p["b1"] = uinit(keys[1], (c,), c * 25)
    p["w2"] = uinit(keys[2], (2 * no_frames, c, 5, 5), c * 25)
    p["b2"] = uinit(keys[3], (2 * no_frames,), c * 25)
    p["w3"] = uinit(keys[4], (no_frames, 2 * no_frames, 5, 5), 2 * no_frames * 25)
    p["b3"] = uinit(keys[5], (no_frames,), 2 * no_frames * 25)
    p["w4"] = uinit(keys[6], (no_frames, no_frames, 5, 5), no_frames * 25)
    p["b4"] = uinit(keys[7], (no_frames,), no_frames * 25)
    p["w5"] = uinit(keys[8], (1, no_frames, 5, 5), no_frames * 25)
    p["b5"] = uinit(keys[9], (1,), no_frames * 25)
    # linear weights stored as (in, out) = PyTorch weight.T
    p["fw1"] = uinit(keys[10], (35 * 22, 500), 35 * 22)
    p["fb1"] = uinit(keys[11], (500,), 35 * 22)
    p["fw2"] = uinit(keys[12], (500, 100), 500)
    p["fb2"] = uinit(keys[13], (100,), 500)
    p["fw3"] = uinit(keys[14], (100, 5), 100)
    p["fb3"] = uinit(keys[15], (5,), 100)
    return p


# ----------------------------------------------------------------------------
# Actor forward
# ----------------------------------------------------------------------------
def actor_forward(params, x):
    # x: (N, 3*no_frames, H, W) NCHW f32
    x = jnp.transpose(x, (1, 0, 2, 3)).astype(jnp.bfloat16)      # CNHW bf16
    x = conv2d_relu_cnhw(x, params["w1"], params["b1"], stride=2)
    x = conv2d_relu_cnhw(x, params["w2"], params["b2"], stride=1)
    x = conv2d_relu_cnhw(x, params["w3"], params["b3"], stride=1)
    x = conv2d_relu_cnhw(x, params["w4"], params["b4"], stride=1)
    x = conv2d_relu_cnhw(x, params["w5"], params["b5"], stride=1)  # (1, N, 35, 22)
    N = x.shape[1]
    flat = x.reshape(N, -1)                                        # nn.Flatten -> (N, 770)
    probs = mlp_head(flat, params["fw1"], params["fb1"],
                     params["fw2"], params["fb2"],
                     params["fw3"], params["fb3"])
    return probs  # (N, 5) action probabilities

# TODO(synk): Actor.act() (Categorical sampling + .item()) is host-side control
# logic and is intentionally not implemented as a TPU kernel.


if __name__ == "__main__":
    no_frames = 2
    batch = 2
    # Spatial dims are forced by the architecture: conv5 output must be 35x22
    # so that Flatten feeds the 35*22 -> 500 linear layer.  VALID 5x5 convs
    # (one stride-2, four stride-1) imply a 105 x 79 input frame.
    H, W = 105, 79
    key = jax.random.PRNGKey(0)
    kx, kp = jax.random.split(key)
    x = jax.random.uniform(kx, (batch, 3 * no_frames, H, W), jnp.float32)
    params = init_params(kp, no_frames)

    fwd = jax.jit(actor_forward)
    probs = jax.block_until_ready(fwd(params, x))
    assert probs.shape == (batch, 5)
    assert bool(jnp.all(jnp.isfinite(probs)))
    # bf16 matmul inputs + approx reciprocal: sums are ~1 to within ~1e-3.
    assert bool(jnp.allclose(jnp.sum(probs, axis=1), 1.0, atol=1e-2))
    print("KERNEL_OK")
</pallas_src>

<mosaic_0001>
module attributes {stable_mosaic.version = 11 : i64} {
  func.func @_conv_gemm_kernel(%arg0: i32, %arg1: memref<6x150xbf16, #tpu.memory_space<vmem>>, %arg2: memref<6x1xf32, #tpu.memory_space<vmem>>, %arg3: memref<150x512xbf16, #tpu.memory_space<vmem>>, %arg4: memref<6x512xbf16, #tpu.memory_space<vmem>>) attributes {dimension_semantics = [#tpu.dimension_semantics<parallel>], iteration_bounds = array<i64: 8>, scalar_prefetch = 0 : i64, scratch_operands = 0 : i64, tpu.core_type = #tpu.core_type<tc>, window_params = [{pipeline_mode = #tpu.pipeline_mode<synchronous>, transform_indices = @transform_0, window_bounds = array<i64: 6, 150>}, {pipeline_mode = #tpu.pipeline_mode<synchronous>, transform_indices = @transform_1, window_bounds = array<i64: 6, 1>}, {transform_indices = @transform_2, window_bounds = array<i64: 150, 512>}, {transform_indices = @transform_3, window_bounds = array<i64: 6, 512>}]} {
    %c0 = arith.constant 0 : index
    %c0_0 = arith.constant 0 : index
    %0 = vector.load %arg1[%c0, %c0_0] : memref<6x150xbf16, #tpu.memory_space<vmem>>, vector<6x150xbf16>
    %c0_1 = arith.constant 0 : index
    %c0_2 = arith.constant 0 : index
    %1 = vector.load %arg3[%c0_1, %c0_2] : memref<150x512xbf16, #tpu.memory_space<vmem>>, vector<150x512xbf16>
    %cst = arith.constant dense<0.000000e+00> : vector<6x512xf32>
    %2 = tpu.matmul %0, %1, %cst {dimension_numbers = #tpu.dot_dimension_numbers<[1], [0], [0], [1], [0, 0, 1, 1], [], []>} : vector<6x150xbf16>, vector<150x512xbf16>, vector<6x512xf32> -> vector<6x512xf32>
    %c0_3 = arith.constant 0 : index
    %c0_4 = arith.constant 0 : index
    %3 = vector.load %arg2[%c0_3, %c0_4] : memref<6x1xf32, #tpu.memory_space<vmem>>, vector<6x1xf32>
    %4 = vector.broadcast %3 : vector<6x1xf32> to vector<6x512xf32>
    %5 = arith.addf %2, %4 : vector<6x512xf32>
    %cst_5 = arith.constant 0.000000e+00 : f32
    %6 = vector.broadcast %cst_5 : f32 to vector<6x512xf32>
    %7 = arith.maximumf %5, %6 : vector<6x512xf32>
    %8 = arith.truncf %7 : vector<6x512xf32> to vector<6x512xbf16>
    %c0_6 = arith.constant 0 : index
    %c0_7 = arith.constant 0 : index
    %9 = vector.load %arg4[%c0_6, %c0_7] : memref<6x512xbf16, #tpu.memory_space<vmem>>, vector<6x512xbf16>
    tpu.vector_store %arg4[%c0_6, %c0_7], %8 {strides = array<i32>} : memref<6x512xbf16, #tpu.memory_space<vmem>>, vector<6x512xbf16>,
    return
  }
  func.func @transform_0(%arg0: i32) -> (i32, i32) {
    %c0_i32 = arith.constant 0 : i32
    %c0_i32_0 = arith.constant 0 : i32
    %c0_i32_1 = arith.constant 0 : i32
    return %c0_i32, %c0_i32_0 : i32, i32
  }
  func.func @transform_1(%arg0: i32) -> (i32, i32) {
    %c0_i32 = arith.constant 0 : i32
    %c0_i32_0 = arith.constant 0 : i32
    %c0_i32_1 = arith.constant 0 : i32
    return %c0_i32, %c0_i32_0 : i32, i32
  }
  func.func @transform_2(%arg0: i32) -> (i32, i32) {
    %c0_i32 = arith.constant 0 : i32
    %c0_i32_0 = arith.constant 0 : i32
    return %c0_i32, %arg0 : i32, i32
  }
  func.func @transform_3(%arg0: i32) -> (i32, i32) {
    %c0_i32 = arith.constant 0 : i32
    %c0_i32_0 = arith.constant 0 : i32
    return %c0_i32, %arg0 : i32, i32
  }
}

module attributes {stable_mosaic.version = 11 : i64} {
  func.func @_conv_gemm_kernel(%arg0: i32, %arg1: memref<4x150xbf16, #tpu.memory_space<vmem>>, %arg2: memref<4x1xf32, #tpu.memory_space<vmem>>, %arg3: memref<150x512xbf16, #tpu.memory_space<vmem>>, %arg4: memref<4x512xbf16, #tpu.memory_space<vmem>>) attributes {dimension_semantics = [#tpu.dimension_semantics<parallel>], iteration_bounds = array<i64: 7>, scalar_prefetch = 0 : i64, scratch_operands = 0 : i64, tpu.core_type = #tpu.core_type<tc>, window_params = [{pipeline_mode = #tpu.pipeline_mode<synchronous>, transform_indices = @transform_0, window_bounds = array<i64: 4, 150>}, {pipeline_mode = #tpu.pipeline_mode<synchronous>, transform_indices = @transform_1, window_bounds = array<i64: 4, 1>}, {transform_indices = @transform_2, window_bounds = array<i64: 150, 512>}, {transform_indices = @transform_3, window_bounds = array<i64: 4, 512>}]} {
    %c0 = arith.constant 0 : index
    %c0_0 = arith.constant 0 : index
    %0 = vector.load %arg1[%c0, %c0_0] : memref<4x150xbf16, #tpu.memory_space<vmem>>, vector<4x150xbf16>
    %c0_1 = arith.constant 0 : index
    %c0_2 = arith.constant 0 : index
    %1 = vector.load %arg3[%c0_1, %c0_2] : memref<150x512xbf16, #tpu.memory_space<vmem>>, vector<150x512xbf16>
    %cst = arith.constant dense<0.000000e+00> : vector<4x512xf32>
    %2 = tpu.matmul %0, %1, %cst {dimension_numbers = #tpu.dot_dimension_numbers<[1], [0], [0], [1], [0, 0, 1, 1], [], []>} : vector<4x150xbf16>, vector<150x512xbf16>, vector<4x512xf32> -> vector<4x512xf32>
    %c0_3 = arith.constant 0 : index
    %c0_4 = arith.constant 0 : index
    %3 = vector.load %arg2[%c0_3, %c0_4] : memref<4x1xf32, #tpu.memory_space<vmem>>, vector<4x1xf32>
    %4 = vector.broadcast %3 : vector<4x1xf32> to vector<4x512xf32>
    %5 = arith.addf %2, %4 : vector<4x512xf32>
    %cst_5 = arith.constant 0.000000e+00 : f32
    %6 = vector.broadcast %cst_5 : f32 to vector<4x512xf32>
    %7 = arith.maximumf %5, %6 : vector<4x512xf32>
    %8 = arith.truncf %7 : vector<4x512xf32> to vector<4x512xbf16>
    %c0_6 = arith.constant 0 : index
    %c0_7 = arith.constant 0 : index
    %9 = vector.load %arg4[%c0_6, %c0_7] : memref<4x512xbf16, #tpu.memory_space<vmem>>, vector<4x512xbf16>
    tpu.vector_store %arg4[%c0_6, %c0_7], %8 {strides = array<i32>} : memref<4x512xbf16, #tpu.memory_space<vmem>>, vector<4x512xbf16>,
    return
  }
  func.func @transform_0(%arg0: i32) -> (i32, i32) {
    %c0_i32 = arith.constant 0 : i32
    %c0_i32_0 = arith.constant 0 : i32
    %c0_i32_1 = arith.constant 0 : i32
    return %c0_i32, %c0_i32_0 : i32, i32
  }
  func.func @transform_1(%arg0: i32) -> (i32, i32) {
    %c0_i32 = arith.constant 0 : i32
    %c0_i32_0 = arith.constant 0 : i32
    %c0_i32_1 = arith.constant 0 : i32
    return %c0_i32, %c0_i32_0 : i32, i32
  }
  func.func @transform_2(%arg0: i32) -> (i32, i32) {
    %c0_i32 = arith.constant 0 : i32
    %c0_i32_0 = arith.constant 0 : i32
    return %c0_i32, %arg0 : i32, i32
  }
  func.func @transform_3(%arg0: i32) -> (i32, i32) {
    %c0_i32 = arith.constant 0 : i32
    %c0_i32_0 = arith.constant 0 : i32
    return %c0_i32, %arg0 : i32, i32
  }
}

module attributes {stable_mosaic.version = 11 : i64} {
  func.func @_conv_gemm_kernel(%arg0: i32, %arg1: memref<2x100xbf16, #tpu.memory_space<vmem>>, %arg2: memref<2x1xf32, #tpu.memory_space<vmem>>, %arg3: memref<100x512xbf16, #tpu.memory_space<vmem>>, %arg4: memref<2x512xbf16, #tpu.memory_space<vmem>>) attributes {dimension_semantics = [#tpu.dimension_semantics<parallel>], iteration_bounds = array<i64: 6>, scalar_prefetch = 0 : i64, scratch_operands = 0 : i64, tpu.core_type = #tpu.core_type<tc>, window_params = [{pipeline_mode = #tpu.pipeline_mode<synchronous>, transform_indices = @transform_0, window_bounds = array<i64: 2, 100>}, {pipeline_mode = #tpu.pipeline_mode<synchronous>, transform_indices = @transform_1, window_bounds = array<i64: 2, 1>}, {transform_indices = @transform_2, window_bounds = array<i64: 100, 512>}, {transform_indices = @transform_3, window_bounds = array<i64: 2, 512>}]} {
    %c0 = arith.constant 0 : index
    %c0_0 = arith.constant 0 : index
    %0 = vector.load %arg1[%c0, %c0_0] : memref<2x100xbf16, #tpu.memory_space<vmem>>, vector<2x100xbf16>
    %c0_1 = arith.constant 0 : index
    %c0_2 = arith.constant 0 : index
    %1 = vector.load %arg3[%c0_1, %c0_2] : memref<100x512xbf16, #tpu.memory_space<vmem>>, vector<100x512xbf16>
    %cst = arith.constant dense<0.000000e+00> : vector<2x512xf32>
    %2 = tpu.matmul %0, %1, %cst {dimension_numbers = #tpu.dot_dimension_numbers<[1], [0], [0], [1], [0, 0, 1, 1], [], []>} : vector<2x100xbf16>, vector<100x512xbf16>, vector<2x512xf32> -> vector<2x512xf32>
    %c0_3 = arith.constant 0 : index
    %c0_4 = arith.constant 0 : index
    %3 = vector.load %arg2[%c0_3, %c0_4] : memref<2x1xf32, #tpu.memory_space<vmem>>, vector<2x1xf32>
    %4 = vector.broadcast %3 : vector<2x1xf32> to vector<2x512xf32>
    %5 = arith.addf %2, %4 : vector<2x512xf32>
    %cst_5 = arith.constant 0.000000e+00 : f32
    %6 = vector.broadcast %cst_5 : f32 to vector<2x512xf32>
    %7 = arith.maximumf %5, %6 : vector<2x512xf32>
    %8 = arith.truncf %7 : vector<2x512xf32> to vector<2x512xbf16>
    %c0_6 = arith.constant 0 : index
    %c0_7 = arith.constant 0 : index
    %9 = vector.load %arg4[%c0_6, %c0_7] : memref<2x512xbf16, #tpu.memory_space<vmem>>, vector<2x512xbf16>
    tpu.vector_store %arg4[%c0_6, %c0_7], %8 {strides = array<i32>} : memref<2x512xbf16, #tpu.memory_space<vmem>>, vector<2x512xbf16>,
    return
  }
  func.func @transform_0(%arg0: i32) -> (i32, i32) {
    %c0_i32 = arith.constant 0 : i32
    %c0_i32_0 = arith.constant 0 : i32
    %c0_i32_1 = arith.constant 0 : i32
    return %c0_i32, %c0_i32_0 : i32, i32
  }
  func.func @transform_1(%arg0: i32) -> (i32, i32) {
    %c0_i32 = arith.constant 0 : i32
    %c0_i32_0 = arith.constant 0 : i32
    %c0_i32_1 = arith.constant 0 : i32
    return %c0_i32, %c0_i32_0 : i32, i32
  }
  func.func @transform_2(%arg0: i32) -> (i32, i32) {
    %c0_i32 = arith.constant 0 : i32
    %c0_i32_0 = arith.constant 0 : i32
    return %c0_i32, %arg0 : i32, i32
  }
  func.func @transform_3(%arg0: i32) -> (i32, i32) {
    %c0_i32 = arith.constant 0 : i32
    %c0_i32_0 = arith.constant 0 : i32
    return %c0_i32, %arg0 : i32, i32
  }
}

module attributes {stable_mosaic.version = 11 : i64} {
  func.func @_conv_gemm_kernel(%arg0: i32, %arg1: memref<2x50xbf16, #tpu.memory_space<vmem>>, %arg2: memref<2x1xf32, #tpu.memory_space<vmem>>, %arg3: memref<50x512xbf16, #tpu.memory_space<vmem>>, %arg4: memref<2x512xbf16, #tpu.memory_space<vmem>>) attributes {dimension_semantics = [#tpu.dimension_semantics<parallel>], iteration_bounds = array<i64: 4>, scalar_prefetch = 0 : i64, scratch_operands = 0 : i64, tpu.core_type = #tpu.core_type<tc>, window_params = [{pipeline_mode = #tpu.pipeline_mode<synchronous>, transform_indices = @transform_0, window_bounds = array<i64: 2, 50>}, {pipeline_mode = #tpu.pipeline_mode<synchronous>, transform_indices = @transform_1, window_bounds = array<i64: 2, 1>}, {transform_indices = @transform_2, window_bounds = array<i64: 50, 512>}, {transform_indices = @transform_3, window_bounds = array<i64: 2, 512>}]} {
    %c0 = arith.constant 0 : index
    %c0_0 = arith.constant 0 : index
    %0 = vector.load %arg1[%c0, %c0_0] : memref<2x50xbf16, #tpu.memory_space<vmem>>, vector<2x50xbf16>
    %c0_1 = arith.constant 0 : index
    %c0_2 = arith.constant 0 : index
    %1 = vector.load %arg3[%c0_1, %c0_2] : memref<50x512xbf16, #tpu.memory_space<vmem>>, vector<50x512xbf16>
    %cst = arith.constant dense<0.000000e+00> : vector<2x512xf32>
    %2 = tpu.matmul %0, %1, %cst {dimension_numbers = #tpu.dot_dimension_numbers<[1], [0], [0], [1], [0, 0, 1, 1], [], []>} : vector<2x50xbf16>, vector<50x512xbf16>, vector<2x512xf32> -> vector<2x512xf32>
    %c0_3 = arith.constant 0 : index
    %c0_4 = arith.constant 0 : index
    %3 = vector.load %arg2[%c0_3, %c0_4] : memref<2x1xf32, #tpu.memory_space<vmem>>, vector<2x1xf32>
    %4 = vector.broadcast %3 : vector<2x1xf32> to vector<2x512xf32>
    %5 = arith.addf %2, %4 : vector<2x512xf32>
    %cst_5 = arith.constant 0.000000e+00 : f32
    %6 = vector.broadcast %cst_5 : f32 to vector<2x512xf32>
    %7 = arith.maximumf %5, %6 : vector<2x512xf32>
    %8 = arith.truncf %7 : vector<2x512xf32> to vector<2x512xbf16>
    %c0_6 = arith.constant 0 : index
    %c0_7 = arith.constant 0 : index
    %9 = vector.load %arg4[%c0_6, %c0_7] : memref<2x512xbf16, #tpu.memory_space<vmem>>, vector<2x512xbf16>
    tpu.vector_store %arg4[%c0_6, %c0_7], %8 {strides = array<i32>} : memref<2x512xbf16, #tpu.memory_space<vmem>>, vector<2x512xbf16>,
    return
  }
  func.func @transform_0(%arg0: i32) -> (i32, i32) {
    %c0_i32 = arith.constant 0 : i32
    %c0_i32_0 = arith.constant 0 : i32
    %c0_i32_1 = arith.constant 0 : i32
    return %c0_i32, %c0_i32_0 : i32, i32
  }
  func.func @transform_1(%arg0: i32) -> (i32, i32) {
    %c0_i32 = arith.constant 0 : i32
    %c0_i32_0 = arith.constant 0 : i32
    %c0_i32_1 = arith.constant 0 : i32
    return %c0_i32, %c0_i32_0 : i32, i32
  }
  func.func @transform_2(%arg0: i32) -> (i32, i32) {
    %c0_i32 = arith.constant 0 : i32
    %c0_i32_0 = arith.constant 0 : i32
    return %c0_i32, %arg0 : i32, i32
  }
  func.func @transform_3(%arg0: i32) -> (i32, i32) {
    %c0_i32 = arith.constant 0 : i32
    %c0_i32_0 = arith.constant 0 : i32
    return %c0_i32, %arg0 : i32, i32
  }
}

module attributes {stable_mosaic.version = 11 : i64} {
  func.func @_conv_gemm_kernel(%arg0: i32, %arg1: memref<1x50xbf16, #tpu.memory_space<vmem>>, %arg2: memref<1x1xf32, #tpu.memory_space<vmem>>, %arg3: memref<50x512xbf16, #tpu.memory_space<vmem>>, %arg4: memref<1x512xbf16, #tpu.memory_space<vmem>>) attributes {dimension_semantics = [#tpu.dimension_semantics<parallel>], iteration_bounds = array<i64: 4>, scalar_prefetch = 0 : i64, scratch_operands = 0 : i64, tpu.core_type = #tpu.core_type<tc>, window_params = [{pipeline_mode = #tpu.pipeline_mode<synchronous>, transform_indices = @transform_0, window_bounds = array<i64: 1, 50>}, {pipeline_mode = #tpu.pipeline_mode<synchronous>, transform_indices = @transform_1, window_bounds = array<i64: 1, 1>}, {transform_indices = @transform_2, window_bounds = array<i64: 50, 512>}, {transform_indices = @transform_3, window_bounds = array<i64: 1, 512>}]} {
    %c0 = arith.constant 0 : index
    %c0_0 = arith.constant 0 : index
    %0 = vector.load %arg1[%c0, %c0_0] : memref<1x50xbf16, #tpu.memory_space<vmem>>, vector<1x50xbf16>
    %c0_1 = arith.constant 0 : index
    %c0_2 = arith.constant 0 : index
    %1 = vector.load %arg3[%c0_1, %c0_2] : memref<50x512xbf16, #tpu.memory_space<vmem>>, vector<50x512xbf16>
    %cst = arith.constant dense<0.000000e+00> : vector<1x512xf32>
    %2 = tpu.matmul %0, %1, %cst {dimension_numbers = #tpu.dot_dimension_numbers<[1], [0], [0], [1], [0, 0, 1, 1], [], []>} : vector<1x50xbf16>, vector<50x512xbf16>, vector<1x512xf32> -> vector<1x512xf32>
    %c0_3 = arith.constant 0 : index
    %c0_4 = arith.constant 0 : index
    %3 = vector.load %arg2[%c0_3, %c0_4] : memref<1x1xf32, #tpu.memory_space<vmem>>, vector<1x1xf32>
    %4 = vector.broadcast %3 : vector<1x1xf32> to vector<1x512xf32>
    %5 = arith.addf %2, %4 : vector<1x512xf32>
    %cst_5 = arith.constant 0.000000e+00 : f32
    %6 = vector.broadcast %cst_5 : f32 to vector<1x512xf32>
    %7 = arith.maximumf %5, %6 : vector<1x512xf32>
    %8 = arith.truncf %7 : vector<1x512xf32> to vector<1x512xbf16>
    %c0_6 = arith.constant 0 : index
    %c0_7 = arith.constant 0 : index
    %9 = vector.load %arg4[%c0_6, %c0_7] : memref<1x512xbf16, #tpu.memory_space<vmem>>, vector<1x512xbf16>
    tpu.vector_store %arg4[%c0_6, %c0_7], %8 {strides = array<i32>} : memref<1x512xbf16, #tpu.memory_space<vmem>>, vector<1x512xbf16>,
    return
  }
  func.func @transform_0(%arg0: i32) -> (i32, i32) {
    %c0_i32 = arith.constant 0 : i32
    %c0_i32_0 = arith.constant 0 : i32
    %c0_i32_1 = arith.constant 0 : i32
    return %c0_i32, %c0_i32_0 : i32, i32
  }
  func.func @transform_1(%arg0: i32) -> (i32, i32) {
    %c0_i32 = arith.constant 0 : i32
    %c0_i32_0 = arith.constant 0 : i32
    %c0_i32_1 = arith.constant 0 : i32
    return %c0_i32, %c0_i32_0 : i32, i32
  }
  func.func @transform_2(%arg0: i32) -> (i32, i32) {
    %c0_i32 = arith.constant 0 : i32
    %c0_i32_0 = arith.constant 0 : i32
    return %c0_i32, %arg0 : i32, i32
  }
  func.func @transform_3(%arg0: i32) -> (i32, i32) {
    %c0_i32 = arith.constant 0 : i32
    %c0_i32_0 = arith.constant 0 : i32
    return %c0_i32, %arg0 : i32, i32
  }
}

module attributes {stable_mosaic.version = 11 : i64} {
  func.func @_mlp_head_kernel(%arg0: i32, %arg1: memref<2x770xbf16, #tpu.memory_space<vmem>>, %arg2: memref<770x500xbf16, #tpu.memory_space<vmem>>, %arg3: memref<1x500xf32, #tpu.memory_space<vmem>>, %arg4: memref<500x100xbf16, #tpu.memory_space<vmem>>, %arg5: memref<1x100xf32, #tpu.memory_space<vmem>>, %arg6: memref<100x5xbf16, #tpu.memory_space<vmem>>, %arg7: memref<1x5xf32, #tpu.memory_space<vmem>>, %arg8: memref<2x5xf32, #tpu.memory_space<vmem>>) attributes {dimension_semantics = [#tpu.dimension_semantics<arbitrary>], iteration_bounds = array<i64: 1>, scalar_prefetch = 0 : i64, scratch_operands = 0 : i64, tpu.core_type = #tpu.core_type<tc>, window_params = [{pipeline_mode = #tpu.pipeline_mode<synchronous>, transform_indices = @transform_0, window_bounds = array<i64: 2, 770>}, {pipeline_mode = #tpu.pipeline_mode<synchronous>, transform_indices = @transform_1, window_bounds = array<i64: 770, 500>}, {pipeline_mode = #tpu.pipeline_mode<synchronous>, transform_indices = @transform_2, window_bounds = array<i64: 1, 500>}, {pipeline_mode = #tpu.pipeline_mode<synchronous>, transform_indices = @transform_3, window_bounds = array<i64: 500, 100>}, {pipeline_mode = #tpu.pipeline_mode<synchronous>, transform_indices = @transform_4, window_bounds = array<i64: 1, 100>}, {pipeline_mode = #tpu.pipeline_mode<synchronous>, transform_indices = @transform_5, window_bounds = array<i64: 100, 5>}, {pipeline_mode = #tpu.pipeline_mode<synchronous>, transform_indices = @transform_6, window_bounds = array<i64: 1, 5>}, {pipeline_mode = #tpu.pipeline_mode<synchronous>, transform_indices = @transform_7, window_bounds = array<i64: 2, 5>}]} {
    %c0 = arith.constant 0 : index
    %c0_0 = arith.constant 0 : index
    %0 = vector.load %arg1[%c0, %c0_0] : memref<2x770xbf16, #tpu.memory_space<vmem>>, vector<2x770xbf16>
    %c0_1 = arith.constant 0 : index
    %c0_2 = arith.constant 0 : index
    %1 = vector.load %arg2[%c0_1, %c0_2] : memref<770x500xbf16, #tpu.memory_space<vmem>>, vector<770x500xbf16>
    %cst = arith.constant dense<0.000000e+00> : vector<2x500xf32>
    %2 = tpu.matmul %0, %1, %cst {dimension_numbers = #tpu.dot_dimension_numbers<[1], [0], [0], [1], [0, 0, 1, 1], [], []>} : vector<2x770xbf16>, vector<770x500xbf16>, vector<2x500xf32> -> vector<2x500xf32>
    %c0_3 = arith.constant 0 : index
    %c0_4 = arith.constant 0 : index
    %3 = vector.load %arg3[%c0_3, %c0_4] : memref<1x500xf32, #tpu.memory_space<vmem>>, vector<1x500xf32>
    %4 = vector.broadcast %3 : vector<1x500xf32> to vector<2x500xf32>
    %5 = arith.addf %2, %4 : vector<2x500xf32>
    %cst_5 = arith.constant 0.000000e+00 : f32
    %6 = vector.broadcast %cst_5 : f32 to vector<2x500xf32>
    %7 = arith.maximumf %5, %6 : vector<2x500xf32>
    %8 = arith.truncf %7 : vector<2x500xf32> to vector<2x500xbf16>
    %c0_6 = arith.constant 0 : index
    %c0_7 = arith.constant 0 : index
    %9 = vector.load %arg4[%c0_6, %c0_7] : memref<500x100xbf16, #tpu.memory_space<vmem>>, vector<500x100xbf16>
    %cst_8 = arith.constant dense<0.000000e+00> : vector<2x100xf32>
    %10 = tpu.matmul %8, %9, %cst_8 {dimension_numbers = #tpu.dot_dimension_numbers<[1], [0], [0], [1], [0, 0, 1, 1], [], []>} : vector<2x500xbf16>, vector<500x100xbf16>, vector<2x100xf32> -> vector<2x100xf32>
    %c0_9 = arith.constant 0 : index
    %c0_10 = arith.constant 0 : index
    %11 = vector.load %arg5[%c0_9, %c0_10] : memref<1x100xf32, #tpu.memory_space<vmem>>, vector<1x100xf32>
    %12 = vector.broadcast %11 : vector<1x100xf32> to vector<2x100xf32>
    %13 = arith.addf %10, %12 : vector<2x100xf32>
    %cst_11 = arith.constant 0.000000e+00 : f32
    %14 = vector.broadcast %cst_11 : f32 to vector<2x100xf32>
    %15 = arith.maximumf %13, %14 : vector<2x100xf32>
    %16 = arith.truncf %15 : vector<2x100xf32> to vector<2x100xbf16>
    %c0_12 = arith.constant 0 : index
    %c0_13 = arith.constant 0 : index
    %17 = vector.load %arg6[%c0_12, %c0_13] : memref<100x5xbf16, #tpu.memory_space<vmem>>, vector<100x5xbf16>
    %cst_14 = arith.constant dense<0.000000e+00> : vector<2x5xf32>
    %18 = tpu.matmul %16, %17, %cst_14 {dimension_numbers = #tpu.dot_dimension_numbers<[1], [0], [0], [1], [0, 0, 1, 1], [], []>} : vector<2x100xbf16>, vector<100x5xbf16>, vector<2x5xf32> -> vector<2x5xf32>
    %c0_15 = arith.constant 0 : index
    %c0_16 = arith.constant 0 : index
    %19 = vector.load %arg7[%c0_15, %c0_16] : memref<1x5xf32, #tpu.memory_space<vmem>>, vector<1x5xf32>
    %20 = vector.broadcast %19 : vector<1x5xf32> to vector<2x5xf32>
    %21 = arith.addf %18, %20 : vector<2x5xf32>
    %cst_17 = arith.constant dense<0xFF800000> : vector<2xf32>
    %22 = vector.multi_reduction <maximumf>, %21, %cst_17 [1] : vector<2x5xf32> to vector<2xf32>
    %23 = vector.shape_cast %22 : vector<2xf32> to vector<2x1xf32>
    %24 = vector.broadcast %23 : vector<2x1xf32> to vector<2x5xf32>
    %25 = arith.subf %21, %24 : vector<2x5xf32>
    %26 = math.exp %25 : vector<2x5xf32>
    %cst_18 = arith.constant dense<0.000000e+00> : vector<2xf32>
    %27 = vector.multi_reduction <add>, %26, %cst_18 [1] : vector<2x5xf32> to vector<2xf32>
    %28 = vector.shape_cast %27 : vector<2xf32> to vector<2x1xf32>
    %29 = tpu.reciprocal %28 {approx = true} : vector<2x1xf32> -> vector<2x1xf32>
    %30 = vector.broadcast %29 : vector<2x1xf32> to vector<2x5xf32>
    %31 = arith.mulf %26, %30 : vector<2x5xf32>
    %c0_19 = arith.constant 0 : index
    %c0_20 = arith.constant 0 : index
    %32 = vector.load %arg8[%c0_19, %c0_20] : memref<2x5xf32, #tpu.memory_space<vmem>>, vector<2x5xf32>
    tpu.vector_store %arg8[%c0_19, %c0_20], %31 {strides = array<i32>} : memref<2x5xf32, #tpu.memory_space<vmem>>, vector<2x5xf32>,
    return
  }
  func.func @transform_0(%arg0: i32) -> (i32, i32) {
    %c0_i32 = arith.constant 0 : i32
    %c0_i32_0 = arith.constant 0 : i32
    %c0_i32_1 = arith.constant 0 : i32
    return %c0_i32, %c0_i32_0 : i32, i32
  }
  func.func @transform_1(%arg0: i32) -> (i32, i32) {
    %c0_i32 = arith.constant 0 : i32
    %c0_i32_0 = arith.constant 0 : i32
    %c0_i32_1 = arith.constant 0 : i32
    return %c0_i32, %c0_i32_0 : i32, i32
  }
  func.func @transform_2(%arg0: i32) -> (i32, i32) {
    %c0_i32 = arith.constant 0 : i32
    %c0_i32_0 = arith.constant 0 : i32
    %c0_i32_1 = arith.constant 0 : i32
    return %c0_i32, %c0_i32_0 : i32, i32
  }
  func.func @transform_3(%arg0: i32) -> (i32, i32) {
    %c0_i32 = arith.constant 0 : i32
    %c0_i32_0 = arith.constant 0 : i32
    %c0_i32_1 = arith.constant 0 : i32
    return %c0_i32, %c0_i32_0 : i32, i32
  }
  func.func @transform_4(%arg0: i32) -> (i32, i32) {
    %c0_i32 = arith.constant 0 : i32
    %c0_i32_0 = arith.constant 0 : i32
    %c0_i32_1 = arith.constant 0 : i32
    return %c0_i32, %c0_i32_0 : i32, i32
  }
  func.func @transform_5(%arg0: i32) -> (i32, i32) {
    %c0_i32 = arith.constant 0 : i32
    %c0_i32_0 = arith.constant 0 : i32
    %c0_i32_1 = arith.constant 0 : i32
    return %c0_i32, %c0_i32_0 : i32, i32
  }
  func.func @transform_6(%arg0: i32) -> (i32, i32) {
    %c0_i32 = arith.constant 0 : i32
    %c0_i32_0 = arith.constant 0 : i32
    %c0_i32_1 = arith.constant 0 : i32
    return %c0_i32, %c0_i32_0 : i32, i32
  }
  func.func @transform_7(%arg0: i32) -> (i32, i32) {
    %c0_i32 = arith.constant 0 : i32
    %c0_i32_0 = arith.constant 0 : i32
    %c0_i32_1 = arith.constant 0 : i32
    return %c0_i32, %c0_i32_0 : i32, i32
  }
}

</mosaic_0001>

<llo_original>
// kernel: actor_forward.6
$region0: #{actor_forward.6}
  #allocation0 [shape = 'u32[]', space=smem, size = 0x4, offset = 0x4, fixed_abs, tag = 'smem constant byte address 0x4 - core index']
  #allocation1 [shape = 'u32[144,128]{1,0:T(1,128)}', space=vmem, size = 0x12000, scoped, tag = 'internal scratch']
  %s0 = inlined_call_operand.vmem [shape: bf16[6,150], index: 0, kind: input, shape index: {}]
  %s1 = inlined_call_operand.vmem [shape: f32[6,1], index: 1, kind: input, shape index: {}]
  %s2 = inlined_call_operand.vmem [shape: bf16[150,3876], index: 2, kind: input, shape index: {}]
  %s3 = inlined_call_operand.vmem [shape: bf16[6,3876], index: 3, kind: output, shape index: {}]
  %s4 = sld [smem:[#allocation0]]
  $region173: #{actor_forward.6} parent=0
    _
  %s6 = ssub.s32 1, %s4
  %s7 = scalar_select 0, %s6, %s4
  $region1: #{actor_forward.6} parent=0
    #allocation2 [shape = 'u8[311296]{0}', space=vmem, size = 0x4c000, scoped, tag = 'input window, operand 2']
    #allocation3 [shape = 'u8[16384]{0}', space=vmem, size = 0x4000, scoped, tag = 'output window, operand 0']
    loop: start=0, step=1, limit=10
    $region2: #{actor_forward.6} parent=1 // loop_pre_header
      _
    $region3: #{actor_forward.6} parent=1 // loop_header
      %s9 = sphi 0, %s13
      %p10 = scmp.ge.s32.totalorder %s9, 10
      %s17 = sphi 0, %s17
      %s19 = sphi 0, %s17
      %s20 = sphi 0, %s19
      %s34 = sphi 0, %s20
      %s38 = sphi 0, %s38
      %s40 = sphi 0, %s38
      %s41 = sphi 0, %s40
      %s55 = sphi 0, %s41
      %s61 = sphi 0, %s63
      %s64 = sphi 0, %s61
      %s65 = sphi 0, %s64
      %s81 = sphi 0, %s65
      %s87 = sphi 0, %s89
      %s90 = sphi 0, %s87
      %s91 = sphi 0, %s90
      %s107 = sphi 0, %s91
    $region4: #{actor_forward.6} parent=1 // loop_header_branch
      %12 = sbr.rel (%p10) target = $region8
    $region5: #{actor_forward.6} parent=1 // loop_body
      %s14 = ssub.s32 %s9, 1
      %s15 = ssub.s32 %s9, 2
      %s16 = sadd.s32 %s9, 1
      %s18 = sadd.s32 %s17, 1
      %p21 = scmp.eq.s32.totalorder %s9, 7
      %p22 = scmp.ne.s32.totalorder %s17, %s19
      %p23 = scmp.eq.s32.totalorder %s9, 0
      %p24 = por %p22, %p23
      %p25 = scmp.ne.s32.totalorder %s17, %s19
      %p26 = scmp.eq.s32.totalorder %s14, 7
      %p27 = por %p25, %p26
      %p28 = scmp.ne.s32.totalorder %s19, %s20
      %p29 = scmp.eq.s32.totalorder %s14, 0
      %p30 = por %p28, %p29
      %p31 = scmp.ne.s32.totalorder %s19, %s20
      %p32 = scmp.eq.s32.totalorder %s15, 7
      %p33 = por %p31, %p32
      %p35 = scmp.ne.s32.totalorder %s20, %s34
      %p36 = scmp.eq.s32.totalorder %s15, 0
      %p37 = por %p35, %p36
      %s39 = sadd.s32 %s38, 1
      %p42 = scmp.eq.s32.totalorder %s9, 7
      %p43 = scmp.ne.s32.totalorder %s38, %s40
      %p44 = scmp.eq.s32.totalorder %s9, 0
      %p45 = por %p43, %p44
      %p46 = scmp.ne.s32.totalorder %s38, %s40
      %p47 = scmp.eq.s32.totalorder %s14, 7
      %p48 = por %p46, %p47
      %p49 = scmp.ne.s32.totalorder %s40, %s41
      %p50 = scmp.eq.s32.totalorder %s14, 0
      %p51 = por %p49, %p50
      %p52 = scmp.ne.s32.totalorder %s40, %s41
      %p53 = scmp.eq.s32.totalorder %s15, 7
      %p54 = por %p52, %p53
      %p56 = scmp.ne.s32.totalorder %s41, %s55
      %p57 = scmp.eq.s32.totalorder %s15, 0
      %p58 = por %p56, %p57
      %s59 = ssub.s32 %s9, %s16
      %p60 = scmp.eq.s32.totalorder %s59, 0
      %s62 = sadd.s32 %s61, 1
      %s63 = scalar_select %p60, %s61, %s62
      %p66 = pneg %p60
      %p67 = scmp.eq.s32.totalorder %s9, 7
      %p68 = por %p66, %p67
      %p69 = scmp.ne.s32.totalorder %s61, %s64
      %p70 = scmp.eq.s32.totalorder %s9, 0
      %p71 = por %p69, %p70
      %p72 = scmp.ne.s32.totalorder %s61, %s64
      %p73 = scmp.eq.s32.totalorder %s14, 7
      %p74 = por %p72, %p73
      %p75 = scmp.ne.s32.totalorder %s64, %s65
      %p76 = scmp.eq.s32.totalorder %s14, 0
      %p77 = por %p75, %p76
      %p78 = scmp.ne.s32.totalorder %s64, %s65
      %p79 = scmp.eq.s32.totalorder %s15, 7
      %p80 = por %p78, %p79
      %p82 = scmp.ne.s32.totalorder %s65, %s81
      %p83 = scmp.eq.s32.totalorder %s15, 0
      %p84 = por %p82, %p83
      %s85 = ssub.s32 %s9, %s16
      %p86 = scmp.eq.s32.totalorder %s85, 0
      %s88 = sadd.s32 %s87, 1
      %s89 = scalar_select %p86, %s87, %s88
      %p92 = pneg %p86
      %p93 = scmp.eq.s32.totalorder %s9, 7
      %p94 = por %p92, %p93
      %p95 = scmp.ne.s32.totalorder %s87, %s90
      %p96 = scmp.eq.s32.totalorder %s9, 0
      %p97 = por %p95, %p96
      %p98 = scmp.ne.s32.totalorder %s87, %s90
      %p99 = scmp.eq.s32.totalorder %s14, 7
      %p100 = por %p98, %p99
      %p101 = scmp.ne.s32.totalorder %s90, %s91
      %p102 = scmp.eq.s32.totalorder %s14, 0
      %p103 = por %p101, %p102
      %p104 = scmp.ne.s32.totalorder %s90, %s91
      %p105 = scmp.eq.s32.totalorder %s15, 7
      %p106 = por %p104, %p105
      %p108 = scmp.ne.s32.totalorder %s91, %s107
      %p109 = scmp.eq.s32.totalorder %s15, 0
      %p110 = por %p108, %p109
      %p111 = scmp.le.s32.totalorder 1, %s9
      %p112 = scmp.lt.s32.totalorder %s9, 9
      %p113 = pnand %p111, %p112
      %p114 = pneg %p113
      // Predicated region
      $region9: #{actor_forward.6} parent=5 // pred_check
        _
      $region10: #{actor_forward.6} parent=5 // pred_check_branch
        %116 = sbr.rel (%p113) target = $region12
      $region11: #{actor_forward.6} parent=5 // pred_region
        %s117 = ssub.s32 %s9, 1
        // Predicated region
        $region13: #{actor_forward.6} parent=11 // pred_check
          %p118 = pneg %p30
        $region14: #{actor_forward.6} parent=11 // pred_check_branch
          %120 = sbr.rel (%p118) target = $region16
        $region15: #{actor_forward.6} parent=11 // pred_region
          _
        $region16: #{actor_forward.6} parent=11 // pred_fallthru
          _
        // Predicated region
        $region17: #{actor_forward.6} parent=11 // pred_check
          %p121 = pneg %p51
        $region18: #{actor_forward.6} parent=11 // pred_check_branch
          %123 = sbr.rel (%p121) target = $region20
        $region19: #{actor_forward.6} parent=11 // pred_region
          _
        $region20: #{actor_forward.6} parent=11 // pred_fallthru
          _
      $region12: #{actor_forward.6} parent=5 // pred_fallthru
        _
      %p124 = scmp.lt.s32.totalorder %s9, 8
      // Predicated region
      $region21: #{actor_forward.6} parent=5 // pred_check
        %p125 = pneg %p124
      $region22: #{actor_forward.6} parent=5 // pred_check_branch
        %127 = sbr.rel (%p125) target = $region24
      $region23: #{actor_forward.6} parent=5 // pred_region
        // Predicated region
        $region25: #{actor_forward.6} parent=23 // pred_check
          %p128 = pneg %p71
        $region26: #{actor_forward.6} parent=23 // pred_check_branch
          %130 = sbr.rel (%p128) target = $region28
        $region27: #{actor_forward.6} parent=23 // pred_region
          %s131 = sand.u32 %s61, 1
          %s132 = sand.u32 %s61, 1
          %s133 = smul.addr %s132, 304
          %s134 = scalar_lea.vmem [#allocation2], %s133
          %s135 = smul.u32 4, %s9
          %s136 = ssub.s32 31, %s135
          %p137 = scmp.lt.s32.totalorder %s136, 4
          %s138 = scalar_select %p137, %s136, 4
          %s139 = smul.u32 1216, %s138
          %p140 = scmp.ne.s32.totalorder 0, %s139
          %s141 = smul.addr %s135, 4
          %s142 = scalar_lea.vmem %s2, %s141
          %s143 = smul.u32 %s138, 4
          // Predicated region
          $region29: #{actor_forward.6} parent=27 // pred_check
            %p144 = pneg %p140
          $region30: #{actor_forward.6} parent=27 // pred_check_branch
            %146 = sbr.rel (%p144) target = $region32
          $region31: #{actor_forward.6} parent=27 // pred_region
            %p147 = scmp.lt.u32.totalorder %s143, 8
            %p148 = pneg %p147
            // Predicated region
            $region33: #{actor_forward.6} parent=31 // pred_check
              _
            $region34: #{actor_forward.6} parent=31 // pred_check_branch
              %150 = sbr.rel (%p147) target = $region36
            $region35: #{actor_forward.6} parent=31 // pred_region
              %s202 = sand.u32 %s143, 7
              %p203 = scmp.eq.s32.totalorder %s202, 0
              // Predicated region
              $region48: #{actor_forward.6} parent=35 // pred_check
                %p204 = pneg %p203
              $region49: #{actor_forward.6} parent=35 // pred_check_branch
                %206 = sbr.rel (%p204) target = $region51
              $region50: #{actor_forward.6} parent=35 // pred_region
                %s207 = sshrl.u32 %s143, 3
                %s208 = sshrl.u32 %s207, 2
                // While loop
                $region52: #{actor_forward.6} parent=50 // loop_pre_header
                  _
                $region53: #{actor_forward.6} parent=50 // loop_header
                  %s212 = sphi 0, %s214
                  %p213 = scmp.ge.s32.totalorder %s212, %s208
                  %s217 = sphi 0, %s374
                  %s218 = sphi %s142, %s377
                  %s219 = sphi %s134, %s378
                $region54: #{actor_forward.6} parent=50 // loop_header_branch
                  %216 = sbr.rel (%p213) target = $region58
                $region55: #{actor_forward.6} parent=50 // loop_body
                  %v220 = vld [vmem:[%s218] sm:$0xff]
                  %221 = vst [vmem:[%s219] sm:$0xff] %v220
                  %v222 = vld [vmem:[%s218 + $0x8] sm:$0xff]
                  %223 = vst [vmem:[%s219 + $0x8] sm:$0xff] %v222
                  %v224 = vld [vmem:[%s218 + $0x10] sm:$0xff]
                  %225 = vst [vmem:[%s219 + $0x10] sm:$0xff] %v224
                  %v226 = vld [vmem:[%s218 + $0x18] sm:$0xff]
                  %227 = vst [vmem:[%s219 + $0x18] sm:$0xff] %v226
                  %v228 = vld [vmem:[%s218 + $0x7c] sm:$0xff]
                  %229 = vst [vmem:[%s219 + $0x10] sm:$0xff] %v228
                  %v230 = vld [vmem:[%s218 + $0x84] sm:$0xff]
                  %231 = vst [vmem:[%s219 + $0x18] sm:$0xff] %v230
                  %v232 = vld [vmem:[%s218 + $0x8c] sm:$0xff]
                  %233 = vst [vmem:[%s219 + $0x20] sm:$0xff] %v232
                  %v234 = vld [vmem:[%s218 + $0x94] sm:$0xff]
                  %235 = vst [vmem:[%s219 + $0x28] sm:$0xff] %v234
                  %v236 = vld [vmem:[%s218 + $0xf8] sm:$0xff]
                  %237 = vst [vmem:[%s219 + $0x20] sm:$0xff] %v236
                  %v238 = vld [vmem:[%s218 + $0x100] sm:$0xff]
                  %239 = vst [vmem:[%s219 + $0x28] sm:$0xff] %v238
                  %v240 = vld [vmem:[%s218 + $0x108] sm:$0xff]
                  %241 = vst [vmem:[%s219 + $0x30] sm:$0xff] %v240
                  %v242 = vld [vmem:[%s218 + $0x110] sm:$0xff]
                  %243 = vst [vmem:[%s219 + $0x38] sm:$0xff] %v242
                  %v244 = vld [vmem:[%s218 + $0x174] sm:$0xff]
                  %245 = vst [vmem:[%s219 + $0x30] sm:$0xff] %v244
                  %v246 = vld [vmem:[%s218 + $0x17c] sm:$0xff]
                  %247 = vst [vmem:[%s219 + $0x38] sm:$0xff] %v246
                  %v248 = vld [vmem:[%s218 + $0x184] sm:$0xff]
                  %249 = vst [vmem:[%s219 + $0x40] sm:$0xff] %v248
                  %v250 = vld [vmem:[%s218 + $0x18c] sm:$0xff]
                  %251 = vst [vmem:[%s219 + $0x48] sm:$0xff] %v250
                  %v252 = vld [vmem:[%s218 + $0x1f0] sm:$0xff]
                  %253 = vst [vmem:[%s219 + $0x40] sm:$0xff] %v252
                  %v254 = vld [vmem:[%s218 + $0x1f8] sm:$0xff]
                  %255 = vst [vmem:[%s219 + $0x48] sm:$0xff] %v254
                  %v256 = vld [vmem:[%s218 + $0x200] sm:$0xff]
                  %257 = vst [vmem:[%s219 + $0x50] sm:$0xff] %v256
                  %v258 = vld [vmem:[%s218 + $0x208] sm:$0xff]
                  %259 = vst [vmem:[%s219 + $0x58] sm:$0xff] %v258
                  %v260 = vld [vmem:[%s218 + $0x26c] sm:$0xff]
                  %261 = vst [vmem:[%s219 + $0x50] sm:$0xff] %v260
                  %v262 = vld [vmem:[%s218 + $0x274] sm:$0xff]
                  %263 = vst [vmem:[%s219 + $0x58] sm:$0xff] %v262
                  %v264 = vld [vmem:[%s218 + $0x27c] sm:$0xff]
                  %265 = vst [vmem:[%s219 + $0x60] sm:$0xff] %v264
                  %v266 = vld [vmem:[%s218 + $0x284] sm:$0xff]
                  %267 = vst [vmem:[%s219 + $0x68] sm:$0xff] %v266
                  %v268 = vld [vmem:[%s218 + $0x2e8] sm:$0xff]
                  %269 = vst [vmem:[%s219 + $0x60] sm:$0xff] %v268
                  %v270 = vld [vmem:[%s218 + $0x2f0] sm:$0xff]
                  %271 = vst [vmem:[%s219 + $0x68] sm:$0xff] %v270
                  %v272 = vld [vmem:[%s218 + $0x2f8] sm:$0xff]
                  %273 = vst [vmem:[%s219 + $0x70] sm:$0xff] %v272
                  %v274 = vld [vmem:[%s218 + $0x300] sm:$0xff]
                  %275 = vst [vmem:[%s219 + $0x78] sm:$0xff] %v274
                  %v276 = vld [vmem:[%s218 + $0x364] sm:$0xff]
                  %277 = vst [vmem:[%s219 + $0x70] sm:$0xff] %v276
                  %v278 = vld [vmem:[%s218 + $0x36c] sm:$0xff]
                  %279 = vst [vmem:[%s219 + $0x78] sm:$0xff] %v278
                  %v280 = vld [vmem:[%s218 + $0x374] sm:$0xff]
                  %281 = vst [vmem:[%s219 + $0x80] sm:$0xff] %v280
                  %v282 = vld [vmem:[%s218 + $0x37c] sm:$0xff]
                  %283 = vst [vmem:[%s219 + $0x88] sm:$0xff] %v282
                  %v284 = vld [vmem:[%s218 + $0x3e0] sm:$0xff]
                  %285 = vst [vmem:[%s219 + $0x80] sm:$0xff] %v284
                  %v286 = vld [vmem:[%s218 + $0x3e8] sm:$0xff]
                  %287 = vst [vmem:[%s219 + $0x88] sm:$0xff] %v286
                  %v288 = vld [vmem:[%s218 + $0x3f0] sm:$0xff]
                  %289 = vst [vmem:[%s219 + $0x90] sm:$0xff] %v288
                  %v290 = vld [vmem:[%s218 + $0x3f8] sm:$0xff]
                  %291 = vst [vmem:[%s219 + $0x98] sm:$0xff] %v290
                  %v292 = vld [vmem:[%s218 + $0x45c] sm:$0xff]
                  %293 = vst [vmem:[%s219 + $0x90] sm:$0xff] %v292
                  %v294 = vld [vmem:[%s218 + $0x464] sm:$0xff]
                  %295 = vst [vmem:[%s219 + $0x98] sm:$0xff] %v294
                  %v296 = vld [vmem:[%s218 + $0x46c] sm:$0xff]
                  %297 = vst [vmem:[%s219 + $0xa0] sm:$0xff] %v296
                  %v298 = vld [vmem:[%s218 + $0x474] sm:$0xff]
                  %299 = vst [vmem:[%s219 + $0xa8] sm:$0xff] %v298
                  %v300 = vld [vmem:[%s218 + $0x4d8] sm:$0xff]
                  %301 = vst [vmem:[%s219 + $0xa0] sm:$0xff] %v300
                  %v302 = vld [vmem:[%s218 + $0x4e0] sm:$0xff]
                  %303 = vst [vmem:[%s219 + $0xa8] sm:$0xff] %v302
                  %v304 = vld [vmem:[%s218 + $0x4e8] sm:$0xff]
                  %305 = vst [vmem:[%s219 + $0xb0] sm:$0xff] %v304
                  %v306 = vld [vmem:[%s218 + $0x4f0] sm:$0xff]
                  %307 = vst [vmem:[%s219 + $0xb8] sm:$0xff] %v306
                  %v308 = vld [vmem:[%s218 + $0x554] sm:$0xff]
                  %309 = vst [vmem:[%s219 + $0xb0] sm:$0xff] %v308
                  %v310 = vld [vmem:[%s218 + $0x55c] sm:$0xff]
                  %311 = vst [vmem:[%s219 + $0xb8] sm:$0xff] %v310
                  %v312 = vld [vmem:[%s218 + $0x564] sm:$0xff]
                  %313 = vst [vmem:[%s219 + $0xc0] sm:$0xff] %v312
                  %v314 = vld [vmem:[%s218 + $0x56c] sm:$0xff]
                  %315 = vst [vmem:[%s219 + $0xc8] sm:$0xff] %v314
                  %v316 = vld [vmem:[%s218 + $0x5d0] sm:$0xff]
                  %317 = vst [vmem:[%s219 + $0xc0] sm:$0xff] %v316
                  %v318 = vld [vmem:[%s218 + $0x5d8] sm:$0xff]
                  %319 = vst [vmem:[%s219 + $0xc8] sm:$0xff] %v318
                  %v320 = vld [vmem:[%s218 + $0x5e0] sm:$0xff]
                  %321 = vst [vmem:[%s219 + $0xd0] sm:$0xff] %v320
                  %v322 = vld [vmem:[%s218 + $0x5e8] sm:$0xff]
                  %323 = vst [vmem:[%s219 + $0xd8] sm:$0xff] %v322
                  %v324 = vld [vmem:[%s218 + $0x64c] sm:$0xff]
                  %325 = vst [vmem:[%s219 + $0xd0] sm:$0xff] %v324
                  %v326 = vld [vmem:[%s218 + $0x654] sm:$0xff]
                  %327 = vst [vmem:[%s219 + $0xd8] sm:$0xff] %v326
                  %v328 = vld [vmem:[%s218 + $0x65c] sm:$0xff]
                  %329 = vst [vmem:[%s219 + $0xe0] sm:$0xff] %v328
                  %v330 = vld [vmem:[%s218 + $0x664] sm:$0xff]
                  %331 = vst [vmem:[%s219 + $0xe8] sm:$0xff] %v330
                  %v332 = vld [vmem:[%s218 + $0x6c8] sm:$0xff]
                  %333 = vst [vmem:[%s219 + $0xe0] sm:$0xff] %v332
                  %v334 = vld [vmem:[%s218 + $0x6d0] sm:$0xff]
                  %335 = vst [vmem:[%s219 + $0xe8] sm:$0xff] %v334
                  %v336 = vld [vmem:[%s218 + $0x6d8] sm:$0xff]
                  %337 = vst [vmem:[%s219 + $0xf0] sm:$0xff] %v336
                  %v338 = vld [vmem:[%s218 + $0x6e0] sm:$0xff]
                  %339 = vst [vmem:[%s219 + $0xf8] sm:$0xff] %v338
                  %v340 = vld [vmem:[%s218 + $0x744] sm:$0xff]
                  %341 = vst [vmem:[%s219 + $0xf0] sm:$0xff] %v340
                  %v342 = vld [vmem:[%s218 + $0x74c] sm:$0xff]
                  %343 = vst [vmem:[%s219 + $0xf8] sm:$0xff] %v342
                  %v344 = vld [vmem:[%s218 + $0x754] sm:$0xff]
                  %345 = vst [vmem:[%s219 + $0x100] sm:$0xff] %v344
                  %v346 = vld [vmem:[%s218 + $0x75c] sm:$0xff]
                  %347 = vst [vmem:[%s219 + $0x108] sm:$0xff] %v346
                  %v348 = vld [vmem:[%s218 + $0x7c0] sm:$0xff]
                  %349 = vst [vmem:[%s219 + $0x100] sm:$0xff] %v348
                  %v350 = vld [vmem:[%s218 + $0x7c8] sm:$0xff]
                  %351 = vst [vmem:[%s219 + $0x108] sm:$0xff] %v350
                  %v352 = vld [vmem:[%s218 + $0x7d0] sm:$0xff]
                  %353 = vst [vmem:[%s219 + $0x110] sm:$0xff] %v352
                  %v354 = vld [vmem:[%s218 + $0x7d8] sm:$0xff]
                  %355 = vst [vmem:[%s219 + $0x118] sm:$0xff] %v354
                  %v356 = vld [vmem:[%s218 + $0x83c] sm:$0xff]
                  %357 = vst [vmem:[%s219 + $0x110] sm:$0xff] %v356
                  %v358 = vld [vmem:[%s218 + $0x844] sm:$0xff]
                  %359 = vst [vmem:[%s219 + $0x118] sm:$0xff] %v358
                  %v360 = vld [vmem:[%s218 + $0x84c] sm:$0xff]
                  %361 = vst [vmem:[%s219 + $0x120] sm:$0xff] %v360
                  %v362 = vld [vmem:[%s218 + $0x854] sm:$0xff]
                  %363 = vst [vmem:[%s219 + $0x128] sm:$0xff] %v362
                  %v364 = vld [vmem:[%s218 + $0x8b8] sm:$0xff]
                  %365 = vst [vmem:[%s219 + $0x120] sm:$0xff] %v364
                  %v366 = vld [vmem:[%s218 + $0x8c0] sm:$0xff]
                  %367 = vst [vmem:[%s219 + $0x128] sm:$0xff] %v366
                  %v368 = vld [vmem:[%s218 + $0x8c8] sm:$0xff]
                  %369 = vst [vmem:[%s219 + $0x130] sm:$0xff] %v368
                  %v370 = vld [vmem:[%s218 + $0x8d0] sm:$0xff]
                  %371 = vst [vmem:[%s219 + $0x138] sm:$0xff] %v370
                  %s372 = sadd.s32 1, %s217
                  %p373 = scmp.ge.s32.totalorder %s372, %s208
                  %s374 = scalar_select %p373, 0, %s372
                  %s375 = smul.u32 %s374, 32
                  %s376 = smul.u32 %s374, 32
                  %s377 = scalar_lea.vmem %s142, %s375
                  %s378 = scalar_lea.vmem %s134, %s376 [#allocation2]
                $region56: #{actor_forward.6} parent=50 // loop_footer
                  %s214 = sadd.s32 %s212, 1
                $region57: #{actor_forward.6} parent=50 // loop_footer_branch
                  %211 = sbr.rel target = $region53
                $region58: #{actor_forward.6} parent=50 // loop_exit
                  _
                %s379 = sshrl.u32 %s207, 2
                %s380 = sand.u32 %s207, 3
                %s381 = smul.u32 %s379, 4
                %s382 = smul.u32 128, %s381
                %s383 = sshra.s32 %s382, 4
                %s384 = scalar_lea.vmem %s142, %s383
                %s385 = smul.u32 128, %s381
                %s386 = sshra.s32 %s385, 4
                %s387 = scalar_lea.vmem %s134, %s386 [#allocation2]
                // While loop
                $region59: #{actor_forward.6} parent=50 // loop_pre_header
                  _
                $region60: #{actor_forward.6} parent=50 // loop_header
                  %s391 = sphi 0, %s393
                  %p392 = scmp.ge.s32.totalorder %s391, %s380
                  %s396 = sphi 0, %s439
                  %s397 = sphi %s384, %s442
                  %s398 = sphi %s387, %s443
                $region61: #{actor_forward.6} parent=50 // loop_header_branch
                  %395 = sbr.rel (%p392) target = $region65
                $region62: #{actor_forward.6} parent=50 // loop_body
                  %v399 = vld [vmem:[%s397] sm:$0xff]
                  %400 = vst [vmem:[%s398] sm:$0xff] %v399
                  %v401 = vld [vmem:[%s397 + $0x7c] sm:$0xff]
                  %402 = vst [vmem:[%s398 + $0x10] sm:$0xff] %v401
                  %v403 = vld [vmem:[%s397 + $0xf8] sm:$0xff]
                  %404 = vst [vmem:[%s398 + $0x20] sm:$0xff] %v403
                  %v405 = vld [vmem:[%s397 + $0x174] sm:$0xff]
                  %406 = vst [vmem:[%s398 + $0x30] sm:$0xff] %v405
                  %v407 = vld [vmem:[%s397 + $0x1f0] sm:$0xff]
                  %408 = vst [vmem:[%s398 + $0x40] sm:$0xff] %v407
                  %v409 = vld [vmem:[%s397 + $0x26c] sm:$0xff]
                  %410 = vst [vmem:[%s398 + $0x50] sm:$0xff] %v409
                  %v411 = vld [vmem:[%s397 + $0x2e8] sm:$0xff]
                  %412 = vst [vmem:[%s398 + $0x60] sm:$0xff] %v411
                  %v413 = vld [vmem:[%s397 + $0x364] sm:$0xff]
                  %414 = vst [vmem:[%s398 + $0x70] sm:$0xff] %v413
                  %v415 = vld [vmem:[%s397 + $0x3e0] sm:$0xff]
                  %416 = vst [vmem:[%s398 + $0x80] sm:$0xff] %v415
                  %v417 = vld [vmem:[%s397 + $0x45c] sm:$0xff]
                  %418 = vst [vmem:[%s398 + $0x90] sm:$0xff] %v417
                  %v419 = vld [vmem:[%s397 + $0x4d8] sm:$0xff]
                  %420 = vst [vmem:[%s398 + $0xa0] sm:$0xff] %v419
                  %v421 = vld [vmem:[%s397 + $0x554] sm:$0xff]
                  %422 = vst [vmem:[%s398 + $0xb0] sm:$0xff] %v421
                  %v423 = vld [vmem:[%s397 + $0x5d0] sm:$0xff]
                  %424 = vst [vmem:[%s398 + $0xc0] sm:$0xff] %v423
                  %v425 = vld [vmem:[%s397 + $0x64c] sm:$0xff]
                  %426 = vst [vmem:[%s398 + $0xd0] sm:$0xff] %v425
                  %v427 = vld [vmem:[%s397 + $0x6c8] sm:$0xff]
                  %428 = vst [vmem:[%s398 + $0xe0] sm:$0xff] %v427
                  %v429 = vld [vmem:[%s397 + $0x744] sm:$0xff]
                  %430 = vst [vmem:[%s398 + $0xf0] sm:$0xff] %v429
                  %v431 = vld [vmem:[%s397 + $0x7c0] sm:$0xff]
                  %432 = vst [vmem:[%s398 + $0x100] sm:$0xff] %v431
                  %v433 = vld [vmem:[%s397 + $0x83c] sm:$0xff]
                  %434 = vst [vmem:[%s398 + $0x110] sm:$0xff] %v433
                  %v435 = vld [vmem:[%s397 + $0x8b8] sm:$0xff]
                  %436 = vst [vmem:[%s398 + $0x120] sm:$0xff] %v435
                  %s437 = sadd.s32 1, %s396
                  %p438 = scmp.ge.s32.totalorder %s437, %s380
                  %s439 = scalar_select %p438, 0, %s437
                  %s440 = smul.u32 %s439, 8
                  %s441 = smul.u32 %s439, 8
                  %s442 = scalar_lea.vmem %s384, %s440
                  %s443 = scalar_lea.vmem %s387, %s441 [#allocation2]
                $region63: #{actor_forward.6} parent=50 // loop_footer
                  %s393 = sadd.s32 %s391, 1
                $region64: #{actor_forward.6} parent=50 // loop_footer_branch
                  %390 = sbr.rel target = $region60
                $region65: #{actor_forward.6} parent=50 // loop_exit
                  _
              $region51: #{actor_forward.6} parent=35 // pred_fallthru
                _
              %p444 = pneg %p203
              // Predicated region
              $region66: #{actor_forward.6} parent=35 // pred_check
                _
              $region67: #{actor_forward.6} parent=35 // pred_check_branch
                %446 = sbr.rel (%p203) target = $region69
              $region68: #{actor_forward.6} parent=35 // pred_region
                %s447 = sand.u32 %s143, 7
                %s448 = ssub.s32 %s143, %s447
                %s449 = scalar_lea.vmem %s142, %s448
                %s450 = ssub.s32 %s143, %s447
                %s451 = scalar_lea.vmem %s134, %s450 [#allocation2]
                %s452 = sshrl.u32 %s143, 3
                %s453 = sshrl.u32 %s452, 2
                // While loop
                $region70: #{actor_forward.6} parent=68 // loop_pre_header
                  _
                $region71: #{actor_forward.6} parent=68 // loop_header
                  %s457 = sphi 0, %s459
                  %p458 = scmp.ge.s32.totalorder %s457, %s453
                  %s462 = sphi 0, %s619
                  %s463 = sphi %s142, %s622
                  %s464 = sphi %s134, %s623
                $region72: #{actor_forward.6} parent=68 // loop_header_branch
                  %461 = sbr.rel (%p458) target = $region76
                $region73: #{actor_forward.6} parent=68 // loop_body
                  %v465 = vld [vmem:[%s463] sm:$0xff]
                  %466 = vst [vmem:[%s464] sm:$0xff] %v465
                  %v467 = vld [vmem:[%s463 + $0x8] sm:$0xff]
                  %468 = vst [vmem:[%s464 + $0x8] sm:$0xff] %v467
                  %v469 = vld [vmem:[%s463 + $0x10] sm:$0xff]
                  %470 = vst [vmem:[%s464 + $0x10] sm:$0xff] %v469
                  %v471 = vld [vmem:[%s463 + $0x18] sm:$0xff]
                  %472 = vst [vmem:[%s464 + $0x18] sm:$0xff] %v471
                  %v473 = vld [vmem:[%s463 + $0x7c] sm:$0xff]
                  %474 = vst [vmem:[%s464 + $0x10] sm:$0xff] %v473
                  %v475 = vld [vmem:[%s463 + $0x84] sm:$0xff]
                  %476 = vst [vmem:[%s464 + $0x18] sm:$0xff] %v475
                  %v477 = vld [vmem:[%s463 + $0x8c] sm:$0xff]
                  %478 = vst [vmem:[%s464 + $0x20] sm:$0xff] %v477
                  %v479 = vld [vmem:[%s463 + $0x94] sm:$0xff]
                  %480 = vst [vmem:[%s464 + $0x28] sm:$0xff] %v479
                  %v481 = vld [vmem:[%s463 + $0xf8] sm:$0xff]
                  %482 = vst [vmem:[%s464 + $0x20] sm:$0xff] %v481
                  %v483 = vld [vmem:[%s463 + $0x100] sm:$0xff]
                  %484 = vst [vmem:[%s464 + $0x28] sm:$0xff] %v483
                  %v485 = vld [vmem:[%s463 + $0x108] sm:$0xff]
                  %486 = vst [vmem:[%s464 + $0x30] sm:$0xff] %v485
                  %v487 = vld [vmem:[%s463 + $0x110] sm:$0xff]
                  %488 = vst [vmem:[%s464 + $0x38] sm:$0xff] %v487
                  %v489 = vld [vmem:[%s463 + $0x174] sm:$0xff]
                  %490 = vst [vmem:[%s464 + $0x30] sm:$0xff] %v489
                  %v491 = vld [vmem:[%s463 + $0x17c] sm:$0xff]
                  %492 = vst [vmem:[%s464 + $0x38] sm:$0xff] %v491
                  %v493 = vld [vmem:[%s463 + $0x184] sm:$0xff]
                  %494 = vst [vmem:[%s464 + $0x40] sm:$0xff] %v493
                  %v495 = vld [vmem:[%s463 + $0x18c] sm:$0xff]
                  %496 = vst [vmem:[%s464 + $0x48] sm:$0xff] %v495
                  %v497 = vld [vmem:[%s463 + $0x1f0] sm:$0xff]
                  %498 = vst [vmem:[%s464 + $0x40] sm:$0xff] %v497
                  %v499 = vld [vmem:[%s463 + $0x1f8] sm:$0xff]
                  %500 = vst [vmem:[%s464 + $0x48] sm:$0xff] %v499
                  %v501 = vld [vmem:[%s463 + $0x200] sm:$0xff]
                  %502 = vst [vmem:[%s464 + $0x50] sm:$0xff] %v501
                  %v503 = vld [vmem:[%s463 + $0x208] sm:$0xff]
                  %504 = vst [vmem:[%s464 + $0x58] sm:$0xff] %v503
                  %v505 = vld [vmem:[%s463 + $0x26c] sm:$0xff]
                  %506 = vst [vmem:[%s464 + $0x50] sm:$0xff] %v505
                  %v507 = vld [vmem:[%s463 + $0x274] sm:$0xff]
                  %508 = vst [vmem:[%s464 + $0x58] sm:$0xff] %v507
                  %v509 = vld [vmem:[%s463 + $0x27c] sm:$0xff]
                  %510 = vst [vmem:[%s464 + $0x60] sm:$0xff] %v509
                  %v511 = vld [vmem:[%s463 + $0x284] sm:$0xff]
                  %512 = vst [vmem:[%s464 + $0x68] sm:$0xff] %v511
                  %v513 = vld [vmem:[%s463 + $0x2e8] sm:$0xff]
                  %514 = vst [vmem:[%s464 + $0x60] sm:$0xff] %v513
                  %v515 = vld [vmem:[%s463 + $0x2f0] sm:$0xff]
                  %516 = vst [vmem:[%s464 + $0x68] sm:$0xff] %v515
                  %v517 = vld [vmem:[%s463 + $0x2f8] sm:$0xff]
                  %518 = vst [vmem:[%s464 + $0x70] sm:$0xff] %v517
                  %v519 = vld [vmem:[%s463 + $0x300] sm:$0xff]
                  %520 = vst [vmem:[%s464 + $0x78] sm:$0xff] %v519
                  %v521 = vld [vmem:[%s463 + $0x364] sm:$0xff]
                  %522 = vst [vmem:[%s464 + $0x70] sm:$0xff] %v521
                  %v523 = vld [vmem:[%s463 + $0x36c] sm:$0xff]
                  %524 = vst [vmem:[%s464 + $0x78] sm:$0xff] %v523
                  %v525 = vld [vmem:[%s463 + $0x374] sm:$0xff]
                  %526 = vst [vmem:[%s464 + $0x80] sm:$0xff] %v525
                  %v527 = vld [vmem:[%s463 + $0x37c] sm:$0xff]
                  %528 = vst [vmem:[%s464 + $0x88] sm:$0xff] %v527
                  %v529 = vld [vmem:[%s463 + $0x3e0] sm:$0xff]
                  %530 = vst [vmem:[%s464 + $0x80] sm:$0xff] %v529
                  %v531 = vld [vmem:[%s463 + $0x3e8] sm:$0xff]
                  %532 = vst [vmem:[%s464 + $0x88] sm:$0xff] %v531
                  %v533 = vld [vmem:[%s463 + $0x3f0] sm:$0xff]
                  %534 = vst [vmem:[%s464 + $0x90] sm:$0xff] %v533
                  %v535 = vld [vmem:[%s463 + $0x3f8] sm:$0xff]
                  %536 = vst [vmem:[%s464 + $0x98] sm:$0xff] %v535
                  %v537 = vld [vmem:[%s463 + $0x45c] sm:$0xff]
                  %538 = vst [vmem:[%s464 + $0x90] sm:$0xff] %v537
                  %v539 = vld [vmem:[%s463 + $0x464] sm:$0xff]
                  %540 = vst [vmem:[%s464 + $0x98] sm:$0xff] %v539
                  %v541 = vld [vmem:[%s463 + $0x46c] sm:$0xff]
                  %542 = vst [vmem:[%s464 + $0xa0] sm:$0xff] %v541
                  %v543 = vld [vmem:[%s463 + $0x474] sm:$0xff]
                  %544 = vst [vmem:[%s464 + $0xa8] sm:$0xff] %v543
                  %v545 = vld [vmem:[%s463 + $0x4d8] sm:$0xff]
                  %546 = vst [vmem:[%s464 + $0xa0] sm:$0xff] %v545
                  %v547 = vld [vmem:[%s463 + $0x4e0] sm:$0xff]
                  %548 = vst [vmem:[%s464 + $0xa8] sm:$0xff] %v547
                  %v549 = vld [vmem:[%s463 + $0x4e8] sm:$0xff]
                  %550 = vst [vmem:[%s464 + $0xb0] sm:$0xff] %v549
                  %v551 = vld [vmem:[%s463 + $0x4f0] sm:$0xff]
                  %552 = vst [vmem:[%s464 + $0xb8] sm:$0xff] %v551
                  %v553 = vld [vmem:[%s463 + $0x554] sm:$0xff]
                  %554 = vst [vmem:[%s464 + $0xb0] sm:$0xff] %v553
                  %v555 = vld [vmem:[%s463 + $0x55c] sm:$0xff]
                  %556 = vst [vmem:[%s464 + $0xb8] sm:$0xff] %v555
                  %v557 = vld [vmem:[%s463 + $0x564] sm:$0xff]
                  %558 = vst [vmem:[%s464 + $0xc0] sm:$0xff] %v557
                  %v559 = vld [vmem:[%s463 + $0x56c] sm:$0xff]
                  %560 = vst [vmem:[%s464 + $0xc8] sm:$0xff] %v559
                  %v561 = vld [vmem:[%s463 + $0x5d0] sm:$0xff]
                  %562 = vst [vmem:[%s464 + $0xc0] sm:$0xff] %v561
                  %v563 = vld [vmem:[%s463 + $0x5d8] sm:$0xff]
                  %564 = vst [vmem:[%s464 + $0xc8] sm:$0xff] %v563
                  %v565 = vld [vmem:[%s463 + $0x5e0] sm:$0xff]
                  %566 = vst [vmem:[%s464 + $0xd0] sm:$0xff] %v565
                  %v567 = vld [vmem:[%s463 + $0x5e8] sm:$0xff]
                  %568 = vst [vmem:[%s464 + $0xd8] sm:$0xff] %v567
                  %v569 = vld [vmem:[%s463 + $0x64c] sm:$0xff]
                  %570 = vst [vmem:[%s464 + $0xd0] sm:$0xff] %v569
                  %v571 = vld [vmem:[%s463 + $0x654] sm:$0xff]
                  %572 = vst [vmem:[%s464 + $0xd8] sm:$0xff] %v571
                  %v573 = vld [vmem:[%s463 + $0x65c] sm:$0xff]
                  %574 = vst [vmem:[%s464 + $0xe0] sm:$0xff] %v573
                  %v575 = vld [vmem:[%s463 + $0x664] sm:$0xff]
                  %576 = vst [vmem:[%s464 + $0xe8] sm:$0xff] %v575
                  %v577 = vld [vmem:[%s463 + $0x6c8] sm:$0xff]
                  %578 = vst [vmem:[%s464 + $0xe0] sm:$0xff] %v577
                  %v579 = vld [vmem:[%s463 + $0x6d0] sm:$0xff]
                  %580 = vst [vmem:[%s464 + $0xe8] sm:$0xff] %v579
                  %v581 = vld [vmem:[%s463 + $0x6d8] sm:$0xff]
                  %582 = vst [vmem:[%s464 + $0xf0] sm:$0xff] %v581
                  %v583 = vld [vmem:[%s463 + $0x6e0] sm:$0xff]
                  %584 = vst [vmem:[%s464 + $0xf8] sm:$0xff] %v583
                  %v585 = vld [vmem:[%s463 + $0x744] sm:$0xff]
                  %586 = vst [vmem:[%s464 + $0xf0] sm:$0xff] %v585
                  %v587 = vld [vmem:[%s463 + $0x74c] sm:$0xff]
                  %588 = vst [vmem:[%s464 + $0xf8] sm:$0xff] %v587
                  %v589 = vld [vmem:[%s463 + $0x754] sm:$0xff]
                  %590 = vst [vmem:[%s464 + $0x100] sm:$0xff] %v589
                  %v591 = vld [vmem:[%s463 + $0x75c] sm:$0xff]
                  %592 = vst [vmem:[%s464 + $0x108] sm:$0xff] %v591
                  %v593 = vld [vmem:[%s463 + $0x7c0] sm:$0xff]
                  %594 = vst [vmem:[%s464 + $0x100] sm:$0xff] %v593
                  %v595 = vld [vmem:[%s463 + $0x7c8] sm:$0xff]
                  %596 = vst [vmem:[%s464 + $0x108] sm:$0xff] %v595
                  %v597 = vld [vmem:[%s463 + $0x7d0] sm:$0xff]
                  %598 = vst [vmem:[%s464 + $0x110] sm:$0xff] %v597
                  %v599 = vld [vmem:[%s463 + $0x7d8] sm:$0xff]
                  %600 = vst [vmem:[%s464 + $0x118] sm:$0xff] %v599
                  %v601 = vld [vmem:[%s463 + $0x83c] sm:$0xff]
                  %602 = vst [vmem:[%s464 + $0x110] sm:$0xff] %v601
                  %v603 = vld [vmem:[%s463 + $0x844] sm:$0xff]
                  %604 = vst [vmem:[%s464 + $0x118] sm:$0xff] %v603
                  %v605 = vld [vmem:[%s463 + $0x84c] sm:$0xff]
                  %606 = vst [vmem:[%s464 + $0x120] sm:$0xff] %v605
                  %v607 = vld [vmem:[%s463 + $0x854] sm:$0xff]
                  %608 = vst [vmem:[%s464 + $0x128] sm:$0xff] %v607
                  %v609 = vld [vmem:[%s463 + $0x8b8] sm:$0xff]
                  %610 = vst [vmem:[%s464 + $0x120] sm:$0xff] %v609
                  %v611 = vld [vmem:[%s463 + $0x8c0] sm:$0xff]
                  %612 = vst [vmem:[%s464 + $0x128] sm:$0xff] %v611
                  %v613 = vld [vmem:[%s463 + $0x8c8] sm:$0xff]
                  %614 = vst [vmem:[%s464 + $0x130] sm:$0xff] %v613
                  %v615 = vld [vmem:[%s463 + $0x8d0] sm:$0xff]
                  %616 = vst [vmem:[%s464 + $0x138] sm:$0xff] %v615
                  %s617 = sadd.s32 1, %s462
                  %p618 = scmp.ge.s32.totalorder %s617, %s453
                  %s619 = scalar_select %p618, 0, %s617
                  %s620 = smul.u32 %s619, 32
                  %s621 = smul.u32 %s619, 32
                  %s622 = scalar_lea.vmem %s142, %s620
                  %s623 = scalar_lea.vmem %s134, %s621 [#allocation2]
                $region74: #{actor_forward.6} parent=68 // loop_footer
                  %s459 = sadd.s32 %s457, 1
                $region75: #{actor_forward.6} parent=68 // loop_footer_branch
                  %456 = sbr.rel target = $region71
                $region76: #{actor_forward.6} parent=68 // loop_exit
                  _
                %s624 = sshrl.u32 %s452, 2
                %s625 = sand.u32 %s452, 3
                %s626 = smul.u32 %s624, 4
                %s627 = smul.u32 128, %s626
                %s628 = sshra.s32 %s627, 4
                %s629 = scalar_lea.vmem %s142, %s628
                %s630 = smul.u32 128, %s626
                %s631 = sshra.s32 %s630, 4
                %s632 = scalar_lea.vmem %s134, %s631 [#allocation2]
                // While loop
                $region77: #{actor_forward.6} parent=68 // loop_pre_header
                  _
                $region78: #{actor_forward.6} parent=68 // loop_header
                  %s636 = sphi 0, %s638
                  %p637 = scmp.ge.s32.totalorder %s636, %s625
                  %s641 = sphi 0, %s684
                  %s642 = sphi %s629, %s687
                  %s643 = sphi %s632, %s688
                $region79: #{actor_forward.6} parent=68 // loop_header_branch
                  %640 = sbr.rel (%p637) target = $region83
                $region80: #{actor_forward.6} parent=68 // loop_body
                  %v644 = vld [vmem:[%s642] sm:$0xff]
                  %645 = vst [vmem:[%s643] sm:$0xff] %v644
                  %v646 = vld [vmem:[%s642 + $0x7c] sm:$0xff]
                  %647 = vst [vmem:[%s643 + $0x10] sm:$0xff] %v646
                  %v648 = vld [vmem:[%s642 + $0xf8] sm:$0xff]
                  %649 = vst [vmem:[%s643 + $0x20] sm:$0xff] %v648
                  %v650 = vld [vmem:[%s642 + $0x174] sm:$0xff]
                  %651 = vst [vmem:[%s643 + $0x30] sm:$0xff] %v650
                  %v652 = vld [vmem:[%s642 + $0x1f0] sm:$0xff]
                  %653 = vst [vmem:[%s643 + $0x40] sm:$0xff] %v652
                  %v654 = vld [vmem:[%s642 + $0x26c] sm:$0xff]
                  %655 = vst [vmem:[%s643 + $0x50] sm:$0xff] %v654
                  %v656 = vld [vmem:[%s642 + $0x2e8] sm:$0xff]
                  %657 = vst [vmem:[%s643 + $0x60] sm:$0xff] %v656
                  %v658 = vld [vmem:[%s642 + $0x364] sm:$0xff]
                  %659 = vst [vmem:[%s643 + $0x70] sm:$0xff] %v658
                  %v660 = vld [vmem:[%s642 + $0x3e0] sm:$0xff]
                  %661 = vst [vmem:[%s643 + $0x80] sm:$0xff] %v660
                  %v662 = vld [vmem:[%s642 + $0x45c] sm:$0xff]
                  %663 = vst [vmem:[%s643 + $0x90] sm:$0xff] %v662
                  %v664 = vld [vmem:[%s642 + $0x4d8] sm:$0xff]
                  %665 = vst [vmem:[%s643 + $0xa0] sm:$0xff] %v664
                  %v666 = vld [vmem:[%s642 + $0x554] sm:$0xff]
                  %667 = vst [vmem:[%s643 + $0xb0] sm:$0xff] %v666
                  %v668 = vld [vmem:[%s642 + $0x5d0] sm:$0xff]
                  %669 = vst [vmem:[%s643 + $0xc0] sm:$0xff] %v668
                  %v670 = vld [vmem:[%s642 + $0x64c] sm:$0xff]
                  %671 = vst [vmem:[%s643 + $0xd0] sm:$0xff] %v670
                  %v672 = vld [vmem:[%s642 + $0x6c8] sm:$0xff]
                  %673 = vst [vmem:[%s643 + $0xe0] sm:$0xff] %v672
                  %v674 = vld [vmem:[%s642 + $0x744] sm:$0xff]
                  %675 = vst [vmem:[%s643 + $0xf0] sm:$0xff] %v674
                  %v676 = vld [vmem:[%s642 + $0x7c0] sm:$0xff]
                  %677 = vst [vmem:[%s643 + $0x100] sm:$0xff] %v676
                  %v678 = vld [vmem:[%s642 + $0x83c] sm:$0xff]
                  %679 = vst [vmem:[%s643 + $0x110] sm:$0xff] %v678
                  %v680 = vld [vmem:[%s642 + $0x8b8] sm:$0xff]
                  %681 = vst [vmem:[%s643 + $0x120] sm:$0xff] %v680
                  %s682 = sadd.s32 1, %s641
                  %p683 = scmp.ge.s32.totalorder %s682, %s625
                  %s684 = scalar_select %p683, 0, %s682
                  %s685 = smul.u32 %s684, 8
                  %s686 = smul.u32 %s684, 8
                  %s687 = scalar_lea.vmem %s629, %s685
                  %s688 = scalar_lea.vmem %s632, %s686 [#allocation2]
                $region81: #{actor_forward.6} parent=68 // loop_footer
                  %s638 = sadd.s32 %s636, 1
                $region82: #{actor_forward.6} parent=68 // loop_footer_branch
                  %635 = sbr.rel target = $region78
                $region83: #{actor_forward.6} parent=68 // loop_exit
                  _
                %s689 = sshll.u32 1, %s447
                %s690 = ssub.s32 %s689, 1
                loop: start=0, step=1, limit=1
                $region84: #{actor_forward.6} parent=68 // loop_pre_header
                  _
                $region85: #{actor_forward.6} parent=68 // loop_header
                  %s692 = sphi 0, %s696
                  %p693 = scmp.ge.s32.totalorder %s692, 1
                  %s697 = sphi %s449, %s449
                  %s698 = sphi %s451, %s451
                $region86: #{actor_forward.6} parent=68 // loop_header_branch
                  %695 = sbr.rel (%p693) target = $region90
                $region87: #{actor_forward.6} parent=68 // loop_body
                  %v699 = vld [vmem:[%s697] sm:%s690]
                  %700 = vst [vmem:[%s698] sm:%s690] %v699
                  %v701 = vld [vmem:[%s697 + $0x7c] sm:%s690]
                  %702 = vst [vmem:[%s698 + $0x10] sm:%s690] %v701
                  %v703 = vld [vmem:[%s697 + $0xf8] sm:%s690]
                  %704 = vst [vmem:[%s698 + $0x20] sm:%s690] %v703
                  %v705 = vld [vmem:[%s697 + $0x174] sm:%s690]
                  %706 = vst [vmem:[%s698 + $0x30] sm:%s690] %v705
                  %v707 = vld [vmem:[%s697 + $0x1f0] sm:%s690]
                  %708 = vst [vmem:[%s698 + $0x40] sm:%s690] %v707
                  %v709 = vld [vmem:[%s697 + $0x26c] sm:%s690]
                  %710 = vst [vmem:[%s698 + $0x50] sm:%s690] %v709
                  %v711 = vld [vmem:[%s697 + $0x2e8] sm:%s690]
                  %712 = vst [vmem:[%s698 + $0x60] sm:%s690] %v711
                  %v713 = vld [vmem:[%s697 + $0x364] sm:%s690]
                  %714 = vst [vmem:[%s698 + $0x70] sm:%s690] %v713
                  %v715 = vld [vmem:[%s697 + $0x3e0] sm:%s690]
                  %716 = vst [vmem:[%s698 + $0x80] sm:%s690] %v715
                  %v717 = vld [vmem:[%s697 + $0x45c] sm:%s690]
                  %718 = vst [vmem:[%s698 + $0x90] sm:%s690] %v717
                  %v719 = vld [vmem:[%s697 + $0x4d8] sm:%s690]
                  %720 = vst [vmem:[%s698 + $0xa0] sm:%s690] %v719
                  %v721 = vld [vmem:[%s697 + $0x554] sm:%s690]
                  %722 = vst [vmem:[%s698 + $0xb0] sm:%s690] %v721
                  %v723 = vld [vmem:[%s697 + $0x5d0] sm:%s690]
                  %724 = vst [vmem:[%s698 + $0xc0] sm:%s690] %v723
                  %v725 = vld [vmem:[%s697 + $0x64c] sm:%s690]
                  %726 = vst [vmem:[%s698 + $0xd0] sm:%s690] %v725
                  %v727 = vld [vmem:[%s697 + $0x6c8] sm:%s690]
                  %728 = vst [vmem:[%s698 + $0xe0] sm:%s690] %v727
                  %v729 = vld [vmem:[%s697 + $0x744] sm:%s690]
                  %730 = vst [vmem:[%s698 + $0xf0] sm:%s690] %v729
                  %v731 = vld [vmem:[%s697 + $0x7c0] sm:%s690]
                  %732 = vst [vmem:[%s698 + $0x100] sm:%s690] %v731
                  %v733 = vld [vmem:[%s697 + $0x83c] sm:%s690]
                  %734 = vst [vmem:[%s698 + $0x110] sm:%s690] %v733
                  %v735 = vld [vmem:[%s697 + $0x8b8] sm:%s690]
                  %736 = vst [vmem:[%s698 + $0x120] sm:%s690] %v735
                $region88: #{actor_forward.6} parent=68 // loop_footer
                  %s696 = sadd.s32 1, %s692
                $region89: #{actor_forward.6} parent=68 // loop_footer_branch
                  %691 = sbr.rel target = $region85
                $region90: #{actor_forward.6} parent=68 // loop_exit
                  _
              $region69: #{actor_forward.6} parent=35 // pred_fallthru
                _
            $region36: #{actor_forward.6} parent=31 // pred_fallthru
              _
            // Predicated region
            $region37: #{actor_forward.6} parent=31 // pred_check
              %p151 = pneg %p147
            $region38: #{actor_forward.6} parent=31 // pred_check_branch
              %153 = sbr.rel (%p151) target = $region40
            $region39: #{actor_forward.6} parent=31 // pred_region
              %s154 = sshll.u32 1, %s143
              %s155 = ssub.s32 %s154, 1
              loop: start=0, step=1, limit=1
              $region41: #{actor_forward.6} parent=39 // loop_pre_header
                _
              $region42: #{actor_forward.6} parent=39 // loop_header
                %s157 = sphi 0, %s161
                %p158 = scmp.ge.s32.totalorder %s157, 1
                %s162 = sphi %s142, %s142
                %s163 = sphi %s134, %s134
              $region43: #{actor_forward.6} parent=39 // loop_header_branch
                %160 = sbr.rel (%p158) target = $region47
              $region44: #{actor_forward.6} parent=39 // loop_body
                %v164 = vld [vmem:[%s162] sm:%s155]
                %165 = vst [vmem:[%s163] sm:%s155] %v164
                %v166 = vld [vmem:[%s162 + $0x7c] sm:%s155]
                %167 = vst [vmem:[%s163 + $0x10] sm:%s155] %v166
                %v168 = vld [vmem:[%s162 + $0xf8] sm:%s155]
                %169 = vst [vmem:[%s163 + $0x20] sm:%s155] %v168
                %v170 = vld [vmem:[%s162 + $0x174] sm:%s155]
                %171 = vst [vmem:[%s163 + $0x30] sm:%s155] %v170
                %v172 = vld [vmem:[%s162 + $0x1f0] sm:%s155]
                %173 = vst [vmem:[%s163 + $0x40] sm:%s155] %v172
                %v174 = vld [vmem:[%s162 + $0x26c] sm:%s155]
                %175 = vst [vmem:[%s163 + $0x50] sm:%s155] %v174
                %v176 = vld [vmem:[%s162 + $0x2e8] sm:%s155]
                %177 = vst [vmem:[%s163 + $0x60] sm:%s155] %v176
                %v178 = vld [vmem:[%s162 + $0x364] sm:%s155]
                %179 = vst [vmem:[%s163 + $0x70] sm:%s155] %v178
                %v180 = vld [vmem:[%s162 + $0x3e0] sm:%s155]
                %181 = vst [vmem:[%s163 + $0x80] sm:%s155] %v180
                %v182 = vld [vmem:[%s162 + $0x45c] sm:%s155]
                %183 = vst [vmem:[%s163 + $0x90] sm:%s155] %v182
                %v184 = vld [vmem:[%s162 + $0x4d8] sm:%s155]
                %185 = vst [vmem:[%s163 + $0xa0] sm:%s155] %v184
                %v186 = vld [vmem:[%s162 + $0x554] sm:%s155]
                %187 = vst [vmem:[%s163 + $0xb0] sm:%s155] %v186
                %v188 = vld [vmem:[%s162 + $0x5d0] sm:%s155]
                %189 = vst [vmem:[%s163 + $0xc0] sm:%s155] %v188
                %v190 = vld [vmem:[%s162 + $0x64c] sm:%s155]
                %191 = vst [vmem:[%s163 + $0xd0] sm:%s155] %v190
                %v192 = vld [vmem:[%s162 + $0x6c8] sm:%s155]
                %193 = vst [vmem:[%s163 + $0xe0] sm:%s155] %v192
                %v194 = vld [vmem:[%s162 + $0x744] sm:%s155]
                %195 = vst [vmem:[%s163 + $0xf0] sm:%s155] %v194
                %v196 = vld [vmem:[%s162 + $0x7c0] sm:%s155]
                %197 = vst [vmem:[%s163 + $0x100] sm:%s155] %v196
                %v198 = vld [vmem:[%s162 + $0x83c] sm:%s155]
                %199 = vst [vmem:[%s163 + $0x110] sm:%s155] %v198
                %v200 = vld [vmem:[%s162 + $0x8b8] sm:%s155]
                %201 = vst [vmem:[%s163 + $0x120] sm:%s155] %v200
              $region45: #{actor_forward.6} parent=39 // loop_footer
                %s161 = sadd.s32 1, %s157
              $region46: #{actor_forward.6} parent=39 // loop_footer_branch
                %156 = sbr.rel target = $region42
              $region47: #{actor_forward.6} parent=39 // loop_exit
                _
            $region40: #{actor_forward.6} parent=31 // pred_fallthru
              _
          $region32: #{actor_forward.6} parent=27 // pred_fallthru
            _
          %737 = vnop
        $region28: #{actor_forward.6} parent=23 // pred_fallthru
          _
      $region24: #{actor_forward.6} parent=5 // pred_fallthru
        _
      %p738 = scmp.le.s32.totalorder 1, %s9
      %p739 = scmp.lt.s32.totalorder %s9, 9
      %p740 = pnand %p738, %p739
      %p741 = pneg %p740
      // Predicated region
      $region91: #{actor_forward.6} parent=5 // pred_check
        _
      $region92: #{actor_forward.6} parent=5 // pred_check_branch
        %743 = sbr.rel (%p740) target = $region94
      $region93: #{actor_forward.6} parent=5 // pred_region
        %s744 = ssub.s32 %s9, 1
        %s745 = sand.u32 %s64, 1
        %s746 = sand.u32 %s64, 1
        %s747 = smul.addr %s746, 304
        %s748 = scalar_lea.vmem [#allocation2], %s747
        // Predicated region
        $region95: #{actor_forward.6} parent=93 // pred_check
          %p749 = pneg %p77
        $region96: #{actor_forward.6} parent=93 // pred_check_branch
          %751 = sbr.rel (%p749) target = $region98
        $region97: #{actor_forward.6} parent=93 // pred_region
          _
        $region98: #{actor_forward.6} parent=93 // pred_fallthru
          _
        %p752 = pneg %p30
        %p753 = pneg %p27
        %p754 = pneg %p51
        %p755 = pneg %p48
        %s756 = sand.u32 %s64, 1
        %s757 = sand.u32 %s64, 1
        %s758 = smul.addr %s757, 304
        %s759 = scalar_lea.vmem [#allocation2], %s758
        %p760 = pneg %p77
        %p761 = pneg %p74
        %p762 = pneg %p103
        %p763 = pneg %p100
        %s764 = sand.u32 %s90, 1
        %s765 = sand.u32 %s90, 1
        %s766 = smul.addr %s765, 16
        %s767 = scalar_lea.vmem [#allocation3], %s766
        %s768 = smul.u32 4, %s14
        %s769 = ssub.s32 31, %s768
        %p770 = scmp.lt.s32.totalorder %s769, 4
        %s771 = scalar_select %p770, %s769, 4
        %s772 = smul.u32 1216, %s771
        %s773 = smul.u32 4, %s14
        %s774 = ssub.s32 31, %s773
        %p775 = scmp.lt.s32.totalorder %s774, 4
        %s776 = scalar_select %p775, %s774, 4
        %s777 = smul.u32 64, %s776
        %v779 = vld [vmem:[%s0] sm:$0x77]
        %v780 = vld [vmem:[%s748] sm:$0xff]
        %v781 = vld [vmem:[%s748 + $0x8] sm:$0xff]
        %v782 = vld [vmem:[%s748 + $0x10] sm:$0xff]
        %v783 = vld [vmem:[%s748 + $0x18] sm:$0xff]
        %v784 = vld [vmem:[%s748 + $0x20] sm:$0xff]
        %v785 = vld [vmem:[%s748 + $0x28] sm:$0xff]
        %v786 = vld [vmem:[%s748 + $0x30] sm:$0xff]
        %v787 = vld [vmem:[%s748 + $0x38] sm:$0xff]
        %v788 = vld [vmem:[%s748 + $0x40] sm:$0xff]
        %v789 = vld [vmem:[%s748 + $0x48] sm:$0xff]
        %v790 = vld [vmem:[%s748 + $0x50] sm:$0xff]
        %v791 = vld [vmem:[%s748 + $0x58] sm:$0xff]
        %v792 = vld [vmem:[%s748 + $0x60] sm:$0xff]
        %v793 = vld [vmem:[%s748 + $0x68] sm:$0xff]
        %v794 = vld [vmem:[%s748 + $0x70] sm:$0xff]
        %v795 = vld [vmem:[%s748 + $0x78] sm:$0xff]
        %v796 = vld [vmem:[%s748 + $0x80] sm:$0xff]
        %v797 = vld [vmem:[%s748 + $0x88] sm:$0xff]
        %v798 = vld [vmem:[%s748 + $0x90] sm:$0xff]
        %v799 = vld [vmem:[%s748 + $0x98] sm:$0xff]
        %v800 = vld [vmem:[%s748 + $0xa0] sm:$0xff]
        %v801 = vld [vmem:[%s748 + $0xa8] sm:$0xff]
        %v802 = vld [vmem:[%s748 + $0xb0] sm:$0xff]
        %v803 = vld [vmem:[%s748 + $0xb8] sm:$0xff]
        %v804 = vld [vmem:[%s748 + $0xc0] sm:$0xff]
        %v805 = vld [vmem:[%s748 + $0xc8] sm:$0xff]
        %v806 = vld [vmem:[%s748 + $0xd0] sm:$0xff]
        %v807 = vld [vmem:[%s748 + $0xd8] sm:$0xff]
        %v808 = vld [vmem:[%s748 + $0xe0] sm:$0xff]
        %v809 = vld [vmem:[%s748 + $0xe8] sm:$0xff]
        %v810 = vld [vmem:[%s748 + $0xf0] sm:$0xff]
        %v811 = vld [vmem:[%s748 + $0xf8] sm:$0xff]
        %v812 = vld [vmem:[%s748 + $0x100] sm:$0xff]
        %v813 = vld [vmem:[%s748 + $0x108] sm:$0xff]
        %v814 = vld [vmem:[%s748 + $0x110] sm:$0xff]
        %v815 = vld [vmem:[%s748 + $0x118] sm:$0xff]
        %v816 = vld [vmem:[%s748 + $0x120] sm:$0x77]
        %v817 = vld [vmem:[%s748 + $0x128] sm:$0x77]
        %v818 = vld [vmem:[%s1] sm:$0x3f]
        %820 = vset.pattern.permute.xlu0 0
        %821 = vperm.xlu0 %820, %v818
        %v822 = vpop.permute.xlu0 %821
        %v825 = vunpack.c.l.b16 %v779
        %v826 = vunpack.c.h.b16 %v779
        %v827 = vpack.c.b16 %v825, %v825
        %v828 = vpack.c.b16 %v826, %v826
        %v868 = vunpack.c.l.b16 %v780
        %v869 = vunpack.c.h.b16 %v780
        %v870 = vunpack.c.l.b16 %v781
        %v871 = vunpack.c.h.b16 %v781
        %v872 = vunpack.c.l.b16 %v782
        %v873 = vunpack.c.h.b16 %v782
        %v874 = vunpack.c.l.b16 %v783
        %v875 = vunpack.c.h.b16 %v783
        %v876 = vunpack.c.l.b16 %v784
        %v877 = vunpack.c.h.b16 %v784
        %v878 = vunpack.c.l.b16 %v785
        %v879 = vunpack.c.h.b16 %v785
        %v880 = vunpack.c.l.b16 %v786
        %v881 = vunpack.c.h.b16 %v786
        %v882 = vunpack.c.l.b16 %v787
        %v883 = vunpack.c.h.b16 %v787
        %v884 = vunpack.c.l.b16 %v788
        %v885 = vunpack.c.h.b16 %v788
        %v886 = vunpack.c.l.b16 %v789
        %v887 = vunpack.c.h.b16 %v789
        %v888 = vunpack.c.l.b16 %v790
        %v889 = vunpack.c.h.b16 %v790
        %v890 = vunpack.c.l.b16 %v791
        %v891 = vunpack.c.h.b16 %v791
        %v892 = vunpack.c.l.b16 %v792
        %v893 = vunpack.c.h.b16 %v792
        %v894 = vunpack.c.l.b16 %v793
        %v895 = vunpack.c.h.b16 %v793
        %v896 = vunpack.c.l.b16 %v794
        %v897 = vunpack.c.h.b16 %v794
        %v898 = vunpack.c.l.b16 %v795
        %v899 = vunpack.c.h.b16 %v795
        %v900 = vunpack.c.l.b16 %v796
        %v901 = vunpack.c.h.b16 %v796
        %v902 = vunpack.c.l.b16 %v797
        %v903 = vunpack.c.h.b16 %v797
        %v904 = vunpack.c.l.b16 %v798
        %v905 = vunpack.c.h.b16 %v798
        %v906 = vunpack.c.l.b16 %v799
        %v907 = vunpack.c.h.b16 %v799
        %v908 = vunpack.c.l.b16 %v800
        %v909 = vunpack.c.h.b16 %v800
        %v910 = vunpack.c.l.b16 %v801
        %v911 = vunpack.c.h.b16 %v801
        %v912 = vunpack.c.l.b16 %v802
        %v913 = vunpack.c.h.b16 %v802
        %v914 = vunpack.c.l.b16 %v803
        %v915 = vunpack.c.h.b16 %v803
        %v916 = vunpack.c.l.b16 %v804
        %v917 = vunpack.c.h.b16 %v804
        %v918 = vunpack.c.l.b16 %v805
        %v919 = vunpack.c.h.b16 %v805
        %v920 = vunpack.c.l.b16 %v806
        %v921 = vunpack.c.h.b16 %v806
        %v922 = vunpack.c.l.b16 %v807
        %v923 = vunpack.c.h.b16 %v807
        %v924 = vunpack.c.l.b16 %v808
        %v925 = vunpack.c.h.b16 %v808
        %v926 = vunpack.c.l.b16 %v809
        %v927 = vunpack.c.h.b16 %v809
        %v928 = vunpack.c.l.b16 %v810
        %v929 = vunpack.c.h.b16 %v810
        %v930 = vunpack.c.l.b16 %v811
        %v931 = vunpack.c.h.b16 %v811
        %v932 = vunpack.c.l.b16 %v812
        %v933 = vunpack.c.h.b16 %v812
        %v934 = vunpack.c.l.b16 %v813
        %v935 = vunpack.c.h.b16 %v813
        %v936 = vunpack.c.l.b16 %v814
        %v937 = vunpack.c.h.b16 %v814
        %v938 = vunpack.c.l.b16 %v815
        %v939 = vunpack.c.h.b16 %v815
        %v940 = vunpack.c.l.b16 %v816
        %v941 = vunpack.c.h.b16 %v816
        %v942 = vunpack.c.l.b16 %v817
        %v943 = vunpack.c.h.b16 %v817
        %v944 = vpack.c.b16 %v872, %v868
        %v945 = vpack.c.b16 %v873, %v869
        %v946 = vpack.c.b16 %v874, %v870
        %v947 = vpack.c.b16 %v875, %v871
        %v948 = vpack.c.b16 %v880, %v876
        %v949 = vpack.c.b16 %v881, %v877
        %v950 = vpack.c.b16 %v882, %v878
        %v951 = vpack.c.b16 %v883, %v879
        %v952 = vpack.c.b16 %v888, %v884
        %v953 = vpack.c.b16 %v889, %v885
        %v954 = vpack.c.b16 %v890, %v886
        %v955 = vpack.c.b16 %v891, %v887
        %v956 = vpack.c.b16 %v896, %v892
        %v957 = vpack.c.b16 %v897, %v893
        %v958 = vpack.c.b16 %v898, %v894
        %v959 = vpack.c.b16 %v899, %v895
        %v960 = vpack.c.b16 %v904, %v900
        %v961 = vpack.c.b16 %v905, %v901
        %v962 = vpack.c.b16 %v906, %v902
        %v963 = vpack.c.b16 %v907, %v903
        %v964 = vpack.c.b16 %v912, %v908
        %v965 = vpack.c.b16 %v913, %v909
        %v966 = vpack.c.b16 %v914, %v910
        %v967 = vpack.c.b16 %v915, %v911
        %v968 = vpack.c.b16 %v920, %v916
        %v969 = vpack.c.b16 %v921, %v917
        %v970 = vpack.c.b16 %v922, %v918
        %v971 = vpack.c.b16 %v923, %v919
        %v972 = vpack.c.b16 %v928, %v924
        %v973 = vpack.c.b16 %v929, %v925
        %v974 = vpack.c.b16 %v930, %v926
        %v975 = vpack.c.b16 %v931, %v927
        %v976 = vpack.c.b16 %v936, %v932
        %v977 = vpack.c.b16 %v937, %v933
        %v978 = vpack.c.b16 %v938, %v934
        %v979 = vpack.c.b16 %v939, %v935
        %v980 = vpack.c.b16 %v940, %v940
        %v981 = vpack.c.b16 %v941, %v941
        %v982 = vpack.c.b16 %v942, %v942
        %v983 = vpack.c.b16 %v943, %v943
        %vm1020 = vcmask 179200
        %v1022 = vsel %vm1020, %v828, 0
        %vm1024 = vcmask 1042432
        %v1026 = vsel %vm1024, %v980, 0
        %v1029 = vsel %vm1024, %v981, 0
        %v1032 = vsel %vm1024, %v982, 0
        %v1035 = vsel %vm1024, %v983, 0
        %1037 = vmatprep.subr.bf16.mxu0 %v973
        %1038 = vmatpush1.bf16.msra.mxu0 %v972
        %1039 = vmatprep.subr.bf16.mxu0 %v969
        %1040 = vmatpush1.bf16.msra.mxu0 %v968
        %1041 = vmatprep.subr.bf16.mxu0 %v965
        %1042 = vmatpush1.bf16.msra.mxu0 %v964
        %1043 = vmatprep.subr.bf16.mxu0 %v961
        %1044 = vmatpush1.bf16.msra.mxu0 %v960
        %1045 = vmatprep.subr.bf16.mxu0 %v957
        %1046 = vmatpush1.bf16.msra.mxu0 %v956
        %1047 = vmatprep.subr.bf16.mxu0 %v953
        %1048 = vmatpush1.bf16.msra.mxu0 %v952
        %1049 = vmatprep.subr.bf16.mxu0 %v949
        %1050 = vmatpush1.bf16.msra.mxu0 %v948
        %1051 = vmatprep.subr.bf16.mxu0 %v945
        %1052 = vmatpush1.bf16.msra.mxu0 %v944
        %1053 = vmatprep.subr.bf16.mxu0 0
        %1054 = vmatpush2.bf16.msra.mxu0 0
        %1055 = vmatprep.subr.bf16.mxu0 0
        %1056 = vmatpush2.bf16.msra.mxu0 0
        %1057 = vmatprep.subr.bf16.mxu0 0
        %1058 = vmatpush2.bf16.msra.mxu0 0
        %1059 = vmatprep.subr.bf16.mxu0 0
        %1060 = vmatpush2.bf16.msra.mxu0 0
        %1061 = vmatprep.subr.bf16.mxu0 0
        %1062 = vmatpush2.bf16.msra.mxu0 0
        %1063 = vmatprep.subr.bf16.mxu0 0
        %1064 = vmatpush2.bf16.msra.mxu0 0
        %1065 = vmatprep.subr.bf16.mxu0 %v1029
        %1066 = vmatpush2.bf16.msra.mxu0 %v1026
        %1067 = vmatprep.subr.bf16.mxu0 %v977
        %1068 = vmatpush2.bf16.msra.mxu0 %v976
        %1069 = vmatprep.mubr.bf16.mxu0 %v1022
        %1070 = vmatmul.mubr.bf16.gmra.mxu0 %v827
        %v1071 = vpop.f32.mrf.mxu0
        %v1072 = vadd.f32 %v822, %v1071
        %v1073 = vpop.f32.mrf.mxu0
        %v1074 = vadd.f32 %v822, %v1073
        %v1075 = vpop.f32.mrf.mxu0
        %v1076 = vpop.f32.mrf.mxu0
        %1077 = vdwg.mxu0
        %1078 = vmatprep.subr.bf16.mxu0 %v975
        %1079 = vmatpush1.bf16.msra.mxu0 %v974
        %1080 = vmatprep.subr.bf16.mxu0 %v971
        %1081 = vmatpush1.bf16.msra.mxu0 %v970
        %1082 = vmatprep.subr.bf16.mxu0 %v967
        %1083 = vmatpush1.bf16.msra.mxu0 %v966
        %1084 = vmatprep.subr.bf16.mxu0 %v963
        %1085 = vmatpush1.bf16.msra.mxu0 %v962
        %1086 = vmatprep.subr.bf16.mxu0 %v959
        %1087 = vmatpush1.bf16.msra.mxu0 %v958
        %1088 = vmatprep.subr.bf16.mxu0 %v955
        %1089 = vmatpush1.bf16.msra.mxu0 %v954
        %1090 = vmatprep.subr.bf16.mxu0 %v951
        %1091 = vmatpush1.bf16.msra.mxu0 %v950
        %1092 = vmatprep.subr.bf16.mxu0 %v947
        %1093 = vmatpush1.bf16.msra.mxu0 %v946
        %1094 = vmatprep.subr.bf16.mxu0 0
        %1095 = vmatpush2.bf16.msra.mxu0 0
        %1096 = vmatprep.subr.bf16.mxu0 0
        %1097 = vmatpush2.bf16.msra.mxu0 0
        %1098 = vmatprep.subr.bf16.mxu0 0
        %1099 = vmatpush2.bf16.msra.mxu0 0
        %1100 = vmatprep.subr.bf16.mxu0 0
        %1101 = vmatpush2.bf16.msra.mxu0 0
        %1102 = vmatprep.subr.bf16.mxu0 0
        %1103 = vmatpush2.bf16.msra.mxu0 0
        %1104 = vmatprep.subr.bf16.mxu0 0
        %1105 = vmatpush2.bf16.msra.mxu0 0
        %1106 = vmatprep.subr.bf16.mxu0 %v1035
        %1107 = vmatpush2.bf16.msra.mxu0 %v1032
        %1108 = vmatprep.subr.bf16.mxu0 %v979
        %1109 = vmatpush2.bf16.msra.mxu0 %v978
        %1110 = vmatprep.mubr.bf16.mxu0 %v1022
        %1111 = vmatmul.mubr.bf16.gmra.mxu0 %v827
        %v1112 = vpop.f32.mrf.mxu0
        %v1113 = vadd.f32 %v822, %v1112
        %v1114 = vpop.f32.mrf.mxu0
        %v1115 = vadd.f32 %v822, %v1114
        %v1116 = vpop.f32.mrf.mxu0
        %v1117 = vpop.f32.mrf.mxu0
        %1118 = vdwg.mxu0
        %v1119 = vmax.f32 %v1072, 0.0
        %v1120 = vmax.f32 %v1074, 0.0
        %v1121 = vmax.f32 %v1113, 0.0
        %v1122 = vmax.f32 %v1115, 0.0
        %v1123 = vpack.c.bf16 %v1119, %v1119
        %v1124 = vpack.c.bf16 %v1120, %v1120
        %v1125 = vpack.c.bf16 %v1121, %v1121
        %v1126 = vpack.c.bf16 %v1122, %v1122
        %v1131 = vunpack.c.l.b16 %v1123
        %v1132 = vunpack.c.l.b16 %v1124
        %v1133 = vunpack.c.l.b16 %v1125
        %v1134 = vunpack.c.l.b16 %v1126
        %v1135 = vpack.c.b16 %v1132, %v1131
        %v1136 = vpack.c.b16 %v1134, %v1133
        %1139 = vst [vmem:[%s767] sm:$0x77] %v1135
        %1140 = vst [vmem:[%s767 + $0x8] sm:$0x77] %v1136
        %s1141 = sand.u32 %s90, 1
        %s1142 = sand.u32 %s90, 1
        %s1143 = smul.addr %s1142, 16
        %s1144 = scalar_lea.vmem [#allocation3], %s1143
        // Predicated region
        $region99: #{actor_forward.6} parent=93 // pred_check
          %p1145 = pneg %p100
        $region100: #{actor_forward.6} parent=93 // pred_check_branch
          %1147 = sbr.rel (%p1145) target = $region102
        $region101: #{actor_forward.6} parent=93 // pred_region
          %s1148 = smul.u32 4, %s14
          %s1149 = ssub.s32 31, %s1148
          %p1150 = scmp.lt.s32.totalorder %s1149, 4
          %s1151 = scalar_select %p1150, %s1149, 4
          %s1152 = smul.u32 64, %s1151
          %p1153 = scmp.ne.s32.totalorder 0, %s1152
          %s1154 = smul.addr %s1148, 4
          %s1155 = scalar_lea.vmem %s3, %s1154
          %s1156 = smul.u32 %s1151, 4
          // Predicated region
          $region103: #{actor_forward.6} parent=101 // pred_check
            %p1157 = pneg %p1153
          $region104: #{actor_forward.6} parent=101 // pred_check_branch
            %1159 = sbr.rel (%p1157) target = $region106
          $region105: #{actor_forward.6} parent=101 // pred_region
            %p1160 = scmp.lt.u32.totalorder %s1156, 8
            %p1161 = pneg %p1160
            // Predicated region
            $region107: #{actor_forward.6} parent=105 // pred_check
              _
            $region108: #{actor_forward.6} parent=105 // pred_check_branch
              %1163 = sbr.rel (%p1160) target = $region110
            $region109: #{actor_forward.6} parent=105 // pred_region
              %s1179 = sand.u32 %s1156, 7
              %p1180 = scmp.eq.s32.totalorder %s1179, 0
              // Predicated region
              $region122: #{actor_forward.6} parent=109 // pred_check
                %p1181 = pneg %p1180
              $region123: #{actor_forward.6} parent=109 // pred_check_branch
                %1183 = sbr.rel (%p1181) target = $region125
              $region124: #{actor_forward.6} parent=109 // pred_region
                %s1184 = sshrl.u32 %s1156, 3
                %s1185 = sshrl.u32 %s1184, 6
                // While loop
                $region126: #{actor_forward.6} parent=124 // loop_pre_header
                  _
                $region127: #{actor_forward.6} parent=124 // loop_header
                  %s1189 = sphi 0, %s1191
                  %p1190 = scmp.ge.s32.totalorder %s1189, %s1185
                  %s1194 = sphi 0, %s1327
                  %s1195 = sphi %s1144, %s1330
                  %s1196 = sphi %s1155, %s1331
                $region128: #{actor_forward.6} parent=124 // loop_header_branch
                  %1193 = sbr.rel (%p1190) target = $region132
                $region129: #{actor_forward.6} parent=124 // loop_body
                  %v1197 = vld [vmem:[%s1195] sm:$0xff]
                  %1198 = vst [vmem:[%s1196] sm:$0xff] %v1197
                  %v1199 = vld [vmem:[%s1195 + $0x8] sm:$0xff]
                  %1200 = vst [vmem:[%s1196 + $0x8] sm:$0xff] %v1199
                  %v1201 = vld [vmem:[%s1195 + $0x10] sm:$0xff]
                  %1202 = vst [vmem:[%s1196 + $0x10] sm:$0xff] %v1201
                  %v1203 = vld [vmem:[%s1195 + $0x18] sm:$0xff]
                  %1204 = vst [vmem:[%s1196 + $0x18] sm:$0xff] %v1203
                  %v1205 = vld [vmem:[%s1195 + $0x20] sm:$0xff]
                  %1206 = vst [vmem:[%s1196 + $0x20] sm:$0xff] %v1205
                  %v1207 = vld [vmem:[%s1195 + $0x28] sm:$0xff]
                  %1208 = vst [vmem:[%s1196 + $0x28] sm:$0xff] %v1207
                  %v1209 = vld [vmem:[%s1195 + $0x30] sm:$0xff]
                  %1210 = vst [vmem:[%s1196 + $0x30] sm:$0xff] %v1209
                  %v1211 = vld [vmem:[%s1195 + $0x38] sm:$0xff]
                  %1212 = vst [vmem:[%s1196 + $0x38] sm:$0xff] %v1211
                  %v1213 = vld [vmem:[%s1195 + $0x40] sm:$0xff]
                  %1214 = vst [vmem:[%s1196 + $0x40] sm:$0xff] %v1213
                  %v1215 = vld [vmem:[%s1195 + $0x48] sm:$0xff]
                  %1216 = vst [vmem:[%s1196 + $0x48] sm:$0xff] %v1215
                  %v1217 = vld [vmem:[%s1195 + $0x50] sm:$0xff]
                  %1218 = vst [vmem:[%s1196 + $0x50] sm:$0xff] %v1217
                  %v1219 = vld [vmem:[%s1195 + $0x58] sm:$0xff]
                  %1220 = vst [vmem:[%s1196 + $0x58] sm:$0xff] %v1219
                  %v1221 = vld [vmem:[%s1195 + $0x60] sm:$0xff]
                  %1222 = vst [vmem:[%s1196 + $0x60] sm:$0xff] %v1221
                  %v1223 = vld [vmem:[%s1195 + $0x68] sm:$0xff]
                  %1224 = vst [vmem:[%s1196 + $0x68] sm:$0xff] %v1223
                  %v1225 = vld [vmem:[%s1195 + $0x70] sm:$0xff]
                  %1226 = vst [vmem:[%s1196 + $0x70] sm:$0xff] %v1225
                  %v1227 = vld [vmem:[%s1195 + $0x78] sm:$0xff]
                  %1228 = vst [vmem:[%s1196 + $0x78] sm:$0xff] %v1227
                  %v1229 = vld [vmem:[%s1195 + $0x80] sm:$0xff]
                  %1230 = vst [vmem:[%s1196 + $0x80] sm:$0xff] %v1229
                  %v1231 = vld [vmem:[%s1195 + $0x88] sm:$0xff]
                  %1232 = vst [vmem:[%s1196 + $0x88] sm:$0xff] %v1231
                  %v1233 = vld [vmem:[%s1195 + $0x90] sm:$0xff]
                  %1234 = vst [vmem:[%s1196 + $0x90] sm:$0xff] %v1233
                  %v1235 = vld [vmem:[%s1195 + $0x98] sm:$0xff]
                  %1236 = vst [vmem:[%s1196 + $0x98] sm:$0xff] %v1235
                  %v1237 = vld [vmem:[%s1195 + $0xa0] sm:$0xff]
                  %1238 = vst [vmem:[%s1196 + $0xa0] sm:$0xff] %v1237
                  %v1239 = vld [vmem:[%s1195 + $0xa8] sm:$0xff]
                  %1240 = vst [vmem:[%s1196 + $0xa8] sm:$0xff] %v1239
                  %v1241 = vld [vmem:[%s1195 + $0xb0] sm:$0xff]
                  %1242 = vst [vmem:[%s1196 + $0xb0] sm:$0xff] %v1241
                  %v1243 = vld [vmem:[%s1195 + $0xb8] sm:$0xff]
                  %1244 = vst [vmem:[%s1196 + $0xb8] sm:$0xff] %v1243
                  %v1245 = vld [vmem:[%s1195 + $0xc0] sm:$0xff]
                  %1246 = vst [vmem:[%s1196 + $0xc0] sm:$0xff] %v1245
                  %v1247 = vld [vmem:[%s1195 + $0xc8] sm:$0xff]
                  %1248 = vst [vmem:[%s1196 + $0xc8] sm:$0xff] %v1247
                  %v1249 = vld [vmem:[%s1195 + $0xd0] sm:$0xff]
                  %1250 = vst [vmem:[%s1196 + $0xd0] sm:$0xff] %v1249
                  %v1251 = vld [vmem:[%s1195 + $0xd8] sm:$0xff]
                  %1252 = vst [vmem:[%s1196 + $0xd8] sm:$0xff] %v1251
                  %v1253 = vld [vmem:[%s1195 + $0xe0] sm:$0xff]
                  %1254 = vst [vmem:[%s1196 + $0xe0] sm:$0xff] %v1253
                  %v1255 = vld [vmem:[%s1195 + $0xe8] sm:$0xff]
                  %1256 = vst [vmem:[%s1196 + $0xe8] sm:$0xff] %v1255
                  %v1257 = vld [vmem:[%s1195 + $0xf0] sm:$0xff]
                  %1258 = vst [vmem:[%s1196 + $0xf0] sm:$0xff] %v1257
                  %v1259 = vld [vmem:[%s1195 + $0xf8] sm:$0xff]
                  %1260 = vst [vmem:[%s1196 + $0xf8] sm:$0xff] %v1259
                  %v1261 = vld [vmem:[%s1195 + $0x100] sm:$0xff]
                  %1262 = vst [vmem:[%s1196 + $0x100] sm:$0xff] %v1261
                  %v1263 = vld [vmem:[%s1195 + $0x108] sm:$0xff]
                  %1264 = vst [vmem:[%s1196 + $0x108] sm:$0xff] %v1263
                  %v1265 = vld [vmem:[%s1195 + $0x110] sm:$0xff]
                  %1266 = vst [vmem:[%s1196 + $0x110] sm:$0xff] %v1265
                  %v1267 = vld [vmem:[%s1195 + $0x118] sm:$0xff]
                  %1268 = vst [vmem:[%s1196 + $0x118] sm:$0xff] %v1267
                  %v1269 = vld [vmem:[%s1195 + $0x120] sm:$0xff]
                  %1270 = vst [vmem:[%s1196 + $0x120] sm:$0xff] %v1269
                  %v1271 = vld [vmem:[%s1195 + $0x128] sm:$0xff]
                  %1272 = vst [vmem:[%s1196 + $0x128] sm:$0xff] %v1271
                  %v1273 = vld [vmem:[%s1195 + $0x130] sm:$0xff]
                  %1274 = vst [vmem:[%s1196 + $0x130] sm:$0xff] %v1273
                  %v1275 = vld [vmem:[%s1195 + $0x138] sm:$0xff]
                  %1276 = vst [vmem:[%s1196 + $0x138] sm:$0xff] %v1275
                  %v1277 = vld [vmem:[%s1195 + $0x140] sm:$0xff]
                  %1278 = vst [vmem:[%s1196 + $0x140] sm:$0xff] %v1277
                  %v1279 = vld [vmem:[%s1195 + $0x148] sm:$0xff]
                  %1280 = vst [vmem:[%s1196 + $0x148] sm:$0xff] %v1279
                  %v1281 = vld [vmem:[%s1195 + $0x150] sm:$0xff]
                  %1282 = vst [vmem:[%s1196 + $0x150] sm:$0xff] %v1281
                  %v1283 = vld [vmem:[%s1195 + $0x158] sm:$0xff]
                  %1284 = vst [vmem:[%s1196 + $0x158] sm:$0xff] %v1283
                  %v1285 = vld [vmem:[%s1195 + $0x160] sm:$0xff]
                  %1286 = vst [vmem:[%s1196 + $0x160] sm:$0xff] %v1285
                  %v1287 = vld [vmem:[%s1195 + $0x168] sm:$0xff]
                  %1288 = vst [vmem:[%s1196 + $0x168] sm:$0xff] %v1287
                  %v1289 = vld [vmem:[%s1195 + $0x170] sm:$0xff]
                  %1290 = vst [vmem:[%s1196 + $0x170] sm:$0xff] %v1289
                  %v1291 = vld [vmem:[%s1195 + $0x178] sm:$0xff]
                  %1292 = vst [vmem:[%s1196 + $0x178] sm:$0xff] %v1291
                  %v1293 = vld [vmem:[%s1195 + $0x180] sm:$0xff]
                  %1294 = vst [vmem:[%s1196 + $0x180] sm:$0xff] %v1293
                  %v1295 = vld [vmem:[%s1195 + $0x188] sm:$0xff]
                  %1296 = vst [vmem:[%s1196 + $0x188] sm:$0xff] %v1295
                  %v1297 = vld [vmem:[%s1195 + $0x190] sm:$0xff]
                  %1298 = vst [vmem:[%s1196 + $0x190] sm:$0xff] %v1297
                  %v1299 = vld [vmem:[%s1195 + $0x198] sm:$0xff]
                  %1300 = vst [vmem:[%s1196 + $0x198] sm:$0xff] %v1299
                  %v1301 = vld [vmem:[%s1195 + $0x1a0] sm:$0xff]
                  %1302 = vst [vmem:[%s1196 + $0x1a0] sm:$0xff] %v1301
                  %v1303 = vld [vmem:[%s1195 + $0x1a8] sm:$0xff]
                  %1304 = vst [vmem:[%s1196 + $0x1a8] sm:$0xff] %v1303
                  %v1305 = vld [vmem:[%s1195 + $0x1b0] sm:$0xff]
                  %1306 = vst [vmem:[%s1196 + $0x1b0] sm:$0xff] %v1305
                  %v1307 = vld [vmem:[%s1195 + $0x1b8] sm:$0xff]
                  %1308 = vst [vmem:[%s1196 + $0x1b8] sm:$0xff] %v1307
                  %v1309 = vld [vmem:[%s1195 + $0x1c0] sm:$0xff]
                  %1310 = vst [vmem:[%s1196 + $0x1c0] sm:$0xff] %v1309
                  %v1311 = vld [vmem:[%s1195 + $0x1c8] sm:$0xff]
                  %1312 = vst [vmem:[%s1196 + $0x1c8] sm:$0xff] %v1311
                  %v1313 = vld [vmem:[%s1195 + $0x1d0] sm:$0xff]
                  %1314 = vst [vmem:[%s1196 + $0x1d0] sm:$0xff] %v1313
                  %v1315 = vld [vmem:[%s1195 + $0x1d8] sm:$0xff]
                  %1316 = vst [vmem:[%s1196 + $0x1d8] sm:$0xff] %v1315
                  %v1317 = vld [vmem:[%s1195 + $0x1e0] sm:$0xff]
                  %1318 = vst [vmem:[%s1196 + $0x1e0] sm:$0xff] %v1317
                  %v1319 = vld [vmem:[%s1195 + $0x1e8] sm:$0xff]
                  %1320 = vst [vmem:[%s1196 + $0x1e8] sm:$0xff] %v1319
                  %v1321 = vld [vmem:[%s1195 + $0x1f0] sm:$0xff]
                  %1322 = vst [vmem:[%s1196 + $0x1f0] sm:$0xff] %v1321
                  %v1323 = vld [vmem:[%s1195 + $0x1f8] sm:$0xff]
                  %1324 = vst [vmem:[%s1196 + $0x1f8] sm:$0xff] %v1323
                  %s1325 = sadd.s32 1, %s1194
                  %p1326 = scmp.ge.s32.totalorder %s1325, %s1185
                  %s1327 = scalar_select %p1326, 0, %s1325
                  %s1328 = smul.u32 %s1327, 512
                  %s1329 = smul.u32 %s1327, 512
                  %s1330 = scalar_lea.vmem %s1144, %s1328 [#allocation3]
                  %s1331 = scalar_lea.vmem %s1155, %s1329
                $region130: #{actor_forward.6} parent=124 // loop_footer
                  %s1191 = sadd.s32 %s1189, 1
                $region131: #{actor_forward.6} parent=124 // loop_footer_branch
                  %1188 = sbr.rel target = $region127
                $region132: #{actor_forward.6} parent=124 // loop_exit
                  _
                %s1332 = sshrl.u32 %s1184, 6
                %s1333 = sand.u32 %s1184, 63
                %s1334 = smul.u32 %s1332, 64
                %s1335 = smul.u32 128, %s1334
                %s1336 = sshra.s32 %s1335, 4
                %s1337 = scalar_lea.vmem %s1144, %s1336 [#allocation3]
                %s1338 = smul.u32 128, %s1334
                %s1339 = sshra.s32 %s1338, 4
                %s1340 = scalar_lea.vmem %s1155, %s1339
                // While loop
                $region133: #{actor_forward.6} parent=124 // loop_pre_header
                  _
                $region134: #{actor_forward.6} parent=124 // loop_header
                  %s1344 = sphi 0, %s1346
                  %p1345 = scmp.ge.s32.totalorder %s1344, %s1333
                  %s1349 = sphi 0, %s1356
                  %s1350 = sphi %s1337, %s1359
                  %s1351 = sphi %s1340, %s1360
                $region135: #{actor_forward.6} parent=124 // loop_header_branch
                  %1348 = sbr.rel (%p1345) target = $region139
                $region136: #{actor_forward.6} parent=124 // loop_body
                  %v1352 = vld [vmem:[%s1350] sm:$0xff]
                  %1353 = vst [vmem:[%s1351] sm:$0xff] %v1352
                  %s1354 = sadd.s32 1, %s1349
                  %p1355 = scmp.ge.s32.totalorder %s1354, %s1333
                  %s1356 = scalar_select %p1355, 0, %s1354
                  %s1357 = smul.u32 %s1356, 8
                  %s1358 = smul.u32 %s1356, 8
                  %s1359 = scalar_lea.vmem %s1337, %s1357 [#allocation3]
                  %s1360 = scalar_lea.vmem %s1340, %s1358
                $region137: #{actor_forward.6} parent=124 // loop_footer
                  %s1346 = sadd.s32 %s1344, 1
                $region138: #{actor_forward.6} parent=124 // loop_footer_branch
                  %1343 = sbr.rel target = $region134
                $region139: #{actor_forward.6} parent=124 // loop_exit
                  _
              $region125: #{actor_forward.6} parent=109 // pred_fallthru
                _
              %p1361 = pneg %p1180
              // Predicated region
              $region140: #{actor_forward.6} parent=109 // pred_check
                _
              $region141: #{actor_forward.6} parent=109 // pred_check_branch
                %1363 = sbr.rel (%p1180) target = $region143
              $region142: #{actor_forward.6} parent=109 // pred_region
                %s1364 = sand.u32 %s1156, 7
                %s1365 = ssub.s32 %s1156, %s1364
                %s1366 = scalar_lea.vmem %s1144, %s1365 [#allocation3]
                %s1367 = ssub.s32 %s1156, %s1364
                %s1368 = scalar_lea.vmem %s1155, %s1367
                %s1369 = sshrl.u32 %s1156, 3
                %s1370 = sshrl.u32 %s1369, 6
                // While loop
                $region144: #{actor_forward.6} parent=142 // loop_pre_header
                  _
                $region145: #{actor_forward.6} parent=142 // loop_header
                  %s1374 = sphi 0, %s1376
                  %p1375 = scmp.ge.s32.totalorder %s1374, %s1370
                  %s1379 = sphi 0, %s1512
                  %s1380 = sphi %s1144, %s1515
                  %s1381 = sphi %s1155, %s1516
                $region146: #{actor_forward.6} parent=142 // loop_header_branch
                  %1378 = sbr.rel (%p1375) target = $region150
                $region147: #{actor_forward.6} parent=142 // loop_body
                  %v1382 = vld [vmem:[%s1380] sm:$0xff]
                  %1383 = vst [vmem:[%s1381] sm:$0xff] %v1382
                  %v1384 = vld [vmem:[%s1380 + $0x8] sm:$0xff]
                  %1385 = vst [vmem:[%s1381 + $0x8] sm:$0xff] %v1384
                  %v1386 = vld [vmem:[%s1380 + $0x10] sm:$0xff]
                  %1387 = vst [vmem:[%s1381 + $0x10] sm:$0xff] %v1386
                  %v1388 = vld [vmem:[%s1380 + $0x18] sm:$0xff]
                  %1389 = vst [vmem:[%s1381 + $0x18] sm:$0xff] %v1388
                  %v1390 = vld [vmem:[%s1380 + $0x20] sm:$0xff]
                  %1391 = vst [vmem:[%s1381 + $0x20] sm:$0xff] %v1390
                  %v1392 = vld [vmem:[%s1380 + $0x28] sm:$0xff]
                  %1393 = vst [vmem:[%s1381 + $0x28] sm:$0xff] %v1392
                  %v1394 = vld [vmem:[%s1380 + $0x30] sm:$0xff]
                  %1395 = vst [vmem:[%s1381 + $0x30] sm:$0xff] %v1394
                  %v1396 = vld [vmem:[%s1380 + $0x38] sm:$0xff]
                  %1397 = vst [vmem:[%s1381 + $0x38] sm:$0xff] %v1396
                  %v1398 = vld [vmem:[%s1380 + $0x40] sm:$0xff]
                  %1399 = vst [vmem:[%s1381 + $0x40] sm:$0xff] %v1398
                  %v1400 = vld [vmem:[%s1380 + $0x48] sm:$0xff]
                  %1401 = vst [vmem:[%s1381 + $0x48] sm:$0xff] %v1400
                  %v1402 = vld [vmem:[%s1380 + $0x50] sm:$0xff]
                  %1403 = vst [vmem:[%s1381 + $0x50] sm:$0xff] %v1402
                  %v1404 = vld [vmem:[%s1380 + $0x58] sm:$0xff]
                  %1405 = vst [vmem:[%s1381 + $0x58] sm:$0xff] %v1404
                  %v1406 = vld [vmem:[%s1380 + $0x60] sm:$0xff]
                  %1407 = vst [vmem:[%s1381 + $0x60] sm:$0xff] %v1406
                  %v1408 = vld [vmem:[%s1380 + $0x68] sm:$0xff]
                  %1409 = vst [vmem:[%s1381 + $0x68] sm:$0xff] %v1408
                  %v1410 = vld [vmem:[%s1380 + $0x70] sm:$0xff]
                  %1411 = vst [vmem:[%s1381 + $0x70] sm:$0xff] %v1410
                  %v1412 = vld [vmem:[%s1380 + $0x78] sm:$0xff]
                  %1413 = vst [vmem:[%s1381 + $0x78] sm:$0xff] %v1412
                  %v1414 = vld [vmem:[%s1380 + $0x80] sm:$0xff]
                  %1415 = vst [vmem:[%s1381 + $0x80] sm:$0xff] %v1414
                  %v1416 = vld [vmem:[%s1380 + $0x88] sm:$0xff]
                  %1417 = vst [vmem:[%s1381 + $0x88] sm:$0xff] %v1416
                  %v1418 = vld [vmem:[%s1380 + $0x90] sm:$0xff]
                  %1419 = vst [vmem:[%s1381 + $0x90] sm:$0xff] %v1418
                  %v1420 = vld [vmem:[%s1380 + $0x98] sm:$0xff]
                  %1421 = vst [vmem:[%s1381 + $0x98] sm:$0xff] %v1420
                  %v1422 = vld [vmem:[%s1380 + $0xa0] sm:$0xff]
                  %1423 = vst [vmem:[%s1381 + $0xa0] sm:$0xff] %v1422
                  %v1424 = vld [vmem:[%s1380 + $0xa8] sm:$0xff]
                  %1425 = vst [vmem:[%s1381 + $0xa8] sm:$0xff] %v1424
                  %v1426 = vld [vmem:[%s1380 + $0xb0] sm:$0xff]
                  %1427 = vst [vmem:[%s1381 + $0xb0] sm:$0xff] %v1426
                  %v1428 = vld [vmem:[%s1380 + $0xb8] sm:$0xff]
                  %1429 = vst [vmem:[%s1381 + $0xb8] sm:$0xff] %v1428
                  %v1430 = vld [vmem:[%s1380 + $0xc0] sm:$0xff]
                  %1431 = vst [vmem:[%s1381 + $0xc0] sm:$0xff] %v1430
                  %v1432 = vld [vmem:[%s1380 + $0xc8] sm:$0xff]
                  %1433 = vst [vmem:[%s1381 + $0xc8] sm:$0xff] %v1432
                  %v1434 = vld [vmem:[%s1380 + $0xd0] sm:$0xff]
                  %1435 = vst [vmem:[%s1381 + $0xd0] sm:$0xff] %v1434
                  %v1436 = vld [vmem:[%s1380 + $0xd8] sm:$0xff]
                  %1437 = vst [vmem:[%s1381 + $0xd8] sm:$0xff] %v1436
                  %v1438 = vld [vmem:[%s1380 + $0xe0] sm:$0xff]
                  %1439 = vst [vmem:[%s1381 + $0xe0] sm:$0xff] %v1438
                  %v1440 = vld [vmem:[%s1380 + $0xe8] sm:$0xff]
                  %1441 = vst [vmem:[%s1381 + $0xe8] sm:$0xff] %v1440
                  %v1442 = vld [vmem:[%s1380 + $0xf0] sm:$0xff]
                  %1443 = vst [vmem:[%s1381 + $0xf0] sm:$0xff] %v1442
                  %v1444 = vld [vmem:[%s1380 + $0xf8] sm:$0xff]
                  %1445 = vst [vmem:[%s1381 + $0xf8] sm:$0xff] %v1444
                  %v1446 = vld [vmem:[%s1380 + $0x100] sm:$0xff]
                  %1447 = vst [vmem:[%s1381 + $0x100] sm:$0xff] %v1446
                  %v1448 = vld [vmem:[%s1380 + $0x108] sm:$0xff]
                  %1449 = vst [vmem:[%s1381 + $0x108] sm:$0xff] %v1448
                  %v1450 = vld [vmem:[%s1380 + $0x110] sm:$0xff]
                  %1451 = vst [vmem:[%s1381 + $0x110] sm:$0xff] %v1450
                  %v1452 = vld [vmem:[%s1380 + $0x118] sm:$0xff]
                  %1453 = vst [vmem:[%s1381 + $0x118] sm:$0xff] %v1452
                  %v1454 = vld [vmem:[%s1380 + $0x120] sm:$0xff]
                  %1455 = vst [vmem:[%s1381 + $0x120] sm:$0xff] %v1454
                  %v1456 = vld [vmem:[%s1380 + $0x128] sm:$0xff]
                  %1457 = vst [vmem:[%s1381 + $0x128] sm:$0xff] %v1456
                  %v1458 = vld [vmem:[%s1380 + $0x130] sm:$0xff]
                  %1459 = vst [vmem:[%s1381 + $0x130] sm:$0xff] %v1458
                  %v1460 = vld [vmem:[%s1380 + $0x138] sm:$0xff]
                  %1461 = vst [vmem:[%s1381 + $0x138] sm:$0xff] %v1460
                  %v1462 = vld [vmem:[%s1380 + $0x140] sm:$0xff]
                  %1463 = vst [vmem:[%s1381 + $0x140] sm:$0xff] %v1462
                  %v1464 = vld [vmem:[%s1380 + $0x148] sm:$0xff]
                  %1465 = vst [vmem:[%s1381 + $0x148] sm:$0xff] %v1464
                  %v1466 = vld [vmem:[%s1380 + $0x150] sm:$0xff]
                  %1467 = vst [vmem:[%s1381 + $0x150] sm:$0xff] %v1466
                  %v1468 = vld [vmem:[%s1380 + $0x158] sm:$0xff]
                  %1469 = vst [vmem:[%s1381 + $0x158] sm:$0xff] %v1468
                  %v1470 = vld [vmem:[%s1380 + $0x160] sm:$0xff]
                  %1471 = vst [vmem:[%s1381 + $0x160] sm:$0xff] %v1470
                  %v1472 = vld [vmem:[%s1380 + $0x168] sm:$0xff]
                  %1473 = vst [vmem:[%s1381 + $0x168] sm:$0xff] %v1472
                  %v1474 = vld [vmem:[%s1380 + $0x170] sm:$0xff]
                  %1475 = vst [vmem:[%s1381 + $0x170] sm:$0xff] %v1474
                  %v1476 = vld [vmem:[%s1380 + $0x178] sm:$0xff]
                  %1477 = vst [vmem:[%s1381 + $0x178] sm:$0xff] %v1476
                  %v1478 = vld [vmem:[%s1380 + $0x180] sm:$0xff]
                  %1479 = vst [vmem:[%s1381 + $0x180] sm:$0xff] %v1478
                  %v1480 = vld [vmem:[%s1380 + $0x188] sm:$0xff]
                  %1481 = vst [vmem:[%s1381 + $0x188] sm:$0xff] %v1480
                  %v1482 = vld [vmem:[%s1380 + $0x190] sm:$0xff]
                  %1483 = vst [vmem:[%s1381 + $0x190] sm:$0xff] %v1482
                  %v1484 = vld [vmem:[%s1380 + $0x198] sm:$0xff]
                  %1485 = vst [vmem:[%s1381 + $0x198] sm:$0xff] %v1484
                  %v1486 = vld [vmem:[%s1380 + $0x1a0] sm:$0xff]
                  %1487 = vst [vmem:[%s1381 + $0x1a0] sm:$0xff] %v1486
                  %v1488 = vld [vmem:[%s1380 + $0x1a8] sm:$0xff]
                  %1489 = vst [vmem:[%s1381 + $0x1a8] sm:$0xff] %v1488
                  %v1490 = vld [vmem:[%s1380 + $0x1b0] sm:$0xff]
                  %1491 = vst [vmem:[%s1381 + $0x1b0] sm:$0xff] %v1490
                  %v1492 = vld [vmem:[%s1380 + $0x1b8] sm:$0xff]
                  %1493 = vst [vmem:[%s1381 + $0x1b8] sm:$0xff] %v1492
                  %v1494 = vld [vmem:[%s1380 + $0x1c0] sm:$0xff]
                  %1495 = vst [vmem:[%s1381 + $0x1c0] sm:$0xff] %v1494
                  %v1496 = vld [vmem:[%s1380 + $0x1c8] sm:$0xff]
                  %1497 = vst [vmem:[%s1381 + $0x1c8] sm:$0xff] %v1496
                  %v1498 = vld [vmem:[%s1380 + $0x1d0] sm:$0xff]
                  %1499 = vst [vmem:[%s1381 + $0x1d0] sm:$0xff] %v1498
                  %v1500 = vld [vmem:[%s1380 + $0x1d8] sm:$0xff]
                  %1501 = vst [vmem:[%s1381 + $0x1d8] sm:$0xff] %v1500
                  %v1502 = vld [vmem:[%s1380 + $0x1e0] sm:$0xff]
                  %1503 = vst [vmem:[%s1381 + $0x1e0] sm:$0xff] %v1502
                  %v1504 = vld [vmem:[%s1380 + $0x1e8] sm:$0xff]
                  %1505 = vst [vmem:[%s1381 + $0x1e8] sm:$0xff] %v1504
                  %v1506 = vld [vmem:[%s1380 + $0x1f0] sm:$0xff]
                  %1507 = vst [vmem:[%s1381 + $0x1f0] sm:$0xff] %v1506
                  %v1508 = vld [vmem:[%s1380 + $0x1f8] sm:$0xff]
                  %1509 = vst [vmem:[%s1381 + $0x1f8] sm:$0xff] %v1508
                  %s1510 = sadd.s32 1, %s1379
                  %p1511 = scmp.ge.s32.totalorder %s1510, %s1370
                  %s1512 = scalar_select %p1511, 0, %s1510
                  %s1513 = smul.u32 %s1512, 512
                  %s1514 = smul.u32 %s1512, 512
                  %s1515 = scalar_lea.vmem %s1144, %s1513 [#allocation3]
                  %s1516 = scalar_lea.vmem %s1155, %s1514
                $region148: #{actor_forward.6} parent=142 // loop_footer
                  %s1376 = sadd.s32 %s1374, 1
                $region149: #{actor_forward.6} parent=142 // loop_footer_branch
                  %1373 = sbr.rel target = $region145
                $region150: #{actor_forward.6} parent=142 // loop_exit
                  _
                %s1517 = sshrl.u32 %s1369, 6
                %s1518 = sand.u32 %s1369, 63
                %s1519 = smul.u32 %s1517, 64
                %s1520 = smul.u32 128, %s1519
                %s1521 = sshra.s32 %s1520, 4
                %s1522 = scalar_lea.vmem %s1144, %s1521 [#allocation3]
                %s1523 = smul.u32 128, %s1519
                %s1524 = sshra.s32 %s1523, 4
                %s1525 = scalar_lea.vmem %s1155, %s1524
                // While loop
                $region151: #{actor_forward.6} parent=142 // loop_pre_header
                  _
                $region152: #{actor_forward.6} parent=142 // loop_header
                  %s1529 = sphi 0, %s1531
                  %p1530 = scmp.ge.s32.totalorder %s1529, %s1518
                  %s1534 = sphi 0, %s1541
                  %s1535 = sphi %s1522, %s1544
                  %s1536 = sphi %s1525, %s1545
                $region153: #{actor_forward.6} parent=142 // loop_header_branch
                  %1533 = sbr.rel (%p1530) target = $region157
                $region154: #{actor_forward.6} parent=142 // loop_body
                  %v1537 = vld [vmem:[%s1535] sm:$0xff]
                  %1538 = vst [vmem:[%s1536] sm:$0xff] %v1537
                  %s1539 = sadd.s32 1, %s1534
                  %p1540 = scmp.ge.s32.totalorder %s1539, %s1518
                  %s1541 = scalar_select %p1540, 0, %s1539
                  %s1542 = smul.u32 %s1541, 8
                  %s1543 = smul.u32 %s1541, 8
                  %s1544 = scalar_lea.vmem %s1522, %s1542 [#allocation3]
                  %s1545 = scalar_lea.vmem %s1525, %s1543
                $region155: #{actor_forward.6} parent=142 // loop_footer
                  %s1531 = sadd.s32 %s1529, 1
                $region156: #{actor_forward.6} parent=142 // loop_footer_branch
                  %1528 = sbr.rel target = $region152
                $region157: #{actor_forward.6} parent=142 // loop_exit
                  _
                %s1546 = sshll.u32 1, %s1364
                %s1547 = ssub.s32 %s1546, 1
                loop: start=0, step=1, limit=1
                $region158: #{actor_forward.6} parent=142 // loop_pre_header
                  _
                $region159: #{actor_forward.6} parent=142 // loop_header
                  %s1549 = sphi 0, %s1553
                  %p1550 = scmp.ge.s32.totalorder %s1549, 1
                  %s1554 = sphi %s1366, %s1366
                  %s1555 = sphi %s1368, %s1368
                $region160: #{actor_forward.6} parent=142 // loop_header_branch
                  %1552 = sbr.rel (%p1550) target = $region164
                $region161: #{actor_forward.6} parent=142 // loop_body
                  %v1556 = vld [vmem:[%s1554] sm:%s1547]
                  %1557 = vst [vmem:[%s1555] sm:%s1547] %v1556
                $region162: #{actor_forward.6} parent=142 // loop_footer
                  %s1553 = sadd.s32 1, %s1549
                $region163: #{actor_forward.6} parent=142 // loop_footer_branch
                  %1548 = sbr.rel target = $region159
                $region164: #{actor_forward.6} parent=142 // loop_exit
                  _
              $region143: #{actor_forward.6} parent=109 // pred_fallthru
                _
            $region110: #{actor_forward.6} parent=105 // pred_fallthru
              _
            // Predicated region
            $region111: #{actor_forward.6} parent=105 // pred_check
              %p1164 = pneg %p1160
            $region112: #{actor_forward.6} parent=105 // pred_check_branch
              %1166 = sbr.rel (%p1164) target = $region114
            $region113: #{actor_forward.6} parent=105 // pred_region
              %s1167 = sshll.u32 1, %s1156
              %s1168 = ssub.s32 %s1167, 1
              loop: start=0, step=1, limit=1
              $region115: #{actor_forward.6} parent=113 // loop_pre_header
                _
              $region116: #{actor_forward.6} parent=113 // loop_header
                %s1170 = sphi 0, %s1174
                %p1171 = scmp.ge.s32.totalorder %s1170, 1
                %s1175 = sphi %s1144, %s1144
                %s1176 = sphi %s1155, %s1155
              $region117: #{actor_forward.6} parent=113 // loop_header_branch
                %1173 = sbr.rel (%p1171) target = $region121
              $region118: #{actor_forward.6} parent=113 // loop_body
                %v1177 = vld [vmem:[%s1175] sm:%s1168]
                %1178 = vst [vmem:[%s1176] sm:%s1168] %v1177
              $region119: #{actor_forward.6} parent=113 // loop_footer
                %s1174 = sadd.s32 1, %s1170
              $region120: #{actor_forward.6} parent=113 // loop_footer_branch
                %1169 = sbr.rel target = $region116
              $region121: #{actor_forward.6} parent=113 // loop_exit
                _
            $region114: #{actor_forward.6} parent=105 // pred_fallthru
              _
          $region106: #{actor_forward.6} parent=101 // pred_fallthru
            _
          %1558 = vnop
        $region102: #{actor_forward.6} parent=93 // pred_fallthru
          _
      $region94: #{actor_forward.6} parent=5 // pred_fallthru
        _
      %p1559 = scmp.le.s32.totalorder 2, %s9
      // Predicated region
      $region165: #{actor_forward.6} parent=5 // pred_check
        %p1560 = pneg %p1559
      $region166: #{actor_forward.6} parent=5 // pred_check_branch
        %1562 = sbr.rel (%p1560) target = $region168
      $region167: #{actor_forward.6} parent=5 // pred_region
        %s1563 = ssub.s32 %s9, 2
        // Predicated region
        $region169: #{actor_forward.6} parent=167 // pred_check
          %p1564 = pneg %p106
        $region170: #{actor_forward.6} parent=167 // pred_check_branch
          %1566 = sbr.rel (%p1564) target = $region172
        $region171: #{actor_forward.6} parent=167 // pred_region
          %s1567 = sand.u32 %s91, 1
          %s1568 = sand.u32 %s91, 1
          %s1569 = smul.addr %s1568, 16
          %s1570 = scalar_lea.vmem [#allocation3], %s1569
        $region172: #{actor_forward.6} parent=167 // pred_fallthru
          _
      $region168: #{actor_forward.6} parent=5 // pred_fallthru
        _
    $region6: #{actor_forward.6} parent=1 // loop_footer
      %s13 = sadd.s32 1, %s9
    $region7: #{actor_forward.6} parent=1 // loop_footer_branch
      %8 = sbr.rel target = $region3
    $region8: #{actor_forward.6} parent=1 // loop_exit
      _

// kernel: actor_forward.7
$region0: #{actor_forward.7}
  #allocation0 [shape = 'u32[]', space=smem, size = 0x4, offset = 0x4, fixed_abs, tag = 'smem constant byte address 0x4 - core index']
  #allocation1 [shape = 'u32[144,128]{1,0:T(1,128)}', space=vmem, size = 0x12000, scoped, tag = 'internal scratch']
  %s0 = inlined_call_operand.vmem [shape: bf16[4,150], index: 0, kind: input, shape index: {}]
  %s1 = inlined_call_operand.vmem [shape: f32[4,1], index: 1, kind: input, shape index: {}]
  %s2 = inlined_call_operand.vmem [shape: bf16[150,3196], index: 2, kind: input, shape index: {}]
  %s3 = inlined_call_operand.vmem [shape: bf16[4,3196], index: 3, kind: output, shape index: {}]
  %s4 = sld [smem:[#allocation0]]
  $region173: #{actor_forward.7} parent=0
    _
  %s6 = ssub.s32 1, %s4
  %s7 = scalar_select 0, %s6, %s4
  $region1: #{actor_forward.7} parent=0
    #allocation2 [shape = 'u8[311296]{0}', space=vmem, size = 0x4c000, scoped, tag = 'input window, operand 2']
    #allocation3 [shape = 'u8[8192]{0}', space=vmem, size = 0x2000, scoped, tag = 'output window, operand 0']
    loop: start=0, step=1, limit=9
    $region2: #{actor_forward.7} parent=1 // loop_pre_header
      _
    $region3: #{actor_forward.7} parent=1 // loop_header
      %s9 = sphi 0, %s13
      %p10 = scmp.ge.s32.totalorder %s9, 9
      %s17 = sphi 0, %s17
      %s19 = sphi 0, %s17
      %s20 = sphi 0, %s19
      %s34 = sphi 0, %s20
      %s38 = sphi 0, %s38
      %s40 = sphi 0, %s38
      %s41 = sphi 0, %s40
      %s55 = sphi 0, %s41
      %s61 = sphi 0, %s63
      %s64 = sphi 0, %s61
      %s65 = sphi 0, %s64
      %s81 = sphi 0, %s65
      %s87 = sphi 0, %s89
      %s90 = sphi 0, %s87
      %s91 = sphi 0, %s90
      %s107 = sphi 0, %s91
    $region4: #{actor_forward.7} parent=1 // loop_header_branch
      %12 = sbr.rel (%p10) target = $region8
    $region5: #{actor_forward.7} parent=1 // loop_body
      %s14 = ssub.s32 %s9, 1
      %s15 = ssub.s32 %s9, 2
      %s16 = sadd.s32 %s9, 1
      %s18 = sadd.s32 %s17, 1
      %p21 = scmp.eq.s32.totalorder %s9, 6
      %p22 = scmp.ne.s32.totalorder %s17, %s19
      %p23 = scmp.eq.s32.totalorder %s9, 0
      %p24 = por %p22, %p23
      %p25 = scmp.ne.s32.totalorder %s17, %s19
      %p26 = scmp.eq.s32.totalorder %s14, 6
      %p27 = por %p25, %p26
      %p28 = scmp.ne.s32.totalorder %s19, %s20
      %p29 = scmp.eq.s32.totalorder %s14, 0
      %p30 = por %p28, %p29
      %p31 = scmp.ne.s32.totalorder %s19, %s20
      %p32 = scmp.eq.s32.totalorder %s15, 6
      %p33 = por %p31, %p32
      %p35 = scmp.ne.s32.totalorder %s20, %s34
      %p36 = scmp.eq.s32.totalorder %s15, 0
      %p37 = por %p35, %p36
      %s39 = sadd.s32 %s38, 1
      %p42 = scmp.eq.s32.totalorder %s9, 6
      %p43 = scmp.ne.s32.totalorder %s38, %s40
      %p44 = scmp.eq.s32.totalorder %s9, 0
      %p45 = por %p43, %p44
      %p46 = scmp.ne.s32.totalorder %s38, %s40
      %p47 = scmp.eq.s32.totalorder %s14, 6
      %p48 = por %p46, %p47
      %p49 = scmp.ne.s32.totalorder %s40, %s41
      %p50 = scmp.eq.s32.totalorder %s14, 0
      %p51 = por %p49, %p50
      %p52 = scmp.ne.s32.totalorder %s40, %s41
      %p53 = scmp.eq.s32.totalorder %s15, 6
      %p54 = por %p52, %p53
      %p56 = scmp.ne.s32.totalorder %s41, %s55
      %p57 = scmp.eq.s32.totalorder %s15, 0
      %p58 = por %p56, %p57
      %s59 = ssub.s32 %s9, %s16
      %p60 = scmp.eq.s32.totalorder %s59, 0
      %s62 = sadd.s32 %s61, 1
      %s63 = scalar_select %p60, %s61, %s62
      %p66 = pneg %p60
      %p67 = scmp.eq.s32.totalorder %s9, 6
      %p68 = por %p66, %p67
      %p69 = scmp.ne.s32.totalorder %s61, %s64
      %p70 = scmp.eq.s32.totalorder %s9, 0
      %p71 = por %p69, %p70
      %p72 = scmp.ne.s32.totalorder %s61, %s64
      %p73 = scmp.eq.s32.totalorder %s14, 6
      %p74 = por %p72, %p73
      %p75 = scmp.ne.s32.totalorder %s64, %s65
      %p76 = scmp.eq.s32.totalorder %s14, 0
      %p77 = por %p75, %p76
      %p78 = scmp.ne.s32.totalorder %s64, %s65
      %p79 = scmp.eq.s32.totalorder %s15, 6
      %p80 = por %p78, %p79
      %p82 = scmp.ne.s32.totalorder %s65, %s81
      %p83 = scmp.eq.s32.totalorder %s15, 0
      %p84 = por %p82, %p83
      %s85 = ssub.s32 %s9, %s16
      %p86 = scmp.eq.s32.totalorder %s85, 0
      %s88 = sadd.s32 %s87, 1
      %s89 = scalar_select %p86, %s87, %s88
      %p92 = pneg %p86
      %p93 = scmp.eq.s32.totalorder %s9, 6
      %p94 = por %p92, %p93
      %p95 = scmp.ne.s32.totalorder %s87, %s90
      %p96 = scmp.eq.s32.totalorder %s9, 0
      %p97 = por %p95, %p96
      %p98 = scmp.ne.s32.totalorder %s87, %s90
      %p99 = scmp.eq.s32.totalorder %s14, 6
      %p100 = por %p98, %p99
      %p101 = scmp.ne.s32.totalorder %s90, %s91
      %p102 = scmp.eq.s32.totalorder %s14, 0
      %p103 = por %p101, %p102
      %p104 = scmp.ne.s32.totalorder %s90, %s91
      %p105 = scmp.eq.s32.totalorder %s15, 6
      %p106 = por %p104, %p105
      %p108 = scmp.ne.s32.totalorder %s91, %s107
      %p109 = scmp.eq.s32.totalorder %s15, 0
      %p110 = por %p108, %p109
      %p111 = scmp.le.s32.totalorder 1, %s9
      %p112 = scmp.lt.s32.totalorder %s9, 8
      %p113 = pnand %p111, %p112
      %p114 = pneg %p113
      // Predicated region
      $region9: #{actor_forward.7} parent=5 // pred_check
        _
      $region10: #{actor_forward.7} parent=5 // pred_check_branch
        %116 = sbr.rel (%p113) target = $region12
      $region11: #{actor_forward.7} parent=5 // pred_region
        %s117 = ssub.s32 %s9, 1
        // Predicated region
        $region13: #{actor_forward.7} parent=11 // pred_check
          %p118 = pneg %p30
        $region14: #{actor_forward.7} parent=11 // pred_check_branch
          %120 = sbr.rel (%p118) target = $region16
        $region15: #{actor_forward.7} parent=11 // pred_region
          _
        $region16: #{actor_forward.7} parent=11 // pred_fallthru
          _
        // Predicated region
        $region17: #{actor_forward.7} parent=11 // pred_check
          %p121 = pneg %p51
        $region18: #{actor_forward.7} parent=11 // pred_check_branch
          %123 = sbr.rel (%p121) target = $region20
        $region19: #{actor_forward.7} parent=11 // pred_region
          _
        $region20: #{actor_forward.7} parent=11 // pred_fallthru
          _
      $region12: #{actor_forward.7} parent=5 // pred_fallthru
        _
      %p124 = scmp.lt.s32.totalorder %s9, 7
      // Predicated region
      $region21: #{actor_forward.7} parent=5 // pred_check
        %p125 = pneg %p124
      $region22: #{actor_forward.7} parent=5 // pred_check_branch
        %127 = sbr.rel (%p125) target = $region24
      $region23: #{actor_forward.7} parent=5 // pred_region
        // Predicated region
        $region25: #{actor_forward.7} parent=23 // pred_check
          %p128 = pneg %p71
        $region26: #{actor_forward.7} parent=23 // pred_check_branch
          %130 = sbr.rel (%p128) target = $region28
        $region27: #{actor_forward.7} parent=23 // pred_region
          %s131 = sand.u32 %s61, 1
          %s132 = sand.u32 %s61, 1
          %s133 = smul.addr %s132, 304
          %s134 = scalar_lea.vmem [#allocation2], %s133
          %s135 = smul.u32 4, %s9
          %s136 = ssub.s32 25, %s135
          %p137 = scmp.lt.s32.totalorder %s136, 4
          %s138 = scalar_select %p137, %s136, 4
          %s139 = smul.u32 1216, %s138
          %p140 = scmp.ne.s32.totalorder 0, %s139
          %s141 = smul.addr %s135, 4
          %s142 = scalar_lea.vmem %s2, %s141
          %s143 = smul.u32 %s138, 4
          // Predicated region
          $region29: #{actor_forward.7} parent=27 // pred_check
            %p144 = pneg %p140
          $region30: #{actor_forward.7} parent=27 // pred_check_branch
            %146 = sbr.rel (%p144) target = $region32
          $region31: #{actor_forward.7} parent=27 // pred_region
            %p147 = scmp.lt.u32.totalorder %s143, 8
            %p148 = pneg %p147
            // Predicated region
            $region33: #{actor_forward.7} parent=31 // pred_check
              _
            $region34: #{actor_forward.7} parent=31 // pred_check_branch
              %150 = sbr.rel (%p147) target = $region36
            $region35: #{actor_forward.7} parent=31 // pred_region
              %s202 = sand.u32 %s143, 7
              %p203 = scmp.eq.s32.totalorder %s202, 0
              // Predicated region
              $region48: #{actor_forward.7} parent=35 // pred_check
                %p204 = pneg %p203
              $region49: #{actor_forward.7} parent=35 // pred_check_branch
                %206 = sbr.rel (%p204) target = $region51
              $region50: #{actor_forward.7} parent=35 // pred_region
                %s207 = sshrl.u32 %s143, 3
                %s208 = sshrl.u32 %s207, 2
                // While loop
                $region52: #{actor_forward.7} parent=50 // loop_pre_header
                  _
                $region53: #{actor_forward.7} parent=50 // loop_header
                  %s212 = sphi 0, %s214
                  %p213 = scmp.ge.s32.totalorder %s212, %s208
                  %s217 = sphi 0, %s374
                  %s218 = sphi %s142, %s377
                  %s219 = sphi %s134, %s378
                $region54: #{actor_forward.7} parent=50 // loop_header_branch
                  %216 = sbr.rel (%p213) target = $region58
                $region55: #{actor_forward.7} parent=50 // loop_body
                  %v220 = vld [vmem:[%s218] sm:$0xff]
                  %221 = vst [vmem:[%s219] sm:$0xff] %v220
                  %v222 = vld [vmem:[%s218 + $0x8] sm:$0xff]
                  %223 = vst [vmem:[%s219 + $0x8] sm:$0xff] %v222
                  %v224 = vld [vmem:[%s218 + $0x10] sm:$0xff]
                  %225 = vst [vmem:[%s219 + $0x10] sm:$0xff] %v224
                  %v226 = vld [vmem:[%s218 + $0x18] sm:$0xff]
                  %227 = vst [vmem:[%s219 + $0x18] sm:$0xff] %v226
                  %v228 = vld [vmem:[%s218 + $0x64] sm:$0xff]
                  %229 = vst [vmem:[%s219 + $0x10] sm:$0xff] %v228
                  %v230 = vld [vmem:[%s218 + $0x6c] sm:$0xff]
                  %231 = vst [vmem:[%s219 + $0x18] sm:$0xff] %v230
                  %v232 = vld [vmem:[%s218 + $0x74] sm:$0xff]
                  %233 = vst [vmem:[%s219 + $0x20] sm:$0xff] %v232
                  %v234 = vld [vmem:[%s218 + $0x7c] sm:$0xff]
                  %235 = vst [vmem:[%s219 + $0x28] sm:$0xff] %v234
                  %v236 = vld [vmem:[%s218 + $0xc8] sm:$0xff]
                  %237 = vst [vmem:[%s219 + $0x20] sm:$0xff] %v236
                  %v238 = vld [vmem:[%s218 + $0xd0] sm:$0xff]
                  %239 = vst [vmem:[%s219 + $0x28] sm:$0xff] %v238
                  %v240 = vld [vmem:[%s218 + $0xd8] sm:$0xff]
                  %241 = vst [vmem:[%s219 + $0x30] sm:$0xff] %v240
                  %v242 = vld [vmem:[%s218 + $0xe0] sm:$0xff]
                  %243 = vst [vmem:[%s219 + $0x38] sm:$0xff] %v242
                  %v244 = vld [vmem:[%s218 + $0x12c] sm:$0xff]
                  %245 = vst [vmem:[%s219 + $0x30] sm:$0xff] %v244
                  %v246 = vld [vmem:[%s218 + $0x134] sm:$0xff]
                  %247 = vst [vmem:[%s219 + $0x38] sm:$0xff] %v246
                  %v248 = vld [vmem:[%s218 + $0x13c] sm:$0xff]
                  %249 = vst [vmem:[%s219 + $0x40] sm:$0xff] %v248
                  %v250 = vld [vmem:[%s218 + $0x144] sm:$0xff]
                  %251 = vst [vmem:[%s219 + $0x48] sm:$0xff] %v250
                  %v252 = vld [vmem:[%s218 + $0x190] sm:$0xff]
                  %253 = vst [vmem:[%s219 + $0x40] sm:$0xff] %v252
                  %v254 = vld [vmem:[%s218 + $0x198] sm:$0xff]
                  %255 = vst [vmem:[%s219 + $0x48] sm:$0xff] %v254
                  %v256 = vld [vmem:[%s218 + $0x1a0] sm:$0xff]
                  %257 = vst [vmem:[%s219 + $0x50] sm:$0xff] %v256
                  %v258 = vld [vmem:[%s218 + $0x1a8] sm:$0xff]
                  %259 = vst [vmem:[%s219 + $0x58] sm:$0xff] %v258
                  %v260 = vld [vmem:[%s218 + $0x1f4] sm:$0xff]
                  %261 = vst [vmem:[%s219 + $0x50] sm:$0xff] %v260
                  %v262 = vld [vmem:[%s218 + $0x1fc] sm:$0xff]
                  %263 = vst [vmem:[%s219 + $0x58] sm:$0xff] %v262
                  %v264 = vld [vmem:[%s218 + $0x204] sm:$0xff]
                  %265 = vst [vmem:[%s219 + $0x60] sm:$0xff] %v264
                  %v266 = vld [vmem:[%s218 + $0x20c] sm:$0xff]
                  %267 = vst [vmem:[%s219 + $0x68] sm:$0xff] %v266
                  %v268 = vld [vmem:[%s218 + $0x258] sm:$0xff]
                  %269 = vst [vmem:[%s219 + $0x60] sm:$0xff] %v268
                  %v270 = vld [vmem:[%s218 + $0x260] sm:$0xff]
                  %271 = vst [vmem:[%s219 + $0x68] sm:$0xff] %v270
                  %v272 = vld [vmem:[%s218 + $0x268] sm:$0xff]
                  %273 = vst [vmem:[%s219 + $0x70] sm:$0xff] %v272
                  %v274 = vld [vmem:[%s218 + $0x270] sm:$0xff]
                  %275 = vst [vmem:[%s219 + $0x78] sm:$0xff] %v274
                  %v276 = vld [vmem:[%s218 + $0x2bc] sm:$0xff]
                  %277 = vst [vmem:[%s219 + $0x70] sm:$0xff] %v276
                  %v278 = vld [vmem:[%s218 + $0x2c4] sm:$0xff]
                  %279 = vst [vmem:[%s219 + $0x78] sm:$0xff] %v278
                  %v280 = vld [vmem:[%s218 + $0x2cc] sm:$0xff]
                  %281 = vst [vmem:[%s219 + $0x80] sm:$0xff] %v280
                  %v282 = vld [vmem:[%s218 + $0x2d4] sm:$0xff]
                  %283 = vst [vmem:[%s219 + $0x88] sm:$0xff] %v282
                  %v284 = vld [vmem:[%s218 + $0x320] sm:$0xff]
                  %285 = vst [vmem:[%s219 + $0x80] sm:$0xff] %v284
                  %v286 = vld [vmem:[%s218 + $0x328] sm:$0xff]
                  %287 = vst [vmem:[%s219 + $0x88] sm:$0xff] %v286
                  %v288 = vld [vmem:[%s218 + $0x330] sm:$0xff]
                  %289 = vst [vmem:[%s219 + $0x90] sm:$0xff] %v288
                  %v290 = vld [vmem:[%s218 + $0x338] sm:$0xff]
                  %291 = vst [vmem:[%s219 + $0x98] sm:$0xff] %v290
                  %v292 = vld [vmem:[%s218 + $0x384] sm:$0xff]
                  %293 = vst [vmem:[%s219 + $0x90] sm:$0xff] %v292
                  %v294 = vld [vmem:[%s218 + $0x38c] sm:$0xff]
                  %295 = vst [vmem:[%s219 + $0x98] sm:$0xff] %v294
                  %v296 = vld [vmem:[%s218 + $0x394] sm:$0xff]
                  %297 = vst [vmem:[%s219 + $0xa0] sm:$0xff] %v296
                  %v298 = vld [vmem:[%s218 + $0x39c] sm:$0xff]
                  %299 = vst [vmem:[%s219 + $0xa8] sm:$0xff] %v298
                  %v300 = vld [vmem:[%s218 + $0x3e8] sm:$0xff]
                  %301 = vst [vmem:[%s219 + $0xa0] sm:$0xff] %v300
                  %v302 = vld [vmem:[%s218 + $0x3f0] sm:$0xff]
                  %303 = vst [vmem:[%s219 + $0xa8] sm:$0xff] %v302
                  %v304 = vld [vmem:[%s218 + $0x3f8] sm:$0xff]
                  %305 = vst [vmem:[%s219 + $0xb0] sm:$0xff] %v304
                  %v306 = vld [vmem:[%s218 + $0x400] sm:$0xff]
                  %307 = vst [vmem:[%s219 + $0xb8] sm:$0xff] %v306
                  %v308 = vld [vmem:[%s218 + $0x44c] sm:$0xff]
                  %309 = vst [vmem:[%s219 + $0xb0] sm:$0xff] %v308
                  %v310 = vld [vmem:[%s218 + $0x454] sm:$0xff]
                  %311 = vst [vmem:[%s219 + $0xb8] sm:$0xff] %v310
                  %v312 = vld [vmem:[%s218 + $0x45c] sm:$0xff]
                  %313 = vst [vmem:[%s219 + $0xc0] sm:$0xff] %v312
                  %v314 = vld [vmem:[%s218 + $0x464] sm:$0xff]
                  %315 = vst [vmem:[%s219 + $0xc8] sm:$0xff] %v314
                  %v316 = vld [vmem:[%s218 + $0x4b0] sm:$0xff]
                  %317 = vst [vmem:[%s219 + $0xc0] sm:$0xff] %v316
                  %v318 = vld [vmem:[%s218 + $0x4b8] sm:$0xff]
                  %319 = vst [vmem:[%s219 + $0xc8] sm:$0xff] %v318
                  %v320 = vld [vmem:[%s218 + $0x4c0] sm:$0xff]
                  %321 = vst [vmem:[%s219 + $0xd0] sm:$0xff] %v320
                  %v322 = vld [vmem:[%s218 + $0x4c8] sm:$0xff]
                  %323 = vst [vmem:[%s219 + $0xd8] sm:$0xff] %v322
                  %v324 = vld [vmem:[%s218 + $0x514] sm:$0xff]
                  %325 = vst [vmem:[%s219 + $0xd0] sm:$0xff] %v324
                  %v326 = vld [vmem:[%s218 + $0x51c] sm:$0xff]
                  %327 = vst [vmem:[%s219 + $0xd8] sm:$0xff] %v326
                  %v328 = vld [vmem:[%s218 + $0x524] sm:$0xff]
                  %329 = vst [vmem:[%s219 + $0xe0] sm:$0xff] %v328
                  %v330 = vld [vmem:[%s218 + $0x52c] sm:$0xff]
                  %331 = vst [vmem:[%s219 + $0xe8] sm:$0xff] %v330
                  %v332 = vld [vmem:[%s218 + $0x578] sm:$0xff]
                  %333 = vst [vmem:[%s219 + $0xe0] sm:$0xff] %v332
                  %v334 = vld [vmem:[%s218 + $0x580] sm:$0xff]
                  %335 = vst [vmem:[%s219 + $0xe8] sm:$0xff] %v334
                  %v336 = vld [vmem:[%s218 + $0x588] sm:$0xff]
                  %337 = vst [vmem:[%s219 + $0xf0] sm:$0xff] %v336
                  %v338 = vld [vmem:[%s218 + $0x590] sm:$0xff]
                  %339 = vst [vmem:[%s219 + $0xf8] sm:$0xff] %v338
                  %v340 = vld [vmem:[%s218 + $0x5dc] sm:$0xff]
                  %341 = vst [vmem:[%s219 + $0xf0] sm:$0xff] %v340
                  %v342 = vld [vmem:[%s218 + $0x5e4] sm:$0xff]
                  %343 = vst [vmem:[%s219 + $0xf8] sm:$0xff] %v342
                  %v344 = vld [vmem:[%s218 + $0x5ec] sm:$0xff]
                  %345 = vst [vmem:[%s219 + $0x100] sm:$0xff] %v344
                  %v346 = vld [vmem:[%s218 + $0x5f4] sm:$0xff]
                  %347 = vst [vmem:[%s219 + $0x108] sm:$0xff] %v346
                  %v348 = vld [vmem:[%s218 + $0x640] sm:$0xff]
                  %349 = vst [vmem:[%s219 + $0x100] sm:$0xff] %v348
                  %v350 = vld [vmem:[%s218 + $0x648] sm:$0xff]
                  %351 = vst [vmem:[%s219 + $0x108] sm:$0xff] %v350
                  %v352 = vld [vmem:[%s218 + $0x650] sm:$0xff]
                  %353 = vst [vmem:[%s219 + $0x110] sm:$0xff] %v352
                  %v354 = vld [vmem:[%s218 + $0x658] sm:$0xff]
                  %355 = vst [vmem:[%s219 + $0x118] sm:$0xff] %v354
                  %v356 = vld [vmem:[%s218 + $0x6a4] sm:$0xff]
                  %357 = vst [vmem:[%s219 + $0x110] sm:$0xff] %v356
                  %v358 = vld [vmem:[%s218 + $0x6ac] sm:$0xff]
                  %359 = vst [vmem:[%s219 + $0x118] sm:$0xff] %v358
                  %v360 = vld [vmem:[%s218 + $0x6b4] sm:$0xff]
                  %361 = vst [vmem:[%s219 + $0x120] sm:$0xff] %v360
                  %v362 = vld [vmem:[%s218 + $0x6bc] sm:$0xff]
                  %363 = vst [vmem:[%s219 + $0x128] sm:$0xff] %v362
                  %v364 = vld [vmem:[%s218 + $0x708] sm:$0xff]
                  %365 = vst [vmem:[%s219 + $0x120] sm:$0xff] %v364
                  %v366 = vld [vmem:[%s218 + $0x710] sm:$0xff]
                  %367 = vst [vmem:[%s219 + $0x128] sm:$0xff] %v366
                  %v368 = vld [vmem:[%s218 + $0x718] sm:$0xff]
                  %369 = vst [vmem:[%s219 + $0x130] sm:$0xff] %v368
                  %v370 = vld [vmem:[%s218 + $0x720] sm:$0xff]
                  %371 = vst [vmem:[%s219 + $0x138] sm:$0xff] %v370
                  %s372 = sadd.s32 1, %s217
                  %p373 = scmp.ge.s32.totalorder %s372, %s208
                  %s374 = scalar_select %p373, 0, %s372
                  %s375 = smul.u32 %s374, 32
                  %s376 = smul.u32 %s374, 32
                  %s377 = scalar_lea.vmem %s142, %s375
                  %s378 = scalar_lea.vmem %s134, %s376 [#allocation2]
                $region56: #{actor_forward.7} parent=50 // loop_footer
                  %s214 = sadd.s32 %s212, 1
                $region57: #{actor_forward.7} parent=50 // loop_footer_branch
                  %211 = sbr.rel target = $region53
                $region58: #{actor_forward.7} parent=50 // loop_exit
                  _
                %s379 = sshrl.u32 %s207, 2
                %s380 = sand.u32 %s207, 3
                %s381 = smul.u32 %s379, 4
                %s382 = smul.u32 128, %s381
                %s383 = sshra.s32 %s382, 4
                %s384 = scalar_lea.vmem %s142, %s383
                %s385 = smul.u32 128, %s381
                %s386 = sshra.s32 %s385, 4
                %s387 = scalar_lea.vmem %s134, %s386 [#allocation2]
                // While loop
                $region59: #{actor_forward.7} parent=50 // loop_pre_header
                  _
                $region60: #{actor_forward.7} parent=50 // loop_header
                  %s391 = sphi 0, %s393
                  %p392 = scmp.ge.s32.totalorder %s391, %s380
                  %s396 = sphi 0, %s439
                  %s397 = sphi %s384, %s442
                  %s398 = sphi %s387, %s443
                $region61: #{actor_forward.7} parent=50 // loop_header_branch
                  %395 = sbr.rel (%p392) target = $region65
                $region62: #{actor_forward.7} parent=50 // loop_body
                  %v399 = vld [vmem:[%s397] sm:$0xff]
                  %400 = vst [vmem:[%s398] sm:$0xff] %v399
                  %v401 = vld [vmem:[%s397 + $0x64] sm:$0xff]
                  %402 = vst [vmem:[%s398 + $0x10] sm:$0xff] %v401
                  %v403 = vld [vmem:[%s397 + $0xc8] sm:$0xff]
                  %404 = vst [vmem:[%s398 + $0x20] sm:$0xff] %v403
                  %v405 = vld [vmem:[%s397 + $0x12c] sm:$0xff]
                  %406 = vst [vmem:[%s398 + $0x30] sm:$0xff] %v405
                  %v407 = vld [vmem:[%s397 + $0x190] sm:$0xff]
                  %408 = vst [vmem:[%s398 + $0x40] sm:$0xff] %v407
                  %v409 = vld [vmem:[%s397 + $0x1f4] sm:$0xff]
                  %410 = vst [vmem:[%s398 + $0x50] sm:$0xff] %v409
                  %v411 = vld [vmem:[%s397 + $0x258] sm:$0xff]
                  %412 = vst [vmem:[%s398 + $0x60] sm:$0xff] %v411
                  %v413 = vld [vmem:[%s397 + $0x2bc] sm:$0xff]
                  %414 = vst [vmem:[%s398 + $0x70] sm:$0xff] %v413
                  %v415 = vld [vmem:[%s397 + $0x320] sm:$0xff]
                  %416 = vst [vmem:[%s398 + $0x80] sm:$0xff] %v415
                  %v417 = vld [vmem:[%s397 + $0x384] sm:$0xff]
                  %418 = vst [vmem:[%s398 + $0x90] sm:$0xff] %v417
                  %v419 = vld [vmem:[%s397 + $0x3e8] sm:$0xff]
                  %420 = vst [vmem:[%s398 + $0xa0] sm:$0xff] %v419
                  %v421 = vld [vmem:[%s397 + $0x44c] sm:$0xff]
                  %422 = vst [vmem:[%s398 + $0xb0] sm:$0xff] %v421
                  %v423 = vld [vmem:[%s397 + $0x4b0] sm:$0xff]
                  %424 = vst [vmem:[%s398 + $0xc0] sm:$0xff] %v423
                  %v425 = vld [vmem:[%s397 + $0x514] sm:$0xff]
                  %426 = vst [vmem:[%s398 + $0xd0] sm:$0xff] %v425
                  %v427 = vld [vmem:[%s397 + $0x578] sm:$0xff]
                  %428 = vst [vmem:[%s398 + $0xe0] sm:$0xff] %v427
                  %v429 = vld [vmem:[%s397 + $0x5dc] sm:$0xff]
                  %430 = vst [vmem:[%s398 + $0xf0] sm:$0xff] %v429
                  %v431 = vld [vmem:[%s397 + $0x640] sm:$0xff]
                  %432 = vst [vmem:[%s398 + $0x100] sm:$0xff] %v431
                  %v433 = vld [vmem:[%s397 + $0x6a4] sm:$0xff]
                  %434 = vst [vmem:[%s398 + $0x110] sm:$0xff] %v433
                  %v435 = vld [vmem:[%s397 + $0x708] sm:$0xff]
                  %436 = vst [vmem:[%s398 + $0x120] sm:$0xff] %v435
                  %s437 = sadd.s32 1, %s396
                  %p438 = scmp.ge.s32.totalorder %s437, %s380
                  %s439 = scalar_select %p438, 0, %s437
                  %s440 = smul.u32 %s439, 8
                  %s441 = smul.u32 %s439, 8
                  %s442 = scalar_lea.vmem %s384, %s440
                  %s443 = scalar_lea.vmem %s387, %s441 [#allocation2]
                $region63: #{actor_forward.7} parent=50 // loop_footer
                  %s393 = sadd.s32 %s391, 1
                $region64: #{actor_forward.7} parent=50 // loop_footer_branch
                  %390 = sbr.rel target = $region60
                $region65: #{actor_forward.7} parent=50 // loop_exit
                  _
              $region51: #{actor_forward.7} parent=35 // pred_fallthru
                _
              %p444 = pneg %p203
              // Predicated region
              $region66: #{actor_forward.7} parent=35 // pred_check
                _
              $region67: #{actor_forward.7} parent=35 // pred_check_branch
                %446 = sbr.rel (%p203) target = $region69
              $region68: #{actor_forward.7} parent=35 // pred_region
                %s447 = sand.u32 %s143, 7
                %s448 = ssub.s32 %s143, %s447
                %s449 = scalar_lea.vmem %s142, %s448
                %s450 = ssub.s32 %s143, %s447
                %s451 = scalar_lea.vmem %s134, %s450 [#allocation2]
                %s452 = sshrl.u32 %s143, 3
                %s453 = sshrl.u32 %s452, 2
                // While loop
                $region70: #{actor_forward.7} parent=68 // loop_pre_header
                  _
                $region71: #{actor_forward.7} parent=68 // loop_header
                  %s457 = sphi 0, %s459
                  %p458 = scmp.ge.s32.totalorder %s457, %s453
                  %s462 = sphi 0, %s619
                  %s463 = sphi %s142, %s622
                  %s464 = sphi %s134, %s623
                $region72: #{actor_forward.7} parent=68 // loop_header_branch
                  %461 = sbr.rel (%p458) target = $region76
                $region73: #{actor_forward.7} parent=68 // loop_body
                  %v465 = vld [vmem:[%s463] sm:$0xff]
                  %466 = vst [vmem:[%s464] sm:$0xff] %v465
                  %v467 = vld [vmem:[%s463 + $0x8] sm:$0xff]
                  %468 = vst [vmem:[%s464 + $0x8] sm:$0xff] %v467
                  %v469 = vld [vmem:[%s463 + $0x10] sm:$0xff]
                  %470 = vst [vmem:[%s464 + $0x10] sm:$0xff] %v469
                  %v471 = vld [vmem:[%s463 + $0x18] sm:$0xff]
                  %472 = vst [vmem:[%s464 + $0x18] sm:$0xff] %v471
                  %v473 = vld [vmem:[%s463 + $0x64] sm:$0xff]
                  %474 = vst [vmem:[%s464 + $0x10] sm:$0xff] %v473
                  %v475 = vld [vmem:[%s463 + $0x6c] sm:$0xff]
                  %476 = vst [vmem:[%s464 + $0x18] sm:$0xff] %v475
                  %v477 = vld [vmem:[%s463 + $0x74] sm:$0xff]
                  %478 = vst [vmem:[%s464 + $0x20] sm:$0xff] %v477
                  %v479 = vld [vmem:[%s463 + $0x7c] sm:$0xff]
                  %480 = vst [vmem:[%s464 + $0x28] sm:$0xff] %v479
                  %v481 = vld [vmem:[%s463 + $0xc8] sm:$0xff]
                  %482 = vst [vmem:[%s464 + $0x20] sm:$0xff] %v481
                  %v483 = vld [vmem:[%s463 + $0xd0] sm:$0xff]
                  %484 = vst [vmem:[%s464 + $0x28] sm:$0xff] %v483
                  %v485 = vld [vmem:[%s463 + $0xd8] sm:$0xff]
                  %486 = vst [vmem:[%s464 + $0x30] sm:$0xff] %v485
                  %v487 = vld [vmem:[%s463 + $0xe0] sm:$0xff]
                  %488 = vst [vmem:[%s464 + $0x38] sm:$0xff] %v487
                  %v489 = vld [vmem:[%s463 + $0x12c] sm:$0xff]
                  %490 = vst [vmem:[%s464 + $0x30] sm:$0xff] %v489
                  %v491 = vld [vmem:[%s463 + $0x134] sm:$0xff]
                  %492 = vst [vmem:[%s464 + $0x38] sm:$0xff] %v491
                  %v493 = vld [vmem:[%s463 + $0x13c] sm:$0xff]
                  %494 = vst [vmem:[%s464 + $0x40] sm:$0xff] %v493
                  %v495 = vld [vmem:[%s463 + $0x144] sm:$0xff]
                  %496 = vst [vmem:[%s464 + $0x48] sm:$0xff] %v495
                  %v497 = vld [vmem:[%s463 + $0x190] sm:$0xff]
                  %498 = vst [vmem:[%s464 + $0x40] sm:$0xff] %v497
                  %v499 = vld [vmem:[%s463 + $0x198] sm:$0xff]
                  %500 = vst [vmem:[%s464 + $0x48] sm:$0xff] %v499
                  %v501 = vld [vmem:[%s463 + $0x1a0] sm:$0xff]
                  %502 = vst [vmem:[%s464 + $0x50] sm:$0xff] %v501
                  %v503 = vld [vmem:[%s463 + $0x1a8] sm:$0xff]
                  %504 = vst [vmem:[%s464 + $0x58] sm:$0xff] %v503
                  %v505 = vld [vmem:[%s463 + $0x1f4] sm:$0xff]
                  %506 = vst [vmem:[%s464 + $0x50] sm:$0xff] %v505
                  %v507 = vld [vmem:[%s463 + $0x1fc] sm:$0xff]
                  %508 = vst [vmem:[%s464 + $0x58] sm:$0xff] %v507
                  %v509 = vld [vmem:[%s463 + $0x204] sm:$0xff]
                  %510 = vst [vmem:[%s464 + $0x60] sm:$0xff] %v509
                  %v511 = vld [vmem:[%s463 + $0x20c] sm:$0xff]
                  %512 = vst [vmem:[%s464 + $0x68] sm:$0xff] %v511
                  %v513 = vld [vmem:[%s463 + $0x258] sm:$0xff]
                  %514 = vst [vmem:[%s464 + $0x60] sm:$0xff] %v513
                  %v515 = vld [vmem:[%s463 + $0x260] sm:$0xff]
                  %516 = vst [vmem:[%s464 + $0x68] sm:$0xff] %v515
                  %v517 = vld [vmem:[%s463 + $0x268] sm:$0xff]
                  %518 = vst [vmem:[%s464 + $0x70] sm:$0xff] %v517
                  %v519 = vld [vmem:[%s463 + $0x270] sm:$0xff]
                  %520 = vst [vmem:[%s464 + $0x78] sm:$0xff] %v519
                  %v521 = vld [vmem:[%s463 + $0x2bc] sm:$0xff]
                  %522 = vst [vmem:[%s464 + $0x70] sm:$0xff] %v521
                  %v523 = vld [vmem:[%s463 + $0x2c4] sm:$0xff]
                  %524 = vst [vmem:[%s464 + $0x78] sm:$0xff] %v523
                  %v525 = vld [vmem:[%s463 + $0x2cc] sm:$0xff]
                  %526 = vst [vmem:[%s464 + $0x80] sm:$0xff] %v525
                  %v527 = vld [vmem:[%s463 + $0x2d4] sm:$0xff]
                  %528 = vst [vmem:[%s464 + $0x88] sm:$0xff] %v527
                  %v529 = vld [vmem:[%s463 + $0x320] sm:$0xff]
                  %530 = vst [vmem:[%s464 + $0x80] sm:$0xff] %v529
                  %v531 = vld [vmem:[%s463 + $0x328] sm:$0xff]
                  %532 = vst [vmem:[%s464 + $0x88] sm:$0xff] %v531
                  %v533 = vld [vmem:[%s463 + $0x330] sm:$0xff]
                  %534 = vst [vmem:[%s464 + $0x90] sm:$0xff] %v533
                  %v535 = vld [vmem:[%s463 + $0x338] sm:$0xff]
                  %536 = vst [vmem:[%s464 + $0x98] sm:$0xff] %v535
                  %v537 = vld [vmem:[%s463 + $0x384] sm:$0xff]
                  %538 = vst [vmem:[%s464 + $0x90] sm:$0xff] %v537
                  %v539 = vld [vmem:[%s463 + $0x38c] sm:$0xff]
                  %540 = vst [vmem:[%s464 + $0x98] sm:$0xff] %v539
                  %v541 = vld [vmem:[%s463 + $0x394] sm:$0xff]
                  %542 = vst [vmem:[%s464 + $0xa0] sm:$0xff] %v541
                  %v543 = vld [vmem:[%s463 + $0x39c] sm:$0xff]
                  %544 = vst [vmem:[%s464 + $0xa8] sm:$0xff] %v543
                  %v545 = vld [vmem:[%s463 + $0x3e8] sm:$0xff]
                  %546 = vst [vmem:[%s464 + $0xa0] sm:$0xff] %v545
                  %v547 = vld [vmem:[%s463 + $0x3f0] sm:$0xff]
                  %548 = vst [vmem:[%s464 + $0xa8] sm:$0xff] %v547
                  %v549 = vld [vmem:[%s463 + $0x3f8] sm:$0xff]
                  %550 = vst [vmem:[%s464 + $0xb0] sm:$0xff] %v549
                  %v551 = vld [vmem:[%s463 + $0x400] sm:$0xff]
                  %552 = vst [vmem:[%s464 + $0xb8] sm:$0xff] %v551
                  %v553 = vld [vmem:[%s463 + $0x44c] sm:$0xff]
                  %554 = vst [vmem:[%s464 + $0xb0] sm:$0xff] %v553
                  %v555 = vld [vmem:[%s463 + $0x454] sm:$0xff]
                  %556 = vst [vmem:[%s464 + $0xb8] sm:$0xff] %v555
                  %v557 = vld [vmem:[%s463 + $0x45c] sm:$0xff]
                  %558 = vst [vmem:[%s464 + $0xc0] sm:$0xff] %v557
                  %v559 = vld [vmem:[%s463 + $0x464] sm:$0xff]
                  %560 = vst [vmem:[%s464 + $0xc8] sm:$0xff] %v559
                  %v561 = vld [vmem:[%s463 + $0x4b0] sm:$0xff]
                  %562 = vst [vmem:[%s464 + $0xc0] sm:$0xff] %v561
                  %v563 = vld [vmem:[%s463 + $0x4b8] sm:$0xff]
                  %564 = vst [vmem:[%s464 + $0xc8] sm:$0xff] %v563
                  %v565 = vld [vmem:[%s463 + $0x4c0] sm:$0xff]
                  %566 = vst [vmem:[%s464 + $0xd0] sm:$0xff] %v565
                  %v567 = vld [vmem:[%s463 + $0x4c8] sm:$0xff]
                  %568 = vst [vmem:[%s464 + $0xd8] sm:$0xff] %v567
                  %v569 = vld [vmem:[%s463 + $0x514] sm:$0xff]
                  %570 = vst [vmem:[%s464 + $0xd0] sm:$0xff] %v569
                  %v571 = vld [vmem:[%s463 + $0x51c] sm:$0xff]
                  %572 = vst [vmem:[%s464 + $0xd8] sm:$0xff] %v571
                  %v573 = vld [vmem:[%s463 + $0x524] sm:$0xff]
                  %574 = vst [vmem:[%s464 + $0xe0] sm:$0xff] %v573
                  %v575 = vld [vmem:[%s463 + $0x52c] sm:$0xff]
                  %576 = vst [vmem:[%s464 + $0xe8] sm:$0xff] %v575
                  %v577 = vld [vmem:[%s463 + $0x578] sm:$0xff]
                  %578 = vst [vmem:[%s464 + $0xe0] sm:$0xff] %v577
                  %v579 = vld [vmem:[%s463 + $0x580] sm:$0xff]
                  %580 = vst [vmem:[%s464 + $0xe8] sm:$0xff] %v579
                  %v581 = vld [vmem:[%s463 + $0x588] sm:$0xff]
                  %582 = vst [vmem:[%s464 + $0xf0] sm:$0xff] %v581
                  %v583 = vld [vmem:[%s463 + $0x590] sm:$0xff]
                  %584 = vst [vmem:[%s464 + $0xf8] sm:$0xff] %v583
                  %v585 = vld [vmem:[%s463 + $0x5dc] sm:$0xff]
                  %586 = vst [vmem:[%s464 + $0xf0] sm:$0xff] %v585
                  %v587 = vld [vmem:[%s463 + $0x5e4] sm:$0xff]
                  %588 = vst [vmem:[%s464 + $0xf8] sm:$0xff] %v587
                  %v589 = vld [vmem:[%s463 + $0x5ec] sm:$0xff]
                  %590 = vst [vmem:[%s464 + $0x100] sm:$0xff] %v589
                  %v591 = vld [vmem:[%s463 + $0x5f4] sm:$0xff]
                  %592 = vst [vmem:[%s464 + $0x108] sm:$0xff] %v591
                  %v593 = vld [vmem:[%s463 + $0x640] sm:$0xff]
                  %594 = vst [vmem:[%s464 + $0x100] sm:$0xff] %v593
                  %v595 = vld [vmem:[%s463 + $0x648] sm:$0xff]
                  %596 = vst [vmem:[%s464 + $0x108] sm:$0xff] %v595
                  %v597 = vld [vmem:[%s463 + $0x650] sm:$0xff]
                  %598 = vst [vmem:[%s464 + $0x110] sm:$0xff] %v597
                  %v599 = vld [vmem:[%s463 + $0x658] sm:$0xff]
                  %600 = vst [vmem:[%s464 + $0x118] sm:$0xff] %v599
                  %v601 = vld [vmem:[%s463 + $0x6a4] sm:$0xff]
                  %602 = vst [vmem:[%s464 + $0x110] sm:$0xff] %v601
                  %v603 = vld [vmem:[%s463 + $0x6ac] sm:$0xff]
                  %604 = vst [vmem:[%s464 + $0x118] sm:$0xff] %v603
                  %v605 = vld [vmem:[%s463 + $0x6b4] sm:$0xff]
                  %606 = vst [vmem:[%s464 + $0x120] sm:$0xff] %v605
                  %v607 = vld [vmem:[%s463 + $0x6bc] sm:$0xff]
                  %608 = vst [vmem:[%s464 + $0x128] sm:$0xff] %v607
                  %v609 = vld [vmem:[%s463 + $0x708] sm:$0xff]
                  %610 = vst [vmem:[%s464 + $0x120] sm:$0xff] %v609
                  %v611 = vld [vmem:[%s463 + $0x710] sm:$0xff]
                  %612 = vst [vmem:[%s464 + $0x128] sm:$0xff] %v611
                  %v613 = vld [vmem:[%s463 + $0x718] sm:$0xff]
                  %614 = vst [vmem:[%s464 + $0x130] sm:$0xff] %v613
                  %v615 = vld [vmem:[%s463 + $0x720] sm:$0xff]
                  %616 = vst [vmem:[%s464 + $0x138] sm:$0xff] %v615
                  %s617 = sadd.s32 1, %s462
                  %p618 = scmp.ge.s32.totalorder %s617, %s453
                  %s619 = scalar_select %p618, 0, %s617
                  %s620 = smul.u32 %s619, 32
                  %s621 = smul.u32 %s619, 32
                  %s622 = scalar_lea.vmem %s142, %s620
                  %s623 = scalar_lea.vmem %s134, %s621 [#allocation2]
                $region74: #{actor_forward.7} parent=68 // loop_footer
                  %s459 = sadd.s32 %s457, 1
                $region75: #{actor_forward.7} parent=68 // loop_footer_branch
                  %456 = sbr.rel target = $region71
                $region76: #{actor_forward.7} parent=68 // loop_exit
                  _
                %s624 = sshrl.u32 %s452, 2
                %s625 = sand.u32 %s452, 3
                %s626 = smul.u32 %s624, 4
                %s627 = smul.u32 128, %s626
                %s628 = sshra.s32 %s627, 4
                %s629 = scalar_lea.vmem %s142, %s628
                %s630 = smul.u32 128, %s626
                %s631 = sshra.s32 %s630, 4
                %s632 = scalar_lea.vmem %s134, %s631 [#allocation2]
                // While loop
                $region77: #{actor_forward.7} parent=68 // loop_pre_header
                  _
                $region78: #{actor_forward.7} parent=68 // loop_header
                  %s636 = sphi 0, %s638
                  %p637 = scmp.ge.s32.totalorder %s636, %s625
                  %s641 = sphi 0, %s684
                  %s642 = sphi %s629, %s687
                  %s643 = sphi %s632, %s688
                $region79: #{actor_forward.7} parent=68 // loop_header_branch
                  %640 = sbr.rel (%p637) target = $region83
                $region80: #{actor_forward.7} parent=68 // loop_body
                  %v644 = vld [vmem:[%s642] sm:$0xff]
                  %645 = vst [vmem:[%s643] sm:$0xff] %v644
                  %v646 = vld [vmem:[%s642 + $0x64] sm:$0xff]
                  %647 = vst [vmem:[%s643 + $0x10] sm:$0xff] %v646
                  %v648 = vld [vmem:[%s642 + $0xc8] sm:$0xff]
                  %649 = vst [vmem:[%s643 + $0x20] sm:$0xff] %v648
                  %v650 = vld [vmem:[%s642 + $0x12c] sm:$0xff]
                  %651 = vst [vmem:[%s643 + $0x30] sm:$0xff] %v650
                  %v652 = vld [vmem:[%s642 + $0x190] sm:$0xff]
                  %653 = vst [vmem:[%s643 + $0x40] sm:$0xff] %v652
                  %v654 = vld [vmem:[%s642 + $0x1f4] sm:$0xff]
                  %655 = vst [vmem:[%s643 + $0x50] sm:$0xff] %v654
                  %v656 = vld [vmem:[%s642 + $0x258] sm:$0xff]
                  %657 = vst [vmem:[%s643 + $0x60] sm:$0xff] %v656
                  %v658 = vld [vmem:[%s642 + $0x2bc] sm:$0xff]
                  %659 = vst [vmem:[%s643 + $0x70] sm:$0xff] %v658
                  %v660 = vld [vmem:[%s642 + $0x320] sm:$0xff]
                  %661 = vst [vmem:[%s643 + $0x80] sm:$0xff] %v660
                  %v662 = vld [vmem:[%s642 + $0x384] sm:$0xff]
                  %663 = vst [vmem:[%s643 + $0x90] sm:$0xff] %v662
                  %v664 = vld [vmem:[%s642 + $0x3e8] sm:$0xff]
                  %665 = vst [vmem:[%s643 + $0xa0] sm:$0xff] %v664
                  %v666 = vld [vmem:[%s642 + $0x44c] sm:$0xff]
                  %667 = vst [vmem:[%s643 + $0xb0] sm:$0xff] %v666
                  %v668 = vld [vmem:[%s642 + $0x4b0] sm:$0xff]
                  %669 = vst [vmem:[%s643 + $0xc0] sm:$0xff] %v668
                  %v670 = vld [vmem:[%s642 + $0x514] sm:$0xff]
                  %671 = vst [vmem:[%s643 + $0xd0] sm:$0xff] %v670
                  %v672 = vld [vmem:[%s642 + $0x578] sm:$0xff]
                  %673 = vst [vmem:[%s643 + $0xe0] sm:$0xff] %v672
                  %v674 = vld [vmem:[%s642 + $0x5dc] sm:$0xff]
                  %675 = vst [vmem:[%s643 + $0xf0] sm:$0xff] %v674
                  %v676 = vld [vmem:[%s642 + $0x640] sm:$0xff]
                  %677 = vst [vmem:[%s643 + $0x100] sm:$0xff] %v676
                  %v678 = vld [vmem:[%s642 + $0x6a4] sm:$0xff]
                  %679 = vst [vmem:[%s643 + $0x110] sm:$0xff] %v678
                  %v680 = vld [vmem:[%s642 + $0x708] sm:$0xff]
                  %681 = vst [vmem:[%s643 + $0x120] sm:$0xff] %v680
                  %s682 = sadd.s32 1, %s641
                  %p683 = scmp.ge.s32.totalorder %s682, %s625
                  %s684 = scalar_select %p683, 0, %s682
                  %s685 = smul.u32 %s684, 8
                  %s686 = smul.u32 %s684, 8
                  %s687 = scalar_lea.vmem %s629, %s685
                  %s688 = scalar_lea.vmem %s632, %s686 [#allocation2]
                $region81: #{actor_forward.7} parent=68 // loop_footer
                  %s638 = sadd.s32 %s636, 1
                $region82: #{actor_forward.7} parent=68 // loop_footer_branch
                  %635 = sbr.rel target = $region78
                $region83: #{actor_forward.7} parent=68 // loop_exit
                  _
                %s689 = sshll.u32 1, %s447
                %s690 = ssub.s32 %s689, 1
                loop: start=0, step=1, limit=1
                $region84: #{actor_forward.7} parent=68 // loop_pre_header
                  _
                $region85: #{actor_forward.7} parent=68 // loop_header
                  %s692 = sphi 0, %s696
                  %p693 = scmp.ge.s32.totalorder %s692, 1
                  %s697 = sphi %s449, %s449
                  %s698 = sphi %s451, %s451
                $region86: #{actor_forward.7} parent=68 // loop_header_branch
                  %695 = sbr.rel (%p693) target = $region90
                $region87: #{actor_forward.7} parent=68 // loop_body
                  %v699 = vld [vmem:[%s697] sm:%s690]
                  %700 = vst [vmem:[%s698] sm:%s690] %v699
                  %v701 = vld [vmem:[%s697 + $0x64] sm:%s690]
                  %702 = vst [vmem:[%s698 + $0x10] sm:%s690] %v701
                  %v703 = vld [vmem:[%s697 + $0xc8] sm:%s690]
                  %704 = vst [vmem:[%s698 + $0x20] sm:%s690] %v703
                  %v705 = vld [vmem:[%s697 + $0x12c] sm:%s690]
                  %706 = vst [vmem:[%s698 + $0x30] sm:%s690] %v705
                  %v707 = vld [vmem:[%s697 + $0x190] sm:%s690]
                  %708 = vst [vmem:[%s698 + $0x40] sm:%s690] %v707
                  %v709 = vld [vmem:[%s697 + $0x1f4] sm:%s690]
                  %710 = vst [vmem:[%s698 + $0x50] sm:%s690] %v709
                  %v711 = vld [vmem:[%s697 + $0x258] sm:%s690]
                  %712 = vst [vmem:[%s698 + $0x60] sm:%s690] %v711
                  %v713 = vld [vmem:[%s697 + $0x2bc] sm:%s690]
                  %714 = vst [vmem:[%s698 + $0x70] sm:%s690] %v713
                  %v715 = vld [vmem:[%s697 + $0x320] sm:%s690]
                  %716 = vst [vmem:[%s698 + $0x80] sm:%s690] %v715
                  %v717 = vld [vmem:[%s697 + $0x384] sm:%s690]
                  %718 = vst [vmem:[%s698 + $0x90] sm:%s690] %v717
                  %v719 = vld [vmem:[%s697 + $0x3e8] sm:%s690]
                  %720 = vst [vmem:[%s698 + $0xa0] sm:%s690] %v719
                  %v721 = vld [vmem:[%s697 + $0x44c] sm:%s690]
                  %722 = vst [vmem:[%s698 + $0xb0] sm:%s690] %v721
                  %v723 = vld [vmem:[%s697 + $0x4b0] sm:%s690]
                  %724 = vst [vmem:[%s698 + $0xc0] sm:%s690] %v723
                  %v725 = vld [vmem:[%s697 + $0x514] sm:%s690]
                  %726 = vst [vmem:[%s698 + $0xd0] sm:%s690] %v725
                  %v727 = vld [vmem:[%s697 + $0x578] sm:%s690]
                  %728 = vst [vmem:[%s698 + $0xe0] sm:%s690] %v727
                  %v729 = vld [vmem:[%s697 + $0x5dc] sm:%s690]
                  %730 = vst [vmem:[%s698 + $0xf0] sm:%s690] %v729
                  %v731 = vld [vmem:[%s697 + $0x640] sm:%s690]
                  %732 = vst [vmem:[%s698 + $0x100] sm:%s690] %v731
                  %v733 = vld [vmem:[%s697 + $0x6a4] sm:%s690]
                  %734 = vst [vmem:[%s698 + $0x110] sm:%s690] %v733
                  %v735 = vld [vmem:[%s697 + $0x708] sm:%s690]
                  %736 = vst [vmem:[%s698 + $0x120] sm:%s690] %v735
                $region88: #{actor_forward.7} parent=68 // loop_footer
                  %s696 = sadd.s32 1, %s692
                $region89: #{actor_forward.7} parent=68 // loop_footer_branch
                  %691 = sbr.rel target = $region85
                $region90: #{actor_forward.7} parent=68 // loop_exit
                  _
              $region69: #{actor_forward.7} parent=35 // pred_fallthru
                _
            $region36: #{actor_forward.7} parent=31 // pred_fallthru
              _
            // Predicated region
            $region37: #{actor_forward.7} parent=31 // pred_check
              %p151 = pneg %p147
            $region38: #{actor_forward.7} parent=31 // pred_check_branch
              %153 = sbr.rel (%p151) target = $region40
            $region39: #{actor_forward.7} parent=31 // pred_region
              %s154 = sshll.u32 1, %s143
              %s155 = ssub.s32 %s154, 1
              loop: start=0, step=1, limit=1
              $region41: #{actor_forward.7} parent=39 // loop_pre_header
                _
              $region42: #{actor_forward.7} parent=39 // loop_header
                %s157 = sphi 0, %s161
                %p158 = scmp.ge.s32.totalorder %s157, 1
                %s162 = sphi %s142, %s142
                %s163 = sphi %s134, %s134
              $region43: #{actor_forward.7} parent=39 // loop_header_branch
                %160 = sbr.rel (%p158) target = $region47
              $region44: #{actor_forward.7} parent=39 // loop_body
                %v164 = vld [vmem:[%s162] sm:%s155]
                %165 = vst [vmem:[%s163] sm:%s155] %v164
                %v166 = vld [vmem:[%s162 + $0x64] sm:%s155]
                %167 = vst [vmem:[%s163 + $0x10] sm:%s155] %v166
                %v168 = vld [vmem:[%s162 + $0xc8] sm:%s155]
                %169 = vst [vmem:[%s163 + $0x20] sm:%s155] %v168
                %v170 = vld [vmem:[%s162 + $0x12c] sm:%s155]
                %171 = vst [vmem:[%s163 + $0x30] sm:%s155] %v170
                %v172 = vld [vmem:[%s162 + $0x190] sm:%s155]
                %173 = vst [vmem:[%s163 + $0x40] sm:%s155] %v172
                %v174 = vld [vmem:[%s162 + $0x1f4] sm:%s155]
                %175 = vst [vmem:[%s163 + $0x50] sm:%s155] %v174
                %v176 = vld [vmem:[%s162 + $0x258] sm:%s155]
                %177 = vst [vmem:[%s163 + $0x60] sm:%s155] %v176
                %v178 = vld [vmem:[%s162 + $0x2bc] sm:%s155]
                %179 = vst [vmem:[%s163 + $0x70] sm:%s155] %v178
                %v180 = vld [vmem:[%s162 + $0x320] sm:%s155]
                %181 = vst [vmem:[%s163 + $0x80] sm:%s155] %v180
                %v182 = vld [vmem:[%s162 + $0x384] sm:%s155]
                %183 = vst [vmem:[%s163 + $0x90] sm:%s155] %v182
                %v184 = vld [vmem:[%s162 + $0x3e8] sm:%s155]
                %185 = vst [vmem:[%s163 + $0xa0] sm:%s155] %v184
                %v186 = vld [vmem:[%s162 + $0x44c] sm:%s155]
                %187 = vst [vmem:[%s163 + $0xb0] sm:%s155] %v186
                %v188 = vld [vmem:[%s162 + $0x4b0] sm:%s155]
                %189 = vst [vmem:[%s163 + $0xc0] sm:%s155] %v188
                %v190 = vld [vmem:[%s162 + $0x514] sm:%s155]
                %191 = vst [vmem:[%s163 + $0xd0] sm:%s155] %v190
                %v192 = vld [vmem:[%s162 + $0x578] sm:%s155]
                %193 = vst [vmem:[%s163 + $0xe0] sm:%s155] %v192
                %v194 = vld [vmem:[%s162 + $0x5dc] sm:%s155]
                %195 = vst [vmem:[%s163 + $0xf0] sm:%s155] %v194
                %v196 = vld [vmem:[%s162 + $0x640] sm:%s155]
                %197 = vst [vmem:[%s163 + $0x100] sm:%s155] %v196
                %v198 = vld [vmem:[%s162 + $0x6a4] sm:%s155]
                %199 = vst [vmem:[%s163 + $0x110] sm:%s155] %v198
                %v200 = vld [vmem:[%s162 + $0x708] sm:%s155]
                %201 = vst [vmem:[%s163 + $0x120] sm:%s155] %v200
              $region45: #{actor_forward.7} parent=39 // loop_footer
                %s161 = sadd.s32 1, %s157
              $region46: #{actor_forward.7} parent=39 // loop_footer_branch
                %156 = sbr.rel target = $region42
              $region47: #{actor_forward.7} parent=39 // loop_exit
                _
            $region40: #{actor_forward.7} parent=31 // pred_fallthru
              _
          $region32: #{actor_forward.7} parent=27 // pred_fallthru
            _
          %737 = vnop
        $region28: #{actor_forward.7} parent=23 // pred_fallthru
          _
      $region24: #{actor_forward.7} parent=5 // pred_fallthru
        _
      %p738 = scmp.le.s32.totalorder 1, %s9
      %p739 = scmp.lt.s32.totalorder %s9, 8
      %p740 = pnand %p738, %p739
      %p741 = pneg %p740
      // Predicated region
      $region91: #{actor_forward.7} parent=5 // pred_check
        _
      $region92: #{actor_forward.7} parent=5 // pred_check_branch
        %743 = sbr.rel (%p740) target = $region94
      $region93: #{actor_forward.7} parent=5 // pred_region
        %s744 = ssub.s32 %s9, 1
        %s745 = sand.u32 %s64, 1
        %s746 = sand.u32 %s64, 1
        %s747 = smul.addr %s746, 304
        %s748 = scalar_lea.vmem [#allocation2], %s747
        // Predicated region
        $region95: #{actor_forward.7} parent=93 // pred_check
          %p749 = pneg %p77
        $region96: #{actor_forward.7} parent=93 // pred_check_branch
          %751 = sbr.rel (%p749) target = $region98
        $region97: #{actor_forward.7} parent=93 // pred_region
          _
        $region98: #{actor_forward.7} parent=93 // pred_fallthru
          _
        %p752 = pneg %p30
        %p753 = pneg %p27
        %p754 = pneg %p51
        %p755 = pneg %p48
        %s756 = sand.u32 %s64, 1
        %s757 = sand.u32 %s64, 1
        %s758 = smul.addr %s757, 304
        %s759 = scalar_lea.vmem [#allocation2], %s758
        %p760 = pneg %p77
        %p761 = pneg %p74
        %p762 = pneg %p103
        %p763 = pneg %p100
        %s764 = sand.u32 %s90, 1
        %s765 = sand.u32 %s90, 1
        %s766 = smul.addr %s765, 8
        %s767 = scalar_lea.vmem [#allocation3], %s766
        %s768 = smul.u32 4, %s14
        %s769 = ssub.s32 25, %s768
        %p770 = scmp.lt.s32.totalorder %s769, 4
        %s771 = scalar_select %p770, %s769, 4
        %s772 = smul.u32 1216, %s771
        %s773 = smul.u32 4, %s14
        %s774 = ssub.s32 25, %s773
        %p775 = scmp.lt.s32.totalorder %s774, 4
        %s776 = scalar_select %p775, %s774, 4
        %s777 = smul.u32 32, %s776
        %v779 = vld [vmem:[%s0] sm:$0xf]
        %v780 = vld [vmem:[%s748] sm:$0xff]
        %v781 = vld [vmem:[%s748 + $0x8] sm:$0xff]
        %v782 = vld [vmem:[%s748 + $0x10] sm:$0xff]
        %v783 = vld [vmem:[%s748 + $0x18] sm:$0xff]
        %v784 = vld [vmem:[%s748 + $0x20] sm:$0xff]
        %v785 = vld [vmem:[%s748 + $0x28] sm:$0xff]
        %v786 = vld [vmem:[%s748 + $0x30] sm:$0xff]
        %v787 = vld [vmem:[%s748 + $0x38] sm:$0xff]
        %v788 = vld [vmem:[%s748 + $0x40] sm:$0xff]
        %v789 = vld [vmem:[%s748 + $0x48] sm:$0xff]
        %v790 = vld [vmem:[%s748 + $0x50] sm:$0xff]
        %v791 = vld [vmem:[%s748 + $0x58] sm:$0xff]
        %v792 = vld [vmem:[%s748 + $0x60] sm:$0xff]
        %v793 = vld [vmem:[%s748 + $0x68] sm:$0xff]
        %v794 = vld [vmem:[%s748 + $0x70] sm:$0xff]
        %v795 = vld [vmem:[%s748 + $0x78] sm:$0xff]
        %v796 = vld [vmem:[%s748 + $0x80] sm:$0xff]
        %v797 = vld [vmem:[%s748 + $0x88] sm:$0xff]
        %v798 = vld [vmem:[%s748 + $0x90] sm:$0xff]
        %v799 = vld [vmem:[%s748 + $0x98] sm:$0xff]
        %v800 = vld [vmem:[%s748 + $0xa0] sm:$0xff]
        %v801 = vld [vmem:[%s748 + $0xa8] sm:$0xff]
        %v802 = vld [vmem:[%s748 + $0xb0] sm:$0xff]
        %v803 = vld [vmem:[%s748 + $0xb8] sm:$0xff]
        %v804 = vld [vmem:[%s748 + $0xc0] sm:$0xff]
        %v805 = vld [vmem:[%s748 + $0xc8] sm:$0xff]
        %v806 = vld [vmem:[%s748 + $0xd0] sm:$0xff]
        %v807 = vld [vmem:[%s748 + $0xd8] sm:$0xff]
        %v808 = vld [vmem:[%s748 + $0xe0] sm:$0xff]
        %v809 = vld [vmem:[%s748 + $0xe8] sm:$0xff]
        %v810 = vld [vmem:[%s748 + $0xf0] sm:$0xff]
        %v811 = vld [vmem:[%s748 + $0xf8] sm:$0xff]
        %v812 = vld [vmem:[%s748 + $0x100] sm:$0xff]
        %v813 = vld [vmem:[%s748 + $0x108] sm:$0xff]
        %v814 = vld [vmem:[%s748 + $0x110] sm:$0xff]
        %v815 = vld [vmem:[%s748 + $0x118] sm:$0xff]
        %v816 = vld [vmem:[%s748 + $0x120] sm:$0x77]
        %v817 = vld [vmem:[%s748 + $0x128] sm:$0x77]
        %v818 = vld [vmem:[%s1] sm:$0xf]
        %820 = vset.pattern.permute.xlu0 0
        %821 = vperm.xlu0 %820, %v818
        %v822 = vpop.permute.xlu0 %821
        %v826 = vunpack.c.l.s4 1983009808
        %v827 = vunpack.c.0.s8 %v826
        %v828 = vlaneseq
        %v829 = vshrl.u32 %v828, 7
        %v830 = vsub.s32 %v827, %v829
        %v831 = vrot.slane %v779, %v830
        %v832 = vcombine.high %v831, %v831
        %v872 = vunpack.c.l.b16 %v780
        %v873 = vunpack.c.h.b16 %v780
        %v874 = vunpack.c.l.b16 %v781
        %v875 = vunpack.c.h.b16 %v781
        %v876 = vunpack.c.l.b16 %v782
        %v877 = vunpack.c.h.b16 %v782
        %v878 = vunpack.c.l.b16 %v783
        %v879 = vunpack.c.h.b16 %v783
        %v880 = vunpack.c.l.b16 %v784
        %v881 = vunpack.c.h.b16 %v784
        %v882 = vunpack.c.l.b16 %v785
        %v883 = vunpack.c.h.b16 %v785
        %v884 = vunpack.c.l.b16 %v786
        %v885 = vunpack.c.h.b16 %v786
        %v886 = vunpack.c.l.b16 %v787
        %v887 = vunpack.c.h.b16 %v787
        %v888 = vunpack.c.l.b16 %v788
        %v889 = vunpack.c.h.b16 %v788
        %v890 = vunpack.c.l.b16 %v789
        %v891 = vunpack.c.h.b16 %v789
        %v892 = vunpack.c.l.b16 %v790
        %v893 = vunpack.c.h.b16 %v790
        %v894 = vunpack.c.l.b16 %v791
        %v895 = vunpack.c.h.b16 %v791
        %v896 = vunpack.c.l.b16 %v792
        %v897 = vunpack.c.h.b16 %v792
        %v898 = vunpack.c.l.b16 %v793
        %v899 = vunpack.c.h.b16 %v793
        %v900 = vunpack.c.l.b16 %v794
        %v901 = vunpack.c.h.b16 %v794
        %v902 = vunpack.c.l.b16 %v795
        %v903 = vunpack.c.h.b16 %v795
        %v904 = vunpack.c.l.b16 %v796
        %v905 = vunpack.c.h.b16 %v796
        %v906 = vunpack.c.l.b16 %v797
        %v907 = vunpack.c.h.b16 %v797
        %v908 = vunpack.c.l.b16 %v798
        %v909 = vunpack.c.h.b16 %v798
        %v910 = vunpack.c.l.b16 %v799
        %v911 = vunpack.c.h.b16 %v799
        %v912 = vunpack.c.l.b16 %v800
        %v913 = vunpack.c.h.b16 %v800
        %v914 = vunpack.c.l.b16 %v801
        %v915 = vunpack.c.h.b16 %v801
        %v916 = vunpack.c.l.b16 %v802
        %v917 = vunpack.c.h.b16 %v802
        %v918 = vunpack.c.l.b16 %v803
        %v919 = vunpack.c.h.b16 %v803
        %v920 = vunpack.c.l.b16 %v804
        %v921 = vunpack.c.h.b16 %v804
        %v922 = vunpack.c.l.b16 %v805
        %v923 = vunpack.c.h.b16 %v805
        %v924 = vunpack.c.l.b16 %v806
        %v925 = vunpack.c.h.b16 %v806
        %v926 = vunpack.c.l.b16 %v807
        %v927 = vunpack.c.h.b16 %v807
        %v928 = vunpack.c.l.b16 %v808
        %v929 = vunpack.c.h.b16 %v808
        %v930 = vunpack.c.l.b16 %v809
        %v931 = vunpack.c.h.b16 %v809
        %v932 = vunpack.c.l.b16 %v810
        %v933 = vunpack.c.h.b16 %v810
        %v934 = vunpack.c.l.b16 %v811
        %v935 = vunpack.c.h.b16 %v811
        %v936 = vunpack.c.l.b16 %v812
        %v937 = vunpack.c.h.b16 %v812
        %v938 = vunpack.c.l.b16 %v813
        %v939 = vunpack.c.h.b16 %v813
        %v940 = vunpack.c.l.b16 %v814
        %v941 = vunpack.c.h.b16 %v814
        %v942 = vunpack.c.l.b16 %v815
        %v943 = vunpack.c.h.b16 %v815
        %v944 = vunpack.c.l.b16 %v816
        %v945 = vunpack.c.h.b16 %v816
        %v946 = vunpack.c.l.b16 %v817
        %v947 = vunpack.c.h.b16 %v817
        %v948 = vpack.c.b16 %v876, %v872
        %v949 = vpack.c.b16 %v877, %v873
        %v950 = vpack.c.b16 %v878, %v874
        %v951 = vpack.c.b16 %v879, %v875
        %v952 = vpack.c.b16 %v884, %v880
        %v953 = vpack.c.b16 %v885, %v881
        %v954 = vpack.c.b16 %v886, %v882
        %v955 = vpack.c.b16 %v887, %v883
        %v956 = vpack.c.b16 %v892, %v888
        %v957 = vpack.c.b16 %v893, %v889
        %v958 = vpack.c.b16 %v894, %v890
        %v959 = vpack.c.b16 %v895, %v891
        %v960 = vpack.c.b16 %v900, %v896
        %v961 = vpack.c.b16 %v901, %v897
        %v962 = vpack.c.b16 %v902, %v898
        %v963 = vpack.c.b16 %v903, %v899
        %v964 = vpack.c.b16 %v908, %v904
        %v965 = vpack.c.b16 %v909, %v905
        %v966 = vpack.c.b16 %v910, %v906
        %v967 = vpack.c.b16 %v911, %v907
        %v968 = vpack.c.b16 %v916, %v912
        %v969 = vpack.c.b16 %v917, %v913
        %v970 = vpack.c.b16 %v918, %v914
        %v971 = vpack.c.b16 %v919, %v915
        %v972 = vpack.c.b16 %v924, %v920
        %v973 = vpack.c.b16 %v925, %v921
        %v974 = vpack.c.b16 %v926, %v922
        %v975 = vpack.c.b16 %v927, %v923
        %v976 = vpack.c.b16 %v932, %v928
        %v977 = vpack.c.b16 %v933, %v929
        %v978 = vpack.c.b16 %v934, %v930
        %v979 = vpack.c.b16 %v935, %v931
        %v980 = vpack.c.b16 %v940, %v936
        %v981 = vpack.c.b16 %v941, %v937
        %v982 = vpack.c.b16 %v942, %v938
        %v983 = vpack.c.b16 %v943, %v939
        %v984 = vpack.c.b16 %v944, %v944
        %v985 = vpack.c.b16 %v945, %v945
        %v986 = vpack.c.b16 %v946, %v946
        %v987 = vpack.c.b16 %v947, %v947
        %vm1024 = vcmask 179200
        %v1026 = vsel %vm1024, %v832, 0
        %vm1028 = vcmask 1042432
        %v1030 = vsel %vm1028, %v984, 0
        %v1033 = vsel %vm1028, %v985, 0
        %v1036 = vsel %vm1028, %v986, 0
        %v1039 = vsel %vm1028, %v987, 0
        %1041 = vmatprep.subr.bf16.mxu0 %v977
        %1042 = vmatpush1.bf16.msra.mxu0 %v976
        %1043 = vmatprep.subr.bf16.mxu0 %v973
        %1044 = vmatpush1.bf16.msra.mxu0 %v972
        %1045 = vmatprep.subr.bf16.mxu0 %v969
        %1046 = vmatpush1.bf16.msra.mxu0 %v968
        %1047 = vmatprep.subr.bf16.mxu0 %v965
        %1048 = vmatpush1.bf16.msra.mxu0 %v964
        %1049 = vmatprep.subr.bf16.mxu0 %v961
        %1050 = vmatpush1.bf16.msra.mxu0 %v960
        %1051 = vmatprep.subr.bf16.mxu0 %v957
        %1052 = vmatpush1.bf16.msra.mxu0 %v956
        %1053 = vmatprep.subr.bf16.mxu0 %v953
        %1054 = vmatpush1.bf16.msra.mxu0 %v952
        %1055 = vmatprep.subr.bf16.mxu0 %v949
        %1056 = vmatpush1.bf16.msra.mxu0 %v948
        %1057 = vmatprep.subr.bf16.mxu0 0
        %1058 = vmatpush2.bf16.msra.mxu0 0
        %1059 = vmatprep.subr.bf16.mxu0 0
        %1060 = vmatpush2.bf16.msra.mxu0 0
        %1061 = vmatprep.subr.bf16.mxu0 0
        %1062 = vmatpush2.bf16.msra.mxu0 0
        %1063 = vmatprep.subr.bf16.mxu0 0
        %1064 = vmatpush2.bf16.msra.mxu0 0
        %1065 = vmatprep.subr.bf16.mxu0 0
        %1066 = vmatpush2.bf16.msra.mxu0 0
        %1067 = vmatprep.subr.bf16.mxu0 0
        %1068 = vmatpush2.bf16.msra.mxu0 0
        %1069 = vmatprep.subr.bf16.mxu0 %v1033
        %1070 = vmatpush2.bf16.msra.mxu0 %v1030
        %1071 = vmatprep.subr.bf16.mxu0 %v981
        %1072 = vmatpush2.bf16.msra.mxu0 %v980
        %1073 = vmatprep.mubr.bf16.mxu0 %v1026
        %1074 = vmatmul.mubr.bf16.gmra.mxu0 %v831
        %v1075 = vpop.f32.mrf.mxu0
        %v1076 = vadd.f32 %v822, %v1075
        %v1077 = vpop.f32.mrf.mxu0
        %v1078 = vadd.f32 %v822, %v1077
        %v1079 = vpop.f32.mrf.mxu0
        %v1080 = vpop.f32.mrf.mxu0
        %1081 = vdwg.mxu0
        %1082 = vmatprep.subr.bf16.mxu0 %v979
        %1083 = vmatpush1.bf16.msra.mxu0 %v978
        %1084 = vmatprep.subr.bf16.mxu0 %v975
        %1085 = vmatpush1.bf16.msra.mxu0 %v974
        %1086 = vmatprep.subr.bf16.mxu0 %v971
        %1087 = vmatpush1.bf16.msra.mxu0 %v970
        %1088 = vmatprep.subr.bf16.mxu0 %v967
        %1089 = vmatpush1.bf16.msra.mxu0 %v966
        %1090 = vmatprep.subr.bf16.mxu0 %v963
        %1091 = vmatpush1.bf16.msra.mxu0 %v962
        %1092 = vmatprep.subr.bf16.mxu0 %v959
        %1093 = vmatpush1.bf16.msra.mxu0 %v958
        %1094 = vmatprep.subr.bf16.mxu0 %v955
        %1095 = vmatpush1.bf16.msra.mxu0 %v954
        %1096 = vmatprep.subr.bf16.mxu0 %v951
        %1097 = vmatpush1.bf16.msra.mxu0 %v950
        %1098 = vmatprep.subr.bf16.mxu0 0
        %1099 = vmatpush2.bf16.msra.mxu0 0
        %1100 = vmatprep.subr.bf16.mxu0 0
        %1101 = vmatpush2.bf16.msra.mxu0 0
        %1102 = vmatprep.subr.bf16.mxu0 0
        %1103 = vmatpush2.bf16.msra.mxu0 0
        %1104 = vmatprep.subr.bf16.mxu0 0
        %1105 = vmatpush2.bf16.msra.mxu0 0
        %1106 = vmatprep.subr.bf16.mxu0 0
        %1107 = vmatpush2.bf16.msra.mxu0 0
        %1108 = vmatprep.subr.bf16.mxu0 0
        %1109 = vmatpush2.bf16.msra.mxu0 0
        %1110 = vmatprep.subr.bf16.mxu0 %v1039
        %1111 = vmatpush2.bf16.msra.mxu0 %v1036
        %1112 = vmatprep.subr.bf16.mxu0 %v983
        %1113 = vmatpush2.bf16.msra.mxu0 %v982
        %1114 = vmatprep.mubr.bf16.mxu0 %v1026
        %1115 = vmatmul.mubr.bf16.gmra.mxu0 %v831
        %v1116 = vpop.f32.mrf.mxu0
        %v1117 = vadd.f32 %v822, %v1116
        %v1118 = vpop.f32.mrf.mxu0
        %v1119 = vadd.f32 %v822, %v1118
        %v1120 = vpop.f32.mrf.mxu0
        %v1121 = vpop.f32.mrf.mxu0
        %1122 = vdwg.mxu0
        %v1123 = vmax.f32 %v1076, 0.0
        %v1124 = vmax.f32 %v1078, 0.0
        %v1125 = vmax.f32 %v1117, 0.0
        %v1126 = vmax.f32 %v1119, 0.0
        %v1127 = vpack.c.bf16 %v1123, %v1123
        %v1128 = vpack.c.bf16 %v1124, %v1124
        %v1129 = vpack.c.bf16 %v1125, %v1125
        %v1130 = vpack.c.bf16 %v1126, %v1126
        %v1135 = vcombine.low %v1127, %v1128
        %v1136 = vcombine.low %v1129, %v1130
        %v1138 = vunpack.c.l.s4 1983009808
        %v1139 = vunpack.c.0.s8 %v1138
        %v1140 = vlaneseq
        %v1141 = vshrl.u32 %v1140, 7
        %v1142 = vsub.s32 %v1139, %v1141
        %v1143 = vrot.slane %v1135, %v1142
        %v1145 = vunpack.c.l.s4 1983009808
        %v1146 = vunpack.c.0.s8 %v1145
        %v1147 = vlaneseq
        %v1148 = vshrl.u32 %v1147, 7
        %v1149 = vsub.s32 %v1146, %v1148
        %v1150 = vrot.slane %v1136, %v1149
        %v1151 = vcombine.low %v1143, %v1150
        %1153 = vst [vmem:[%s767] sm:$0xff] %v1151
        %s1154 = sand.u32 %s90, 1
        %s1155 = sand.u32 %s90, 1
        %s1156 = smul.addr %s1155, 8
        %s1157 = scalar_lea.vmem [#allocation3], %s1156
        // Predicated region
        $region99: #{actor_forward.7} parent=93 // pred_check
          %p1158 = pneg %p100
        $region100: #{actor_forward.7} parent=93 // pred_check_branch
          %1160 = sbr.rel (%p1158) target = $region102
        $region101: #{actor_forward.7} parent=93 // pred_region
          %s1161 = smul.u32 4, %s14
          %s1162 = ssub.s32 25, %s1161
          %p1163 = scmp.lt.s32.totalorder %s1162, 4
          %s1164 = scalar_select %p1163, %s1162, 4
          %s1165 = smul.u32 32, %s1164
          %p1166 = scmp.ne.s32.totalorder 0, %s1165
          %s1167 = smul.addr %s1161, 2
          %s1168 = scalar_lea.vmem %s3, %s1167
          %s1169 = smul.u32 %s1164, 2
          // Predicated region
          $region103: #{actor_forward.7} parent=101 // pred_check
            %p1170 = pneg %p1166
          $region104: #{actor_forward.7} parent=101 // pred_check_branch
            %1172 = sbr.rel (%p1170) target = $region106
          $region105: #{actor_forward.7} parent=101 // pred_region
            %p1173 = scmp.lt.u32.totalorder %s1169, 8
            %p1174 = pneg %p1173
            // Predicated region
            $region107: #{actor_forward.7} parent=105 // pred_check
              _
            $region108: #{actor_forward.7} parent=105 // pred_check_branch
              %1176 = sbr.rel (%p1173) target = $region110
            $region109: #{actor_forward.7} parent=105 // pred_region
              %s1192 = sand.u32 %s1169, 7
              %p1193 = scmp.eq.s32.totalorder %s1192, 0
              // Predicated region
              $region122: #{actor_forward.7} parent=109 // pred_check
                %p1194 = pneg %p1193
              $region123: #{actor_forward.7} parent=109 // pred_check_branch
                %1196 = sbr.rel (%p1194) target = $region125
              $region124: #{actor_forward.7} parent=109 // pred_region
                %s1197 = sshrl.u32 %s1169, 3
                %s1198 = sshrl.u32 %s1197, 6
                // While loop
                $region126: #{actor_forward.7} parent=124 // loop_pre_header
                  _
                $region127: #{actor_forward.7} parent=124 // loop_header
                  %s1202 = sphi 0, %s1204
                  %p1203 = scmp.ge.s32.totalorder %s1202, %s1198
                  %s1207 = sphi 0, %s1340
                  %s1208 = sphi %s1157, %s1343
                  %s1209 = sphi %s1168, %s1344
                $region128: #{actor_forward.7} parent=124 // loop_header_branch
                  %1206 = sbr.rel (%p1203) target = $region132
                $region129: #{actor_forward.7} parent=124 // loop_body
                  %v1210 = vld [vmem:[%s1208] sm:$0xff]
                  %1211 = vst [vmem:[%s1209] sm:$0xff] %v1210
                  %v1212 = vld [vmem:[%s1208 + $0x8] sm:$0xff]
                  %1213 = vst [vmem:[%s1209 + $0x8] sm:$0xff] %v1212
                  %v1214 = vld [vmem:[%s1208 + $0x10] sm:$0xff]
                  %1215 = vst [vmem:[%s1209 + $0x10] sm:$0xff] %v1214
                  %v1216 = vld [vmem:[%s1208 + $0x18] sm:$0xff]
                  %1217 = vst [vmem:[%s1209 + $0x18] sm:$0xff] %v1216
                  %v1218 = vld [vmem:[%s1208 + $0x20] sm:$0xff]
                  %1219 = vst [vmem:[%s1209 + $0x20] sm:$0xff] %v1218
                  %v1220 = vld [vmem:[%s1208 + $0x28] sm:$0xff]
                  %1221 = vst [vmem:[%s1209 + $0x28] sm:$0xff] %v1220
                  %v1222 = vld [vmem:[%s1208 + $0x30] sm:$0xff]
                  %1223 = vst [vmem:[%s1209 + $0x30] sm:$0xff] %v1222
                  %v1224 = vld [vmem:[%s1208 + $0x38] sm:$0xff]
                  %1225 = vst [vmem:[%s1209 + $0x38] sm:$0xff] %v1224
                  %v1226 = vld [vmem:[%s1208 + $0x40] sm:$0xff]
                  %1227 = vst [vmem:[%s1209 + $0x40] sm:$0xff] %v1226
                  %v1228 = vld [vmem:[%s1208 + $0x48] sm:$0xff]
                  %1229 = vst [vmem:[%s1209 + $0x48] sm:$0xff] %v1228
                  %v1230 = vld [vmem:[%s1208 + $0x50] sm:$0xff]
                  %1231 = vst [vmem:[%s1209 + $0x50] sm:$0xff] %v1230
                  %v1232 = vld [vmem:[%s1208 + $0x58] sm:$0xff]
                  %1233 = vst [vmem:[%s1209 + $0x58] sm:$0xff] %v1232
                  %v1234 = vld [vmem:[%s1208 + $0x60] sm:$0xff]
                  %1235 = vst [vmem:[%s1209 + $0x60] sm:$0xff] %v1234
                  %v1236 = vld [vmem:[%s1208 + $0x68] sm:$0xff]
                  %1237 = vst [vmem:[%s1209 + $0x68] sm:$0xff] %v1236
                  %v1238 = vld [vmem:[%s1208 + $0x70] sm:$0xff]
                  %1239 = vst [vmem:[%s1209 + $0x70] sm:$0xff] %v1238
                  %v1240 = vld [vmem:[%s1208 + $0x78] sm:$0xff]
                  %1241 = vst [vmem:[%s1209 + $0x78] sm:$0xff] %v1240
                  %v1242 = vld [vmem:[%s1208 + $0x80] sm:$0xff]
                  %1243 = vst [vmem:[%s1209 + $0x80] sm:$0xff] %v1242
                  %v1244 = vld [vmem:[%s1208 + $0x88] sm:$0xff]
                  %1245 = vst [vmem:[%s1209 + $0x88] sm:$0xff] %v1244
                  %v1246 = vld [vmem:[%s1208 + $0x90] sm:$0xff]
                  %1247 = vst [vmem:[%s1209 + $0x90] sm:$0xff] %v1246
                  %v1248 = vld [vmem:[%s1208 + $0x98] sm:$0xff]
                  %1249 = vst [vmem:[%s1209 + $0x98] sm:$0xff] %v1248
                  %v1250 = vld [vmem:[%s1208 + $0xa0] sm:$0xff]
                  %1251 = vst [vmem:[%s1209 + $0xa0] sm:$0xff] %v1250
                  %v1252 = vld [vmem:[%s1208 + $0xa8] sm:$0xff]
                  %1253 = vst [vmem:[%s1209 + $0xa8] sm:$0xff] %v1252
                  %v1254 = vld [vmem:[%s1208 + $0xb0] sm:$0xff]
                  %1255 = vst [vmem:[%s1209 + $0xb0] sm:$0xff] %v1254
                  %v1256 = vld [vmem:[%s1208 + $0xb8] sm:$0xff]
                  %1257 = vst [vmem:[%s1209 + $0xb8] sm:$0xff] %v1256
                  %v1258 = vld [vmem:[%s1208 + $0xc0] sm:$0xff]
                  %1259 = vst [vmem:[%s1209 + $0xc0] sm:$0xff] %v1258
                  %v1260 = vld [vmem:[%s1208 + $0xc8] sm:$0xff]
                  %1261 = vst [vmem:[%s1209 + $0xc8] sm:$0xff] %v1260
                  %v1262 = vld [vmem:[%s1208 + $0xd0] sm:$0xff]
                  %1263 = vst [vmem:[%s1209 + $0xd0] sm:$0xff] %v1262
                  %v1264 = vld [vmem:[%s1208 + $0xd8] sm:$0xff]
                  %1265 = vst [vmem:[%s1209 + $0xd8] sm:$0xff] %v1264
                  %v1266 = vld [vmem:[%s1208 + $0xe0] sm:$0xff]
                  %1267 = vst [vmem:[%s1209 + $0xe0] sm:$0xff] %v1266
                  %v1268 = vld [vmem:[%s1208 + $0xe8] sm:$0xff]
                  %1269 = vst [vmem:[%s1209 + $0xe8] sm:$0xff] %v1268
                  %v1270 = vld [vmem:[%s1208 + $0xf0] sm:$0xff]
                  %1271 = vst [vmem:[%s1209 + $0xf0] sm:$0xff] %v1270
                  %v1272 = vld [vmem:[%s1208 + $0xf8] sm:$0xff]
                  %1273 = vst [vmem:[%s1209 + $0xf8] sm:$0xff] %v1272
                  %v1274 = vld [vmem:[%s1208 + $0x100] sm:$0xff]
                  %1275 = vst [vmem:[%s1209 + $0x100] sm:$0xff] %v1274
                  %v1276 = vld [vmem:[%s1208 + $0x108] sm:$0xff]
                  %1277 = vst [vmem:[%s1209 + $0x108] sm:$0xff] %v1276
                  %v1278 = vld [vmem:[%s1208 + $0x110] sm:$0xff]
                  %1279 = vst [vmem:[%s1209 + $0x110] sm:$0xff] %v1278
                  %v1280 = vld [vmem:[%s1208 + $0x118] sm:$0xff]
                  %1281 = vst [vmem:[%s1209 + $0x118] sm:$0xff] %v1280
                  %v1282 = vld [vmem:[%s1208 + $0x120] sm:$0xff]
                  %1283 = vst [vmem:[%s1209 + $0x120] sm:$0xff] %v1282
                  %v1284 = vld [vmem:[%s1208 + $0x128] sm:$0xff]
                  %1285 = vst [vmem:[%s1209 + $0x128] sm:$0xff] %v1284
                  %v1286 = vld [vmem:[%s1208 + $0x130] sm:$0xff]
                  %1287 = vst [vmem:[%s1209 + $0x130] sm:$0xff] %v1286
                  %v1288 = vld [vmem:[%s1208 + $0x138] sm:$0xff]
                  %1289 = vst [vmem:[%s1209 + $0x138] sm:$0xff] %v1288
                  %v1290 = vld [vmem:[%s1208 + $0x140] sm:$0xff]
                  %1291 = vst [vmem:[%s1209 + $0x140] sm:$0xff] %v1290
                  %v1292 = vld [vmem:[%s1208 + $0x148] sm:$0xff]
                  %1293 = vst [vmem:[%s1209 + $0x148] sm:$0xff] %v1292
                  %v1294 = vld [vmem:[%s1208 + $0x150] sm:$0xff]
                  %1295 = vst [vmem:[%s1209 + $0x150] sm:$0xff] %v1294
                  %v1296 = vld [vmem:[%s1208 + $0x158] sm:$0xff]
                  %1297 = vst [vmem:[%s1209 + $0x158] sm:$0xff] %v1296
                  %v1298 = vld [vmem:[%s1208 + $0x160] sm:$0xff]
                  %1299 = vst [vmem:[%s1209 + $0x160] sm:$0xff] %v1298
                  %v1300 = vld [vmem:[%s1208 + $0x168] sm:$0xff]
                  %1301 = vst [vmem:[%s1209 + $0x168] sm:$0xff] %v1300
                  %v1302 = vld [vmem:[%s1208 + $0x170] sm:$0xff]
                  %1303 = vst [vmem:[%s1209 + $0x170] sm:$0xff] %v1302
                  %v1304 = vld [vmem:[%s1208 + $0x178] sm:$0xff]
                  %1305 = vst [vmem:[%s1209 + $0x178] sm:$0xff] %v1304
                  %v1306 = vld [vmem:[%s1208 + $0x180] sm:$0xff]
                  %1307 = vst [vmem:[%s1209 + $0x180] sm:$0xff] %v1306
                  %v1308 = vld [vmem:[%s1208 + $0x188] sm:$0xff]
                  %1309 = vst [vmem:[%s1209 + $0x188] sm:$0xff] %v1308
                  %v1310 = vld [vmem:[%s1208 + $0x190] sm:$0xff]
                  %1311 = vst [vmem:[%s1209 + $0x190] sm:$0xff] %v1310
                  %v1312 = vld [vmem:[%s1208 + $0x198] sm:$0xff]
                  %1313 = vst [vmem:[%s1209 + $0x198] sm:$0xff] %v1312
                  %v1314 = vld [vmem:[%s1208 + $0x1a0] sm:$0xff]
                  %1315 = vst [vmem:[%s1209 + $0x1a0] sm:$0xff] %v1314
                  %v1316 = vld [vmem:[%s1208 + $0x1a8] sm:$0xff]
                  %1317 = vst [vmem:[%s1209 + $0x1a8] sm:$0xff] %v1316
                  %v1318 = vld [vmem:[%s1208 + $0x1b0] sm:$0xff]
                  %1319 = vst [vmem:[%s1209 + $0x1b0] sm:$0xff] %v1318
                  %v1320 = vld [vmem:[%s1208 + $0x1b8] sm:$0xff]
                  %1321 = vst [vmem:[%s1209 + $0x1b8] sm:$0xff] %v1320
                  %v1322 = vld [vmem:[%s1208 + $0x1c0] sm:$0xff]
                  %1323 = vst [vmem:[%s1209 + $0x1c0] sm:$0xff] %v1322
                  %v1324 = vld [vmem:[%s1208 + $0x1c8] sm:$0xff]
                  %1325 = vst [vmem:[%s1209 + $0x1c8] sm:$0xff] %v1324
                  %v1326 = vld [vmem:[%s1208 + $0x1d0] sm:$0xff]
                  %1327 = vst [vmem:[%s1209 + $0x1d0] sm:$0xff] %v1326
                  %v1328 = vld [vmem:[%s1208 + $0x1d8] sm:$0xff]
                  %1329 = vst [vmem:[%s1209 + $0x1d8] sm:$0xff] %v1328
                  %v1330 = vld [vmem:[%s1208 + $0x1e0] sm:$0xff]
                  %1331 = vst [vmem:[%s1209 + $0x1e0] sm:$0xff] %v1330
                  %v1332 = vld [vmem:[%s1208 + $0x1e8] sm:$0xff]
                  %1333 = vst [vmem:[%s1209 + $0x1e8] sm:$0xff] %v1332
                  %v1334 = vld [vmem:[%s1208 + $0x1f0] sm:$0xff]
                  %1335 = vst [vmem:[%s1209 + $0x1f0] sm:$0xff] %v1334
                  %v1336 = vld [vmem:[%s1208 + $0x1f8] sm:$0xff]
                  %1337 = vst [vmem:[%s1209 + $0x1f8] sm:$0xff] %v1336
                  %s1338 = sadd.s32 1, %s1207
                  %p1339 = scmp.ge.s32.totalorder %s1338, %s1198
                  %s1340 = scalar_select %p1339, 0, %s1338
                  %s1341 = smul.u32 %s1340, 512
                  %s1342 = smul.u32 %s1340, 512
                  %s1343 = scalar_lea.vmem %s1157, %s1341 [#allocation3]
                  %s1344 = scalar_lea.vmem %s1168, %s1342
                $region130: #{actor_forward.7} parent=124 // loop_footer
                  %s1204 = sadd.s32 %s1202, 1
                $region131: #{actor_forward.7} parent=124 // loop_footer_branch
                  %1201 = sbr.rel target = $region127
                $region132: #{actor_forward.7} parent=124 // loop_exit
                  _
                %s1345 = sshrl.u32 %s1197, 6
                %s1346 = sand.u32 %s1197, 63
                %s1347 = smul.u32 %s1345, 64
                %s1348 = smul.u32 128, %s1347
                %s1349 = sshra.s32 %s1348, 4
                %s1350 = scalar_lea.vmem %s1157, %s1349 [#allocation3]
                %s1351 = smul.u32 128, %s1347
                %s1352 = sshra.s32 %s1351, 4
                %s1353 = scalar_lea.vmem %s1168, %s1352
                // While loop
                $region133: #{actor_forward.7} parent=124 // loop_pre_header
                  _
                $region134: #{actor_forward.7} parent=124 // loop_header
                  %s1357 = sphi 0, %s1359
                  %p1358 = scmp.ge.s32.totalorder %s1357, %s1346
                  %s1362 = sphi 0, %s1369
                  %s1363 = sphi %s1350, %s1372
                  %s1364 = sphi %s1353, %s1373
                $region135: #{actor_forward.7} parent=124 // loop_header_branch
                  %1361 = sbr.rel (%p1358) target = $region139
                $region136: #{actor_forward.7} parent=124 // loop_body
                  %v1365 = vld [vmem:[%s1363] sm:$0xff]
                  %1366 = vst [vmem:[%s1364] sm:$0xff] %v1365
                  %s1367 = sadd.s32 1, %s1362
                  %p1368 = scmp.ge.s32.totalorder %s1367, %s1346
                  %s1369 = scalar_select %p1368, 0, %s1367
                  %s1370 = smul.u32 %s1369, 8
                  %s1371 = smul.u32 %s1369, 8
                  %s1372 = scalar_lea.vmem %s1350, %s1370 [#allocation3]
                  %s1373 = scalar_lea.vmem %s1353, %s1371
                $region137: #{actor_forward.7} parent=124 // loop_footer
                  %s1359 = sadd.s32 %s1357, 1
                $region138: #{actor_forward.7} parent=124 // loop_footer_branch
                  %1356 = sbr.rel target = $region134
                $region139: #{actor_forward.7} parent=124 // loop_exit
                  _
              $region125: #{actor_forward.7} parent=109 // pred_fallthru
                _
              %p1374 = pneg %p1193
              // Predicated region
              $region140: #{actor_forward.7} parent=109 // pred_check
                _
              $region141: #{actor_forward.7} parent=109 // pred_check_branch
                %1376 = sbr.rel (%p1193) target = $region143
              $region142: #{actor_forward.7} parent=109 // pred_region
                %s1377 = sand.u32 %s1169, 7
                %s1378 = ssub.s32 %s1169, %s1377
                %s1379 = scalar_lea.vmem %s1157, %s1378 [#allocation3]
                %s1380 = ssub.s32 %s1169, %s1377
                %s1381 = scalar_lea.vmem %s1168, %s1380
                %s1382 = sshrl.u32 %s1169, 3
                %s1383 = sshrl.u32 %s1382, 6
                // While loop
                $region144: #{actor_forward.7} parent=142 // loop_pre_header
                  _
                $region145: #{actor_forward.7} parent=142 // loop_header
                  %s1387 = sphi 0, %s1389
                  %p1388 = scmp.ge.s32.totalorder %s1387, %s1383
                  %s1392 = sphi 0, %s1525
                  %s1393 = sphi %s1157, %s1528
                  %s1394 = sphi %s1168, %s1529
                $region146: #{actor_forward.7} parent=142 // loop_header_branch
                  %1391 = sbr.rel (%p1388) target = $region150
                $region147: #{actor_forward.7} parent=142 // loop_body
                  %v1395 = vld [vmem:[%s1393] sm:$0xff]
                  %1396 = vst [vmem:[%s1394] sm:$0xff] %v1395
                  %v1397 = vld [vmem:[%s1393 + $0x8] sm:$0xff]
                  %1398 = vst [vmem:[%s1394 + $0x8] sm:$0xff] %v1397
                  %v1399 = vld [vmem:[%s1393 + $0x10] sm:$0xff]
                  %1400 = vst [vmem:[%s1394 + $0x10] sm:$0xff] %v1399
                  %v1401 = vld [vmem:[%s1393 + $0x18] sm:$0xff]
                  %1402 = vst [vmem:[%s1394 + $0x18] sm:$0xff] %v1401
                  %v1403 = vld [vmem:[%s1393 + $0x20] sm:$0xff]
                  %1404 = vst [vmem:[%s1394 + $0x20] sm:$0xff] %v1403
                  %v1405 = vld [vmem:[%s1393 + $0x28] sm:$0xff]
                  %1406 = vst [vmem:[%s1394 + $0x28] sm:$0xff] %v1405
                  %v1407 = vld [vmem:[%s1393 + $0x30] sm:$0xff]
                  %1408 = vst [vmem:[%s1394 + $0x30] sm:$0xff] %v1407
                  %v1409 = vld [vmem:[%s1393 + $0x38] sm:$0xff]
                  %1410 = vst [vmem:[%s1394 + $0x38] sm:$0xff] %v1409
                  %v1411 = vld [vmem:[%s1393 + $0x40] sm:$0xff]
                  %1412 = vst [vmem:[%s1394 + $0x40] sm:$0xff] %v1411
                  %v1413 = vld [vmem:[%s1393 + $0x48] sm:$0xff]
                  %1414 = vst [vmem:[%s1394 + $0x48] sm:$0xff] %v1413
                  %v1415 = vld [vmem:[%s1393 + $0x50] sm:$0xff]
                  %1416 = vst [vmem:[%s1394 + $0x50] sm:$0xff] %v1415
                  %v1417 = vld [vmem:[%s1393 + $0x58] sm:$0xff]
                  %1418 = vst [vmem:[%s1394 + $0x58] sm:$0xff] %v1417
                  %v1419 = vld [vmem:[%s1393 + $0x60] sm:$0xff]
                  %1420 = vst [vmem:[%s1394 + $0x60] sm:$0xff] %v1419
                  %v1421 = vld [vmem:[%s1393 + $0x68] sm:$0xff]
                  %1422 = vst [vmem:[%s1394 + $0x68] sm:$0xff] %v1421
                  %v1423 = vld [vmem:[%s1393 + $0x70] sm:$0xff]
                  %1424 = vst [vmem:[%s1394 + $0x70] sm:$0xff] %v1423
                  %v1425 = vld [vmem:[%s1393 + $0x78] sm:$0xff]
                  %1426 = vst [vmem:[%s1394 + $0x78] sm:$0xff] %v1425
                  %v1427 = vld [vmem:[%s1393 + $0x80] sm:$0xff]
                  %1428 = vst [vmem:[%s1394 + $0x80] sm:$0xff] %v1427
                  %v1429 = vld [vmem:[%s1393 + $0x88] sm:$0xff]
                  %1430 = vst [vmem:[%s1394 + $0x88] sm:$0xff] %v1429
                  %v1431 = vld [vmem:[%s1393 + $0x90] sm:$0xff]
                  %1432 = vst [vmem:[%s1394 + $0x90] sm:$0xff] %v1431
                  %v1433 = vld [vmem:[%s1393 + $0x98] sm:$0xff]
                  %1434 = vst [vmem:[%s1394 + $0x98] sm:$0xff] %v1433
                  %v1435 = vld [vmem:[%s1393 + $0xa0] sm:$0xff]
                  %1436 = vst [vmem:[%s1394 + $0xa0] sm:$0xff] %v1435
                  %v1437 = vld [vmem:[%s1393 + $0xa8] sm:$0xff]
                  %1438 = vst [vmem:[%s1394 + $0xa8] sm:$0xff] %v1437
                  %v1439 = vld [vmem:[%s1393 + $0xb0] sm:$0xff]
                  %1440 = vst [vmem:[%s1394 + $0xb0] sm:$0xff] %v1439
                  %v1441 = vld [vmem:[%s1393 + $0xb8] sm:$0xff]
                  %1442 = vst [vmem:[%s1394 + $0xb8] sm:$0xff] %v1441
                  %v1443 = vld [vmem:[%s1393 + $0xc0] sm:$0xff]
                  %1444 = vst [vmem:[%s1394 + $0xc0] sm:$0xff] %v1443
                  %v1445 = vld [vmem:[%s1393 + $0xc8] sm:$0xff]
                  %1446 = vst [vmem:[%s1394 + $0xc8] sm:$0xff] %v1445
                  %v1447 = vld [vmem:[%s1393 + $0xd0] sm:$0xff]
                  %1448 = vst [vmem:[%s1394 + $0xd0] sm:$0xff] %v1447
                  %v1449 = vld [vmem:[%s1393 + $0xd8] sm:$0xff]
                  %1450 = vst [vmem:[%s1394 + $0xd8] sm:$0xff] %v1449
                  %v1451 = vld [vmem:[%s1393 + $0xe0] sm:$0xff]
                  %1452 = vst [vmem:[%s1394 + $0xe0] sm:$0xff] %v1451
                  %v1453 = vld [vmem:[%s1393 + $0xe8] sm:$0xff]
                  %1454 = vst [vmem:[%s1394 + $0xe8] sm:$0xff] %v1453
                  %v1455 = vld [vmem:[%s1393 + $0xf0] sm:$0xff]
                  %1456 = vst [vmem:[%s1394 + $0xf0] sm:$0xff] %v1455
                  %v1457 = vld [vmem:[%s1393 + $0xf8] sm:$0xff]
                  %1458 = vst [vmem:[%s1394 + $0xf8] sm:$0xff] %v1457
                  %v1459 = vld [vmem:[%s1393 + $0x100] sm:$0xff]
                  %1460 = vst [vmem:[%s1394 + $0x100] sm:$0xff] %v1459
                  %v1461 = vld [vmem:[%s1393 + $0x108] sm:$0xff]
                  %1462 = vst [vmem:[%s1394 + $0x108] sm:$0xff] %v1461
                  %v1463 = vld [vmem:[%s1393 + $0x110] sm:$0xff]
                  %1464 = vst [vmem:[%s1394 + $0x110] sm:$0xff] %v1463
                  %v1465 = vld [vmem:[%s1393 + $0x118] sm:$0xff]
                  %1466 = vst [vmem:[%s1394 + $0x118] sm:$0xff] %v1465
                  %v1467 = vld [vmem:[%s1393 + $0x120] sm:$0xff]
                  %1468 = vst [vmem:[%s1394 + $0x120] sm:$0xff] %v1467
                  %v1469 = vld [vmem:[%s1393 + $0x128] sm:$0xff]
                  %1470 = vst [vmem:[%s1394 + $0x128] sm:$0xff] %v1469
                  %v1471 = vld [vmem:[%s1393 + $0x130] sm:$0xff]
                  %1472 = vst [vmem:[%s1394 + $0x130] sm:$0xff] %v1471
                  %v1473 = vld [vmem:[%s1393 + $0x138] sm:$0xff]
                  %1474 = vst [vmem:[%s1394 + $0x138] sm:$0xff] %v1473
                  %v1475 = vld [vmem:[%s1393 + $0x140] sm:$0xff]
                  %1476 = vst [vmem:[%s1394 + $0x140] sm:$0xff] %v1475
                  %v1477 = vld [vmem:[%s1393 + $0x148] sm:$0xff]
                  %1478 = vst [vmem:[%s1394 + $0x148] sm:$0xff] %v1477
                  %v1479 = vld [vmem:[%s1393 + $0x150] sm:$0xff]
                  %1480 = vst [vmem:[%s1394 + $0x150] sm:$0xff] %v1479
                  %v1481 = vld [vmem:[%s1393 + $0x158] sm:$0xff]
                  %1482 = vst [vmem:[%s1394 + $0x158] sm:$0xff] %v1481
                  %v1483 = vld [vmem:[%s1393 + $0x160] sm:$0xff]
                  %1484 = vst [vmem:[%s1394 + $0x160] sm:$0xff] %v1483
                  %v1485 = vld [vmem:[%s1393 + $0x168] sm:$0xff]
                  %1486 = vst [vmem:[%s1394 + $0x168] sm:$0xff] %v1485
                  %v1487 = vld [vmem:[%s1393 + $0x170] sm:$0xff]
                  %1488 = vst [vmem:[%s1394 + $0x170] sm:$0xff] %v1487
                  %v1489 = vld [vmem:[%s1393 + $0x178] sm:$0xff]
                  %1490 = vst [vmem:[%s1394 + $0x178] sm:$0xff] %v1489
                  %v1491 = vld [vmem:[%s1393 + $0x180] sm:$0xff]
                  %1492 = vst [vmem:[%s1394 + $0x180] sm:$0xff] %v1491
                  %v1493 = vld [vmem:[%s1393 + $0x188] sm:$0xff]
                  %1494 = vst [vmem:[%s1394 + $0x188] sm:$0xff] %v1493
                  %v1495 = vld [vmem:[%s1393 + $0x190] sm:$0xff]
                  %1496 = vst [vmem:[%s1394 + $0x190] sm:$0xff] %v1495
                  %v1497 = vld [vmem:[%s1393 + $0x198] sm:$0xff]
                  %1498 = vst [vmem:[%s1394 + $0x198] sm:$0xff] %v1497
                  %v1499 = vld [vmem:[%s1393 + $0x1a0] sm:$0xff]
                  %1500 = vst [vmem:[%s1394 + $0x1a0] sm:$0xff] %v1499
                  %v1501 = vld [vmem:[%s1393 + $0x1a8] sm:$0xff]
                  %1502 = vst [vmem:[%s1394 + $0x1a8] sm:$0xff] %v1501
                  %v1503 = vld [vmem:[%s1393 + $0x1b0] sm:$0xff]
                  %1504 = vst [vmem:[%s1394 + $0x1b0] sm:$0xff] %v1503
                  %v1505 = vld [vmem:[%s1393 + $0x1b8] sm:$0xff]
                  %1506 = vst [vmem:[%s1394 + $0x1b8] sm:$0xff] %v1505
                  %v1507 = vld [vmem:[%s1393 + $0x1c0] sm:$0xff]
                  %1508 = vst [vmem:[%s1394 + $0x1c0] sm:$0xff] %v1507
                  %v1509 = vld [vmem:[%s1393 + $0x1c8] sm:$0xff]
                  %1510 = vst [vmem:[%s1394 + $0x1c8] sm:$0xff] %v1509
                  %v1511 = vld [vmem:[%s1393 + $0x1d0] sm:$0xff]
                  %1512 = vst [vmem:[%s1394 + $0x1d0] sm:$0xff] %v1511
                  %v1513 = vld [vmem:[%s1393 + $0x1d8] sm:$0xff]
                  %1514 = vst [vmem:[%s1394 + $0x1d8] sm:$0xff] %v1513
                  %v1515 = vld [vmem:[%s1393 + $0x1e0] sm:$0xff]
                  %1516 = vst [vmem:[%s1394 + $0x1e0] sm:$0xff] %v1515
                  %v1517 = vld [vmem:[%s1393 + $0x1e8] sm:$0xff]
                  %1518 = vst [vmem:[%s1394 + $0x1e8] sm:$0xff] %v1517
                  %v1519 = vld [vmem:[%s1393 + $0x1f0] sm:$0xff]
                  %1520 = vst [vmem:[%s1394 + $0x1f0] sm:$0xff] %v1519
                  %v1521 = vld [vmem:[%s1393 + $0x1f8] sm:$0xff]
                  %1522 = vst [vmem:[%s1394 + $0x1f8] sm:$0xff] %v1521
                  %s1523 = sadd.s32 1, %s1392
                  %p1524 = scmp.ge.s32.totalorder %s1523, %s1383
                  %s1525 = scalar_select %p1524, 0, %s1523
                  %s1526 = smul.u32 %s1525, 512
                  %s1527 = smul.u32 %s1525, 512
                  %s1528 = scalar_lea.vmem %s1157, %s1526 [#allocation3]
                  %s1529 = scalar_lea.vmem %s1168, %s1527
                $region148: #{actor_forward.7} parent=142 // loop_footer
                  %s1389 = sadd.s32 %s1387, 1
                $region149: #{actor_forward.7} parent=142 // loop_footer_branch
                  %1386 = sbr.rel target = $region145
                $region150: #{actor_forward.7} parent=142 // loop_exit
                  _
                %s1530 = sshrl.u32 %s1382, 6
                %s1531 = sand.u32 %s1382, 63
                %s1532 = smul.u32 %s1530, 64
                %s1533 = smul.u32 128, %s1532
                %s1534 = sshra.s32 %s1533, 4
                %s1535 = scalar_lea.vmem %s1157, %s1534 [#allocation3]
                %s1536 = smul.u32 128, %s1532
                %s1537 = sshra.s32 %s1536, 4
                %s1538 = scalar_lea.vmem %s1168, %s1537
                // While loop
                $region151: #{actor_forward.7} parent=142 // loop_pre_header
                  _
                $region152: #{actor_forward.7} parent=142 // loop_header
                  %s1542 = sphi 0, %s1544
                  %p1543 = scmp.ge.s32.totalorder %s1542, %s1531
                  %s1547 = sphi 0, %s1554
                  %s1548 = sphi %s1535, %s1557
                  %s1549 = sphi %s1538, %s1558
                $region153: #{actor_forward.7} parent=142 // loop_header_branch
                  %1546 = sbr.rel (%p1543) target = $region157
                $region154: #{actor_forward.7} parent=142 // loop_body
                  %v1550 = vld [vmem:[%s1548] sm:$0xff]
                  %1551 = vst [vmem:[%s1549] sm:$0xff] %v1550
                  %s1552 = sadd.s32 1, %s1547
                  %p1553 = scmp.ge.s32.totalorder %s1552, %s1531
                  %s1554 = scalar_select %p1553, 0, %s1552
                  %s1555 = smul.u32 %s1554, 8
                  %s1556 = smul.u32 %s1554, 8
                  %s1557 = scalar_lea.vmem %s1535, %s1555 [#allocation3]
                  %s1558 = scalar_lea.vmem %s1538, %s1556
                $region155: #{actor_forward.7} parent=142 // loop_footer
                  %s1544 = sadd.s32 %s1542, 1
                $region156: #{actor_forward.7} parent=142 // loop_footer_branch
                  %1541 = sbr.rel target = $region152
                $region157: #{actor_forward.7} parent=142 // loop_exit
                  _
                %s1559 = sshll.u32 1, %s1377
                %s1560 = ssub.s32 %s1559, 1
                loop: start=0, step=1, limit=1
                $region158: #{actor_forward.7} parent=142 // loop_pre_header
                  _
                $region159: #{actor_forward.7} parent=142 // loop_header
                  %s1562 = sphi 0, %s1566
                  %p1563 = scmp.ge.s32.totalorder %s1562, 1
                  %s1567 = sphi %s1379, %s1379
                  %s1568 = sphi %s1381, %s1381
                $region160: #{actor_forward.7} parent=142 // loop_header_branch
                  %1565 = sbr.rel (%p1563) target = $region164
                $region161: #{actor_forward.7} parent=142 // loop_body
                  %v1569 = vld [vmem:[%s1567] sm:%s1560]
                  %1570 = vst [vmem:[%s1568] sm:%s1560] %v1569
                $region162: #{actor_forward.7} parent=142 // loop_footer
                  %s1566 = sadd.s32 1, %s1562
                $region163: #{actor_forward.7} parent=142 // loop_footer_branch
                  %1561 = sbr.rel target = $region159
                $region164: #{actor_forward.7} parent=142 // loop_exit
                  _
              $region143: #{actor_forward.7} parent=109 // pred_fallthru
                _
            $region110: #{actor_forward.7} parent=105 // pred_fallthru
              _
            // Predicated region
            $region111: #{actor_forward.7} parent=105 // pred_check
              %p1177 = pneg %p1173
            $region112: #{actor_forward.7} parent=105 // pred_check_branch
              %1179 = sbr.rel (%p1177) target = $region114
            $region113: #{actor_forward.7} parent=105 // pred_region
              %s1180 = sshll.u32 1, %s1169
              %s1181 = ssub.s32 %s1180, 1
              loop: start=0, step=1, limit=1
              $region115: #{actor_forward.7} parent=113 // loop_pre_header
                _
              $region116: #{actor_forward.7} parent=113 // loop_header
                %s1183 = sphi 0, %s1187
                %p1184 = scmp.ge.s32.totalorder %s1183, 1
                %s1188 = sphi %s1157, %s1157
                %s1189 = sphi %s1168, %s1168
              $region117: #{actor_forward.7} parent=113 // loop_header_branch
                %1186 = sbr.rel (%p1184) target = $region121
              $region118: #{actor_forward.7} parent=113 // loop_body
                %v1190 = vld [vmem:[%s1188] sm:%s1181]
                %1191 = vst [vmem:[%s1189] sm:%s1181] %v1190
              $region119: #{actor_forward.7} parent=113 // loop_footer
                %s1187 = sadd.s32 1, %s1183
              $region120: #{actor_forward.7} parent=113 // loop_footer_branch
                %1182 = sbr.rel target = $region116
              $region121: #{actor_forward.7} parent=113 // loop_exit
                _
            $region114: #{actor_forward.7} parent=105 // pred_fallthru
              _
          $region106: #{actor_forward.7} parent=101 // pred_fallthru
            _
          %1571 = vnop
        $region102: #{actor_forward.7} parent=93 // pred_fallthru
          _
      $region94: #{actor_forward.7} parent=5 // pred_fallthru
        _
      %p1572 = scmp.le.s32.totalorder 2, %s9
      // Predicated region
      $region165: #{actor_forward.7} parent=5 // pred_check
        %p1573 = pneg %p1572
      $region166: #{actor_forward.7} parent=5 // pred_check_branch
        %1575 = sbr.rel (%p1573) target = $region168
      $region167: #{actor_forward.7} parent=5 // pred_region
        %s1576 = ssub.s32 %s9, 2
        // Predicated region
        $region169: #{actor_forward.7} parent=167 // pred_check
          %p1577 = pneg %p106
        $region170: #{actor_forward.7} parent=167 // pred_check_branch
          %1579 = sbr.rel (%p1577) target = $region172
        $region171: #{actor_forward.7} parent=167 // pred_region
          %s1580 = sand.u32 %s91, 1
          %s1581 = sand.u32 %s91, 1
          %s1582 = smul.addr %s1581, 8
          %s1583 = scalar_lea.vmem [#allocation3], %s1582
        $region172: #{actor_forward.7} parent=167 // pred_fallthru
          _
      $region168: #{actor_forward.7} parent=5 // pred_fallthru
        _
    $region6: #{actor_forward.7} parent=1 // loop_footer
      %s13 = sadd.s32 1, %s9
    $region7: #{actor_forward.7} parent=1 // loop_footer_branch
      %8 = sbr.rel target = $region3
    $region8: #{actor_forward.7} parent=1 // loop_exit
      _

// kernel: actor_forward.8
$region0: #{actor_forward.8}
  #allocation0 [shape = 'u32[]', space=smem, size = 0x4, offset = 0x4, fixed_abs, tag = 'smem constant byte address 0x4 - core index']
  #allocation1 [shape = 'u32[144,128]{1,0:T(1,128)}', space=vmem, size = 0x12000, scoped, tag = 'internal scratch']
  %s0 = inlined_call_operand.vmem [shape: bf16[2,100], index: 0, kind: input, shape index: {}]
  %s1 = inlined_call_operand.vmem [shape: f32[2,1], index: 1, kind: input, shape index: {}]
  %s2 = inlined_call_operand.vmem [shape: bf16[100,2580], index: 2, kind: input, shape index: {}]
  %s3 = inlined_call_operand.vmem [shape: bf16[2,2580], index: 3, kind: output, shape index: {}]
  %s4 = sld [smem:[#allocation0]]
  $region173: #{actor_forward.8} parent=0
    _
  %s6 = ssub.s32 1, %s4
  %s7 = scalar_select 0, %s6, %s4
  $region1: #{actor_forward.8} parent=0
    #allocation2 [shape = 'u8[212992]{0}', space=vmem, size = 0x34000, scoped, tag = 'input window, operand 2']
    #allocation3 [shape = 'u8[4096]{0}', space=vmem, size = 0x1000, scoped, tag = 'output window, operand 0']
    loop: start=0, step=1, limit=8
    $region2: #{actor_forward.8} parent=1 // loop_pre_header
      _
    $region3: #{actor_forward.8} parent=1 // loop_header
      %s9 = sphi 0, %s13
      %p10 = scmp.ge.s32.totalorder %s9, 8
      %s17 = sphi 0, %s17
      %s19 = sphi 0, %s17
      %s20 = sphi 0, %s19
      %s34 = sphi 0, %s20
      %s38 = sphi 0, %s38
      %s40 = sphi 0, %s38
      %s41 = sphi 0, %s40
      %s55 = sphi 0, %s41
      %s61 = sphi 0, %s63
      %s64 = sphi 0, %s61
      %s65 = sphi 0, %s64
      %s81 = sphi 0, %s65
      %s87 = sphi 0, %s89
      %s90 = sphi 0, %s87
      %s91 = sphi 0, %s90
      %s107 = sphi 0, %s91
    $region4: #{actor_forward.8} parent=1 // loop_header_branch
      %12 = sbr.rel (%p10) target = $region8
    $region5: #{actor_forward.8} parent=1 // loop_body
      %s14 = ssub.s32 %s9, 1
      %s15 = ssub.s32 %s9, 2
      %s16 = sadd.s32 %s9, 1
      %s18 = sadd.s32 %s17, 1
      %p21 = scmp.eq.s32.totalorder %s9, 5
      %p22 = scmp.ne.s32.totalorder %s17, %s19
      %p23 = scmp.eq.s32.totalorder %s9, 0
      %p24 = por %p22, %p23
      %p25 = scmp.ne.s32.totalorder %s17, %s19
      %p26 = scmp.eq.s32.totalorder %s14, 5
      %p27 = por %p25, %p26
      %p28 = scmp.ne.s32.totalorder %s19, %s20
      %p29 = scmp.eq.s32.totalorder %s14, 0
      %p30 = por %p28, %p29
      %p31 = scmp.ne.s32.totalorder %s19, %s20
      %p32 = scmp.eq.s32.totalorder %s15, 5
      %p33 = por %p31, %p32
      %p35 = scmp.ne.s32.totalorder %s20, %s34
      %p36 = scmp.eq.s32.totalorder %s15, 0
      %p37 = por %p35, %p36
      %s39 = sadd.s32 %s38, 1
      %p42 = scmp.eq.s32.totalorder %s9, 5
      %p43 = scmp.ne.s32.totalorder %s38, %s40
      %p44 = scmp.eq.s32.totalorder %s9, 0
      %p45 = por %p43, %p44
      %p46 = scmp.ne.s32.totalorder %s38, %s40
      %p47 = scmp.eq.s32.totalorder %s14, 5
      %p48 = por %p46, %p47
      %p49 = scmp.ne.s32.totalorder %s40, %s41
      %p50 = scmp.eq.s32.totalorder %s14, 0
      %p51 = por %p49, %p50
      %p52 = scmp.ne.s32.totalorder %s40, %s41
      %p53 = scmp.eq.s32.totalorder %s15, 5
      %p54 = por %p52, %p53
      %p56 = scmp.ne.s32.totalorder %s41, %s55
      %p57 = scmp.eq.s32.totalorder %s15, 0
      %p58 = por %p56, %p57
      %s59 = ssub.s32 %s9, %s16
      %p60 = scmp.eq.s32.totalorder %s59, 0
      %s62 = sadd.s32 %s61, 1
      %s63 = scalar_select %p60, %s61, %s62
      %p66 = pneg %p60
      %p67 = scmp.eq.s32.totalorder %s9, 5
      %p68 = por %p66, %p67
      %p69 = scmp.ne.s32.totalorder %s61, %s64
      %p70 = scmp.eq.s32.totalorder %s9, 0
      %p71 = por %p69, %p70
      %p72 = scmp.ne.s32.totalorder %s61, %s64
      %p73 = scmp.eq.s32.totalorder %s14, 5
      %p74 = por %p72, %p73
      %p75 = scmp.ne.s32.totalorder %s64, %s65
      %p76 = scmp.eq.s32.totalorder %s14, 0
      %p77 = por %p75, %p76
      %p78 = scmp.ne.s32.totalorder %s64, %s65
      %p79 = scmp.eq.s32.totalorder %s15, 5
      %p80 = por %p78, %p79
      %p82 = scmp.ne.s32.totalorder %s65, %s81
      %p83 = scmp.eq.s32.totalorder %s15, 0
      %p84 = por %p82, %p83
      %s85 = ssub.s32 %s9, %s16
      %p86 = scmp.eq.s32.totalorder %s85, 0
      %s88 = sadd.s32 %s87, 1
      %s89 = scalar_select %p86, %s87, %s88
      %p92 = pneg %p86
      %p93 = scmp.eq.s32.totalorder %s9, 5
      %p94 = por %p92, %p93
      %p95 = scmp.ne.s32.totalorder %s87, %s90
      %p96 = scmp.eq.s32.totalorder %s9, 0
      %p97 = por %p95, %p96
      %p98 = scmp.ne.s32.totalorder %s87, %s90
      %p99 = scmp.eq.s32.totalorder %s14, 5
      %p100 = por %p98, %p99
      %p101 = scmp.ne.s32.totalorder %s90, %s91
      %p102 = scmp.eq.s32.totalorder %s14, 0
      %p103 = por %p101, %p102
      %p104 = scmp.ne.s32.totalorder %s90, %s91
      %p105 = scmp.eq.s32.totalorder %s15, 5
      %p106 = por %p104, %p105
      %p108 = scmp.ne.s32.totalorder %s91, %s107
      %p109 = scmp.eq.s32.totalorder %s15, 0
      %p110 = por %p108, %p109
      %p111 = scmp.le.s32.totalorder 1, %s9
      %p112 = scmp.lt.s32.totalorder %s9, 7
      %p113 = pnand %p111, %p112
      %p114 = pneg %p113
      // Predicated region
      $region9: #{actor_forward.8} parent=5 // pred_check
        _
      $region10: #{actor_forward.8} parent=5 // pred_check_branch
        %116 = sbr.rel (%p113) target = $region12
      $region11: #{actor_forward.8} parent=5 // pred_region
        %s117 = ssub.s32 %s9, 1
        // Predicated region
        $region13: #{actor_forward.8} parent=11 // pred_check
          %p118 = pneg %p30
        $region14: #{actor_forward.8} parent=11 // pred_check_branch
          %120 = sbr.rel (%p118) target = $region16
        $region15: #{actor_forward.8} parent=11 // pred_region
          _
        $region16: #{actor_forward.8} parent=11 // pred_fallthru
          _
        // Predicated region
        $region17: #{actor_forward.8} parent=11 // pred_check
          %p121 = pneg %p51
        $region18: #{actor_forward.8} parent=11 // pred_check_branch
          %123 = sbr.rel (%p121) target = $region20
        $region19: #{actor_forward.8} parent=11 // pred_region
          _
        $region20: #{actor_forward.8} parent=11 // pred_fallthru
          _
      $region12: #{actor_forward.8} parent=5 // pred_fallthru
        _
      %p124 = scmp.lt.s32.totalorder %s9, 6
      // Predicated region
      $region21: #{actor_forward.8} parent=5 // pred_check
        %p125 = pneg %p124
      $region22: #{actor_forward.8} parent=5 // pred_check_branch
        %127 = sbr.rel (%p125) target = $region24
      $region23: #{actor_forward.8} parent=5 // pred_region
        // Predicated region
        $region25: #{actor_forward.8} parent=23 // pred_check
          %p128 = pneg %p71
        $region26: #{actor_forward.8} parent=23 // pred_check_branch
          %130 = sbr.rel (%p128) target = $region28
        $region27: #{actor_forward.8} parent=23 // pred_region
          %s131 = sand.u32 %s61, 1
          %s132 = sand.u32 %s61, 1
          %s133 = smul.addr %s132, 208
          %s134 = scalar_lea.vmem [#allocation2], %s133
          %s135 = smul.u32 4, %s9
          %s136 = ssub.s32 21, %s135
          %p137 = scmp.lt.s32.totalorder %s136, 4
          %s138 = scalar_select %p137, %s136, 4
          %s139 = smul.u32 832, %s138
          %p140 = scmp.ne.s32.totalorder 0, %s139
          %s141 = smul.addr %s135, 4
          %s142 = scalar_lea.vmem %s2, %s141
          %s143 = smul.u32 %s138, 4
          // Predicated region
          $region29: #{actor_forward.8} parent=27 // pred_check
            %p144 = pneg %p140
          $region30: #{actor_forward.8} parent=27 // pred_check_branch
            %146 = sbr.rel (%p144) target = $region32
          $region31: #{actor_forward.8} parent=27 // pred_region
            %p147 = scmp.lt.u32.totalorder %s143, 8
            %p148 = pneg %p147
            // Predicated region
            $region33: #{actor_forward.8} parent=31 // pred_check
              _
            $region34: #{actor_forward.8} parent=31 // pred_check_branch
              %150 = sbr.rel (%p147) target = $region36
            $region35: #{actor_forward.8} parent=31 // pred_region
              %s190 = sand.u32 %s143, 7
              %p191 = scmp.eq.s32.totalorder %s190, 0
              // Predicated region
              $region48: #{actor_forward.8} parent=35 // pred_check
                %p192 = pneg %p191
              $region49: #{actor_forward.8} parent=35 // pred_check_branch
                %194 = sbr.rel (%p192) target = $region51
              $region50: #{actor_forward.8} parent=35 // pred_region
                %s195 = sshrl.u32 %s143, 3
                %s196 = sshrl.u32 %s195, 3
                // While loop
                $region52: #{actor_forward.8} parent=50 // loop_pre_header
                  _
                $region53: #{actor_forward.8} parent=50 // loop_header
                  %s200 = sphi 0, %s202
                  %p201 = scmp.ge.s32.totalorder %s200, %s196
                  %s205 = sphi 0, %s418
                  %s206 = sphi %s142, %s421
                  %s207 = sphi %s134, %s422
                $region54: #{actor_forward.8} parent=50 // loop_header_branch
                  %204 = sbr.rel (%p201) target = $region58
                $region55: #{actor_forward.8} parent=50 // loop_body
                  %v208 = vld [vmem:[%s206] sm:$0xff]
                  %209 = vst [vmem:[%s207] sm:$0xff] %v208
                  %v210 = vld [vmem:[%s206 + $0x8] sm:$0xff]
                  %211 = vst [vmem:[%s207 + $0x8] sm:$0xff] %v210
                  %v212 = vld [vmem:[%s206 + $0x10] sm:$0xff]
                  %213 = vst [vmem:[%s207 + $0x10] sm:$0xff] %v212
                  %v214 = vld [vmem:[%s206 + $0x18] sm:$0xff]
                  %215 = vst [vmem:[%s207 + $0x18] sm:$0xff] %v214
                  %v216 = vld [vmem:[%s206 + $0x20] sm:$0xff]
                  %217 = vst [vmem:[%s207 + $0x20] sm:$0xff] %v216
                  %v218 = vld [vmem:[%s206 + $0x28] sm:$0xff]
                  %219 = vst [vmem:[%s207 + $0x28] sm:$0xff] %v218
                  %v220 = vld [vmem:[%s206 + $0x30] sm:$0xff]
                  %221 = vst [vmem:[%s207 + $0x30] sm:$0xff] %v220
                  %v222 = vld [vmem:[%s206 + $0x38] sm:$0xff]
                  %223 = vst [vmem:[%s207 + $0x38] sm:$0xff] %v222
                  %v224 = vld [vmem:[%s206 + $0x54] sm:$0xff]
                  %225 = vst [vmem:[%s207 + $0x10] sm:$0xff] %v224
                  %v226 = vld [vmem:[%s206 + $0x5c] sm:$0xff]
                  %227 = vst [vmem:[%s207 + $0x18] sm:$0xff] %v226
                  %v228 = vld [vmem:[%s206 + $0x64] sm:$0xff]
                  %229 = vst [vmem:[%s207 + $0x20] sm:$0xff] %v228
                  %v230 = vld [vmem:[%s206 + $0x6c] sm:$0xff]
                  %231 = vst [vmem:[%s207 + $0x28] sm:$0xff] %v230
                  %v232 = vld [vmem:[%s206 + $0x74] sm:$0xff]
                  %233 = vst [vmem:[%s207 + $0x30] sm:$0xff] %v232
                  %v234 = vld [vmem:[%s206 + $0x7c] sm:$0xff]
                  %235 = vst [vmem:[%s207 + $0x38] sm:$0xff] %v234
                  %v236 = vld [vmem:[%s206 + $0x84] sm:$0xff]
                  %237 = vst [vmem:[%s207 + $0x40] sm:$0xff] %v236
                  %v238 = vld [vmem:[%s206 + $0x8c] sm:$0xff]
                  %239 = vst [vmem:[%s207 + $0x48] sm:$0xff] %v238
                  %v240 = vld [vmem:[%s206 + $0xa8] sm:$0xff]
                  %241 = vst [vmem:[%s207 + $0x20] sm:$0xff] %v240
                  %v242 = vld [vmem:[%s206 + $0xb0] sm:$0xff]
                  %243 = vst [vmem:[%s207 + $0x28] sm:$0xff] %v242
                  %v244 = vld [vmem:[%s206 + $0xb8] sm:$0xff]
                  %245 = vst [vmem:[%s207 + $0x30] sm:$0xff] %v244
                  %v246 = vld [vmem:[%s206 + $0xc0] sm:$0xff]
                  %247 = vst [vmem:[%s207 + $0x38] sm:$0xff] %v246
                  %v248 = vld [vmem:[%s206 + $0xc8] sm:$0xff]
                  %249 = vst [vmem:[%s207 + $0x40] sm:$0xff] %v248
                  %v250 = vld [vmem:[%s206 + $0xd0] sm:$0xff]
                  %251 = vst [vmem:[%s207 + $0x48] sm:$0xff] %v250
                  %v252 = vld [vmem:[%s206 + $0xd8] sm:$0xff]
                  %253 = vst [vmem:[%s207 + $0x50] sm:$0xff] %v252
                  %v254 = vld [vmem:[%s206 + $0xe0] sm:$0xff]
                  %255 = vst [vmem:[%s207 + $0x58] sm:$0xff] %v254
                  %v256 = vld [vmem:[%s206 + $0xfc] sm:$0xff]
                  %257 = vst [vmem:[%s207 + $0x30] sm:$0xff] %v256
                  %v258 = vld [vmem:[%s206 + $0x104] sm:$0xff]
                  %259 = vst [vmem:[%s207 + $0x38] sm:$0xff] %v258
                  %v260 = vld [vmem:[%s206 + $0x10c] sm:$0xff]
                  %261 = vst [vmem:[%s207 + $0x40] sm:$0xff] %v260
                  %v262 = vld [vmem:[%s206 + $0x114] sm:$0xff]
                  %263 = vst [vmem:[%s207 + $0x48] sm:$0xff] %v262
                  %v264 = vld [vmem:[%s206 + $0x11c] sm:$0xff]
                  %265 = vst [vmem:[%s207 + $0x50] sm:$0xff] %v264
                  %v266 = vld [vmem:[%s206 + $0x124] sm:$0xff]
                  %267 = vst [vmem:[%s207 + $0x58] sm:$0xff] %v266
                  %v268 = vld [vmem:[%s206 + $0x12c] sm:$0xff]
                  %269 = vst [vmem:[%s207 + $0x60] sm:$0xff] %v268
                  %v270 = vld [vmem:[%s206 + $0x134] sm:$0xff]
                  %271 = vst [vmem:[%s207 + $0x68] sm:$0xff] %v270
                  %v272 = vld [vmem:[%s206 + $0x150] sm:$0xff]
                  %273 = vst [vmem:[%s207 + $0x40] sm:$0xff] %v272
                  %v274 = vld [vmem:[%s206 + $0x158] sm:$0xff]
                  %275 = vst [vmem:[%s207 + $0x48] sm:$0xff] %v274
                  %v276 = vld [vmem:[%s206 + $0x160] sm:$0xff]
                  %277 = vst [vmem:[%s207 + $0x50] sm:$0xff] %v276
                  %v278 = vld [vmem:[%s206 + $0x168] sm:$0xff]
                  %279 = vst [vmem:[%s207 + $0x58] sm:$0xff] %v278
                  %v280 = vld [vmem:[%s206 + $0x170] sm:$0xff]
                  %281 = vst [vmem:[%s207 + $0x60] sm:$0xff] %v280
                  %v282 = vld [vmem:[%s206 + $0x178] sm:$0xff]
                  %283 = vst [vmem:[%s207 + $0x68] sm:$0xff] %v282
                  %v284 = vld [vmem:[%s206 + $0x180] sm:$0xff]
                  %285 = vst [vmem:[%s207 + $0x70] sm:$0xff] %v284
                  %v286 = vld [vmem:[%s206 + $0x188] sm:$0xff]
                  %287 = vst [vmem:[%s207 + $0x78] sm:$0xff] %v286
                  %v288 = vld [vmem:[%s206 + $0x1a4] sm:$0xff]
                  %289 = vst [vmem:[%s207 + $0x50] sm:$0xff] %v288
                  %v290 = vld [vmem:[%s206 + $0x1ac] sm:$0xff]
                  %291 = vst [vmem:[%s207 + $0x58] sm:$0xff] %v290
                  %v292 = vld [vmem:[%s206 + $0x1b4] sm:$0xff]
                  %293 = vst [vmem:[%s207 + $0x60] sm:$0xff] %v292
                  %v294 = vld [vmem:[%s206 + $0x1bc] sm:$0xff]
                  %295 = vst [vmem:[%s207 + $0x68] sm:$0xff] %v294
                  %v296 = vld [vmem:[%s206 + $0x1c4] sm:$0xff]
                  %297 = vst [vmem:[%s207 + $0x70] sm:$0xff] %v296
                  %v298 = vld [vmem:[%s206 + $0x1cc] sm:$0xff]
                  %299 = vst [vmem:[%s207 + $0x78] sm:$0xff] %v298
                  %v300 = vld [vmem:[%s206 + $0x1d4] sm:$0xff]
                  %301 = vst [vmem:[%s207 + $0x80] sm:$0xff] %v300
                  %v302 = vld [vmem:[%s206 + $0x1dc] sm:$0xff]
                  %303 = vst [vmem:[%s207 + $0x88] sm:$0xff] %v302
                  %v304 = vld [vmem:[%s206 + $0x1f8] sm:$0xff]
                  %305 = vst [vmem:[%s207 + $0x60] sm:$0xff] %v304
                  %v306 = vld [vmem:[%s206 + $0x200] sm:$0xff]
                  %307 = vst [vmem:[%s207 + $0x68] sm:$0xff] %v306
                  %v308 = vld [vmem:[%s206 + $0x208] sm:$0xff]
                  %309 = vst [vmem:[%s207 + $0x70] sm:$0xff] %v308
                  %v310 = vld [vmem:[%s206 + $0x210] sm:$0xff]
                  %311 = vst [vmem:[%s207 + $0x78] sm:$0xff] %v310
                  %v312 = vld [vmem:[%s206 + $0x218] sm:$0xff]
                  %313 = vst [vmem:[%s207 + $0x80] sm:$0xff] %v312
                  %v314 = vld [vmem:[%s206 + $0x220] sm:$0xff]
                  %315 = vst [vmem:[%s207 + $0x88] sm:$0xff] %v314
                  %v316 = vld [vmem:[%s206 + $0x228] sm:$0xff]
                  %317 = vst [vmem:[%s207 + $0x90] sm:$0xff] %v316
                  %v318 = vld [vmem:[%s206 + $0x230] sm:$0xff]
                  %319 = vst [vmem:[%s207 + $0x98] sm:$0xff] %v318
                  %v320 = vld [vmem:[%s206 + $0x24c] sm:$0xff]
                  %321 = vst [vmem:[%s207 + $0x70] sm:$0xff] %v320
                  %v322 = vld [vmem:[%s206 + $0x254] sm:$0xff]
                  %323 = vst [vmem:[%s207 + $0x78] sm:$0xff] %v322
                  %v324 = vld [vmem:[%s206 + $0x25c] sm:$0xff]
                  %325 = vst [vmem:[%s207 + $0x80] sm:$0xff] %v324
                  %v326 = vld [vmem:[%s206 + $0x264] sm:$0xff]
                  %327 = vst [vmem:[%s207 + $0x88] sm:$0xff] %v326
                  %v328 = vld [vmem:[%s206 + $0x26c] sm:$0xff]
                  %329 = vst [vmem:[%s207 + $0x90] sm:$0xff] %v328
                  %v330 = vld [vmem:[%s206 + $0x274] sm:$0xff]
                  %331 = vst [vmem:[%s207 + $0x98] sm:$0xff] %v330
                  %v332 = vld [vmem:[%s206 + $0x27c] sm:$0xff]
                  %333 = vst [vmem:[%s207 + $0xa0] sm:$0xff] %v332
                  %v334 = vld [vmem:[%s206 + $0x284] sm:$0xff]
                  %335 = vst [vmem:[%s207 + $0xa8] sm:$0xff] %v334
                  %v336 = vld [vmem:[%s206 + $0x2a0] sm:$0xff]
                  %337 = vst [vmem:[%s207 + $0x80] sm:$0xff] %v336
                  %v338 = vld [vmem:[%s206 + $0x2a8] sm:$0xff]
                  %339 = vst [vmem:[%s207 + $0x88] sm:$0xff] %v338
                  %v340 = vld [vmem:[%s206 + $0x2b0] sm:$0xff]
                  %341 = vst [vmem:[%s207 + $0x90] sm:$0xff] %v340
                  %v342 = vld [vmem:[%s206 + $0x2b8] sm:$0xff]
                  %343 = vst [vmem:[%s207 + $0x98] sm:$0xff] %v342
                  %v344 = vld [vmem:[%s206 + $0x2c0] sm:$0xff]
                  %345 = vst [vmem:[%s207 + $0xa0] sm:$0xff] %v344
                  %v346 = vld [vmem:[%s206 + $0x2c8] sm:$0xff]
                  %347 = vst [vmem:[%s207 + $0xa8] sm:$0xff] %v346
                  %v348 = vld [vmem:[%s206 + $0x2d0] sm:$0xff]
                  %349 = vst [vmem:[%s207 + $0xb0] sm:$0xff] %v348
                  %v350 = vld [vmem:[%s206 + $0x2d8] sm:$0xff]
                  %351 = vst [vmem:[%s207 + $0xb8] sm:$0xff] %v350
                  %v352 = vld [vmem:[%s206 + $0x2f4] sm:$0xff]
                  %353 = vst [vmem:[%s207 + $0x90] sm:$0xff] %v352
                  %v354 = vld [vmem:[%s206 + $0x2fc] sm:$0xff]
                  %355 = vst [vmem:[%s207 + $0x98] sm:$0xff] %v354
                  %v356 = vld [vmem:[%s206 + $0x304] sm:$0xff]
                  %357 = vst [vmem:[%s207 + $0xa0] sm:$0xff] %v356
                  %v358 = vld [vmem:[%s206 + $0x30c] sm:$0xff]
                  %359 = vst [vmem:[%s207 + $0xa8] sm:$0xff] %v358
                  %v360 = vld [vmem:[%s206 + $0x314] sm:$0xff]
                  %361 = vst [vmem:[%s207 + $0xb0] sm:$0xff] %v360
                  %v362 = vld [vmem:[%s206 + $0x31c] sm:$0xff]
                  %363 = vst [vmem:[%s207 + $0xb8] sm:$0xff] %v362
                  %v364 = vld [vmem:[%s206 + $0x324] sm:$0xff]
                  %365 = vst [vmem:[%s207 + $0xc0] sm:$0xff] %v364
                  %v366 = vld [vmem:[%s206 + $0x32c] sm:$0xff]
                  %367 = vst [vmem:[%s207 + $0xc8] sm:$0xff] %v366
                  %v368 = vld [vmem:[%s206 + $0x348] sm:$0xff]
                  %369 = vst [vmem:[%s207 + $0xa0] sm:$0xff] %v368
                  %v370 = vld [vmem:[%s206 + $0x350] sm:$0xff]
                  %371 = vst [vmem:[%s207 + $0xa8] sm:$0xff] %v370
                  %v372 = vld [vmem:[%s206 + $0x358] sm:$0xff]
                  %373 = vst [vmem:[%s207 + $0xb0] sm:$0xff] %v372
                  %v374 = vld [vmem:[%s206 + $0x360] sm:$0xff]
                  %375 = vst [vmem:[%s207 + $0xb8] sm:$0xff] %v374
                  %v376 = vld [vmem:[%s206 + $0x368] sm:$0xff]
                  %377 = vst [vmem:[%s207 + $0xc0] sm:$0xff] %v376
                  %v378 = vld [vmem:[%s206 + $0x370] sm:$0xff]
                  %379 = vst [vmem:[%s207 + $0xc8] sm:$0xff] %v378
                  %v380 = vld [vmem:[%s206 + $0x378] sm:$0xff]
                  %381 = vst [vmem:[%s207 + $0xd0] sm:$0xff] %v380
                  %v382 = vld [vmem:[%s206 + $0x380] sm:$0xff]
                  %383 = vst [vmem:[%s207 + $0xd8] sm:$0xff] %v382
                  %v384 = vld [vmem:[%s206 + $0x39c] sm:$0xff]
                  %385 = vst [vmem:[%s207 + $0xb0] sm:$0xff] %v384
                  %v386 = vld [vmem:[%s206 + $0x3a4] sm:$0xff]
                  %387 = vst [vmem:[%s207 + $0xb8] sm:$0xff] %v386
                  %v388 = vld [vmem:[%s206 + $0x3ac] sm:$0xff]
                  %389 = vst [vmem:[%s207 + $0xc0] sm:$0xff] %v388
                  %v390 = vld [vmem:[%s206 + $0x3b4] sm:$0xff]
                  %391 = vst [vmem:[%s207 + $0xc8] sm:$0xff] %v390
                  %v392 = vld [vmem:[%s206 + $0x3bc] sm:$0xff]
                  %393 = vst [vmem:[%s207 + $0xd0] sm:$0xff] %v392
                  %v394 = vld [vmem:[%s206 + $0x3c4] sm:$0xff]
                  %395 = vst [vmem:[%s207 + $0xd8] sm:$0xff] %v394
                  %v396 = vld [vmem:[%s206 + $0x3cc] sm:$0xff]
                  %397 = vst [vmem:[%s207 + $0xe0] sm:$0xff] %v396
                  %v398 = vld [vmem:[%s206 + $0x3d4] sm:$0xff]
                  %399 = vst [vmem:[%s207 + $0xe8] sm:$0xff] %v398
                  %v400 = vld [vmem:[%s206 + $0x3f0] sm:$0xff]
                  %401 = vst [vmem:[%s207 + $0xc0] sm:$0xff] %v400
                  %v402 = vld [vmem:[%s206 + $0x3f8] sm:$0xff]
                  %403 = vst [vmem:[%s207 + $0xc8] sm:$0xff] %v402
                  %v404 = vld [vmem:[%s206 + $0x400] sm:$0xff]
                  %405 = vst [vmem:[%s207 + $0xd0] sm:$0xff] %v404
                  %v406 = vld [vmem:[%s206 + $0x408] sm:$0xff]
                  %407 = vst [vmem:[%s207 + $0xd8] sm:$0xff] %v406
                  %v408 = vld [vmem:[%s206 + $0x410] sm:$0xff]
                  %409 = vst [vmem:[%s207 + $0xe0] sm:$0xff] %v408
                  %v410 = vld [vmem:[%s206 + $0x418] sm:$0xff]
                  %411 = vst [vmem:[%s207 + $0xe8] sm:$0xff] %v410
                  %v412 = vld [vmem:[%s206 + $0x420] sm:$0xff]
                  %413 = vst [vmem:[%s207 + $0xf0] sm:$0xff] %v412
                  %v414 = vld [vmem:[%s206 + $0x428] sm:$0xff]
                  %415 = vst [vmem:[%s207 + $0xf8] sm:$0xff] %v414
                  %s416 = sadd.s32 1, %s205
                  %p417 = scmp.ge.s32.totalorder %s416, %s196
                  %s418 = scalar_select %p417, 0, %s416
                  %s419 = smul.u32 %s418, 64
                  %s420 = smul.u32 %s418, 64
                  %s421 = scalar_lea.vmem %s142, %s419
                  %s422 = scalar_lea.vmem %s134, %s420 [#allocation2]
                $region56: #{actor_forward.8} parent=50 // loop_footer
                  %s202 = sadd.s32 %s200, 1
                $region57: #{actor_forward.8} parent=50 // loop_footer_branch
                  %199 = sbr.rel target = $region53
                $region58: #{actor_forward.8} parent=50 // loop_exit
                  _
                %s423 = sshrl.u32 %s195, 3
                %s424 = sand.u32 %s195, 7
                %s425 = smul.u32 %s423, 8
                %s426 = smul.u32 128, %s425
                %s427 = sshra.s32 %s426, 4
                %s428 = scalar_lea.vmem %s142, %s427
                %s429 = smul.u32 128, %s425
                %s430 = sshra.s32 %s429, 4
                %s431 = scalar_lea.vmem %s134, %s430 [#allocation2]
                // While loop
                $region59: #{actor_forward.8} parent=50 // loop_pre_header
                  _
                $region60: #{actor_forward.8} parent=50 // loop_header
                  %s435 = sphi 0, %s437
                  %p436 = scmp.ge.s32.totalorder %s435, %s424
                  %s440 = sphi 0, %s471
                  %s441 = sphi %s428, %s474
                  %s442 = sphi %s431, %s475
                $region61: #{actor_forward.8} parent=50 // loop_header_branch
                  %439 = sbr.rel (%p436) target = $region65
                $region62: #{actor_forward.8} parent=50 // loop_body
                  %v443 = vld [vmem:[%s441] sm:$0xff]
                  %444 = vst [vmem:[%s442] sm:$0xff] %v443
                  %v445 = vld [vmem:[%s441 + $0x54] sm:$0xff]
                  %446 = vst [vmem:[%s442 + $0x10] sm:$0xff] %v445
                  %v447 = vld [vmem:[%s441 + $0xa8] sm:$0xff]
                  %448 = vst [vmem:[%s442 + $0x20] sm:$0xff] %v447
                  %v449 = vld [vmem:[%s441 + $0xfc] sm:$0xff]
                  %450 = vst [vmem:[%s442 + $0x30] sm:$0xff] %v449
                  %v451 = vld [vmem:[%s441 + $0x150] sm:$0xff]
                  %452 = vst [vmem:[%s442 + $0x40] sm:$0xff] %v451
                  %v453 = vld [vmem:[%s441 + $0x1a4] sm:$0xff]
                  %454 = vst [vmem:[%s442 + $0x50] sm:$0xff] %v453
                  %v455 = vld [vmem:[%s441 + $0x1f8] sm:$0xff]
                  %456 = vst [vmem:[%s442 + $0x60] sm:$0xff] %v455
                  %v457 = vld [vmem:[%s441 + $0x24c] sm:$0xff]
                  %458 = vst [vmem:[%s442 + $0x70] sm:$0xff] %v457
                  %v459 = vld [vmem:[%s441 + $0x2a0] sm:$0xff]
                  %460 = vst [vmem:[%s442 + $0x80] sm:$0xff] %v459
                  %v461 = vld [vmem:[%s441 + $0x2f4] sm:$0xff]
                  %462 = vst [vmem:[%s442 + $0x90] sm:$0xff] %v461
                  %v463 = vld [vmem:[%s441 + $0x348] sm:$0xff]
                  %464 = vst [vmem:[%s442 + $0xa0] sm:$0xff] %v463
                  %v465 = vld [vmem:[%s441 + $0x39c] sm:$0xff]
                  %466 = vst [vmem:[%s442 + $0xb0] sm:$0xff] %v465
                  %v467 = vld [vmem:[%s441 + $0x3f0] sm:$0xff]
                  %468 = vst [vmem:[%s442 + $0xc0] sm:$0xff] %v467
                  %s469 = sadd.s32 1, %s440
                  %p470 = scmp.ge.s32.totalorder %s469, %s424
                  %s471 = scalar_select %p470, 0, %s469
                  %s472 = smul.u32 %s471, 8
                  %s473 = smul.u32 %s471, 8
                  %s474 = scalar_lea.vmem %s428, %s472
                  %s475 = scalar_lea.vmem %s431, %s473 [#allocation2]
                $region63: #{actor_forward.8} parent=50 // loop_footer
                  %s437 = sadd.s32 %s435, 1
                $region64: #{actor_forward.8} parent=50 // loop_footer_branch
                  %434 = sbr.rel target = $region60
                $region65: #{actor_forward.8} parent=50 // loop_exit
                  _
              $region51: #{actor_forward.8} parent=35 // pred_fallthru
                _
              %p476 = pneg %p191
              // Predicated region
              $region66: #{actor_forward.8} parent=35 // pred_check
                _
              $region67: #{actor_forward.8} parent=35 // pred_check_branch
                %478 = sbr.rel (%p191) target = $region69
              $region68: #{actor_forward.8} parent=35 // pred_region
                %s479 = sand.u32 %s143, 7
                %s480 = ssub.s32 %s143, %s479
                %s481 = scalar_lea.vmem %s142, %s480
                %s482 = ssub.s32 %s143, %s479
                %s483 = scalar_lea.vmem %s134, %s482 [#allocation2]
                %s484 = sshrl.u32 %s143, 3
                %s485 = sshrl.u32 %s484, 3
                // While loop
                $region70: #{actor_forward.8} parent=68 // loop_pre_header
                  _
                $region71: #{actor_forward.8} parent=68 // loop_header
                  %s489 = sphi 0, %s491
                  %p490 = scmp.ge.s32.totalorder %s489, %s485
                  %s494 = sphi 0, %s707
                  %s495 = sphi %s142, %s710
                  %s496 = sphi %s134, %s711
                $region72: #{actor_forward.8} parent=68 // loop_header_branch
                  %493 = sbr.rel (%p490) target = $region76
                $region73: #{actor_forward.8} parent=68 // loop_body
                  %v497 = vld [vmem:[%s495] sm:$0xff]
                  %498 = vst [vmem:[%s496] sm:$0xff] %v497
                  %v499 = vld [vmem:[%s495 + $0x8] sm:$0xff]
                  %500 = vst [vmem:[%s496 + $0x8] sm:$0xff] %v499
                  %v501 = vld [vmem:[%s495 + $0x10] sm:$0xff]
                  %502 = vst [vmem:[%s496 + $0x10] sm:$0xff] %v501
                  %v503 = vld [vmem:[%s495 + $0x18] sm:$0xff]
                  %504 = vst [vmem:[%s496 + $0x18] sm:$0xff] %v503
                  %v505 = vld [vmem:[%s495 + $0x20] sm:$0xff]
                  %506 = vst [vmem:[%s496 + $0x20] sm:$0xff] %v505
                  %v507 = vld [vmem:[%s495 + $0x28] sm:$0xff]
                  %508 = vst [vmem:[%s496 + $0x28] sm:$0xff] %v507
                  %v509 = vld [vmem:[%s495 + $0x30] sm:$0xff]
                  %510 = vst [vmem:[%s496 + $0x30] sm:$0xff] %v509
                  %v511 = vld [vmem:[%s495 + $0x38] sm:$0xff]
                  %512 = vst [vmem:[%s496 + $0x38] sm:$0xff] %v511
                  %v513 = vld [vmem:[%s495 + $0x54] sm:$0xff]
                  %514 = vst [vmem:[%s496 + $0x10] sm:$0xff] %v513
                  %v515 = vld [vmem:[%s495 + $0x5c] sm:$0xff]
                  %516 = vst [vmem:[%s496 + $0x18] sm:$0xff] %v515
                  %v517 = vld [vmem:[%s495 + $0x64] sm:$0xff]
                  %518 = vst [vmem:[%s496 + $0x20] sm:$0xff] %v517
                  %v519 = vld [vmem:[%s495 + $0x6c] sm:$0xff]
                  %520 = vst [vmem:[%s496 + $0x28] sm:$0xff] %v519
                  %v521 = vld [vmem:[%s495 + $0x74] sm:$0xff]
                  %522 = vst [vmem:[%s496 + $0x30] sm:$0xff] %v521
                  %v523 = vld [vmem:[%s495 + $0x7c] sm:$0xff]
                  %524 = vst [vmem:[%s496 + $0x38] sm:$0xff] %v523
                  %v525 = vld [vmem:[%s495 + $0x84] sm:$0xff]
                  %526 = vst [vmem:[%s496 + $0x40] sm:$0xff] %v525
                  %v527 = vld [vmem:[%s495 + $0x8c] sm:$0xff]
                  %528 = vst [vmem:[%s496 + $0x48] sm:$0xff] %v527
                  %v529 = vld [vmem:[%s495 + $0xa8] sm:$0xff]
                  %530 = vst [vmem:[%s496 + $0x20] sm:$0xff] %v529
                  %v531 = vld [vmem:[%s495 + $0xb0] sm:$0xff]
                  %532 = vst [vmem:[%s496 + $0x28] sm:$0xff] %v531
                  %v533 = vld [vmem:[%s495 + $0xb8] sm:$0xff]
                  %534 = vst [vmem:[%s496 + $0x30] sm:$0xff] %v533
                  %v535 = vld [vmem:[%s495 + $0xc0] sm:$0xff]
                  %536 = vst [vmem:[%s496 + $0x38] sm:$0xff] %v535
                  %v537 = vld [vmem:[%s495 + $0xc8] sm:$0xff]
                  %538 = vst [vmem:[%s496 + $0x40] sm:$0xff] %v537
                  %v539 = vld [vmem:[%s495 + $0xd0] sm:$0xff]
                  %540 = vst [vmem:[%s496 + $0x48] sm:$0xff] %v539
                  %v541 = vld [vmem:[%s495 + $0xd8] sm:$0xff]
                  %542 = vst [vmem:[%s496 + $0x50] sm:$0xff] %v541
                  %v543 = vld [vmem:[%s495 + $0xe0] sm:$0xff]
                  %544 = vst [vmem:[%s496 + $0x58] sm:$0xff] %v543
                  %v545 = vld [vmem:[%s495 + $0xfc] sm:$0xff]
                  %546 = vst [vmem:[%s496 + $0x30] sm:$0xff] %v545
                  %v547 = vld [vmem:[%s495 + $0x104] sm:$0xff]
                  %548 = vst [vmem:[%s496 + $0x38] sm:$0xff] %v547
                  %v549 = vld [vmem:[%s495 + $0x10c] sm:$0xff]
                  %550 = vst [vmem:[%s496 + $0x40] sm:$0xff] %v549
                  %v551 = vld [vmem:[%s495 + $0x114] sm:$0xff]
                  %552 = vst [vmem:[%s496 + $0x48] sm:$0xff] %v551
                  %v553 = vld [vmem:[%s495 + $0x11c] sm:$0xff]
                  %554 = vst [vmem:[%s496 + $0x50] sm:$0xff] %v553
                  %v555 = vld [vmem:[%s495 + $0x124] sm:$0xff]
                  %556 = vst [vmem:[%s496 + $0x58] sm:$0xff] %v555
                  %v557 = vld [vmem:[%s495 + $0x12c] sm:$0xff]
                  %558 = vst [vmem:[%s496 + $0x60] sm:$0xff] %v557
                  %v559 = vld [vmem:[%s495 + $0x134] sm:$0xff]
                  %560 = vst [vmem:[%s496 + $0x68] sm:$0xff] %v559
                  %v561 = vld [vmem:[%s495 + $0x150] sm:$0xff]
                  %562 = vst [vmem:[%s496 + $0x40] sm:$0xff] %v561
                  %v563 = vld [vmem:[%s495 + $0x158] sm:$0xff]
                  %564 = vst [vmem:[%s496 + $0x48] sm:$0xff] %v563
                  %v565 = vld [vmem:[%s495 + $0x160] sm:$0xff]
                  %566 = vst [vmem:[%s496 + $0x50] sm:$0xff] %v565
                  %v567 = vld [vmem:[%s495 + $0x168] sm:$0xff]
                  %568 = vst [vmem:[%s496 + $0x58] sm:$0xff] %v567
                  %v569 = vld [vmem:[%s495 + $0x170] sm:$0xff]
                  %570 = vst [vmem:[%s496 + $0x60] sm:$0xff] %v569
                  %v571 = vld [vmem:[%s495 + $0x178] sm:$0xff]
                  %572 = vst [vmem:[%s496 + $0x68] sm:$0xff] %v571
                  %v573 = vld [vmem:[%s495 + $0x180] sm:$0xff]
                  %574 = vst [vmem:[%s496 + $0x70] sm:$0xff] %v573
                  %v575 = vld [vmem:[%s495 + $0x188] sm:$0xff]
                  %576 = vst [vmem:[%s496 + $0x78] sm:$0xff] %v575
                  %v577 = vld [vmem:[%s495 + $0x1a4] sm:$0xff]
                  %578 = vst [vmem:[%s496 + $0x50] sm:$0xff] %v577
                  %v579 = vld [vmem:[%s495 + $0x1ac] sm:$0xff]
                  %580 = vst [vmem:[%s496 + $0x58] sm:$0xff] %v579
                  %v581 = vld [vmem:[%s495 + $0x1b4] sm:$0xff]
                  %582 = vst [vmem:[%s496 + $0x60] sm:$0xff] %v581
                  %v583 = vld [vmem:[%s495 + $0x1bc] sm:$0xff]
                  %584 = vst [vmem:[%s496 + $0x68] sm:$0xff] %v583
                  %v585 = vld [vmem:[%s495 + $0x1c4] sm:$0xff]
                  %586 = vst [vmem:[%s496 + $0x70] sm:$0xff] %v585
                  %v587 = vld [vmem:[%s495 + $0x1cc] sm:$0xff]
                  %588 = vst [vmem:[%s496 + $0x78] sm:$0xff] %v587
                  %v589 = vld [vmem:[%s495 + $0x1d4] sm:$0xff]
                  %590 = vst [vmem:[%s496 + $0x80] sm:$0xff] %v589
                  %v591 = vld [vmem:[%s495 + $0x1dc] sm:$0xff]
                  %592 = vst [vmem:[%s496 + $0x88] sm:$0xff] %v591
                  %v593 = vld [vmem:[%s495 + $0x1f8] sm:$0xff]
                  %594 = vst [vmem:[%s496 + $0x60] sm:$0xff] %v593
                  %v595 = vld [vmem:[%s495 + $0x200] sm:$0xff]
                  %596 = vst [vmem:[%s496 + $0x68] sm:$0xff] %v595
                  %v597 = vld [vmem:[%s495 + $0x208] sm:$0xff]
                  %598 = vst [vmem:[%s496 + $0x70] sm:$0xff] %v597
                  %v599 = vld [vmem:[%s495 + $0x210] sm:$0xff]
                  %600 = vst [vmem:[%s496 + $0x78] sm:$0xff] %v599
                  %v601 = vld [vmem:[%s495 + $0x218] sm:$0xff]
                  %602 = vst [vmem:[%s496 + $0x80] sm:$0xff] %v601
                  %v603 = vld [vmem:[%s495 + $0x220] sm:$0xff]
                  %604 = vst [vmem:[%s496 + $0x88] sm:$0xff] %v603
                  %v605 = vld [vmem:[%s495 + $0x228] sm:$0xff]
                  %606 = vst [vmem:[%s496 + $0x90] sm:$0xff] %v605
                  %v607 = vld [vmem:[%s495 + $0x230] sm:$0xff]
                  %608 = vst [vmem:[%s496 + $0x98] sm:$0xff] %v607
                  %v609 = vld [vmem:[%s495 + $0x24c] sm:$0xff]
                  %610 = vst [vmem:[%s496 + $0x70] sm:$0xff] %v609
                  %v611 = vld [vmem:[%s495 + $0x254] sm:$0xff]
                  %612 = vst [vmem:[%s496 + $0x78] sm:$0xff] %v611
                  %v613 = vld [vmem:[%s495 + $0x25c] sm:$0xff]
                  %614 = vst [vmem:[%s496 + $0x80] sm:$0xff] %v613
                  %v615 = vld [vmem:[%s495 + $0x264] sm:$0xff]
                  %616 = vst [vmem:[%s496 + $0x88] sm:$0xff] %v615
                  %v617 = vld [vmem:[%s495 + $0x26c] sm:$0xff]
                  %618 = vst [vmem:[%s496 + $0x90] sm:$0xff] %v617
                  %v619 = vld [vmem:[%s495 + $0x274] sm:$0xff]
                  %620 = vst [vmem:[%s496 + $0x98] sm:$0xff] %v619
                  %v621 = vld [vmem:[%s495 + $0x27c] sm:$0xff]
                  %622 = vst [vmem:[%s496 + $0xa0] sm:$0xff] %v621
                  %v623 = vld [vmem:[%s495 + $0x284] sm:$0xff]
                  %624 = vst [vmem:[%s496 + $0xa8] sm:$0xff] %v623
                  %v625 = vld [vmem:[%s495 + $0x2a0] sm:$0xff]
                  %626 = vst [vmem:[%s496 + $0x80] sm:$0xff] %v625
                  %v627 = vld [vmem:[%s495 + $0x2a8] sm:$0xff]
                  %628 = vst [vmem:[%s496 + $0x88] sm:$0xff] %v627
                  %v629 = vld [vmem:[%s495 + $0x2b0] sm:$0xff]
                  %630 = vst [vmem:[%s496 + $0x90] sm:$0xff] %v629
                  %v631 = vld [vmem:[%s495 + $0x2b8] sm:$0xff]
                  %632 = vst [vmem:[%s496 + $0x98] sm:$0xff] %v631
                  %v633 = vld [vmem:[%s495 + $0x2c0] sm:$0xff]
                  %634 = vst [vmem:[%s496 + $0xa0] sm:$0xff] %v633
                  %v635 = vld [vmem:[%s495 + $0x2c8] sm:$0xff]
                  %636 = vst [vmem:[%s496 + $0xa8] sm:$0xff] %v635
                  %v637 = vld [vmem:[%s495 + $0x2d0] sm:$0xff]
                  %638 = vst [vmem:[%s496 + $0xb0] sm:$0xff] %v637
                  %v639 = vld [vmem:[%s495 + $0x2d8] sm:$0xff]
                  %640 = vst [vmem:[%s496 + $0xb8] sm:$0xff] %v639
                  %v641 = vld [vmem:[%s495 + $0x2f4] sm:$0xff]
                  %642 = vst [vmem:[%s496 + $0x90] sm:$0xff] %v641
                  %v643 = vld [vmem:[%s495 + $0x2fc] sm:$0xff]
                  %644 = vst [vmem:[%s496 + $0x98] sm:$0xff] %v643
                  %v645 = vld [vmem:[%s495 + $0x304] sm:$0xff]
                  %646 = vst [vmem:[%s496 + $0xa0] sm:$0xff] %v645
                  %v647 = vld [vmem:[%s495 + $0x30c] sm:$0xff]
                  %648 = vst [vmem:[%s496 + $0xa8] sm:$0xff] %v647
                  %v649 = vld [vmem:[%s495 + $0x314] sm:$0xff]
                  %650 = vst [vmem:[%s496 + $0xb0] sm:$0xff] %v649
                  %v651 = vld [vmem:[%s495 + $0x31c] sm:$0xff]
                  %652 = vst [vmem:[%s496 + $0xb8] sm:$0xff] %v651
                  %v653 = vld [vmem:[%s495 + $0x324] sm:$0xff]
                  %654 = vst [vmem:[%s496 + $0xc0] sm:$0xff] %v653
                  %v655 = vld [vmem:[%s495 + $0x32c] sm:$0xff]
                  %656 = vst [vmem:[%s496 + $0xc8] sm:$0xff] %v655
                  %v657 = vld [vmem:[%s495 + $0x348] sm:$0xff]
                  %658 = vst [vmem:[%s496 + $0xa0] sm:$0xff] %v657
                  %v659 = vld [vmem:[%s495 + $0x350] sm:$0xff]
                  %660 = vst [vmem:[%s496 + $0xa8] sm:$0xff] %v659
                  %v661 = vld [vmem:[%s495 + $0x358] sm:$0xff]
                  %662 = vst [vmem:[%s496 + $0xb0] sm:$0xff] %v661
                  %v663 = vld [vmem:[%s495 + $0x360] sm:$0xff]
                  %664 = vst [vmem:[%s496 + $0xb8] sm:$0xff] %v663
                  %v665 = vld [vmem:[%s495 + $0x368] sm:$0xff]
                  %666 = vst [vmem:[%s496 + $0xc0] sm:$0xff] %v665
                  %v667 = vld [vmem:[%s495 + $0x370] sm:$0xff]
                  %668 = vst [vmem:[%s496 + $0xc8] sm:$0xff] %v667
                  %v669 = vld [vmem:[%s495 + $0x378] sm:$0xff]
                  %670 = vst [vmem:[%s496 + $0xd0] sm:$0xff] %v669
                  %v671 = vld [vmem:[%s495 + $0x380] sm:$0xff]
                  %672 = vst [vmem:[%s496 + $0xd8] sm:$0xff] %v671
                  %v673 = vld [vmem:[%s495 + $0x39c] sm:$0xff]
                  %674 = vst [vmem:[%s496 + $0xb0] sm:$0xff] %v673
                  %v675 = vld [vmem:[%s495 + $0x3a4] sm:$0xff]
                  %676 = vst [vmem:[%s496 + $0xb8] sm:$0xff] %v675
                  %v677 = vld [vmem:[%s495 + $0x3ac] sm:$0xff]
                  %678 = vst [vmem:[%s496 + $0xc0] sm:$0xff] %v677
                  %v679 = vld [vmem:[%s495 + $0x3b4] sm:$0xff]
                  %680 = vst [vmem:[%s496 + $0xc8] sm:$0xff] %v679
                  %v681 = vld [vmem:[%s495 + $0x3bc] sm:$0xff]
                  %682 = vst [vmem:[%s496 + $0xd0] sm:$0xff] %v681
                  %v683 = vld [vmem:[%s495 + $0x3c4] sm:$0xff]
                  %684 = vst [vmem:[%s496 + $0xd8] sm:$0xff] %v683
                  %v685 = vld [vmem:[%s495 + $0x3cc] sm:$0xff]
                  %686 = vst [vmem:[%s496 + $0xe0] sm:$0xff] %v685
                  %v687 = vld [vmem:[%s495 + $0x3d4] sm:$0xff]
                  %688 = vst [vmem:[%s496 + $0xe8] sm:$0xff] %v687
                  %v689 = vld [vmem:[%s495 + $0x3f0] sm:$0xff]
                  %690 = vst [vmem:[%s496 + $0xc0] sm:$0xff] %v689
                  %v691 = vld [vmem:[%s495 + $0x3f8] sm:$0xff]
                  %692 = vst [vmem:[%s496 + $0xc8] sm:$0xff] %v691
                  %v693 = vld [vmem:[%s495 + $0x400] sm:$0xff]
                  %694 = vst [vmem:[%s496 + $0xd0] sm:$0xff] %v693
                  %v695 = vld [vmem:[%s495 + $0x408] sm:$0xff]
                  %696 = vst [vmem:[%s496 + $0xd8] sm:$0xff] %v695
                  %v697 = vld [vmem:[%s495 + $0x410] sm:$0xff]
                  %698 = vst [vmem:[%s496 + $0xe0] sm:$0xff] %v697
                  %v699 = vld [vmem:[%s495 + $0x418] sm:$0xff]
                  %700 = vst [vmem:[%s496 + $0xe8] sm:$0xff] %v699
                  %v701 = vld [vmem:[%s495 + $0x420] sm:$0xff]
                  %702 = vst [vmem:[%s496 + $0xf0] sm:$0xff] %v701
                  %v703 = vld [vmem:[%s495 + $0x428] sm:$0xff]
                  %704 = vst [vmem:[%s496 + $0xf8] sm:$0xff] %v703
                  %s705 = sadd.s32 1, %s494
                  %p706 = scmp.ge.s32.totalorder %s705, %s485
                  %s707 = scalar_select %p706, 0, %s705
                  %s708 = smul.u32 %s707, 64
                  %s709 = smul.u32 %s707, 64
                  %s710 = scalar_lea.vmem %s142, %s708
                  %s711 = scalar_lea.vmem %s134, %s709 [#allocation2]
                $region74: #{actor_forward.8} parent=68 // loop_footer
                  %s491 = sadd.s32 %s489, 1
                $region75: #{actor_forward.8} parent=68 // loop_footer_branch
                  %488 = sbr.rel target = $region71
                $region76: #{actor_forward.8} parent=68 // loop_exit
                  _
                %s712 = sshrl.u32 %s484, 3
                %s713 = sand.u32 %s484, 7
                %s714 = smul.u32 %s712, 8
                %s715 = smul.u32 128, %s714
                %s716 = sshra.s32 %s715, 4
                %s717 = scalar_lea.vmem %s142, %s716
                %s718 = smul.u32 128, %s714
                %s719 = sshra.s32 %s718, 4
                %s720 = scalar_lea.vmem %s134, %s719 [#allocation2]
                // While loop
                $region77: #{actor_forward.8} parent=68 // loop_pre_header
                  _
                $region78: #{actor_forward.8} parent=68 // loop_header
                  %s724 = sphi 0, %s726
                  %p725 = scmp.ge.s32.totalorder %s724, %s713
                  %s729 = sphi 0, %s760
                  %s730 = sphi %s717, %s763
                  %s731 = sphi %s720, %s764
                $region79: #{actor_forward.8} parent=68 // loop_header_branch
                  %728 = sbr.rel (%p725) target = $region83
                $region80: #{actor_forward.8} parent=68 // loop_body
                  %v732 = vld [vmem:[%s730] sm:$0xff]
                  %733 = vst [vmem:[%s731] sm:$0xff] %v732
                  %v734 = vld [vmem:[%s730 + $0x54] sm:$0xff]
                  %735 = vst [vmem:[%s731 + $0x10] sm:$0xff] %v734
                  %v736 = vld [vmem:[%s730 + $0xa8] sm:$0xff]
                  %737 = vst [vmem:[%s731 + $0x20] sm:$0xff] %v736
                  %v738 = vld [vmem:[%s730 + $0xfc] sm:$0xff]
                  %739 = vst [vmem:[%s731 + $0x30] sm:$0xff] %v738
                  %v740 = vld [vmem:[%s730 + $0x150] sm:$0xff]
                  %741 = vst [vmem:[%s731 + $0x40] sm:$0xff] %v740
                  %v742 = vld [vmem:[%s730 + $0x1a4] sm:$0xff]
                  %743 = vst [vmem:[%s731 + $0x50] sm:$0xff] %v742
                  %v744 = vld [vmem:[%s730 + $0x1f8] sm:$0xff]
                  %745 = vst [vmem:[%s731 + $0x60] sm:$0xff] %v744
                  %v746 = vld [vmem:[%s730 + $0x24c] sm:$0xff]
                  %747 = vst [vmem:[%s731 + $0x70] sm:$0xff] %v746
                  %v748 = vld [vmem:[%s730 + $0x2a0] sm:$0xff]
                  %749 = vst [vmem:[%s731 + $0x80] sm:$0xff] %v748
                  %v750 = vld [vmem:[%s730 + $0x2f4] sm:$0xff]
                  %751 = vst [vmem:[%s731 + $0x90] sm:$0xff] %v750
                  %v752 = vld [vmem:[%s730 + $0x348] sm:$0xff]
                  %753 = vst [vmem:[%s731 + $0xa0] sm:$0xff] %v752
                  %v754 = vld [vmem:[%s730 + $0x39c] sm:$0xff]
                  %755 = vst [vmem:[%s731 + $0xb0] sm:$0xff] %v754
                  %v756 = vld [vmem:[%s730 + $0x3f0] sm:$0xff]
                  %757 = vst [vmem:[%s731 + $0xc0] sm:$0xff] %v756
                  %s758 = sadd.s32 1, %s729
                  %p759 = scmp.ge.s32.totalorder %s758, %s713
                  %s760 = scalar_select %p759, 0, %s758
                  %s761 = smul.u32 %s760, 8
                  %s762 = smul.u32 %s760, 8
                  %s763 = scalar_lea.vmem %s717, %s761
                  %s764 = scalar_lea.vmem %s720, %s762 [#allocation2]
                $region81: #{actor_forward.8} parent=68 // loop_footer
                  %s726 = sadd.s32 %s724, 1
                $region82: #{actor_forward.8} parent=68 // loop_footer_branch
                  %723 = sbr.rel target = $region78
                $region83: #{actor_forward.8} parent=68 // loop_exit
                  _
                %s765 = sshll.u32 1, %s479
                %s766 = ssub.s32 %s765, 1
                loop: start=0, step=1, limit=1
                $region84: #{actor_forward.8} parent=68 // loop_pre_header
                  _
                $region85: #{actor_forward.8} parent=68 // loop_header
                  %s768 = sphi 0, %s772
                  %p769 = scmp.ge.s32.totalorder %s768, 1
                  %s773 = sphi %s481, %s481
                  %s774 = sphi %s483, %s483
                $region86: #{actor_forward.8} parent=68 // loop_header_branch
                  %771 = sbr.rel (%p769) target = $region90
                $region87: #{actor_forward.8} parent=68 // loop_body
                  %v775 = vld [vmem:[%s773] sm:%s766]
                  %776 = vst [vmem:[%s774] sm:%s766] %v775
                  %v777 = vld [vmem:[%s773 + $0x54] sm:%s766]
                  %778 = vst [vmem:[%s774 + $0x10] sm:%s766] %v777
                  %v779 = vld [vmem:[%s773 + $0xa8] sm:%s766]
                  %780 = vst [vmem:[%s774 + $0x20] sm:%s766] %v779
                  %v781 = vld [vmem:[%s773 + $0xfc] sm:%s766]
                  %782 = vst [vmem:[%s774 + $0x30] sm:%s766] %v781
                  %v783 = vld [vmem:[%s773 + $0x150] sm:%s766]
                  %784 = vst [vmem:[%s774 + $0x40] sm:%s766] %v783
                  %v785 = vld [vmem:[%s773 + $0x1a4] sm:%s766]
                  %786 = vst [vmem:[%s774 + $0x50] sm:%s766] %v785
                  %v787 = vld [vmem:[%s773 + $0x1f8] sm:%s766]
                  %788 = vst [vmem:[%s774 + $0x60] sm:%s766] %v787
                  %v789 = vld [vmem:[%s773 + $0x24c] sm:%s766]
                  %790 = vst [vmem:[%s774 + $0x70] sm:%s766] %v789
                  %v791 = vld [vmem:[%s773 + $0x2a0] sm:%s766]
                  %792 = vst [vmem:[%s774 + $0x80] sm:%s766] %v791
                  %v793 = vld [vmem:[%s773 + $0x2f4] sm:%s766]
                  %794 = vst [vmem:[%s774 + $0x90] sm:%s766] %v793
                  %v795 = vld [vmem:[%s773 + $0x348] sm:%s766]
                  %796 = vst [vmem:[%s774 + $0xa0] sm:%s766] %v795
                  %v797 = vld [vmem:[%s773 + $0x39c] sm:%s766]
                  %798 = vst [vmem:[%s774 + $0xb0] sm:%s766] %v797
                  %v799 = vld [vmem:[%s773 + $0x3f0] sm:%s766]
                  %800 = vst [vmem:[%s774 + $0xc0] sm:%s766] %v799
                $region88: #{actor_forward.8} parent=68 // loop_footer
                  %s772 = sadd.s32 1, %s768
                $region89: #{actor_forward.8} parent=68 // loop_footer_branch
                  %767 = sbr.rel target = $region85
                $region90: #{actor_forward.8} parent=68 // loop_exit
                  _
              $region69: #{actor_forward.8} parent=35 // pred_fallthru
                _
            $region36: #{actor_forward.8} parent=31 // pred_fallthru
              _
            // Predicated region
            $region37: #{actor_forward.8} parent=31 // pred_check
              %p151 = pneg %p147
            $region38: #{actor_forward.8} parent=31 // pred_check_branch
              %153 = sbr.rel (%p151) target = $region40
            $region39: #{actor_forward.8} parent=31 // pred_region
              %s154 = sshll.u32 1, %s143
              %s155 = ssub.s32 %s154, 1
              loop: start=0, step=1, limit=1
              $region41: #{actor_forward.8} parent=39 // loop_pre_header
                _
              $region42: #{actor_forward.8} parent=39 // loop_header
                %s157 = sphi 0, %s161
                %p158 = scmp.ge.s32.totalorder %s157, 1
                %s162 = sphi %s142, %s142
                %s163 = sphi %s134, %s134
              $region43: #{actor_forward.8} parent=39 // loop_header_branch
                %160 = sbr.rel (%p158) target = $region47
              $region44: #{actor_forward.8} parent=39 // loop_body
                %v164 = vld [vmem:[%s162] sm:%s155]
                %165 = vst [vmem:[%s163] sm:%s155] %v164
                %v166 = vld [vmem:[%s162 + $0x54] sm:%s155]
                %167 = vst [vmem:[%s163 + $0x10] sm:%s155] %v166
                %v168 = vld [vmem:[%s162 + $0xa8] sm:%s155]
                %169 = vst [vmem:[%s163 + $0x20] sm:%s155] %v168
                %v170 = vld [vmem:[%s162 + $0xfc] sm:%s155]
                %171 = vst [vmem:[%s163 + $0x30] sm:%s155] %v170
                %v172 = vld [vmem:[%s162 + $0x150] sm:%s155]
                %173 = vst [vmem:[%s163 + $0x40] sm:%s155] %v172
                %v174 = vld [vmem:[%s162 + $0x1a4] sm:%s155]
                %175 = vst [vmem:[%s163 + $0x50] sm:%s155] %v174
                %v176 = vld [vmem:[%s162 + $0x1f8] sm:%s155]
                %177 = vst [vmem:[%s163 + $0x60] sm:%s155] %v176
                %v178 = vld [vmem:[%s162 + $0x24c] sm:%s155]
                %179 = vst [vmem:[%s163 + $0x70] sm:%s155] %v178
                %v180 = vld [vmem:[%s162 + $0x2a0] sm:%s155]
                %181 = vst [vmem:[%s163 + $0x80] sm:%s155] %v180
                %v182 = vld [vmem:[%s162 + $0x2f4] sm:%s155]
                %183 = vst [vmem:[%s163 + $0x90] sm:%s155] %v182
                %v184 = vld [vmem:[%s162 + $0x348] sm:%s155]
                %185 = vst [vmem:[%s163 + $0xa0] sm:%s155] %v184
                %v186 = vld [vmem:[%s162 + $0x39c] sm:%s155]
                %187 = vst [vmem:[%s163 + $0xb0] sm:%s155] %v186
                %v188 = vld [vmem:[%s162 + $0x3f0] sm:%s155]
                %189 = vst [vmem:[%s163 + $0xc0] sm:%s155] %v188
              $region45: #{actor_forward.8} parent=39 // loop_footer
                %s161 = sadd.s32 1, %s157
              $region46: #{actor_forward.8} parent=39 // loop_footer_branch
                %156 = sbr.rel target = $region42
              $region47: #{actor_forward.8} parent=39 // loop_exit
                _
            $region40: #{actor_forward.8} parent=31 // pred_fallthru
              _
          $region32: #{actor_forward.8} parent=27 // pred_fallthru
            _
          %801 = vnop
        $region28: #{actor_forward.8} parent=23 // pred_fallthru
          _
      $region24: #{actor_forward.8} parent=5 // pred_fallthru
        _
      %p802 = scmp.le.s32.totalorder 1, %s9
      %p803 = scmp.lt.s32.totalorder %s9, 7
      %p804 = pnand %p802, %p803
      %p805 = pneg %p804
      // Predicated region
      $region91: #{actor_forward.8} parent=5 // pred_check
        _
      $region92: #{actor_forward.8} parent=5 // pred_check_branch
        %807 = sbr.rel (%p804) target = $region94
      $region93: #{actor_forward.8} parent=5 // pred_region
        %s808 = ssub.s32 %s9, 1
        %s809 = sand.u32 %s64, 1
        %s810 = sand.u32 %s64, 1
        %s811 = smul.addr %s810, 208
        %s812 = scalar_lea.vmem [#allocation2], %s811
        // Predicated region
        $region95: #{actor_forward.8} parent=93 // pred_check
          %p813 = pneg %p77
        $region96: #{actor_forward.8} parent=93 // pred_check_branch
          %815 = sbr.rel (%p813) target = $region98
        $region97: #{actor_forward.8} parent=93 // pred_region
          _
        $region98: #{actor_forward.8} parent=93 // pred_fallthru
          _
        %p816 = pneg %p30
        %p817 = pneg %p27
        %p818 = pneg %p51
        %p819 = pneg %p48
        %s820 = sand.u32 %s64, 1
        %s821 = sand.u32 %s64, 1
        %s822 = smul.addr %s821, 208
        %s823 = scalar_lea.vmem [#allocation2], %s822
        %p824 = pneg %p77
        %p825 = pneg %p74
        %p826 = pneg %p103
        %p827 = pneg %p100
        %s828 = sand.u32 %s90, 1
        %s829 = sand.u32 %s90, 1
        %s830 = smul.addr %s829, 4
        %s831 = scalar_lea.vmem [#allocation3], %s830
        %s832 = smul.u32 4, %s14
        %s833 = ssub.s32 21, %s832
        %p834 = scmp.lt.s32.totalorder %s833, 4
        %s835 = scalar_select %p834, %s833, 4
        %s836 = smul.u32 832, %s835
        %s837 = smul.u32 4, %s14
        %s838 = ssub.s32 21, %s837
        %p839 = scmp.lt.s32.totalorder %s838, 4
        %s840 = scalar_select %p839, %s838, 4
        %s841 = smul.u32 16, %s840
        %v843 = vld [vmem:[%s0] sm:$0x1]
        %v844 = vld [vmem:[%s812] sm:$0xff]
        %v845 = vld [vmem:[%s812 + $0x8] sm:$0xff]
        %v846 = vld [vmem:[%s812 + $0x10] sm:$0xff]
        %v847 = vld [vmem:[%s812 + $0x18] sm:$0xff]
        %v848 = vld [vmem:[%s812 + $0x20] sm:$0xff]
        %v849 = vld [vmem:[%s812 + $0x28] sm:$0xff]
        %v850 = vld [vmem:[%s812 + $0x30] sm:$0xff]
        %v851 = vld [vmem:[%s812 + $0x38] sm:$0xff]
        %v852 = vld [vmem:[%s812 + $0x40] sm:$0xff]
        %v853 = vld [vmem:[%s812 + $0x48] sm:$0xff]
        %v854 = vld [vmem:[%s812 + $0x50] sm:$0xff]
        %v855 = vld [vmem:[%s812 + $0x58] sm:$0xff]
        %v856 = vld [vmem:[%s812 + $0x60] sm:$0xff]
        %v857 = vld [vmem:[%s812 + $0x68] sm:$0xff]
        %v858 = vld [vmem:[%s812 + $0x70] sm:$0xff]
        %v859 = vld [vmem:[%s812 + $0x78] sm:$0xff]
        %v860 = vld [vmem:[%s812 + $0x80] sm:$0xff]
        %v861 = vld [vmem:[%s812 + $0x88] sm:$0xff]
        %v862 = vld [vmem:[%s812 + $0x90] sm:$0xff]
        %v863 = vld [vmem:[%s812 + $0x98] sm:$0xff]
        %v864 = vld [vmem:[%s812 + $0xa0] sm:$0xff]
        %v865 = vld [vmem:[%s812 + $0xa8] sm:$0xff]
        %v866 = vld [vmem:[%s812 + $0xb0] sm:$0xff]
        %v867 = vld [vmem:[%s812 + $0xb8] sm:$0xff]
        %v868 = vld [vmem:[%s812 + $0xc0] sm:$0x33]
        %v869 = vld [vmem:[%s812 + $0xc8] sm:$0x33]
        %v870 = vld [vmem:[%s1] sm:$0x3]
        %872 = vset.pattern.permute.xlu0 0
        %873 = vperm.xlu0 %872, %v870
        %v874 = vpop.permute.xlu0 %873
        %v902 = vunpack.c.l.b16 %v844
        %v903 = vunpack.c.h.b16 %v844
        %v904 = vunpack.c.l.b16 %v845
        %v905 = vunpack.c.h.b16 %v845
        %v906 = vunpack.c.l.b16 %v846
        %v907 = vunpack.c.h.b16 %v846
        %v908 = vunpack.c.l.b16 %v847
        %v909 = vunpack.c.h.b16 %v847
        %v910 = vunpack.c.l.b16 %v848
        %v911 = vunpack.c.h.b16 %v848
        %v912 = vunpack.c.l.b16 %v849
        %v913 = vunpack.c.h.b16 %v849
        %v914 = vunpack.c.l.b16 %v850
        %v915 = vunpack.c.h.b16 %v850
        %v916 = vunpack.c.l.b16 %v851
        %v917 = vunpack.c.h.b16 %v851
        %v918 = vunpack.c.l.b16 %v852
        %v919 = vunpack.c.h.b16 %v852
        %v920 = vunpack.c.l.b16 %v853
        %v921 = vunpack.c.h.b16 %v853
        %v922 = vunpack.c.l.b16 %v854
        %v923 = vunpack.c.h.b16 %v854
        %v924 = vunpack.c.l.b16 %v855
        %v925 = vunpack.c.h.b16 %v855
        %v926 = vunpack.c.l.b16 %v856
        %v927 = vunpack.c.h.b16 %v856
        %v928 = vunpack.c.l.b16 %v857
        %v929 = vunpack.c.h.b16 %v857
        %v930 = vunpack.c.l.b16 %v858
        %v931 = vunpack.c.h.b16 %v858
        %v932 = vunpack.c.l.b16 %v859
        %v933 = vunpack.c.h.b16 %v859
        %v934 = vunpack.c.l.b16 %v860
        %v935 = vunpack.c.h.b16 %v860
        %v936 = vunpack.c.l.b16 %v861
        %v937 = vunpack.c.h.b16 %v861
        %v938 = vunpack.c.l.b16 %v862
        %v939 = vunpack.c.h.b16 %v862
        %v940 = vunpack.c.l.b16 %v863
        %v941 = vunpack.c.h.b16 %v863
        %v942 = vunpack.c.l.b16 %v864
        %v943 = vunpack.c.h.b16 %v864
        %v944 = vunpack.c.l.b16 %v865
        %v945 = vunpack.c.h.b16 %v865
        %v946 = vunpack.c.l.b16 %v866
        %v947 = vunpack.c.h.b16 %v866
        %v948 = vunpack.c.l.b16 %v867
        %v949 = vunpack.c.h.b16 %v867
        %v950 = vunpack.c.l.b16 %v868
        %v951 = vunpack.c.h.b16 %v868
        %v952 = vunpack.c.l.b16 %v869
        %v953 = vunpack.c.h.b16 %v869
        %v954 = vpack.c.b16 %v906, %v902
        %v955 = vpack.c.b16 %v907, %v903
        %v956 = vpack.c.b16 %v908, %v904
        %v957 = vpack.c.b16 %v909, %v905
        %v958 = vpack.c.b16 %v914, %v910
        %v959 = vpack.c.b16 %v915, %v911
        %v960 = vpack.c.b16 %v916, %v912
        %v961 = vpack.c.b16 %v917, %v913
        %v962 = vpack.c.b16 %v922, %v918
        %v963 = vpack.c.b16 %v923, %v919
        %v964 = vpack.c.b16 %v924, %v920
        %v965 = vpack.c.b16 %v925, %v921
        %v966 = vpack.c.b16 %v930, %v926
        %v967 = vpack.c.b16 %v931, %v927
        %v968 = vpack.c.b16 %v932, %v928
        %v969 = vpack.c.b16 %v933, %v929
        %v970 = vpack.c.b16 %v938, %v934
        %v971 = vpack.c.b16 %v939, %v935
        %v972 = vpack.c.b16 %v940, %v936
        %v973 = vpack.c.b16 %v941, %v937
        %v974 = vpack.c.b16 %v946, %v942
        %v975 = vpack.c.b16 %v947, %v943
        %v976 = vpack.c.b16 %v948, %v944
        %v977 = vpack.c.b16 %v949, %v945
        %v978 = vpack.c.b16 %v950, %v950
        %v979 = vpack.c.b16 %v951, %v951
        %v980 = vpack.c.b16 %v952, %v952
        %v981 = vpack.c.b16 %v953, %v953
        %vm1006 = vcmask 818176
        %v1008 = vsel %vm1006, %v843, 0
        %vm1010 = vcmask 1041408
        %v1012 = vsel %vm1010, %v978, 0
        %v1015 = vsel %vm1010, %v979, 0
        %v1018 = vsel %vm1010, %v980, 0
        %v1021 = vsel %vm1010, %v981, 0
        %1023 = vmatprep.subr.bf16.mxu0 0
        %1024 = vmatpush1.bf16.msra.mxu0 0
        %1025 = vmatprep.subr.bf16.mxu0 %v1015
        %1026 = vmatpush1.bf16.msra.mxu0 %v1012
        %1027 = vmatprep.subr.bf16.mxu0 %v975
        %1028 = vmatpush1.bf16.msra.mxu0 %v974
        %1029 = vmatprep.subr.bf16.mxu0 %v971
        %1030 = vmatpush1.bf16.msra.mxu0 %v970
        %1031 = vmatprep.subr.bf16.mxu0 %v967
        %1032 = vmatpush1.bf16.msra.mxu0 %v966
        %1033 = vmatprep.subr.bf16.mxu0 %v963
        %1034 = vmatpush1.bf16.msra.mxu0 %v962
        %1035 = vmatprep.subr.bf16.mxu0 %v959
        %1036 = vmatpush1.bf16.msra.mxu0 %v958
        %1037 = vmatprep.subr.bf16.mxu0 %v955
        %1038 = vmatpush1.bf16.msra.mxu0 %v954
        %1039 = vmatprep.subr.bf16.mxu0 0
        %1040 = vmatpush2.bf16.msra.mxu0 0
        %1041 = vmatprep.subr.bf16.mxu0 0
        %1042 = vmatpush2.bf16.msra.mxu0 0
        %1043 = vmatprep.subr.bf16.mxu0 0
        %1044 = vmatpush2.bf16.msra.mxu0 0
        %1045 = vmatprep.subr.bf16.mxu0 0
        %1046 = vmatpush2.bf16.msra.mxu0 0
        %1047 = vmatprep.subr.bf16.mxu0 0
        %1048 = vmatpush2.bf16.msra.mxu0 0
        %1049 = vmatprep.subr.bf16.mxu0 0
        %1050 = vmatpush2.bf16.msra.mxu0 0
        %1051 = vmatprep.subr.bf16.mxu0 0
        %1052 = vmatpush2.bf16.msra.mxu0 0
        %1053 = vmatprep.subr.bf16.mxu0 0
        %1054 = vmatpush2.bf16.msra.mxu0 0
        %1055 = vmatprep.mubr.bf16.mxu0 0
        %1056 = vmatmul.mubr.bf16.gmra.mxu0 %v1008
        %v1057 = vpop.f32.mrf.mxu0
        %v1058 = vadd.f32 %v874, %v1057
        %v1059 = vpop.f32.mrf.mxu0
        %v1060 = vadd.f32 %v874, %v1059
        %v1061 = vpop.f32.mrf.mxu0
        %v1062 = vpop.f32.mrf.mxu0
        %1063 = vdwg.mxu0
        %1064 = vmatprep.subr.bf16.mxu0 0
        %1065 = vmatpush1.bf16.msra.mxu0 0
        %1066 = vmatprep.subr.bf16.mxu0 %v1021
        %1067 = vmatpush1.bf16.msra.mxu0 %v1018
        %1068 = vmatprep.subr.bf16.mxu0 %v977
        %1069 = vmatpush1.bf16.msra.mxu0 %v976
        %1070 = vmatprep.subr.bf16.mxu0 %v973
        %1071 = vmatpush1.bf16.msra.mxu0 %v972
        %1072 = vmatprep.subr.bf16.mxu0 %v969
        %1073 = vmatpush1.bf16.msra.mxu0 %v968
        %1074 = vmatprep.subr.bf16.mxu0 %v965
        %1075 = vmatpush1.bf16.msra.mxu0 %v964
        %1076 = vmatprep.subr.bf16.mxu0 %v961
        %1077 = vmatpush1.bf16.msra.mxu0 %v960
        %1078 = vmatprep.subr.bf16.mxu0 %v957
        %1079 = vmatpush1.bf16.msra.mxu0 %v956
        %1080 = vmatprep.subr.bf16.mxu0 0
        %1081 = vmatpush2.bf16.msra.mxu0 0
        %1082 = vmatprep.subr.bf16.mxu0 0
        %1083 = vmatpush2.bf16.msra.mxu0 0
        %1084 = vmatprep.subr.bf16.mxu0 0
        %1085 = vmatpush2.bf16.msra.mxu0 0
        %1086 = vmatprep.subr.bf16.mxu0 0
        %1087 = vmatpush2.bf16.msra.mxu0 0
        %1088 = vmatprep.subr.bf16.mxu0 0
        %1089 = vmatpush2.bf16.msra.mxu0 0
        %1090 = vmatprep.subr.bf16.mxu0 0
        %1091 = vmatpush2.bf16.msra.mxu0 0
        %1092 = vmatprep.subr.bf16.mxu0 0
        %1093 = vmatpush2.bf16.msra.mxu0 0
        %1094 = vmatprep.subr.bf16.mxu0 0
        %1095 = vmatpush2.bf16.msra.mxu0 0
        %1096 = vmatprep.mubr.bf16.mxu0 0
        %1097 = vmatmul.mubr.bf16.gmra.mxu0 %v1008
        %v1098 = vpop.f32.mrf.mxu0
        %v1099 = vadd.f32 %v874, %v1098
        %v1100 = vpop.f32.mrf.mxu0
        %v1101 = vadd.f32 %v874, %v1100
        %v1102 = vpop.f32.mrf.mxu0
        %v1103 = vpop.f32.mrf.mxu0
        %1104 = vdwg.mxu0
        %v1105 = vmax.f32 %v1058, 0.0
        %v1106 = vmax.f32 %v1060, 0.0
        %v1107 = vmax.f32 %v1099, 0.0
        %v1108 = vmax.f32 %v1101, 0.0
        %v1109 = vpack.c.bf16 %v1105, %v1105
        %v1110 = vpack.c.bf16 %v1106, %v1106
        %v1111 = vpack.c.bf16 %v1107, %v1107
        %v1112 = vpack.c.bf16 %v1108, %v1108
        %v1117 = vcombine.low %v1109, %v1110
        %v1118 = vcombine.low %v1111, %v1112
        %v1120 = vunpack.c.l.s4 1966171168
        %v1121 = vunpack.c.0.s8 %v1120
        %v1122 = vlaneseq
        %v1123 = vshrl.u32 %v1122, 7
        %v1124 = vsub.s32 %v1121, %v1123
        %v1125 = vrot.slane %v1117, %v1124
        %v1127 = vunpack.c.l.s4 1966171168
        %v1128 = vunpack.c.0.s8 %v1127
        %v1129 = vlaneseq
        %v1130 = vshrl.u32 %v1129, 7
        %v1131 = vsub.s32 %v1128, %v1130
        %v1132 = vrot.slane %v1118, %v1131
        %v1133 = vcombine.low %v1125, %v1132
        %v1135 = vunpack.c.l.s4 1966171168
        %v1136 = vunpack.c.0.s8 %v1135
        %v1137 = vlaneseq
        %v1138 = vshrl.u32 %v1137, 7
        %v1139 = vsub.s32 %v1136, %v1138
        %v1140 = vrot.slane %v1133, %v1139
        %1142 = vst [vmem:[%s831] sm:$0xf] %v1140
        %s1143 = sand.u32 %s90, 1
        %s1144 = sand.u32 %s90, 1
        %s1145 = smul.addr %s1144, 4
        %s1146 = scalar_lea.vmem [#allocation3], %s1145
        // Predicated region
        $region99: #{actor_forward.8} parent=93 // pred_check
          %p1147 = pneg %p100
        $region100: #{actor_forward.8} parent=93 // pred_check_branch
          %1149 = sbr.rel (%p1147) target = $region102
        $region101: #{actor_forward.8} parent=93 // pred_region
          %s1150 = smul.u32 4, %s14
          %s1151 = ssub.s32 21, %s1150
          %p1152 = scmp.lt.s32.totalorder %s1151, 4
          %s1153 = scalar_select %p1152, %s1151, 4
          %s1154 = smul.u32 16, %s1153
          %p1155 = scmp.ne.s32.totalorder 0, %s1154
          %s1156 = scalar_lea.vmem %s3, %s1150
          // Predicated region
          $region103: #{actor_forward.8} parent=101 // pred_check
            %p1157 = pneg %p1155
          $region104: #{actor_forward.8} parent=101 // pred_check_branch
            %1159 = sbr.rel (%p1157) target = $region106
          $region105: #{actor_forward.8} parent=101 // pred_region
            %p1160 = scmp.lt.u32.totalorder %s1153, 8
            %p1161 = pneg %p1160
            // Predicated region
            $region107: #{actor_forward.8} parent=105 // pred_check
              _
            $region108: #{actor_forward.8} parent=105 // pred_check_branch
              %1163 = sbr.rel (%p1160) target = $region110
            $region109: #{actor_forward.8} parent=105 // pred_region
              %s1179 = sand.u32 %s1153, 7
              %p1180 = scmp.eq.s32.totalorder %s1179, 0
              // Predicated region
              $region122: #{actor_forward.8} parent=109 // pred_check
                %p1181 = pneg %p1180
              $region123: #{actor_forward.8} parent=109 // pred_check_branch
                %1183 = sbr.rel (%p1181) target = $region125
              $region124: #{actor_forward.8} parent=109 // pred_region
                %s1184 = sshrl.u32 %s1153, 3
                %s1185 = sshrl.u32 %s1184, 6
                // While loop
                $region126: #{actor_forward.8} parent=124 // loop_pre_header
                  _
                $region127: #{actor_forward.8} parent=124 // loop_header
                  %s1189 = sphi 0, %s1191
                  %p1190 = scmp.ge.s32.totalorder %s1189, %s1185
                  %s1194 = sphi 0, %s1327
                  %s1195 = sphi %s1146, %s1330
                  %s1196 = sphi %s1156, %s1331
                $region128: #{actor_forward.8} parent=124 // loop_header_branch
                  %1193 = sbr.rel (%p1190) target = $region132
                $region129: #{actor_forward.8} parent=124 // loop_body
                  %v1197 = vld [vmem:[%s1195] sm:$0xff]
                  %1198 = vst [vmem:[%s1196] sm:$0xff] %v1197
                  %v1199 = vld [vmem:[%s1195 + $0x8] sm:$0xff]
                  %1200 = vst [vmem:[%s1196 + $0x8] sm:$0xff] %v1199
                  %v1201 = vld [vmem:[%s1195 + $0x10] sm:$0xff]
                  %1202 = vst [vmem:[%s1196 + $0x10] sm:$0xff] %v1201
                  %v1203 = vld [vmem:[%s1195 + $0x18] sm:$0xff]
                  %1204 = vst [vmem:[%s1196 + $0x18] sm:$0xff] %v1203
                  %v1205 = vld [vmem:[%s1195 + $0x20] sm:$0xff]
                  %1206 = vst [vmem:[%s1196 + $0x20] sm:$0xff] %v1205
                  %v1207 = vld [vmem:[%s1195 + $0x28] sm:$0xff]
                  %1208 = vst [vmem:[%s1196 + $0x28] sm:$0xff] %v1207
                  %v1209 = vld [vmem:[%s1195 + $0x30] sm:$0xff]
                  %1210 = vst [vmem:[%s1196 + $0x30] sm:$0xff] %v1209
                  %v1211 = vld [vmem:[%s1195 + $0x38] sm:$0xff]
                  %1212 = vst [vmem:[%s1196 + $0x38] sm:$0xff] %v1211
                  %v1213 = vld [vmem:[%s1195 + $0x40] sm:$0xff]
                  %1214 = vst [vmem:[%s1196 + $0x40] sm:$0xff] %v1213
                  %v1215 = vld [vmem:[%s1195 + $0x48] sm:$0xff]
                  %1216 = vst [vmem:[%s1196 + $0x48] sm:$0xff] %v1215
                  %v1217 = vld [vmem:[%s1195 + $0x50] sm:$0xff]
                  %1218 = vst [vmem:[%s1196 + $0x50] sm:$0xff] %v1217
                  %v1219 = vld [vmem:[%s1195 + $0x58] sm:$0xff]
                  %1220 = vst [vmem:[%s1196 + $0x58] sm:$0xff] %v1219
                  %v1221 = vld [vmem:[%s1195 + $0x60] sm:$0xff]
                  %1222 = vst [vmem:[%s1196 + $0x60] sm:$0xff] %v1221
                  %v1223 = vld [vmem:[%s1195 + $0x68] sm:$0xff]
                  %1224 = vst [vmem:[%s1196 + $0x68] sm:$0xff] %v1223
                  %v1225 = vld [vmem:[%s1195 + $0x70] sm:$0xff]
                  %1226 = vst [vmem:[%s1196 + $0x70] sm:$0xff] %v1225
                  %v1227 = vld [vmem:[%s1195 + $0x78] sm:$0xff]
                  %1228 = vst [vmem:[%s1196 + $0x78] sm:$0xff] %v1227
                  %v1229 = vld [vmem:[%s1195 + $0x80] sm:$0xff]
                  %1230 = vst [vmem:[%s1196 + $0x80] sm:$0xff] %v1229
                  %v1231 = vld [vmem:[%s1195 + $0x88] sm:$0xff]
                  %1232 = vst [vmem:[%s1196 + $0x88] sm:$0xff] %v1231
                  %v1233 = vld [vmem:[%s1195 + $0x90] sm:$0xff]
                  %1234 = vst [vmem:[%s1196 + $0x90] sm:$0xff] %v1233
                  %v1235 = vld [vmem:[%s1195 + $0x98] sm:$0xff]
                  %1236 = vst [vmem:[%s1196 + $0x98] sm:$0xff] %v1235
                  %v1237 = vld [vmem:[%s1195 + $0xa0] sm:$0xff]
                  %1238 = vst [vmem:[%s1196 + $0xa0] sm:$0xff] %v1237
                  %v1239 = vld [vmem:[%s1195 + $0xa8] sm:$0xff]
                  %1240 = vst [vmem:[%s1196 + $0xa8] sm:$0xff] %v1239
                  %v1241 = vld [vmem:[%s1195 + $0xb0] sm:$0xff]
                  %1242 = vst [vmem:[%s1196 + $0xb0] sm:$0xff] %v1241
                  %v1243 = vld [vmem:[%s1195 + $0xb8] sm:$0xff]
                  %1244 = vst [vmem:[%s1196 + $0xb8] sm:$0xff] %v1243
                  %v1245 = vld [vmem:[%s1195 + $0xc0] sm:$0xff]
                  %1246 = vst [vmem:[%s1196 + $0xc0] sm:$0xff] %v1245
                  %v1247 = vld [vmem:[%s1195 + $0xc8] sm:$0xff]
                  %1248 = vst [vmem:[%s1196 + $0xc8] sm:$0xff] %v1247
                  %v1249 = vld [vmem:[%s1195 + $0xd0] sm:$0xff]
                  %1250 = vst [vmem:[%s1196 + $0xd0] sm:$0xff] %v1249
                  %v1251 = vld [vmem:[%s1195 + $0xd8] sm:$0xff]
                  %1252 = vst [vmem:[%s1196 + $0xd8] sm:$0xff] %v1251
                  %v1253 = vld [vmem:[%s1195 + $0xe0] sm:$0xff]
                  %1254 = vst [vmem:[%s1196 + $0xe0] sm:$0xff] %v1253
                  %v1255 = vld [vmem:[%s1195 + $0xe8] sm:$0xff]
                  %1256 = vst [vmem:[%s1196 + $0xe8] sm:$0xff] %v1255
                  %v1257 = vld [vmem:[%s1195 + $0xf0] sm:$0xff]
                  %1258 = vst [vmem:[%s1196 + $0xf0] sm:$0xff] %v1257
                  %v1259 = vld [vmem:[%s1195 + $0xf8] sm:$0xff]
                  %1260 = vst [vmem:[%s1196 + $0xf8] sm:$0xff] %v1259
                  %v1261 = vld [vmem:[%s1195 + $0x100] sm:$0xff]
                  %1262 = vst [vmem:[%s1196 + $0x100] sm:$0xff] %v1261
                  %v1263 = vld [vmem:[%s1195 + $0x108] sm:$0xff]
                  %1264 = vst [vmem:[%s1196 + $0x108] sm:$0xff] %v1263
                  %v1265 = vld [vmem:[%s1195 + $0x110] sm:$0xff]
                  %1266 = vst [vmem:[%s1196 + $0x110] sm:$0xff] %v1265
                  %v1267 = vld [vmem:[%s1195 + $0x118] sm:$0xff]
                  %1268 = vst [vmem:[%s1196 + $0x118] sm:$0xff] %v1267
                  %v1269 = vld [vmem:[%s1195 + $0x120] sm:$0xff]
                  %1270 = vst [vmem:[%s1196 + $0x120] sm:$0xff] %v1269
                  %v1271 = vld [vmem:[%s1195 + $0x128] sm:$0xff]
                  %1272 = vst [vmem:[%s1196 + $0x128] sm:$0xff] %v1271
                  %v1273 = vld [vmem:[%s1195 + $0x130] sm:$0xff]
                  %1274 = vst [vmem:[%s1196 + $0x130] sm:$0xff] %v1273
                  %v1275 = vld [vmem:[%s1195 + $0x138] sm:$0xff]
                  %1276 = vst [vmem:[%s1196 + $0x138] sm:$0xff] %v1275
                  %v1277 = vld [vmem:[%s1195 + $0x140] sm:$0xff]
                  %1278 = vst [vmem:[%s1196 + $0x140] sm:$0xff] %v1277
                  %v1279 = vld [vmem:[%s1195 + $0x148] sm:$0xff]
                  %1280 = vst [vmem:[%s1196 + $0x148] sm:$0xff] %v1279
                  %v1281 = vld [vmem:[%s1195 + $0x150] sm:$0xff]
                  %1282 = vst [vmem:[%s1196 + $0x150] sm:$0xff] %v1281
                  %v1283 = vld [vmem:[%s1195 + $0x158] sm:$0xff]
                  %1284 = vst [vmem:[%s1196 + $0x158] sm:$0xff] %v1283
                  %v1285 = vld [vmem:[%s1195 + $0x160] sm:$0xff]
                  %1286 = vst [vmem:[%s1196 + $0x160] sm:$0xff] %v1285
                  %v1287 = vld [vmem:[%s1195 + $0x168] sm:$0xff]
                  %1288 = vst [vmem:[%s1196 + $0x168] sm:$0xff] %v1287
                  %v1289 = vld [vmem:[%s1195 + $0x170] sm:$0xff]
                  %1290 = vst [vmem:[%s1196 + $0x170] sm:$0xff] %v1289
                  %v1291 = vld [vmem:[%s1195 + $0x178] sm:$0xff]
                  %1292 = vst [vmem:[%s1196 + $0x178] sm:$0xff] %v1291
                  %v1293 = vld [vmem:[%s1195 + $0x180] sm:$0xff]
                  %1294 = vst [vmem:[%s1196 + $0x180] sm:$0xff] %v1293
                  %v1295 = vld [vmem:[%s1195 + $0x188] sm:$0xff]
                  %1296 = vst [vmem:[%s1196 + $0x188] sm:$0xff] %v1295
                  %v1297 = vld [vmem:[%s1195 + $0x190] sm:$0xff]
                  %1298 = vst [vmem:[%s1196 + $0x190] sm:$0xff] %v1297
                  %v1299 = vld [vmem:[%s1195 + $0x198] sm:$0xff]
                  %1300 = vst [vmem:[%s1196 + $0x198] sm:$0xff] %v1299
                  %v1301 = vld [vmem:[%s1195 + $0x1a0] sm:$0xff]
                  %1302 = vst [vmem:[%s1196 + $0x1a0] sm:$0xff] %v1301
                  %v1303 = vld [vmem:[%s1195 + $0x1a8] sm:$0xff]
                  %1304 = vst [vmem:[%s1196 + $0x1a8] sm:$0xff] %v1303
                  %v1305 = vld [vmem:[%s1195 + $0x1b0] sm:$0xff]
                  %1306 = vst [vmem:[%s1196 + $0x1b0] sm:$0xff] %v1305
                  %v1307 = vld [vmem:[%s1195 + $0x1b8] sm:$0xff]
                  %1308 = vst [vmem:[%s1196 + $0x1b8] sm:$0xff] %v1307
                  %v1309 = vld [vmem:[%s1195 + $0x1c0] sm:$0xff]
                  %1310 = vst [vmem:[%s1196 + $0x1c0] sm:$0xff] %v1309
                  %v1311 = vld [vmem:[%s1195 + $0x1c8] sm:$0xff]
                  %1312 = vst [vmem:[%s1196 + $0x1c8] sm:$0xff] %v1311
                  %v1313 = vld [vmem:[%s1195 + $0x1d0] sm:$0xff]
                  %1314 = vst [vmem:[%s1196 + $0x1d0] sm:$0xff] %v1313
                  %v1315 = vld [vmem:[%s1195 + $0x1d8] sm:$0xff]
                  %1316 = vst [vmem:[%s1196 + $0x1d8] sm:$0xff] %v1315
                  %v1317 = vld [vmem:[%s1195 + $0x1e0] sm:$0xff]
                  %1318 = vst [vmem:[%s1196 + $0x1e0] sm:$0xff] %v1317
                  %v1319 = vld [vmem:[%s1195 + $0x1e8] sm:$0xff]
                  %1320 = vst [vmem:[%s1196 + $0x1e8] sm:$0xff] %v1319
                  %v1321 = vld [vmem:[%s1195 + $0x1f0] sm:$0xff]
                  %1322 = vst [vmem:[%s1196 + $0x1f0] sm:$0xff] %v1321
                  %v1323 = vld [vmem:[%s1195 + $0x1f8] sm:$0xff]
                  %1324 = vst [vmem:[%s1196 + $0x1f8] sm:$0xff] %v1323
                  %s1325 = sadd.s32 1, %s1194
                  %p1326 = scmp.ge.s32.totalorder %s1325, %s1185
                  %s1327 = scalar_select %p1326, 0, %s1325
                  %s1328 = smul.u32 %s1327, 512
                  %s1329 = smul.u32 %s1327, 512
                  %s1330 = scalar_lea.vmem %s1146, %s1328 [#allocation3]
                  %s1331 = scalar_lea.vmem %s1156, %s1329
                $region130: #{actor_forward.8} parent=124 // loop_footer
                  %s1191 = sadd.s32 %s1189, 1
                $region131: #{actor_forward.8} parent=124 // loop_footer_branch
                  %1188 = sbr.rel target = $region127
                $region132: #{actor_forward.8} parent=124 // loop_exit
                  _
                %s1332 = sshrl.u32 %s1184, 6
                %s1333 = sand.u32 %s1184, 63
                %s1334 = smul.u32 %s1332, 64
                %s1335 = smul.u32 128, %s1334
                %s1336 = sshra.s32 %s1335, 4
                %s1337 = scalar_lea.vmem %s1146, %s1336 [#allocation3]
                %s1338 = smul.u32 128, %s1334
                %s1339 = sshra.s32 %s1338, 4
                %s1340 = scalar_lea.vmem %s1156, %s1339
                // While loop
                $region133: #{actor_forward.8} parent=124 // loop_pre_header
                  _
                $region134: #{actor_forward.8} parent=124 // loop_header
                  %s1344 = sphi 0, %s1346
                  %p1345 = scmp.ge.s32.totalorder %s1344, %s1333
                  %s1349 = sphi 0, %s1356
                  %s1350 = sphi %s1337, %s1359
                  %s1351 = sphi %s1340, %s1360
                $region135: #{actor_forward.8} parent=124 // loop_header_branch
                  %1348 = sbr.rel (%p1345) target = $region139
                $region136: #{actor_forward.8} parent=124 // loop_body
                  %v1352 = vld [vmem:[%s1350] sm:$0xff]
                  %1353 = vst [vmem:[%s1351] sm:$0xff] %v1352
                  %s1354 = sadd.s32 1, %s1349
                  %p1355 = scmp.ge.s32.totalorder %s1354, %s1333
                  %s1356 = scalar_select %p1355, 0, %s1354
                  %s1357 = smul.u32 %s1356, 8
                  %s1358 = smul.u32 %s1356, 8
                  %s1359 = scalar_lea.vmem %s1337, %s1357 [#allocation3]
                  %s1360 = scalar_lea.vmem %s1340, %s1358
                $region137: #{actor_forward.8} parent=124 // loop_footer
                  %s1346 = sadd.s32 %s1344, 1
                $region138: #{actor_forward.8} parent=124 // loop_footer_branch
                  %1343 = sbr.rel target = $region134
                $region139: #{actor_forward.8} parent=124 // loop_exit
                  _
              $region125: #{actor_forward.8} parent=109 // pred_fallthru
                _
              %p1361 = pneg %p1180
              // Predicated region
              $region140: #{actor_forward.8} parent=109 // pred_check
                _
              $region141: #{actor_forward.8} parent=109 // pred_check_branch
                %1363 = sbr.rel (%p1180) target = $region143
              $region142: #{actor_forward.8} parent=109 // pred_region
                %s1364 = sand.u32 %s1153, 7
                %s1365 = ssub.s32 %s1153, %s1364
                %s1366 = scalar_lea.vmem %s1146, %s1365 [#allocation3]
                %s1367 = ssub.s32 %s1153, %s1364
                %s1368 = scalar_lea.vmem %s1156, %s1367
                %s1369 = sshrl.u32 %s1153, 3
                %s1370 = sshrl.u32 %s1369, 6
                // While loop
                $region144: #{actor_forward.8} parent=142 // loop_pre_header
                  _
                $region145: #{actor_forward.8} parent=142 // loop_header
                  %s1374 = sphi 0, %s1376
                  %p1375 = scmp.ge.s32.totalorder %s1374, %s1370
                  %s1379 = sphi 0, %s1512
                  %s1380 = sphi %s1146, %s1515
                  %s1381 = sphi %s1156, %s1516
                $region146: #{actor_forward.8} parent=142 // loop_header_branch
                  %1378 = sbr.rel (%p1375) target = $region150
                $region147: #{actor_forward.8} parent=142 // loop_body
                  %v1382 = vld [vmem:[%s1380] sm:$0xff]
                  %1383 = vst [vmem:[%s1381] sm:$0xff] %v1382
                  %v1384 = vld [vmem:[%s1380 + $0x8] sm:$0xff]
                  %1385 = vst [vmem:[%s1381 + $0x8] sm:$0xff] %v1384
                  %v1386 = vld [vmem:[%s1380 + $0x10] sm:$0xff]
                  %1387 = vst [vmem:[%s1381 + $0x10] sm:$0xff] %v1386
                  %v1388 = vld [vmem:[%s1380 + $0x18] sm:$0xff]
                  %1389 = vst [vmem:[%s1381 + $0x18] sm:$0xff] %v1388
                  %v1390 = vld [vmem:[%s1380 + $0x20] sm:$0xff]
                  %1391 = vst [vmem:[%s1381 + $0x20] sm:$0xff] %v1390
                  %v1392 = vld [vmem:[%s1380 + $0x28] sm:$0xff]
                  %1393 = vst [vmem:[%s1381 + $0x28] sm:$0xff] %v1392
                  %v1394 = vld [vmem:[%s1380 + $0x30] sm:$0xff]
                  %1395 = vst [vmem:[%s1381 + $0x30] sm:$0xff] %v1394
                  %v1396 = vld [vmem:[%s1380 + $0x38] sm:$0xff]
                  %1397 = vst [vmem:[%s1381 + $0x38] sm:$0xff] %v1396
                  %v1398 = vld [vmem:[%s1380 + $0x40] sm:$0xff]
                  %1399 = vst [vmem:[%s1381 + $0x40] sm:$0xff] %v1398
                  %v1400 = vld [vmem:[%s1380 + $0x48] sm:$0xff]
                  %1401 = vst [vmem:[%s1381 + $0x48] sm:$0xff] %v1400
                  %v1402 = vld [vmem:[%s1380 + $0x50] sm:$0xff]
                  %1403 = vst [vmem:[%s1381 + $0x50] sm:$0xff] %v1402
                  %v1404 = vld [vmem:[%s1380 + $0x58] sm:$0xff]
                  %1405 = vst [vmem:[%s1381 + $0x58] sm:$0xff] %v1404
                  %v1406 = vld [vmem:[%s1380 + $0x60] sm:$0xff]
                  %1407 = vst [vmem:[%s1381 + $0x60] sm:$0xff] %v1406
                  %v1408 = vld [vmem:[%s1380 + $0x68] sm:$0xff]
                  %1409 = vst [vmem:[%s1381 + $0x68] sm:$0xff] %v1408
                  %v1410 = vld [vmem:[%s1380 + $0x70] sm:$0xff]
                  %1411 = vst [vmem:[%s1381 + $0x70] sm:$0xff] %v1410
                  %v1412 = vld [vmem:[%s1380 + $0x78] sm:$0xff]
                  %1413 = vst [vmem:[%s1381 + $0x78] sm:$0xff] %v1412
                  %v1414 = vld [vmem:[%s1380 + $0x80] sm:$0xff]
                  %1415 = vst [vmem:[%s1381 + $0x80] sm:$0xff] %v1414
                  %v1416 = vld [vmem:[%s1380 + $0x88] sm:$0xff]
                  %1417 = vst [vmem:[%s1381 + $0x88] sm:$0xff] %v1416
                  %v1418 = vld [vmem:[%s1380 + $0x90] sm:$0xff]
                  %1419 = vst [vmem:[%s1381 + $0x90] sm:$0xff] %v1418
                  %v1420 = vld [vmem:[%s1380 + $0x98] sm:$0xff]
                  %1421 = vst [vmem:[%s1381 + $0x98] sm:$0xff] %v1420
                  %v1422 = vld [vmem:[%s1380 + $0xa0] sm:$0xff]
                  %1423 = vst [vmem:[%s1381 + $0xa0] sm:$0xff] %v1422
                  %v1424 = vld [vmem:[%s1380 + $0xa8] sm:$0xff]
                  %1425 = vst [vmem:[%s1381 + $0xa8] sm:$0xff] %v1424
                  %v1426 = vld [vmem:[%s1380 + $0xb0] sm:$0xff]
                  %1427 = vst [vmem:[%s1381 + $0xb0] sm:$0xff] %v1426
                  %v1428 = vld [vmem:[%s1380 + $0xb8] sm:$0xff]
                  %1429 = vst [vmem:[%s1381 + $0xb8] sm:$0xff] %v1428
                  %v1430 = vld [vmem:[%s1380 + $0xc0] sm:$0xff]
                  %1431 = vst [vmem:[%s1381 + $0xc0] sm:$0xff] %v1430
                  %v1432 = vld [vmem:[%s1380 + $0xc8] sm:$0xff]
                  %1433 = vst [vmem:[%s1381 + $0xc8] sm:$0xff] %v1432
                  %v1434 = vld [vmem:[%s1380 + $0xd0] sm:$0xff]
                  %1435 = vst [vmem:[%s1381 + $0xd0] sm:$0xff] %v1434
                  %v1436 = vld [vmem:[%s1380 + $0xd8] sm:$0xff]
                  %1437 = vst [vmem:[%s1381 + $0xd8] sm:$0xff] %v1436
                  %v1438 = vld [vmem:[%s1380 + $0xe0] sm:$0xff]
                  %1439 = vst [vmem:[%s1381 + $0xe0] sm:$0xff] %v1438
                  %v1440 = vld [vmem:[%s1380 + $0xe8] sm:$0xff]
                  %1441 = vst [vmem:[%s1381 + $0xe8] sm:$0xff] %v1440
                  %v1442 = vld [vmem:[%s1380 + $0xf0] sm:$0xff]
                  %1443 = vst [vmem:[%s1381 + $0xf0] sm:$0xff] %v1442
                  %v1444 = vld [vmem:[%s1380 + $0xf8] sm:$0xff]
                  %1445 = vst [vmem:[%s1381 + $0xf8] sm:$0xff] %v1444
                  %v1446 = vld [vmem:[%s1380 + $0x100] sm:$0xff]
                  %1447 = vst [vmem:[%s1381 + $0x100] sm:$0xff] %v1446
                  %v1448 = vld [vmem:[%s1380 + $0x108] sm:$0xff]
                  %1449 = vst [vmem:[%s1381 + $0x108] sm:$0xff] %v1448
                  %v1450 = vld [vmem:[%s1380 + $0x110] sm:$0xff]
                  %1451 = vst [vmem:[%s1381 + $0x110] sm:$0xff] %v1450
                  %v1452 = vld [vmem:[%s1380 + $0x118] sm:$0xff]
                  %1453 = vst [vmem:[%s1381 + $0x118] sm:$0xff] %v1452
                  %v1454 = vld [vmem:[%s1380 + $0x120] sm:$0xff]
                  %1455 = vst [vmem:[%s1381 + $0x120] sm:$0xff] %v1454
                  %v1456 = vld [vmem:[%s1380 + $0x128] sm:$0xff]
                  %1457 = vst [vmem:[%s1381 + $0x128] sm:$0xff] %v1456
                  %v1458 = vld [vmem:[%s1380 + $0x130] sm:$0xff]
                  %1459 = vst [vmem:[%s1381 + $0x130] sm:$0xff] %v1458
                  %v1460 = vld [vmem:[%s1380 + $0x138] sm:$0xff]
                  %1461 = vst [vmem:[%s1381 + $0x138] sm:$0xff] %v1460
                  %v1462 = vld [vmem:[%s1380 + $0x140] sm:$0xff]
                  %1463 = vst [vmem:[%s1381 + $0x140] sm:$0xff] %v1462
                  %v1464 = vld [vmem:[%s1380 + $0x148] sm:$0xff]
                  %1465 = vst [vmem:[%s1381 + $0x148] sm:$0xff] %v1464
                  %v1466 = vld [vmem:[%s1380 + $0x150] sm:$0xff]
                  %1467 = vst [vmem:[%s1381 + $0x150] sm:$0xff] %v1466
                  %v1468 = vld [vmem:[%s1380 + $0x158] sm:$0xff]
                  %1469 = vst [vmem:[%s1381 + $0x158] sm:$0xff] %v1468
                  %v1470 = vld [vmem:[%s1380 + $0x160] sm:$0xff]
                  %1471 = vst [vmem:[%s1381 + $0x160] sm:$0xff] %v1470
                  %v1472 = vld [vmem:[%s1380 + $0x168] sm:$0xff]
                  %1473 = vst [vmem:[%s1381 + $0x168] sm:$0xff] %v1472
                  %v1474 = vld [vmem:[%s1380 + $0x170] sm:$0xff]
                  %1475 = vst [vmem:[%s1381 + $0x170] sm:$0xff] %v1474
                  %v1476 = vld [vmem:[%s1380 + $0x178] sm:$0xff]
                  %1477 = vst [vmem:[%s1381 + $0x178] sm:$0xff] %v1476
                  %v1478 = vld [vmem:[%s1380 + $0x180] sm:$0xff]
                  %1479 = vst [vmem:[%s1381 + $0x180] sm:$0xff] %v1478
                  %v1480 = vld [vmem:[%s1380 + $0x188] sm:$0xff]
                  %1481 = vst [vmem:[%s1381 + $0x188] sm:$0xff] %v1480
                  %v1482 = vld [vmem:[%s1380 + $0x190] sm:$0xff]
                  %1483 = vst [vmem:[%s1381 + $0x190] sm:$0xff] %v1482
                  %v1484 = vld [vmem:[%s1380 + $0x198] sm:$0xff]
                  %1485 = vst [vmem:[%s1381 + $0x198] sm:$0xff] %v1484
                  %v1486 = vld [vmem:[%s1380 + $0x1a0] sm:$0xff]
                  %1487 = vst [vmem:[%s1381 + $0x1a0] sm:$0xff] %v1486
                  %v1488 = vld [vmem:[%s1380 + $0x1a8] sm:$0xff]
                  %1489 = vst [vmem:[%s1381 + $0x1a8] sm:$0xff] %v1488
                  %v1490 = vld [vmem:[%s1380 + $0x1b0] sm:$0xff]
                  %1491 = vst [vmem:[%s1381 + $0x1b0] sm:$0xff] %v1490
                  %v1492 = vld [vmem:[%s1380 + $0x1b8] sm:$0xff]
                  %1493 = vst [vmem:[%s1381 + $0x1b8] sm:$0xff] %v1492
                  %v1494 = vld [vmem:[%s1380 + $0x1c0] sm:$0xff]
                  %1495 = vst [vmem:[%s1381 + $0x1c0] sm:$0xff] %v1494
                  %v1496 = vld [vmem:[%s1380 + $0x1c8] sm:$0xff]
                  %1497 = vst [vmem:[%s1381 + $0x1c8] sm:$0xff] %v1496
                  %v1498 = vld [vmem:[%s1380 + $0x1d0] sm:$0xff]
                  %1499 = vst [vmem:[%s1381 + $0x1d0] sm:$0xff] %v1498
                  %v1500 = vld [vmem:[%s1380 + $0x1d8] sm:$0xff]
                  %1501 = vst [vmem:[%s1381 + $0x1d8] sm:$0xff] %v1500
                  %v1502 = vld [vmem:[%s1380 + $0x1e0] sm:$0xff]
                  %1503 = vst [vmem:[%s1381 + $0x1e0] sm:$0xff] %v1502
                  %v1504 = vld [vmem:[%s1380 + $0x1e8] sm:$0xff]
                  %1505 = vst [vmem:[%s1381 + $0x1e8] sm:$0xff] %v1504
                  %v1506 = vld [vmem:[%s1380 + $0x1f0] sm:$0xff]
                  %1507 = vst [vmem:[%s1381 + $0x1f0] sm:$0xff] %v1506
                  %v1508 = vld [vmem:[%s1380 + $0x1f8] sm:$0xff]
                  %1509 = vst [vmem:[%s1381 + $0x1f8] sm:$0xff] %v1508
                  %s1510 = sadd.s32 1, %s1379
                  %p1511 = scmp.ge.s32.totalorder %s1510, %s1370
                  %s1512 = scalar_select %p1511, 0, %s1510
                  %s1513 = smul.u32 %s1512, 512
                  %s1514 = smul.u32 %s1512, 512
                  %s1515 = scalar_lea.vmem %s1146, %s1513 [#allocation3]
                  %s1516 = scalar_lea.vmem %s1156, %s1514
                $region148: #{actor_forward.8} parent=142 // loop_footer
                  %s1376 = sadd.s32 %s1374, 1
                $region149: #{actor_forward.8} parent=142 // loop_footer_branch
                  %1373 = sbr.rel target = $region145
                $region150: #{actor_forward.8} parent=142 // loop_exit
                  _
                %s1517 = sshrl.u32 %s1369, 6
                %s1518 = sand.u32 %s1369, 63
                %s1519 = smul.u32 %s1517, 64
                %s1520 = smul.u32 128, %s1519
                %s1521 = sshra.s32 %s1520, 4
                %s1522 = scalar_lea.vmem %s1146, %s1521 [#allocation3]
                %s1523 = smul.u32 128, %s1519
                %s1524 = sshra.s32 %s1523, 4
                %s1525 = scalar_lea.vmem %s1156, %s1524
                // While loop
                $region151: #{actor_forward.8} parent=142 // loop_pre_header
                  _
                $region152: #{actor_forward.8} parent=142 // loop_header
                  %s1529 = sphi 0, %s1531
                  %p1530 = scmp.ge.s32.totalorder %s1529, %s1518
                  %s1534 = sphi 0, %s1541
                  %s1535 = sphi %s1522, %s1544
                  %s1536 = sphi %s1525, %s1545
                $region153: #{actor_forward.8} parent=142 // loop_header_branch
                  %1533 = sbr.rel (%p1530) target = $region157
                $region154: #{actor_forward.8} parent=142 // loop_body
                  %v1537 = vld [vmem:[%s1535] sm:$0xff]
                  %1538 = vst [vmem:[%s1536] sm:$0xff] %v1537
                  %s1539 = sadd.s32 1, %s1534
                  %p1540 = scmp.ge.s32.totalorder %s1539, %s1518
                  %s1541 = scalar_select %p1540, 0, %s1539
                  %s1542 = smul.u32 %s1541, 8
                  %s1543 = smul.u32 %s1541, 8
                  %s1544 = scalar_lea.vmem %s1522, %s1542 [#allocation3]
                  %s1545 = scalar_lea.vmem %s1525, %s1543
                $region155: #{actor_forward.8} parent=142 // loop_footer
                  %s1531 = sadd.s32 %s1529, 1
                $region156: #{actor_forward.8} parent=142 // loop_footer_branch
                  %1528 = sbr.rel target = $region152
                $region157: #{actor_forward.8} parent=142 // loop_exit
                  _
                %s1546 = sshll.u32 1, %s1364
                %s1547 = ssub.s32 %s1546, 1
                loop: start=0, step=1, limit=1
                $region158: #{actor_forward.8} parent=142 // loop_pre_header
                  _
                $region159: #{actor_forward.8} parent=142 // loop_header
                  %s1549 = sphi 0, %s1553
                  %p1550 = scmp.ge.s32.totalorder %s1549, 1
                  %s1554 = sphi %s1366, %s1366
                  %s1555 = sphi %s1368, %s1368
                $region160: #{actor_forward.8} parent=142 // loop_header_branch
                  %1552 = sbr.rel (%p1550) target = $region164
                $region161: #{actor_forward.8} parent=142 // loop_body
                  %v1556 = vld [vmem:[%s1554] sm:%s1547]
                  %1557 = vst [vmem:[%s1555] sm:%s1547] %v1556
                $region162: #{actor_forward.8} parent=142 // loop_footer
                  %s1553 = sadd.s32 1, %s1549
                $region163: #{actor_forward.8} parent=142 // loop_footer_branch
                  %1548 = sbr.rel target = $region159
                $region164: #{actor_forward.8} parent=142 // loop_exit
                  _
              $region143: #{actor_forward.8} parent=109 // pred_fallthru
                _
            $region110: #{actor_forward.8} parent=105 // pred_fallthru
              _
            // Predicated region
            $region111: #{actor_forward.8} parent=105 // pred_check
              %p1164 = pneg %p1160
            $region112: #{actor_forward.8} parent=105 // pred_check_branch
              %1166 = sbr.rel (%p1164) target = $region114
            $region113: #{actor_forward.8} parent=105 // pred_region
              %s1167 = sshll.u32 1, %s1153
              %s1168 = ssub.s32 %s1167, 1
              loop: start=0, step=1, limit=1
              $region115: #{actor_forward.8} parent=113 // loop_pre_header
                _
              $region116: #{actor_forward.8} parent=113 // loop_header
                %s1170 = sphi 0, %s1174
                %p1171 = scmp.ge.s32.totalorder %s1170, 1
                %s1175 = sphi %s1146, %s1146
                %s1176 = sphi %s1156, %s1156
              $region117: #{actor_forward.8} parent=113 // loop_header_branch
                %1173 = sbr.rel (%p1171) target = $region121
              $region118: #{actor_forward.8} parent=113 // loop_body
                %v1177 = vld [vmem:[%s1175] sm:%s1168]
                %1178 = vst [vmem:[%s1176] sm:%s1168] %v1177
              $region119: #{actor_forward.8} parent=113 // loop_footer
                %s1174 = sadd.s32 1, %s1170
              $region120: #{actor_forward.8} parent=113 // loop_footer_branch
                %1169 = sbr.rel target = $region116
              $region121: #{actor_forward.8} parent=113 // loop_exit
                _
            $region114: #{actor_forward.8} parent=105 // pred_fallthru
              _
          $region106: #{actor_forward.8} parent=101 // pred_fallthru
            _
          %1558 = vnop
        $region102: #{actor_forward.8} parent=93 // pred_fallthru
          _
      $region94: #{actor_forward.8} parent=5 // pred_fallthru
        _
      %p1559 = scmp.le.s32.totalorder 2, %s9
      // Predicated region
      $region165: #{actor_forward.8} parent=5 // pred_check
        %p1560 = pneg %p1559
      $region166: #{actor_forward.8} parent=5 // pred_check_branch
        %1562 = sbr.rel (%p1560) target = $region168
      $region167: #{actor_forward.8} parent=5 // pred_region
        %s1563 = ssub.s32 %s9, 2
        // Predicated region
        $region169: #{actor_forward.8} parent=167 // pred_check
          %p1564 = pneg %p106
        $region170: #{actor_forward.8} parent=167 // pred_check_branch
          %1566 = sbr.rel (%p1564) target = $region172
        $region171: #{actor_forward.8} parent=167 // pred_region
          %s1567 = sand.u32 %s91, 1
          %s1568 = sand.u32 %s91, 1
          %s1569 = smul.addr %s1568, 4
          %s1570 = scalar_lea.vmem [#allocation3], %s1569
        $region172: #{actor_forward.8} parent=167 // pred_fallthru
          _
      $region168: #{actor_forward.8} parent=5 // pred_fallthru
        _
    $region6: #{actor_forward.8} parent=1 // loop_footer
      %s13 = sadd.s32 1, %s9
    $region7: #{actor_forward.8} parent=1 // loop_footer_branch
      %8 = sbr.rel target = $region3
    $region8: #{actor_forward.8} parent=1 // loop_exit
      _

// kernel: actor_forward.9
$region0: #{actor_forward.9}
  #allocation0 [shape = 'u32[]', space=smem, size = 0x4, offset = 0x4, fixed_abs, tag = 'smem constant byte address 0x4 - core index']
  #allocation1 [shape = 'u32[144,128]{1,0:T(1,128)}', space=vmem, size = 0x12000, scoped, tag = 'internal scratch']
  %s0 = inlined_call_operand.vmem [shape: bf16[2,50], index: 0, kind: input, shape index: {}]
  %s1 = inlined_call_operand.vmem [shape: f32[2,1], index: 1, kind: input, shape index: {}]
  %s2 = inlined_call_operand.vmem [shape: bf16[50,2028], index: 2, kind: input, shape index: {}]
  %s3 = inlined_call_operand.vmem [shape: bf16[2,2028], index: 3, kind: output, shape index: {}]
  %s4 = sld [smem:[#allocation0]]
  $region68: #{actor_forward.9} parent=0
    _
  %s6 = ssub.s32 1, %s4
  %s7 = scalar_select 0, %s6, %s4
  $region1: #{actor_forward.9} parent=0
    #allocation2 [shape = 'u8[114688]{0}', space=vmem, size = 0x1c000, scoped, tag = 'input window, operand 2']
    loop: start=0, step=1, limit=6
    $region2: #{actor_forward.9} parent=1 // loop_pre_header
      _
    $region3: #{actor_forward.9} parent=1 // loop_header
      %s9 = sphi 0, %s13
      %p10 = scmp.ge.s32.totalorder %s9, 6
      %s17 = sphi 0, %s17
      %s19 = sphi 0, %s17
      %s20 = sphi 0, %s19
      %s34 = sphi 0, %s20
      %s38 = sphi 0, %s38
      %s40 = sphi 0, %s38
      %s41 = sphi 0, %s40
      %s55 = sphi 0, %s41
      %s61 = sphi 0, %s63
      %s64 = sphi 0, %s61
      %s65 = sphi 0, %s64
      %s81 = sphi 0, %s65
      %s87 = sphi 0, %s89
      %s90 = sphi 0, %s87
      %s91 = sphi 0, %s90
      %s107 = sphi 0, %s91
    $region4: #{actor_forward.9} parent=1 // loop_header_branch
      %12 = sbr.rel (%p10) target = $region8
    $region5: #{actor_forward.9} parent=1 // loop_body
      %s14 = ssub.s32 %s9, 1
      %s15 = ssub.s32 %s9, 2
      %s16 = sadd.s32 %s9, 1
      %s18 = sadd.s32 %s17, 1
      %p21 = scmp.eq.s32.totalorder %s9, 3
      %p22 = scmp.ne.s32.totalorder %s17, %s19
      %p23 = scmp.eq.s32.totalorder %s9, 0
      %p24 = por %p22, %p23
      %p25 = scmp.ne.s32.totalorder %s17, %s19
      %p26 = scmp.eq.s32.totalorder %s14, 3
      %p27 = por %p25, %p26
      %p28 = scmp.ne.s32.totalorder %s19, %s20
      %p29 = scmp.eq.s32.totalorder %s14, 0
      %p30 = por %p28, %p29
      %p31 = scmp.ne.s32.totalorder %s19, %s20
      %p32 = scmp.eq.s32.totalorder %s15, 3
      %p33 = por %p31, %p32
      %p35 = scmp.ne.s32.totalorder %s20, %s34
      %p36 = scmp.eq.s32.totalorder %s15, 0
      %p37 = por %p35, %p36
      %s39 = sadd.s32 %s38, 1
      %p42 = scmp.eq.s32.totalorder %s9, 3
      %p43 = scmp.ne.s32.totalorder %s38, %s40
      %p44 = scmp.eq.s32.totalorder %s9, 0
      %p45 = por %p43, %p44
      %p46 = scmp.ne.s32.totalorder %s38, %s40
      %p47 = scmp.eq.s32.totalorder %s14, 3
      %p48 = por %p46, %p47
      %p49 = scmp.ne.s32.totalorder %s40, %s41
      %p50 = scmp.eq.s32.totalorder %s14, 0
      %p51 = por %p49, %p50
      %p52 = scmp.ne.s32.totalorder %s40, %s41
      %p53 = scmp.eq.s32.totalorder %s15, 3
      %p54 = por %p52, %p53
      %p56 = scmp.ne.s32.totalorder %s41, %s55
      %p57 = scmp.eq.s32.totalorder %s15, 0
      %p58 = por %p56, %p57
      %s59 = ssub.s32 %s9, %s16
      %p60 = scmp.eq.s32.totalorder %s59, 0
      %s62 = sadd.s32 %s61, 1
      %s63 = scalar_select %p60, %s61, %s62
      %p66 = pneg %p60
      %p67 = scmp.eq.s32.totalorder %s9, 3
      %p68 = por %p66, %p67
      %p69 = scmp.ne.s32.totalorder %s61, %s64
      %p70 = scmp.eq.s32.totalorder %s9, 0
      %p71 = por %p69, %p70
      %p72 = scmp.ne.s32.totalorder %s61, %s64
      %p73 = scmp.eq.s32.totalorder %s14, 3
      %p74 = por %p72, %p73
      %p75 = scmp.ne.s32.totalorder %s64, %s65
      %p76 = scmp.eq.s32.totalorder %s14, 0
      %p77 = por %p75, %p76
      %p78 = scmp.ne.s32.totalorder %s64, %s65
      %p79 = scmp.eq.s32.totalorder %s15, 3
      %p80 = por %p78, %p79
      %p82 = scmp.ne.s32.totalorder %s65, %s81
      %p83 = scmp.eq.s32.totalorder %s15, 0
      %p84 = por %p82, %p83
      %s85 = ssub.s32 %s9, %s16
      %p86 = scmp.eq.s32.totalorder %s85, 0
      %s88 = sadd.s32 %s87, 1
      %s89 = scalar_select %p86, %s87, %s88
      %p92 = pneg %p86
      %p93 = scmp.eq.s32.totalorder %s9, 3
      %p94 = por %p92, %p93
      %p95 = scmp.ne.s32.totalorder %s87, %s90
      %p96 = scmp.eq.s32.totalorder %s9, 0
      %p97 = por %p95, %p96
      %p98 = scmp.ne.s32.totalorder %s87, %s90
      %p99 = scmp.eq.s32.totalorder %s14, 3
      %p100 = por %p98, %p99
      %p101 = scmp.ne.s32.totalorder %s90, %s91
      %p102 = scmp.eq.s32.totalorder %s14, 0
      %p103 = por %p101, %p102
      %p104 = scmp.ne.s32.totalorder %s90, %s91
      %p105 = scmp.eq.s32.totalorder %s15, 3
      %p106 = por %p104, %p105
      %p108 = scmp.ne.s32.totalorder %s91, %s107
      %p109 = scmp.eq.s32.totalorder %s15, 0
      %p110 = por %p108, %p109
      %p111 = scmp.le.s32.totalorder 1, %s9
      %p112 = scmp.lt.s32.totalorder %s9, 5
      %p113 = pnand %p111, %p112
      %p114 = pneg %p113
      // Predicated region
      $region9: #{actor_forward.9} parent=5 // pred_check
        _
      $region10: #{actor_forward.9} parent=5 // pred_check_branch
        %116 = sbr.rel (%p113) target = $region12
      $region11: #{actor_forward.9} parent=5 // pred_region
        %s117 = ssub.s32 %s9, 1
        // Predicated region
        $region13: #{actor_forward.9} parent=11 // pred_check
          %p118 = pneg %p30
        $region14: #{actor_forward.9} parent=11 // pred_check_branch
          %120 = sbr.rel (%p118) target = $region16
        $region15: #{actor_forward.9} parent=11 // pred_region
          _
        $region16: #{actor_forward.9} parent=11 // pred_fallthru
          _
        // Predicated region
        $region17: #{actor_forward.9} parent=11 // pred_check
          %p121 = pneg %p51
        $region18: #{actor_forward.9} parent=11 // pred_check_branch
          %123 = sbr.rel (%p121) target = $region20
        $region19: #{actor_forward.9} parent=11 // pred_region
          _
        $region20: #{actor_forward.9} parent=11 // pred_fallthru
          _
      $region12: #{actor_forward.9} parent=5 // pred_fallthru
        _
      %p124 = scmp.lt.s32.totalorder %s9, 4
      // Predicated region
      $region21: #{actor_forward.9} parent=5 // pred_check
        %p125 = pneg %p124
      $region22: #{actor_forward.9} parent=5 // pred_check_branch
        %127 = sbr.rel (%p125) target = $region24
      $region23: #{actor_forward.9} parent=5 // pred_region
        // Predicated region
        $region25: #{actor_forward.9} parent=23 // pred_check
          %p128 = pneg %p71
        $region26: #{actor_forward.9} parent=23 // pred_check_branch
          %130 = sbr.rel (%p128) target = $region28
        $region27: #{actor_forward.9} parent=23 // pred_region
          %s131 = sand.u32 %s61, 1
          %s132 = sand.u32 %s61, 1
          %s133 = smul.addr %s132, 112
          %s134 = scalar_lea.vmem [#allocation2], %s133
          %s135 = smul.u32 4, %s9
          %s136 = smul.addr %s135, 4
          %s137 = scalar_lea.vmem %s2, %s136
          // Predicated region
          $region29: #{actor_forward.9} parent=27 // pred_check
            _
          $region30: #{actor_forward.9} parent=27 // pred_check_branch
            %139 = sbr.rel (0) target = $region32
          $region31: #{actor_forward.9} parent=27 // pred_region
            // Predicated region
            $region33: #{actor_forward.9} parent=31 // pred_check
              _
            $region34: #{actor_forward.9} parent=31 // pred_check_branch
              %141 = sbr.rel (0) target = $region36
            $region35: #{actor_forward.9} parent=31 // pred_region
              loop: start=0, step=1, limit=1
              $region37: #{actor_forward.9} parent=35 // loop_pre_header
                _
              $region38: #{actor_forward.9} parent=35 // loop_header
                %s143 = sphi 0, %s147
                %p144 = scmp.ge.s32.totalorder %s143, 1
                %s148 = sphi %s137, %s137
                %s149 = sphi %s134, %s134
              $region39: #{actor_forward.9} parent=35 // loop_header_branch
                %146 = sbr.rel (%p144) target = $region43
              $region40: #{actor_forward.9} parent=35 // loop_body
                %v150 = vld [vmem:[%s148] sm:$0xff]
                %151 = vst [vmem:[%s149] sm:$0xff] %v150
                %v152 = vld [vmem:[%s148 + $0x8] sm:$0xff]
                %153 = vst [vmem:[%s149 + $0x8] sm:$0xff] %v152
                %v154 = vld [vmem:[%s148 + $0x40] sm:$0xff]
                %155 = vst [vmem:[%s149 + $0x10] sm:$0xff] %v154
                %v156 = vld [vmem:[%s148 + $0x48] sm:$0xff]
                %157 = vst [vmem:[%s149 + $0x18] sm:$0xff] %v156
                %v158 = vld [vmem:[%s148 + $0x80] sm:$0xff]
                %159 = vst [vmem:[%s149 + $0x20] sm:$0xff] %v158
                %v160 = vld [vmem:[%s148 + $0x88] sm:$0xff]
                %161 = vst [vmem:[%s149 + $0x28] sm:$0xff] %v160
                %v162 = vld [vmem:[%s148 + $0xc0] sm:$0xff]
                %163 = vst [vmem:[%s149 + $0x30] sm:$0xff] %v162
                %v164 = vld [vmem:[%s148 + $0xc8] sm:$0xff]
                %165 = vst [vmem:[%s149 + $0x38] sm:$0xff] %v164
                %v166 = vld [vmem:[%s148 + $0x100] sm:$0xff]
                %167 = vst [vmem:[%s149 + $0x40] sm:$0xff] %v166
                %v168 = vld [vmem:[%s148 + $0x108] sm:$0xff]
                %169 = vst [vmem:[%s149 + $0x48] sm:$0xff] %v168
                %v170 = vld [vmem:[%s148 + $0x140] sm:$0xff]
                %171 = vst [vmem:[%s149 + $0x50] sm:$0xff] %v170
                %v172 = vld [vmem:[%s148 + $0x148] sm:$0xff]
                %173 = vst [vmem:[%s149 + $0x58] sm:$0xff] %v172
                %v174 = vld [vmem:[%s148 + $0x180] sm:$0xff]
                %175 = vst [vmem:[%s149 + $0x60] sm:$0xff] %v174
                %v176 = vld [vmem:[%s148 + $0x188] sm:$0xff]
                %177 = vst [vmem:[%s149 + $0x68] sm:$0xff] %v176
              $region41: #{actor_forward.9} parent=35 // loop_footer
                %s147 = sadd.s32 1, %s143
              $region42: #{actor_forward.9} parent=35 // loop_footer_branch
                %142 = sbr.rel target = $region38
              $region43: #{actor_forward.9} parent=35 // loop_exit
                _
            $region36: #{actor_forward.9} parent=31 // pred_fallthru
              _
            // Predicated region
            $region44: #{actor_forward.9} parent=31 // pred_check
              _
            $region45: #{actor_forward.9} parent=31 // pred_check_branch
              %179 = sbr.rel target = $region47
            $region46: #{actor_forward.9} parent=31 // pred_region
              _
            $region47: #{actor_forward.9} parent=31 // pred_fallthru
              _
          $region32: #{actor_forward.9} parent=27 // pred_fallthru
            _
          %180 = vnop
        $region28: #{actor_forward.9} parent=23 // pred_fallthru
          _
      $region24: #{actor_forward.9} parent=5 // pred_fallthru
        _
      %p181 = scmp.le.s32.totalorder 1, %s9
      %p182 = scmp.lt.s32.totalorder %s9, 5
      %p183 = pnand %p181, %p182
      %p184 = pneg %p183
      // Predicated region
      $region48: #{actor_forward.9} parent=5 // pred_check
        _
      $region49: #{actor_forward.9} parent=5 // pred_check_branch
        %186 = sbr.rel (%p183) target = $region51
      $region50: #{actor_forward.9} parent=5 // pred_region
        %s187 = ssub.s32 %s9, 1
        %s188 = sand.u32 %s64, 1
        %s189 = sand.u32 %s64, 1
        %s190 = smul.addr %s189, 112
        %s191 = scalar_lea.vmem [#allocation2], %s190
        // Predicated region
        $region52: #{actor_forward.9} parent=50 // pred_check
          %p192 = pneg %p77
        $region53: #{actor_forward.9} parent=50 // pred_check_branch
          %194 = sbr.rel (%p192) target = $region55
        $region54: #{actor_forward.9} parent=50 // pred_region
          _
        $region55: #{actor_forward.9} parent=50 // pred_fallthru
          _
        %p195 = pneg %p30
        %p196 = pneg %p27
        %p197 = pneg %p51
        %p198 = pneg %p48
        %s199 = sand.u32 %s64, 1
        %s200 = sand.u32 %s64, 1
        %s201 = smul.addr %s200, 112
        %s202 = scalar_lea.vmem [#allocation2], %s201
        %p203 = pneg %p77
        %p204 = pneg %p74
        %p205 = pneg %p103
        %p206 = pneg %p100
        %s207 = smul.u32 4, %s14
        %p208 = scmp.lt.s32.totalorder %s207, 15
        %s209 = scalar_select %p208, %s207, 15
        %s210 = scalar_lea.vmem %s3, %s209
        %s211 = smul.u32 4, %s14
        %s212 = smul.u32 4, %s14
        %p213 = scmp.lt.s32.totalorder %s212, 15
        %s214 = scalar_select %p213, %s212, 15
        %s215 = scalar_lea.vmem %s3, %s214
        %s216 = smul.u32 4, %s14
        %v218 = vld [vmem:[%s0] sm:$0x1]
        %v219 = vld [vmem:[%s191] sm:$0xff]
        %v220 = vld [vmem:[%s191 + $0x8] sm:$0xff]
        %v221 = vld [vmem:[%s191 + $0x10] sm:$0xff]
        %v222 = vld [vmem:[%s191 + $0x18] sm:$0xff]
        %v223 = vld [vmem:[%s191 + $0x20] sm:$0xff]
        %v224 = vld [vmem:[%s191 + $0x28] sm:$0xff]
        %v225 = vld [vmem:[%s191 + $0x30] sm:$0xff]
        %v226 = vld [vmem:[%s191 + $0x38] sm:$0xff]
        %v227 = vld [vmem:[%s191 + $0x40] sm:$0xff]
        %v228 = vld [vmem:[%s191 + $0x48] sm:$0xff]
        %v229 = vld [vmem:[%s191 + $0x50] sm:$0xff]
        %v230 = vld [vmem:[%s191 + $0x58] sm:$0xff]
        %v231 = vld [vmem:[%s191 + $0x60] sm:$0x11]
        %v232 = vld [vmem:[%s191 + $0x68] sm:$0x11]
        %v233 = vld [vmem:[%s1] sm:$0x3]
        %235 = vset.pattern.permute.xlu0 0
        %236 = vperm.xlu0 %235, %v233
        %v237 = vpop.permute.xlu0 %236
        %v253 = vunpack.c.l.b16 %v219
        %v254 = vunpack.c.h.b16 %v219
        %v255 = vunpack.c.l.b16 %v220
        %v256 = vunpack.c.h.b16 %v220
        %v257 = vunpack.c.l.b16 %v221
        %v258 = vunpack.c.h.b16 %v221
        %v259 = vunpack.c.l.b16 %v222
        %v260 = vunpack.c.h.b16 %v222
        %v261 = vunpack.c.l.b16 %v223
        %v262 = vunpack.c.h.b16 %v223
        %v263 = vunpack.c.l.b16 %v224
        %v264 = vunpack.c.h.b16 %v224
        %v265 = vunpack.c.l.b16 %v225
        %v266 = vunpack.c.h.b16 %v225
        %v267 = vunpack.c.l.b16 %v226
        %v268 = vunpack.c.h.b16 %v226
        %v269 = vunpack.c.l.b16 %v227
        %v270 = vunpack.c.h.b16 %v227
        %v271 = vunpack.c.l.b16 %v228
        %v272 = vunpack.c.h.b16 %v228
        %v273 = vunpack.c.l.b16 %v229
        %v274 = vunpack.c.h.b16 %v229
        %v275 = vunpack.c.l.b16 %v230
        %v276 = vunpack.c.h.b16 %v230
        %v277 = vunpack.c.l.b16 %v231
        %v278 = vunpack.c.h.b16 %v231
        %v279 = vunpack.c.l.b16 %v232
        %v280 = vunpack.c.h.b16 %v232
        %v281 = vpack.c.b16 %v257, %v253
        %v282 = vpack.c.b16 %v258, %v254
        %v283 = vpack.c.b16 %v259, %v255
        %v284 = vpack.c.b16 %v260, %v256
        %v285 = vpack.c.b16 %v265, %v261
        %v286 = vpack.c.b16 %v266, %v262
        %v287 = vpack.c.b16 %v267, %v263
        %v288 = vpack.c.b16 %v268, %v264
        %v289 = vpack.c.b16 %v273, %v269
        %v290 = vpack.c.b16 %v274, %v270
        %v291 = vpack.c.b16 %v275, %v271
        %v292 = vpack.c.b16 %v276, %v272
        %v293 = vpack.c.b16 %v277, %v277
        %v294 = vpack.c.b16 %v278, %v278
        %v295 = vpack.c.b16 %v279, %v279
        %v296 = vpack.c.b16 %v280, %v280
        %vm309 = vcmask 408576
        %v311 = vsel %vm309, %v218, 0
        %vm313 = vcmask 1040384
        %v315 = vsel %vm313, %v293, 0
        %v318 = vsel %vm313, %v294, 0
        %v321 = vsel %vm313, %v295, 0
        %v324 = vsel %vm313, %v296, 0
        %326 = vmatprep.subr.bf16.mxu0 0
        %327 = vmatpush1.bf16.msra.mxu0 0
        %328 = vmatprep.subr.bf16.mxu0 0
        %329 = vmatpush1.bf16.msra.mxu0 0
        %330 = vmatprep.subr.bf16.mxu0 0
        %331 = vmatpush1.bf16.msra.mxu0 0
        %332 = vmatprep.subr.bf16.mxu0 0
        %333 = vmatpush1.bf16.msra.mxu0 0
        %334 = vmatprep.subr.bf16.mxu0 %v318
        %335 = vmatpush1.bf16.msra.mxu0 %v315
        %336 = vmatprep.subr.bf16.mxu0 %v290
        %337 = vmatpush1.bf16.msra.mxu0 %v289
        %338 = vmatprep.subr.bf16.mxu0 %v286
        %339 = vmatpush1.bf16.msra.mxu0 %v285
        %340 = vmatprep.subr.bf16.mxu0 %v282
        %341 = vmatpush1.bf16.msra.mxu0 %v281
        %342 = vmatprep.subr.bf16.mxu0 0
        %343 = vmatpush2.bf16.msra.mxu0 0
        %344 = vmatprep.subr.bf16.mxu0 0
        %345 = vmatpush2.bf16.msra.mxu0 0
        %346 = vmatprep.subr.bf16.mxu0 0
        %347 = vmatpush2.bf16.msra.mxu0 0
        %348 = vmatprep.subr.bf16.mxu0 0
        %349 = vmatpush2.bf16.msra.mxu0 0
        %350 = vmatprep.subr.bf16.mxu0 0
        %351 = vmatpush2.bf16.msra.mxu0 0
        %352 = vmatprep.subr.bf16.mxu0 0
        %353 = vmatpush2.bf16.msra.mxu0 0
        %354 = vmatprep.subr.bf16.mxu0 0
        %355 = vmatpush2.bf16.msra.mxu0 0
        %356 = vmatprep.subr.bf16.mxu0 0
        %357 = vmatpush2.bf16.msra.mxu0 0
        %358 = vmatprep.mubr.bf16.mxu0 0
        %359 = vmatmul.mubr.bf16.gmra.mxu0 %v311
        %v360 = vpop.f32.mrf.mxu0
        %v361 = vadd.f32 %v237, %v360
        %v362 = vpop.f32.mrf.mxu0
        %v363 = vadd.f32 %v237, %v362
        %v364 = vpop.f32.mrf.mxu0
        %v365 = vpop.f32.mrf.mxu0
        %366 = vdwg.mxu0
        %367 = vmatprep.subr.bf16.mxu0 0
        %368 = vmatpush1.bf16.msra.mxu0 0
        %369 = vmatprep.subr.bf16.mxu0 0
        %370 = vmatpush1.bf16.msra.mxu0 0
        %371 = vmatprep.subr.bf16.mxu0 0
        %372 = vmatpush1.bf16.msra.mxu0 0
        %373 = vmatprep.subr.bf16.mxu0 0
        %374 = vmatpush1.bf16.msra.mxu0 0
        %375 = vmatprep.subr.bf16.mxu0 %v324
        %376 = vmatpush1.bf16.msra.mxu0 %v321
        %377 = vmatprep.subr.bf16.mxu0 %v292
        %378 = vmatpush1.bf16.msra.mxu0 %v291
        %379 = vmatprep.subr.bf16.mxu0 %v288
        %380 = vmatpush1.bf16.msra.mxu0 %v287
        %381 = vmatprep.subr.bf16.mxu0 %v284
        %382 = vmatpush1.bf16.msra.mxu0 %v283
        %383 = vmatprep.subr.bf16.mxu0 0
        %384 = vmatpush2.bf16.msra.mxu0 0
        %385 = vmatprep.subr.bf16.mxu0 0
        %386 = vmatpush2.bf16.msra.mxu0 0
        %387 = vmatprep.subr.bf16.mxu0 0
        %388 = vmatpush2.bf16.msra.mxu0 0
        %389 = vmatprep.subr.bf16.mxu0 0
        %390 = vmatpush2.bf16.msra.mxu0 0
        %391 = vmatprep.subr.bf16.mxu0 0
        %392 = vmatpush2.bf16.msra.mxu0 0
        %393 = vmatprep.subr.bf16.mxu0 0
        %394 = vmatpush2.bf16.msra.mxu0 0
        %395 = vmatprep.subr.bf16.mxu0 0
        %396 = vmatpush2.bf16.msra.mxu0 0
        %397 = vmatprep.subr.bf16.mxu0 0
        %398 = vmatpush2.bf16.msra.mxu0 0
        %399 = vmatprep.mubr.bf16.mxu0 0
        %400 = vmatmul.mubr.bf16.gmra.mxu0 %v311
        %v401 = vpop.f32.mrf.mxu0
        %v402 = vadd.f32 %v237, %v401
        %v403 = vpop.f32.mrf.mxu0
        %v404 = vadd.f32 %v237, %v403
        %v405 = vpop.f32.mrf.mxu0
        %v406 = vpop.f32.mrf.mxu0
        %407 = vdwg.mxu0
        %v408 = vmax.f32 %v361, 0.0
        %v409 = vmax.f32 %v363, 0.0
        %v410 = vmax.f32 %v402, 0.0
        %v411 = vmax.f32 %v404, 0.0
        %v412 = vpack.c.bf16 %v408, %v408
        %v413 = vpack.c.bf16 %v409, %v409
        %v414 = vpack.c.bf16 %v410, %v410
        %v415 = vpack.c.bf16 %v411, %v411
        %v420 = vcombine.low %v412, %v413
        %v421 = vcombine.low %v414, %v415
        %v423 = vunpack.c.l.s4 1966171168
        %v424 = vunpack.c.0.s8 %v423
        %v425 = vlaneseq
        %v426 = vshrl.u32 %v425, 7
        %v427 = vsub.s32 %v424, %v426
        %v428 = vrot.slane %v420, %v427
        %v430 = vunpack.c.l.s4 1966171168
        %v431 = vunpack.c.0.s8 %v430
        %v432 = vlaneseq
        %v433 = vshrl.u32 %v432, 7
        %v434 = vsub.s32 %v431, %v433
        %v435 = vrot.slane %v421, %v434
        %v436 = vcombine.low %v428, %v435
        %v438 = vunpack.c.l.s4 1966171168
        %v439 = vunpack.c.0.s8 %v438
        %v440 = vlaneseq
        %v441 = vshrl.u32 %v440, 7
        %v442 = vsub.s32 %v439, %v441
        %v443 = vrot.slane %v436, %v442
        %445 = vst [vmem:[%s215] sm:$0xf] %v443
        %s446 = smul.u32 4, %s14
        %p447 = scmp.lt.s32.totalorder %s446, 15
        %s448 = scalar_select %p447, %s446, 15
        %s449 = scalar_lea.vmem %s3, %s448
        // Predicated region
        $region56: #{actor_forward.9} parent=50 // pred_check
          %p450 = pneg %p100
        $region57: #{actor_forward.9} parent=50 // pred_check_branch
          %452 = sbr.rel (%p450) target = $region59
        $region58: #{actor_forward.9} parent=50 // pred_region
          %s453 = smul.u32 4, %s14
        $region59: #{actor_forward.9} parent=50 // pred_fallthru
          _
      $region51: #{actor_forward.9} parent=5 // pred_fallthru
        _
      %p454 = scmp.le.s32.totalorder 2, %s9
      // Predicated region
      $region60: #{actor_forward.9} parent=5 // pred_check
        %p455 = pneg %p454
      $region61: #{actor_forward.9} parent=5 // pred_check_branch
        %457 = sbr.rel (%p455) target = $region63
      $region62: #{actor_forward.9} parent=5 // pred_region
        %s458 = ssub.s32 %s9, 2
        // Predicated region
        $region64: #{actor_forward.9} parent=62 // pred_check
          %p459 = pneg %p106
        $region65: #{actor_forward.9} parent=62 // pred_check_branch
          %461 = sbr.rel (%p459) target = $region67
        $region66: #{actor_forward.9} parent=62 // pred_region
          %s462 = smul.u32 4, %s15
          %p463 = scmp.lt.s32.totalorder %s462, 15
          %s464 = scalar_select %p463, %s462, 15
          %s465 = scalar_lea.vmem %s3, %s464
        $region67: #{actor_forward.9} parent=62 // pred_fallthru
          _
      $region63: #{actor_forward.9} parent=5 // pred_fallthru
        _
    $region6: #{actor_forward.9} parent=1 // loop_footer
      %s13 = sadd.s32 1, %s9
    $region7: #{actor_forward.9} parent=1 // loop_footer_branch
      %8 = sbr.rel target = $region3
    $region8: #{actor_forward.9} parent=1 // loop_exit
      _

// kernel: actor_forward.10
$region0: #{actor_forward.10}
  #allocation0 [shape = 'u32[]', space=smem, size = 0x4, offset = 0x4, fixed_abs, tag = 'smem constant byte address 0x4 - core index']
  #allocation1 [shape = 'u32[144,128]{1,0:T(1,128)}', space=vmem, size = 0x12000, scoped, tag = 'internal scratch']
  #allocation2 [shape = 'f32[1,1]{1,0:T(1,128)S(1)}', space=vmem, size = 0x200, scoped, tag = 'scoped memory for actor_forward.10']
  %s0 = inlined_call_operand.vmem [shape: bf16[1,50], index: 0, kind: input, shape index: {}]
  %s1 = inlined_call_operand.<no memory space> [shape: f32[1,1], index: 1, kind: input, shape index: {}]
  %s2 = inlined_call_operand.vmem [shape: bf16[50,1540], index: 2, kind: input, shape index: {}]
  %s3 = inlined_call_operand.vmem [shape: bf16[1,1540], index: 3, kind: output, shape index: {}]
  %s4 = sld [smem:[#allocation0]]
  $region173: #{actor_forward.10} parent=0
    _
  %s6 = ssub.s32 1, %s4
  %s7 = scalar_select 0, %s6, %s4
  %v8 = vstv %s1
  %9 = vst [vmem:[#allocation2] sm:$0x1] %v8
  $region1: #{actor_forward.10} parent=0
    #allocation3 [shape = 'u8[114688]{0}', space=vmem, size = 0x1c000, scoped, tag = 'input window, operand 2']
    #allocation4 [shape = 'u8[4096]{0}', space=vmem, size = 0x1000, scoped, tag = 'output window, operand 0']
    loop: start=0, step=1, limit=6
    $region2: #{actor_forward.10} parent=1 // loop_pre_header
      _
    $region3: #{actor_forward.10} parent=1 // loop_header
      %s11 = sphi 0, %s15
      %p12 = scmp.ge.s32.totalorder %s11, 6
      %s19 = sphi 0, %s19
      %s21 = sphi 0, %s19
      %s22 = sphi 0, %s21
      %s36 = sphi 0, %s22
      %s40 = sphi 0, %s40
      %s42 = sphi 0, %s40
      %s43 = sphi 0, %s42
      %s57 = sphi 0, %s43
      %s63 = sphi 0, %s65
      %s66 = sphi 0, %s63
      %s67 = sphi 0, %s66
      %s83 = sphi 0, %s67
      %s89 = sphi 0, %s91
      %s92 = sphi 0, %s89
      %s93 = sphi 0, %s92
      %s109 = sphi 0, %s93
    $region4: #{actor_forward.10} parent=1 // loop_header_branch
      %14 = sbr.rel (%p12) target = $region8
    $region5: #{actor_forward.10} parent=1 // loop_body
      %s16 = ssub.s32 %s11, 1
      %s17 = ssub.s32 %s11, 2
      %s18 = sadd.s32 %s11, 1
      %s20 = sadd.s32 %s19, 1
      %p23 = scmp.eq.s32.totalorder %s11, 3
      %p24 = scmp.ne.s32.totalorder %s19, %s21
      %p25 = scmp.eq.s32.totalorder %s11, 0
      %p26 = por %p24, %p25
      %p27 = scmp.ne.s32.totalorder %s19, %s21
      %p28 = scmp.eq.s32.totalorder %s16, 3
      %p29 = por %p27, %p28
      %p30 = scmp.ne.s32.totalorder %s21, %s22
      %p31 = scmp.eq.s32.totalorder %s16, 0
      %p32 = por %p30, %p31
      %p33 = scmp.ne.s32.totalorder %s21, %s22
      %p34 = scmp.eq.s32.totalorder %s17, 3
      %p35 = por %p33, %p34
      %p37 = scmp.ne.s32.totalorder %s22, %s36
      %p38 = scmp.eq.s32.totalorder %s17, 0
      %p39 = por %p37, %p38
      %s41 = sadd.s32 %s40, 1
      %p44 = scmp.eq.s32.totalorder %s11, 3
      %p45 = scmp.ne.s32.totalorder %s40, %s42
      %p46 = scmp.eq.s32.totalorder %s11, 0
      %p47 = por %p45, %p46
      %p48 = scmp.ne.s32.totalorder %s40, %s42
      %p49 = scmp.eq.s32.totalorder %s16, 3
      %p50 = por %p48, %p49
      %p51 = scmp.ne.s32.totalorder %s42, %s43
      %p52 = scmp.eq.s32.totalorder %s16, 0
      %p53 = por %p51, %p52
      %p54 = scmp.ne.s32.totalorder %s42, %s43
      %p55 = scmp.eq.s32.totalorder %s17, 3
      %p56 = por %p54, %p55
      %p58 = scmp.ne.s32.totalorder %s43, %s57
      %p59 = scmp.eq.s32.totalorder %s17, 0
      %p60 = por %p58, %p59
      %s61 = ssub.s32 %s11, %s18
      %p62 = scmp.eq.s32.totalorder %s61, 0
      %s64 = sadd.s32 %s63, 1
      %s65 = scalar_select %p62, %s63, %s64
      %p68 = pneg %p62
      %p69 = scmp.eq.s32.totalorder %s11, 3
      %p70 = por %p68, %p69
      %p71 = scmp.ne.s32.totalorder %s63, %s66
      %p72 = scmp.eq.s32.totalorder %s11, 0
      %p73 = por %p71, %p72
      %p74 = scmp.ne.s32.totalorder %s63, %s66
      %p75 = scmp.eq.s32.totalorder %s16, 3
      %p76 = por %p74, %p75
      %p77 = scmp.ne.s32.totalorder %s66, %s67
      %p78 = scmp.eq.s32.totalorder %s16, 0
      %p79 = por %p77, %p78
      %p80 = scmp.ne.s32.totalorder %s66, %s67
      %p81 = scmp.eq.s32.totalorder %s17, 3
      %p82 = por %p80, %p81
      %p84 = scmp.ne.s32.totalorder %s67, %s83
      %p85 = scmp.eq.s32.totalorder %s17, 0
      %p86 = por %p84, %p85
      %s87 = ssub.s32 %s11, %s18
      %p88 = scmp.eq.s32.totalorder %s87, 0
      %s90 = sadd.s32 %s89, 1
      %s91 = scalar_select %p88, %s89, %s90
      %p94 = pneg %p88
      %p95 = scmp.eq.s32.totalorder %s11, 3
      %p96 = por %p94, %p95
      %p97 = scmp.ne.s32.totalorder %s89, %s92
      %p98 = scmp.eq.s32.totalorder %s11, 0
      %p99 = por %p97, %p98
      %p100 = scmp.ne.s32.totalorder %s89, %s92
      %p101 = scmp.eq.s32.totalorder %s16, 3
      %p102 = por %p100, %p101
      %p103 = scmp.ne.s32.totalorder %s92, %s93
      %p104 = scmp.eq.s32.totalorder %s16, 0
      %p105 = por %p103, %p104
      %p106 = scmp.ne.s32.totalorder %s92, %s93
      %p107 = scmp.eq.s32.totalorder %s17, 3
      %p108 = por %p106, %p107
      %p110 = scmp.ne.s32.totalorder %s93, %s109
      %p111 = scmp.eq.s32.totalorder %s17, 0
      %p112 = por %p110, %p111
      %p113 = scmp.le.s32.totalorder 1, %s11
      %p114 = scmp.lt.s32.totalorder %s11, 5
      %p115 = pnand %p113, %p114
      %p116 = pneg %p115
      // Predicated region
      $region9: #{actor_forward.10} parent=5 // pred_check
        _
      $region10: #{actor_forward.10} parent=5 // pred_check_branch
        %118 = sbr.rel (%p115) target = $region12
      $region11: #{actor_forward.10} parent=5 // pred_region
        %s119 = ssub.s32 %s11, 1
        // Predicated region
        $region13: #{actor_forward.10} parent=11 // pred_check
          %p120 = pneg %p32
        $region14: #{actor_forward.10} parent=11 // pred_check_branch
          %122 = sbr.rel (%p120) target = $region16
        $region15: #{actor_forward.10} parent=11 // pred_region
          _
        $region16: #{actor_forward.10} parent=11 // pred_fallthru
          _
        // Predicated region
        $region17: #{actor_forward.10} parent=11 // pred_check
          %p123 = pneg %p53
        $region18: #{actor_forward.10} parent=11 // pred_check_branch
          %125 = sbr.rel (%p123) target = $region20
        $region19: #{actor_forward.10} parent=11 // pred_region
          _
        $region20: #{actor_forward.10} parent=11 // pred_fallthru
          _
      $region12: #{actor_forward.10} parent=5 // pred_fallthru
        _
      %p126 = scmp.lt.s32.totalorder %s11, 4
      // Predicated region
      $region21: #{actor_forward.10} parent=5 // pred_check
        %p127 = pneg %p126
      $region22: #{actor_forward.10} parent=5 // pred_check_branch
        %129 = sbr.rel (%p127) target = $region24
      $region23: #{actor_forward.10} parent=5 // pred_region
        // Predicated region
        $region25: #{actor_forward.10} parent=23 // pred_check
          %p130 = pneg %p73
        $region26: #{actor_forward.10} parent=23 // pred_check_branch
          %132 = sbr.rel (%p130) target = $region28
        $region27: #{actor_forward.10} parent=23 // pred_region
          %s133 = sand.u32 %s63, 1
          %s134 = sand.u32 %s63, 1
          %s135 = smul.addr %s134, 112
          %s136 = scalar_lea.vmem [#allocation3], %s135
          %s137 = smul.u32 4, %s11
          %s138 = ssub.s32 13, %s137
          %p139 = scmp.lt.s32.totalorder %s138, 4
          %s140 = scalar_select %p139, %s138, 4
          %s141 = smul.u32 448, %s140
          %p142 = scmp.ne.s32.totalorder 0, %s141
          %s143 = smul.addr %s137, 4
          %s144 = scalar_lea.vmem %s2, %s143
          %s145 = smul.u32 %s140, 4
          // Predicated region
          $region29: #{actor_forward.10} parent=27 // pred_check
            %p146 = pneg %p142
          $region30: #{actor_forward.10} parent=27 // pred_check_branch
            %148 = sbr.rel (%p146) target = $region32
          $region31: #{actor_forward.10} parent=27 // pred_region
            %p149 = scmp.lt.u32.totalorder %s145, 8
            %p150 = pneg %p149
            // Predicated region
            $region33: #{actor_forward.10} parent=31 // pred_check
              _
            $region34: #{actor_forward.10} parent=31 // pred_check_branch
              %152 = sbr.rel (%p149) target = $region36
            $region35: #{actor_forward.10} parent=31 // pred_region
              %s180 = sand.u32 %s145, 7
              %p181 = scmp.eq.s32.totalorder %s180, 0
              // Predicated region
              $region48: #{actor_forward.10} parent=35 // pred_check
                %p182 = pneg %p181
              $region49: #{actor_forward.10} parent=35 // pred_check_branch
                %184 = sbr.rel (%p182) target = $region51
              $region50: #{actor_forward.10} parent=35 // pred_region
                %s185 = sshrl.u32 %s145, 3
                %s186 = sdiv.u32.pop %s185, 12
                %s187 = srem.u32.pop %s185, 12
                // While loop
                $region52: #{actor_forward.10} parent=50 // loop_pre_header
                  _
                $region53: #{actor_forward.10} parent=50 // loop_header
                  %s191 = sphi 0, %s193
                  %p192 = scmp.ge.s32.totalorder %s191, %s186
                  %s196 = sphi 0, %s369
                  %s197 = sphi %s144, %s372
                  %s198 = sphi %s136, %s373
                $region54: #{actor_forward.10} parent=50 // loop_header_branch
                  %195 = sbr.rel (%p192) target = $region58
                $region55: #{actor_forward.10} parent=50 // loop_body
                  %v199 = vld [vmem:[%s197] sm:$0xff]
                  %200 = vst [vmem:[%s198] sm:$0xff] %v199
                  %v201 = vld [vmem:[%s197 + $0x8] sm:$0xff]
                  %202 = vst [vmem:[%s198 + $0x8] sm:$0xff] %v201
                  %v203 = vld [vmem:[%s197 + $0x10] sm:$0xff]
                  %204 = vst [vmem:[%s198 + $0x10] sm:$0xff] %v203
                  %v205 = vld [vmem:[%s197 + $0x18] sm:$0xff]
                  %206 = vst [vmem:[%s198 + $0x18] sm:$0xff] %v205
                  %v207 = vld [vmem:[%s197 + $0x20] sm:$0xff]
                  %208 = vst [vmem:[%s198 + $0x20] sm:$0xff] %v207
                  %v209 = vld [vmem:[%s197 + $0x28] sm:$0xff]
                  %210 = vst [vmem:[%s198 + $0x28] sm:$0xff] %v209
                  %v211 = vld [vmem:[%s197 + $0x30] sm:$0xff]
                  %212 = vst [vmem:[%s198 + $0x30] sm:$0xff] %v211
                  %v213 = vld [vmem:[%s197 + $0x38] sm:$0xff]
                  %214 = vst [vmem:[%s198 + $0x38] sm:$0xff] %v213
                  %v215 = vld [vmem:[%s197 + $0x40] sm:$0xff]
                  %216 = vst [vmem:[%s198 + $0x40] sm:$0xff] %v215
                  %v217 = vld [vmem:[%s197 + $0x48] sm:$0xff]
                  %218 = vst [vmem:[%s198 + $0x48] sm:$0xff] %v217
                  %v219 = vld [vmem:[%s197 + $0x50] sm:$0xff]
                  %220 = vst [vmem:[%s198 + $0x50] sm:$0xff] %v219
                  %v221 = vld [vmem:[%s197 + $0x58] sm:$0xff]
                  %222 = vst [vmem:[%s198 + $0x58] sm:$0xff] %v221
                  %v223 = vld [vmem:[%s197 + $0x34] sm:$0xff]
                  %224 = vst [vmem:[%s198 + $0x10] sm:$0xff] %v223
                  %v225 = vld [vmem:[%s197 + $0x3c] sm:$0xff]
                  %226 = vst [vmem:[%s198 + $0x18] sm:$0xff] %v225
                  %v227 = vld [vmem:[%s197 + $0x44] sm:$0xff]
                  %228 = vst [vmem:[%s198 + $0x20] sm:$0xff] %v227
                  %v229 = vld [vmem:[%s197 + $0x4c] sm:$0xff]
                  %230 = vst [vmem:[%s198 + $0x28] sm:$0xff] %v229
                  %v231 = vld [vmem:[%s197 + $0x54] sm:$0xff]
                  %232 = vst [vmem:[%s198 + $0x30] sm:$0xff] %v231
                  %v233 = vld [vmem:[%s197 + $0x5c] sm:$0xff]
                  %234 = vst [vmem:[%s198 + $0x38] sm:$0xff] %v233
                  %v235 = vld [vmem:[%s197 + $0x64] sm:$0xff]
                  %236 = vst [vmem:[%s198 + $0x40] sm:$0xff] %v235
                  %v237 = vld [vmem:[%s197 + $0x6c] sm:$0xff]
                  %238 = vst [vmem:[%s198 + $0x48] sm:$0xff] %v237
                  %v239 = vld [vmem:[%s197 + $0x74] sm:$0xff]
                  %240 = vst [vmem:[%s198 + $0x50] sm:$0xff] %v239
                  %v241 = vld [vmem:[%s197 + $0x7c] sm:$0xff]
                  %242 = vst [vmem:[%s198 + $0x58] sm:$0xff] %v241
                  %v243 = vld [vmem:[%s197 + $0x84] sm:$0xff]
                  %244 = vst [vmem:[%s198 + $0x60] sm:$0xff] %v243
                  %v245 = vld [vmem:[%s197 + $0x8c] sm:$0xff]
                  %246 = vst [vmem:[%s198 + $0x68] sm:$0xff] %v245
                  %v247 = vld [vmem:[%s197 + $0x68] sm:$0xff]
                  %248 = vst [vmem:[%s198 + $0x20] sm:$0xff] %v247
                  %v249 = vld [vmem:[%s197 + $0x70] sm:$0xff]
                  %250 = vst [vmem:[%s198 + $0x28] sm:$0xff] %v249
                  %v251 = vld [vmem:[%s197 + $0x78] sm:$0xff]
                  %252 = vst [vmem:[%s198 + $0x30] sm:$0xff] %v251
                  %v253 = vld [vmem:[%s197 + $0x80] sm:$0xff]
                  %254 = vst [vmem:[%s198 + $0x38] sm:$0xff] %v253
                  %v255 = vld [vmem:[%s197 + $0x88] sm:$0xff]
                  %256 = vst [vmem:[%s198 + $0x40] sm:$0xff] %v255
                  %v257 = vld [vmem:[%s197 + $0x90] sm:$0xff]
                  %258 = vst [vmem:[%s198 + $0x48] sm:$0xff] %v257
                  %v259 = vld [vmem:[%s197 + $0x98] sm:$0xff]
                  %260 = vst [vmem:[%s198 + $0x50] sm:$0xff] %v259
                  %v261 = vld [vmem:[%s197 + $0xa0] sm:$0xff]
                  %262 = vst [vmem:[%s198 + $0x58] sm:$0xff] %v261
                  %v263 = vld [vmem:[%s197 + $0xa8] sm:$0xff]
                  %264 = vst [vmem:[%s198 + $0x60] sm:$0xff] %v263
                  %v265 = vld [vmem:[%s197 + $0xb0] sm:$0xff]
                  %266 = vst [vmem:[%s198 + $0x68] sm:$0xff] %v265
                  %v267 = vld [vmem:[%s197 + $0xb8] sm:$0xff]
                  %268 = vst [vmem:[%s198 + $0x70] sm:$0xff] %v267
                  %v269 = vld [vmem:[%s197 + $0xc0] sm:$0xff]
                  %270 = vst [vmem:[%s198 + $0x78] sm:$0xff] %v269
                  %v271 = vld [vmem:[%s197 + $0x9c] sm:$0xff]
                  %272 = vst [vmem:[%s198 + $0x30] sm:$0xff] %v271
                  %v273 = vld [vmem:[%s197 + $0xa4] sm:$0xff]
                  %274 = vst [vmem:[%s198 + $0x38] sm:$0xff] %v273
                  %v275 = vld [vmem:[%s197 + $0xac] sm:$0xff]
                  %276 = vst [vmem:[%s198 + $0x40] sm:$0xff] %v275
                  %v277 = vld [vmem:[%s197 + $0xb4] sm:$0xff]
                  %278 = vst [vmem:[%s198 + $0x48] sm:$0xff] %v277
                  %v279 = vld [vmem:[%s197 + $0xbc] sm:$0xff]
                  %280 = vst [vmem:[%s198 + $0x50] sm:$0xff] %v279
                  %v281 = vld [vmem:[%s197 + $0xc4] sm:$0xff]
                  %282 = vst [vmem:[%s198 + $0x58] sm:$0xff] %v281
                  %v283 = vld [vmem:[%s197 + $0xcc] sm:$0xff]
                  %284 = vst [vmem:[%s198 + $0x60] sm:$0xff] %v283
                  %v285 = vld [vmem:[%s197 + $0xd4] sm:$0xff]
                  %286 = vst [vmem:[%s198 + $0x68] sm:$0xff] %v285
                  %v287 = vld [vmem:[%s197 + $0xdc] sm:$0xff]
                  %288 = vst [vmem:[%s198 + $0x70] sm:$0xff] %v287
                  %v289 = vld [vmem:[%s197 + $0xe4] sm:$0xff]
                  %290 = vst [vmem:[%s198 + $0x78] sm:$0xff] %v289
                  %v291 = vld [vmem:[%s197 + $0xec] sm:$0xff]
                  %292 = vst [vmem:[%s198 + $0x80] sm:$0xff] %v291
                  %v293 = vld [vmem:[%s197 + $0xf4] sm:$0xff]
                  %294 = vst [vmem:[%s198 + $0x88] sm:$0xff] %v293
                  %v295 = vld [vmem:[%s197 + $0xd0] sm:$0xff]
                  %296 = vst [vmem:[%s198 + $0x40] sm:$0xff] %v295
                  %v297 = vld [vmem:[%s197 + $0xd8] sm:$0xff]
                  %298 = vst [vmem:[%s198 + $0x48] sm:$0xff] %v297
                  %v299 = vld [vmem:[%s197 + $0xe0] sm:$0xff]
                  %300 = vst [vmem:[%s198 + $0x50] sm:$0xff] %v299
                  %v301 = vld [vmem:[%s197 + $0xe8] sm:$0xff]
                  %302 = vst [vmem:[%s198 + $0x58] sm:$0xff] %v301
                  %v303 = vld [vmem:[%s197 + $0xf0] sm:$0xff]
                  %304 = vst [vmem:[%s198 + $0x60] sm:$0xff] %v303
                  %v305 = vld [vmem:[%s197 + $0xf8] sm:$0xff]
                  %306 = vst [vmem:[%s198 + $0x68] sm:$0xff] %v305
                  %v307 = vld [vmem:[%s197 + $0x100] sm:$0xff]
                  %308 = vst [vmem:[%s198 + $0x70] sm:$0xff] %v307
                  %v309 = vld [vmem:[%s197 + $0x108] sm:$0xff]
                  %310 = vst [vmem:[%s198 + $0x78] sm:$0xff] %v309
                  %v311 = vld [vmem:[%s197 + $0x110] sm:$0xff]
                  %312 = vst [vmem:[%s198 + $0x80] sm:$0xff] %v311
                  %v313 = vld [vmem:[%s197 + $0x118] sm:$0xff]
                  %314 = vst [vmem:[%s198 + $0x88] sm:$0xff] %v313
                  %v315 = vld [vmem:[%s197 + $0x120] sm:$0xff]
                  %316 = vst [vmem:[%s198 + $0x90] sm:$0xff] %v315
                  %v317 = vld [vmem:[%s197 + $0x128] sm:$0xff]
                  %318 = vst [vmem:[%s198 + $0x98] sm:$0xff] %v317
                  %v319 = vld [vmem:[%s197 + $0x104] sm:$0xff]
                  %320 = vst [vmem:[%s198 + $0x50] sm:$0xff] %v319
                  %v321 = vld [vmem:[%s197 + $0x10c] sm:$0xff]
                  %322 = vst [vmem:[%s198 + $0x58] sm:$0xff] %v321
                  %v323 = vld [vmem:[%s197 + $0x114] sm:$0xff]
                  %324 = vst [vmem:[%s198 + $0x60] sm:$0xff] %v323
                  %v325 = vld [vmem:[%s197 + $0x11c] sm:$0xff]
                  %326 = vst [vmem:[%s198 + $0x68] sm:$0xff] %v325
                  %v327 = vld [vmem:[%s197 + $0x124] sm:$0xff]
                  %328 = vst [vmem:[%s198 + $0x70] sm:$0xff] %v327
                  %v329 = vld [vmem:[%s197 + $0x12c] sm:$0xff]
                  %330 = vst [vmem:[%s198 + $0x78] sm:$0xff] %v329
                  %v331 = vld [vmem:[%s197 + $0x134] sm:$0xff]
                  %332 = vst [vmem:[%s198 + $0x80] sm:$0xff] %v331
                  %v333 = vld [vmem:[%s197 + $0x13c] sm:$0xff]
                  %334 = vst [vmem:[%s198 + $0x88] sm:$0xff] %v333
                  %v335 = vld [vmem:[%s197 + $0x144] sm:$0xff]
                  %336 = vst [vmem:[%s198 + $0x90] sm:$0xff] %v335
                  %v337 = vld [vmem:[%s197 + $0x14c] sm:$0xff]
                  %338 = vst [vmem:[%s198 + $0x98] sm:$0xff] %v337
                  %v339 = vld [vmem:[%s197 + $0x154] sm:$0xff]
                  %340 = vst [vmem:[%s198 + $0xa0] sm:$0xff] %v339
                  %v341 = vld [vmem:[%s197 + $0x15c] sm:$0xff]
                  %342 = vst [vmem:[%s198 + $0xa8] sm:$0xff] %v341
                  %v343 = vld [vmem:[%s197 + $0x138] sm:$0xff]
                  %344 = vst [vmem:[%s198 + $0x60] sm:$0xff] %v343
                  %v345 = vld [vmem:[%s197 + $0x140] sm:$0xff]
                  %346 = vst [vmem:[%s198 + $0x68] sm:$0xff] %v345
                  %v347 = vld [vmem:[%s197 + $0x148] sm:$0xff]
                  %348 = vst [vmem:[%s198 + $0x70] sm:$0xff] %v347
                  %v349 = vld [vmem:[%s197 + $0x150] sm:$0xff]
                  %350 = vst [vmem:[%s198 + $0x78] sm:$0xff] %v349
                  %v351 = vld [vmem:[%s197 + $0x158] sm:$0xff]
                  %352 = vst [vmem:[%s198 + $0x80] sm:$0xff] %v351
                  %v353 = vld [vmem:[%s197 + $0x160] sm:$0xff]
                  %354 = vst [vmem:[%s198 + $0x88] sm:$0xff] %v353
                  %v355 = vld [vmem:[%s197 + $0x168] sm:$0xff]
                  %356 = vst [vmem:[%s198 + $0x90] sm:$0xff] %v355
                  %v357 = vld [vmem:[%s197 + $0x170] sm:$0xff]
                  %358 = vst [vmem:[%s198 + $0x98] sm:$0xff] %v357
                  %v359 = vld [vmem:[%s197 + $0x178] sm:$0xff]
                  %360 = vst [vmem:[%s198 + $0xa0] sm:$0xff] %v359
                  %v361 = vld [vmem:[%s197 + $0x180] sm:$0xff]
                  %362 = vst [vmem:[%s198 + $0xa8] sm:$0xff] %v361
                  %v363 = vld [vmem:[%s197 + $0x188] sm:$0xff]
                  %364 = vst [vmem:[%s198 + $0xb0] sm:$0xff] %v363
                  %v365 = vld [vmem:[%s197 + $0x190] sm:$0xff]
                  %366 = vst [vmem:[%s198 + $0xb8] sm:$0xff] %v365
                  %s367 = sadd.s32 1, %s196
                  %p368 = scmp.ge.s32.totalorder %s367, %s186
                  %s369 = scalar_select %p368, 0, %s367
                  %s370 = smul.u32 %s369, 96
                  %s371 = smul.u32 %s369, 96
                  %s372 = scalar_lea.vmem %s144, %s370
                  %s373 = scalar_lea.vmem %s136, %s371 [#allocation3]
                $region56: #{actor_forward.10} parent=50 // loop_footer
                  %s193 = sadd.s32 %s191, 1
                $region57: #{actor_forward.10} parent=50 // loop_footer_branch
                  %190 = sbr.rel target = $region53
                $region58: #{actor_forward.10} parent=50 // loop_exit
                  _
                %s374 = sdiv.u32.pop %s185, 12
                %s375 = srem.u32.pop %s185, 12
                %s376 = smul.u32 %s374, 12
                %s377 = smul.u32 128, %s376
                %s378 = sshra.s32 %s377, 4
                %s379 = scalar_lea.vmem %s144, %s378
                %s380 = smul.u32 128, %s376
                %s381 = sshra.s32 %s380, 4
                %s382 = scalar_lea.vmem %s136, %s381 [#allocation3]
                // While loop
                $region59: #{actor_forward.10} parent=50 // loop_pre_header
                  _
                $region60: #{actor_forward.10} parent=50 // loop_header
                  %s386 = sphi 0, %s388
                  %p387 = scmp.ge.s32.totalorder %s386, %s375
                  %s391 = sphi 0, %s410
                  %s392 = sphi %s379, %s413
                  %s393 = sphi %s382, %s414
                $region61: #{actor_forward.10} parent=50 // loop_header_branch
                  %390 = sbr.rel (%p387) target = $region65
                $region62: #{actor_forward.10} parent=50 // loop_body
                  %v394 = vld [vmem:[%s392] sm:$0xff]
                  %395 = vst [vmem:[%s393] sm:$0xff] %v394
                  %v396 = vld [vmem:[%s392 + $0x34] sm:$0xff]
                  %397 = vst [vmem:[%s393 + $0x10] sm:$0xff] %v396
                  %v398 = vld [vmem:[%s392 + $0x68] sm:$0xff]
                  %399 = vst [vmem:[%s393 + $0x20] sm:$0xff] %v398
                  %v400 = vld [vmem:[%s392 + $0x9c] sm:$0xff]
                  %401 = vst [vmem:[%s393 + $0x30] sm:$0xff] %v400
                  %v402 = vld [vmem:[%s392 + $0xd0] sm:$0xff]
                  %403 = vst [vmem:[%s393 + $0x40] sm:$0xff] %v402
                  %v404 = vld [vmem:[%s392 + $0x104] sm:$0xff]
                  %405 = vst [vmem:[%s393 + $0x50] sm:$0xff] %v404
                  %v406 = vld [vmem:[%s392 + $0x138] sm:$0xff]
                  %407 = vst [vmem:[%s393 + $0x60] sm:$0xff] %v406
                  %s408 = sadd.s32 1, %s391
                  %p409 = scmp.ge.s32.totalorder %s408, %s375
                  %s410 = scalar_select %p409, 0, %s408
                  %s411 = smul.u32 %s410, 8
                  %s412 = smul.u32 %s410, 8
                  %s413 = scalar_lea.vmem %s379, %s411
                  %s414 = scalar_lea.vmem %s382, %s412 [#allocation3]
                $region63: #{actor_forward.10} parent=50 // loop_footer
                  %s388 = sadd.s32 %s386, 1
                $region64: #{actor_forward.10} parent=50 // loop_footer_branch
                  %385 = sbr.rel target = $region60
                $region65: #{actor_forward.10} parent=50 // loop_exit
                  _
              $region51: #{actor_forward.10} parent=35 // pred_fallthru
                _
              %p415 = pneg %p181
              // Predicated region
              $region66: #{actor_forward.10} parent=35 // pred_check
                _
              $region67: #{actor_forward.10} parent=35 // pred_check_branch
                %417 = sbr.rel (%p181) target = $region69
              $region68: #{actor_forward.10} parent=35 // pred_region
                %s418 = sand.u32 %s145, 7
                %s419 = ssub.s32 %s145, %s418
                %s420 = scalar_lea.vmem %s144, %s419
                %s421 = ssub.s32 %s145, %s418
                %s422 = scalar_lea.vmem %s136, %s421 [#allocation3]
                %s423 = sshrl.u32 %s145, 3
                %s424 = sdiv.u32.pop %s423, 12
                %s425 = srem.u32.pop %s423, 12
                // While loop
                $region70: #{actor_forward.10} parent=68 // loop_pre_header
                  _
                $region71: #{actor_forward.10} parent=68 // loop_header
                  %s429 = sphi 0, %s431
                  %p430 = scmp.ge.s32.totalorder %s429, %s424
                  %s434 = sphi 0, %s607
                  %s435 = sphi %s144, %s610
                  %s436 = sphi %s136, %s611
                $region72: #{actor_forward.10} parent=68 // loop_header_branch
                  %433 = sbr.rel (%p430) target = $region76
                $region73: #{actor_forward.10} parent=68 // loop_body
                  %v437 = vld [vmem:[%s435] sm:$0xff]
                  %438 = vst [vmem:[%s436] sm:$0xff] %v437
                  %v439 = vld [vmem:[%s435 + $0x8] sm:$0xff]
                  %440 = vst [vmem:[%s436 + $0x8] sm:$0xff] %v439
                  %v441 = vld [vmem:[%s435 + $0x10] sm:$0xff]
                  %442 = vst [vmem:[%s436 + $0x10] sm:$0xff] %v441
                  %v443 = vld [vmem:[%s435 + $0x18] sm:$0xff]
                  %444 = vst [vmem:[%s436 + $0x18] sm:$0xff] %v443
                  %v445 = vld [vmem:[%s435 + $0x20] sm:$0xff]
                  %446 = vst [vmem:[%s436 + $0x20] sm:$0xff] %v445
                  %v447 = vld [vmem:[%s435 + $0x28] sm:$0xff]
                  %448 = vst [vmem:[%s436 + $0x28] sm:$0xff] %v447
                  %v449 = vld [vmem:[%s435 + $0x30] sm:$0xff]
                  %450 = vst [vmem:[%s436 + $0x30] sm:$0xff] %v449
                  %v451 = vld [vmem:[%s435 + $0x38] sm:$0xff]
                  %452 = vst [vmem:[%s436 + $0x38] sm:$0xff] %v451
                  %v453 = vld [vmem:[%s435 + $0x40] sm:$0xff]
                  %454 = vst [vmem:[%s436 + $0x40] sm:$0xff] %v453
                  %v455 = vld [vmem:[%s435 + $0x48] sm:$0xff]
                  %456 = vst [vmem:[%s436 + $0x48] sm:$0xff] %v455
                  %v457 = vld [vmem:[%s435 + $0x50] sm:$0xff]
                  %458 = vst [vmem:[%s436 + $0x50] sm:$0xff] %v457
                  %v459 = vld [vmem:[%s435 + $0x58] sm:$0xff]
                  %460 = vst [vmem:[%s436 + $0x58] sm:$0xff] %v459
                  %v461 = vld [vmem:[%s435 + $0x34] sm:$0xff]
                  %462 = vst [vmem:[%s436 + $0x10] sm:$0xff] %v461
                  %v463 = vld [vmem:[%s435 + $0x3c] sm:$0xff]
                  %464 = vst [vmem:[%s436 + $0x18] sm:$0xff] %v463
                  %v465 = vld [vmem:[%s435 + $0x44] sm:$0xff]
                  %466 = vst [vmem:[%s436 + $0x20] sm:$0xff] %v465
                  %v467 = vld [vmem:[%s435 + $0x4c] sm:$0xff]
                  %468 = vst [vmem:[%s436 + $0x28] sm:$0xff] %v467
                  %v469 = vld [vmem:[%s435 + $0x54] sm:$0xff]
                  %470 = vst [vmem:[%s436 + $0x30] sm:$0xff] %v469
                  %v471 = vld [vmem:[%s435 + $0x5c] sm:$0xff]
                  %472 = vst [vmem:[%s436 + $0x38] sm:$0xff] %v471
                  %v473 = vld [vmem:[%s435 + $0x64] sm:$0xff]
                  %474 = vst [vmem:[%s436 + $0x40] sm:$0xff] %v473
                  %v475 = vld [vmem:[%s435 + $0x6c] sm:$0xff]
                  %476 = vst [vmem:[%s436 + $0x48] sm:$0xff] %v475
                  %v477 = vld [vmem:[%s435 + $0x74] sm:$0xff]
                  %478 = vst [vmem:[%s436 + $0x50] sm:$0xff] %v477
                  %v479 = vld [vmem:[%s435 + $0x7c] sm:$0xff]
                  %480 = vst [vmem:[%s436 + $0x58] sm:$0xff] %v479
                  %v481 = vld [vmem:[%s435 + $0x84] sm:$0xff]
                  %482 = vst [vmem:[%s436 + $0x60] sm:$0xff] %v481
                  %v483 = vld [vmem:[%s435 + $0x8c] sm:$0xff]
                  %484 = vst [vmem:[%s436 + $0x68] sm:$0xff] %v483
                  %v485 = vld [vmem:[%s435 + $0x68] sm:$0xff]
                  %486 = vst [vmem:[%s436 + $0x20] sm:$0xff] %v485
                  %v487 = vld [vmem:[%s435 + $0x70] sm:$0xff]
                  %488 = vst [vmem:[%s436 + $0x28] sm:$0xff] %v487
                  %v489 = vld [vmem:[%s435 + $0x78] sm:$0xff]
                  %490 = vst [vmem:[%s436 + $0x30] sm:$0xff] %v489
                  %v491 = vld [vmem:[%s435 + $0x80] sm:$0xff]
                  %492 = vst [vmem:[%s436 + $0x38] sm:$0xff] %v491
                  %v493 = vld [vmem:[%s435 + $0x88] sm:$0xff]
                  %494 = vst [vmem:[%s436 + $0x40] sm:$0xff] %v493
                  %v495 = vld [vmem:[%s435 + $0x90] sm:$0xff]
                  %496 = vst [vmem:[%s436 + $0x48] sm:$0xff] %v495
                  %v497 = vld [vmem:[%s435 + $0x98] sm:$0xff]
                  %498 = vst [vmem:[%s436 + $0x50] sm:$0xff] %v497
                  %v499 = vld [vmem:[%s435 + $0xa0] sm:$0xff]
                  %500 = vst [vmem:[%s436 + $0x58] sm:$0xff] %v499
                  %v501 = vld [vmem:[%s435 + $0xa8] sm:$0xff]
                  %502 = vst [vmem:[%s436 + $0x60] sm:$0xff] %v501
                  %v503 = vld [vmem:[%s435 + $0xb0] sm:$0xff]
                  %504 = vst [vmem:[%s436 + $0x68] sm:$0xff] %v503
                  %v505 = vld [vmem:[%s435 + $0xb8] sm:$0xff]
                  %506 = vst [vmem:[%s436 + $0x70] sm:$0xff] %v505
                  %v507 = vld [vmem:[%s435 + $0xc0] sm:$0xff]
                  %508 = vst [vmem:[%s436 + $0x78] sm:$0xff] %v507
                  %v509 = vld [vmem:[%s435 + $0x9c] sm:$0xff]
                  %510 = vst [vmem:[%s436 + $0x30] sm:$0xff] %v509
                  %v511 = vld [vmem:[%s435 + $0xa4] sm:$0xff]
                  %512 = vst [vmem:[%s436 + $0x38] sm:$0xff] %v511
                  %v513 = vld [vmem:[%s435 + $0xac] sm:$0xff]
                  %514 = vst [vmem:[%s436 + $0x40] sm:$0xff] %v513
                  %v515 = vld [vmem:[%s435 + $0xb4] sm:$0xff]
                  %516 = vst [vmem:[%s436 + $0x48] sm:$0xff] %v515
                  %v517 = vld [vmem:[%s435 + $0xbc] sm:$0xff]
                  %518 = vst [vmem:[%s436 + $0x50] sm:$0xff] %v517
                  %v519 = vld [vmem:[%s435 + $0xc4] sm:$0xff]
                  %520 = vst [vmem:[%s436 + $0x58] sm:$0xff] %v519
                  %v521 = vld [vmem:[%s435 + $0xcc] sm:$0xff]
                  %522 = vst [vmem:[%s436 + $0x60] sm:$0xff] %v521
                  %v523 = vld [vmem:[%s435 + $0xd4] sm:$0xff]
                  %524 = vst [vmem:[%s436 + $0x68] sm:$0xff] %v523
                  %v525 = vld [vmem:[%s435 + $0xdc] sm:$0xff]
                  %526 = vst [vmem:[%s436 + $0x70] sm:$0xff] %v525
                  %v527 = vld [vmem:[%s435 + $0xe4] sm:$0xff]
                  %528 = vst [vmem:[%s436 + $0x78] sm:$0xff] %v527
                  %v529 = vld [vmem:[%s435 + $0xec] sm:$0xff]
                  %530 = vst [vmem:[%s436 + $0x80] sm:$0xff] %v529
                  %v531 = vld [vmem:[%s435 + $0xf4] sm:$0xff]
                  %532 = vst [vmem:[%s436 + $0x88] sm:$0xff] %v531
                  %v533 = vld [vmem:[%s435 + $0xd0] sm:$0xff]
                  %534 = vst [vmem:[%s436 + $0x40] sm:$0xff] %v533
                  %v535 = vld [vmem:[%s435 + $0xd8] sm:$0xff]
                  %536 = vst [vmem:[%s436 + $0x48] sm:$0xff] %v535
                  %v537 = vld [vmem:[%s435 + $0xe0] sm:$0xff]
                  %538 = vst [vmem:[%s436 + $0x50] sm:$0xff] %v537
                  %v539 = vld [vmem:[%s435 + $0xe8] sm:$0xff]
                  %540 = vst [vmem:[%s436 + $0x58] sm:$0xff] %v539
                  %v541 = vld [vmem:[%s435 + $0xf0] sm:$0xff]
                  %542 = vst [vmem:[%s436 + $0x60] sm:$0xff] %v541
                  %v543 = vld [vmem:[%s435 + $0xf8] sm:$0xff]
                  %544 = vst [vmem:[%s436 + $0x68] sm:$0xff] %v543
                  %v545 = vld [vmem:[%s435 + $0x100] sm:$0xff]
                  %546 = vst [vmem:[%s436 + $0x70] sm:$0xff] %v545
                  %v547 = vld [vmem:[%s435 + $0x108] sm:$0xff]
                  %548 = vst [vmem:[%s436 + $0x78] sm:$0xff] %v547
                  %v549 = vld [vmem:[%s435 + $0x110] sm:$0xff]
                  %550 = vst [vmem:[%s436 + $0x80] sm:$0xff] %v549
                  %v551 = vld [vmem:[%s435 + $0x118] sm:$0xff]
                  %552 = vst [vmem:[%s436 + $0x88] sm:$0xff] %v551
                  %v553 = vld [vmem:[%s435 + $0x120] sm:$0xff]
                  %554 = vst [vmem:[%s436 + $0x90] sm:$0xff] %v553
                  %v555 = vld [vmem:[%s435 + $0x128] sm:$0xff]
                  %556 = vst [vmem:[%s436 + $0x98] sm:$0xff] %v555
                  %v557 = vld [vmem:[%s435 + $0x104] sm:$0xff]
                  %558 = vst [vmem:[%s436 + $0x50] sm:$0xff] %v557
                  %v559 = vld [vmem:[%s435 + $0x10c] sm:$0xff]
                  %560 = vst [vmem:[%s436 + $0x58] sm:$0xff] %v559
                  %v561 = vld [vmem:[%s435 + $0x114] sm:$0xff]
                  %562 = vst [vmem:[%s436 + $0x60] sm:$0xff] %v561
                  %v563 = vld [vmem:[%s435 + $0x11c] sm:$0xff]
                  %564 = vst [vmem:[%s436 + $0x68] sm:$0xff] %v563
                  %v565 = vld [vmem:[%s435 + $0x124] sm:$0xff]
                  %566 = vst [vmem:[%s436 + $0x70] sm:$0xff] %v565
                  %v567 = vld [vmem:[%s435 + $0x12c] sm:$0xff]
                  %568 = vst [vmem:[%s436 + $0x78] sm:$0xff] %v567
                  %v569 = vld [vmem:[%s435 + $0x134] sm:$0xff]
                  %570 = vst [vmem:[%s436 + $0x80] sm:$0xff] %v569
                  %v571 = vld [vmem:[%s435 + $0x13c] sm:$0xff]
                  %572 = vst [vmem:[%s436 + $0x88] sm:$0xff] %v571
                  %v573 = vld [vmem:[%s435 + $0x144] sm:$0xff]
                  %574 = vst [vmem:[%s436 + $0x90] sm:$0xff] %v573
                  %v575 = vld [vmem:[%s435 + $0x14c] sm:$0xff]
                  %576 = vst [vmem:[%s436 + $0x98] sm:$0xff] %v575
                  %v577 = vld [vmem:[%s435 + $0x154] sm:$0xff]
                  %578 = vst [vmem:[%s436 + $0xa0] sm:$0xff] %v577
                  %v579 = vld [vmem:[%s435 + $0x15c] sm:$0xff]
                  %580 = vst [vmem:[%s436 + $0xa8] sm:$0xff] %v579
                  %v581 = vld [vmem:[%s435 + $0x138] sm:$0xff]
                  %582 = vst [vmem:[%s436 + $0x60] sm:$0xff] %v581
                  %v583 = vld [vmem:[%s435 + $0x140] sm:$0xff]
                  %584 = vst [vmem:[%s436 + $0x68] sm:$0xff] %v583
                  %v585 = vld [vmem:[%s435 + $0x148] sm:$0xff]
                  %586 = vst [vmem:[%s436 + $0x70] sm:$0xff] %v585
                  %v587 = vld [vmem:[%s435 + $0x150] sm:$0xff]
                  %588 = vst [vmem:[%s436 + $0x78] sm:$0xff] %v587
                  %v589 = vld [vmem:[%s435 + $0x158] sm:$0xff]
                  %590 = vst [vmem:[%s436 + $0x80] sm:$0xff] %v589
                  %v591 = vld [vmem:[%s435 + $0x160] sm:$0xff]
                  %592 = vst [vmem:[%s436 + $0x88] sm:$0xff] %v591
                  %v593 = vld [vmem:[%s435 + $0x168] sm:$0xff]
                  %594 = vst [vmem:[%s436 + $0x90] sm:$0xff] %v593
                  %v595 = vld [vmem:[%s435 + $0x170] sm:$0xff]
                  %596 = vst [vmem:[%s436 + $0x98] sm:$0xff] %v595
                  %v597 = vld [vmem:[%s435 + $0x178] sm:$0xff]
                  %598 = vst [vmem:[%s436 + $0xa0] sm:$0xff] %v597
                  %v599 = vld [vmem:[%s435 + $0x180] sm:$0xff]
                  %600 = vst [vmem:[%s436 + $0xa8] sm:$0xff] %v599
                  %v601 = vld [vmem:[%s435 + $0x188] sm:$0xff]
                  %602 = vst [vmem:[%s436 + $0xb0] sm:$0xff] %v601
                  %v603 = vld [vmem:[%s435 + $0x190] sm:$0xff]
                  %604 = vst [vmem:[%s436 + $0xb8] sm:$0xff] %v603
                  %s605 = sadd.s32 1, %s434
                  %p606 = scmp.ge.s32.totalorder %s605, %s424
                  %s607 = scalar_select %p606, 0, %s605
                  %s608 = smul.u32 %s607, 96
                  %s609 = smul.u32 %s607, 96
                  %s610 = scalar_lea.vmem %s144, %s608
                  %s611 = scalar_lea.vmem %s136, %s609 [#allocation3]
                $region74: #{actor_forward.10} parent=68 // loop_footer
                  %s431 = sadd.s32 %s429, 1
                $region75: #{actor_forward.10} parent=68 // loop_footer_branch
                  %428 = sbr.rel target = $region71
                $region76: #{actor_forward.10} parent=68 // loop_exit
                  _
                %s612 = sdiv.u32.pop %s423, 12
                %s613 = srem.u32.pop %s423, 12
                %s614 = smul.u32 %s612, 12
                %s615 = smul.u32 128, %s614
                %s616 = sshra.s32 %s615, 4
                %s617 = scalar_lea.vmem %s144, %s616
                %s618 = smul.u32 128, %s614
                %s619 = sshra.s32 %s618, 4
                %s620 = scalar_lea.vmem %s136, %s619 [#allocation3]
                // While loop
                $region77: #{actor_forward.10} parent=68 // loop_pre_header
                  _
                $region78: #{actor_forward.10} parent=68 // loop_header
                  %s624 = sphi 0, %s626
                  %p625 = scmp.ge.s32.totalorder %s624, %s613
                  %s629 = sphi 0, %s648
                  %s630 = sphi %s617, %s651
                  %s631 = sphi %s620, %s652
                $region79: #{actor_forward.10} parent=68 // loop_header_branch
                  %628 = sbr.rel (%p625) target = $region83
                $region80: #{actor_forward.10} parent=68 // loop_body
                  %v632 = vld [vmem:[%s630] sm:$0xff]
                  %633 = vst [vmem:[%s631] sm:$0xff] %v632
                  %v634 = vld [vmem:[%s630 + $0x34] sm:$0xff]
                  %635 = vst [vmem:[%s631 + $0x10] sm:$0xff] %v634
                  %v636 = vld [vmem:[%s630 + $0x68] sm:$0xff]
                  %637 = vst [vmem:[%s631 + $0x20] sm:$0xff] %v636
                  %v638 = vld [vmem:[%s630 + $0x9c] sm:$0xff]
                  %639 = vst [vmem:[%s631 + $0x30] sm:$0xff] %v638
                  %v640 = vld [vmem:[%s630 + $0xd0] sm:$0xff]
                  %641 = vst [vmem:[%s631 + $0x40] sm:$0xff] %v640
                  %v642 = vld [vmem:[%s630 + $0x104] sm:$0xff]
                  %643 = vst [vmem:[%s631 + $0x50] sm:$0xff] %v642
                  %v644 = vld [vmem:[%s630 + $0x138] sm:$0xff]
                  %645 = vst [vmem:[%s631 + $0x60] sm:$0xff] %v644
                  %s646 = sadd.s32 1, %s629
                  %p647 = scmp.ge.s32.totalorder %s646, %s613
                  %s648 = scalar_select %p647, 0, %s646
                  %s649 = smul.u32 %s648, 8
                  %s650 = smul.u32 %s648, 8
                  %s651 = scalar_lea.vmem %s617, %s649
                  %s652 = scalar_lea.vmem %s620, %s650 [#allocation3]
                $region81: #{actor_forward.10} parent=68 // loop_footer
                  %s626 = sadd.s32 %s624, 1
                $region82: #{actor_forward.10} parent=68 // loop_footer_branch
                  %623 = sbr.rel target = $region78
                $region83: #{actor_forward.10} parent=68 // loop_exit
                  _
                %s653 = sshll.u32 1, %s418
                %s654 = ssub.s32 %s653, 1
                loop: start=0, step=1, limit=1
                $region84: #{actor_forward.10} parent=68 // loop_pre_header
                  _
                $region85: #{actor_forward.10} parent=68 // loop_header
                  %s656 = sphi 0, %s660
                  %p657 = scmp.ge.s32.totalorder %s656, 1
                  %s661 = sphi %s420, %s420
                  %s662 = sphi %s422, %s422
                $region86: #{actor_forward.10} parent=68 // loop_header_branch
                  %659 = sbr.rel (%p657) target = $region90
                $region87: #{actor_forward.10} parent=68 // loop_body
                  %v663 = vld [vmem:[%s661] sm:%s654]
                  %664 = vst [vmem:[%s662] sm:%s654] %v663
                  %v665 = vld [vmem:[%s661 + $0x34] sm:%s654]
                  %666 = vst [vmem:[%s662 + $0x10] sm:%s654] %v665
                  %v667 = vld [vmem:[%s661 + $0x68] sm:%s654]
                  %668 = vst [vmem:[%s662 + $0x20] sm:%s654] %v667
                  %v669 = vld [vmem:[%s661 + $0x9c] sm:%s654]
                  %670 = vst [vmem:[%s662 + $0x30] sm:%s654] %v669
                  %v671 = vld [vmem:[%s661 + $0xd0] sm:%s654]
                  %672 = vst [vmem:[%s662 + $0x40] sm:%s654] %v671
                  %v673 = vld [vmem:[%s661 + $0x104] sm:%s654]
                  %674 = vst [vmem:[%s662 + $0x50] sm:%s654] %v673
                  %v675 = vld [vmem:[%s661 + $0x138] sm:%s654]
                  %676 = vst [vmem:[%s662 + $0x60] sm:%s654] %v675
                $region88: #{actor_forward.10} parent=68 // loop_footer
                  %s660 = sadd.s32 1, %s656
                $region89: #{actor_forward.10} parent=68 // loop_footer_branch
                  %655 = sbr.rel target = $region85
                $region90: #{actor_forward.10} parent=68 // loop_exit
                  _
              $region69: #{actor_forward.10} parent=35 // pred_fallthru
                _
            $region36: #{actor_forward.10} parent=31 // pred_fallthru
              _
            // Predicated region
            $region37: #{actor_forward.10} parent=31 // pred_check
              %p153 = pneg %p149
            $region38: #{actor_forward.10} parent=31 // pred_check_branch
              %155 = sbr.rel (%p153) target = $region40
            $region39: #{actor_forward.10} parent=31 // pred_region
              %s156 = sshll.u32 1, %s145
              %s157 = ssub.s32 %s156, 1
              loop: start=0, step=1, limit=1
              $region41: #{actor_forward.10} parent=39 // loop_pre_header
                _
              $region42: #{actor_forward.10} parent=39 // loop_header
                %s159 = sphi 0, %s163
                %p160 = scmp.ge.s32.totalorder %s159, 1
                %s164 = sphi %s144, %s144
                %s165 = sphi %s136, %s136
              $region43: #{actor_forward.10} parent=39 // loop_header_branch
                %162 = sbr.rel (%p160) target = $region47
              $region44: #{actor_forward.10} parent=39 // loop_body
                %v166 = vld [vmem:[%s164] sm:%s157]
                %167 = vst [vmem:[%s165] sm:%s157] %v166
                %v168 = vld [vmem:[%s164 + $0x34] sm:%s157]
                %169 = vst [vmem:[%s165 + $0x10] sm:%s157] %v168
                %v170 = vld [vmem:[%s164 + $0x68] sm:%s157]
                %171 = vst [vmem:[%s165 + $0x20] sm:%s157] %v170
                %v172 = vld [vmem:[%s164 + $0x9c] sm:%s157]
                %173 = vst [vmem:[%s165 + $0x30] sm:%s157] %v172
                %v174 = vld [vmem:[%s164 + $0xd0] sm:%s157]
                %175 = vst [vmem:[%s165 + $0x40] sm:%s157] %v174
                %v176 = vld [vmem:[%s164 + $0x104] sm:%s157]
                %177 = vst [vmem:[%s165 + $0x50] sm:%s157] %v176
                %v178 = vld [vmem:[%s164 + $0x138] sm:%s157]
                %179 = vst [vmem:[%s165 + $0x60] sm:%s157] %v178
              $region45: #{actor_forward.10} parent=39 // loop_footer
                %s163 = sadd.s32 1, %s159
              $region46: #{actor_forward.10} parent=39 // loop_footer_branch
                %158 = sbr.rel target = $region42
              $region47: #{actor_forward.10} parent=39 // loop_exit
                _
            $region40: #{actor_forward.10} parent=31 // pred_fallthru
              _
          $region32: #{actor_forward.10} parent=27 // pred_fallthru
            _
          %677 = vnop
        $region28: #{actor_forward.10} parent=23 // pred_fallthru
          _
      $region24: #{actor_forward.10} parent=5 // pred_fallthru
        _
      %p678 = scmp.le.s32.totalorder 1, %s11
      %p679 = scmp.lt.s32.totalorder %s11, 5
      %p680 = pnand %p678, %p679
      %p681 = pneg %p680
      // Predicated region
      $region91: #{actor_forward.10} parent=5 // pred_check
        _
      $region92: #{actor_forward.10} parent=5 // pred_check_branch
        %683 = sbr.rel (%p680) target = $region94
      $region93: #{actor_forward.10} parent=5 // pred_region
        %s684 = ssub.s32 %s11, 1
        %s685 = sand.u32 %s66, 1
        %s686 = sand.u32 %s66, 1
        %s687 = smul.addr %s686, 112
        %s688 = scalar_lea.vmem [#allocation3], %s687
        // Predicated region
        $region95: #{actor_forward.10} parent=93 // pred_check
          %p689 = pneg %p79
        $region96: #{actor_forward.10} parent=93 // pred_check_branch
          %691 = sbr.rel (%p689) target = $region98
        $region97: #{actor_forward.10} parent=93 // pred_region
          _
        $region98: #{actor_forward.10} parent=93 // pred_fallthru
          _
        %p692 = pneg %p32
        %p693 = pneg %p29
        %p694 = pneg %p53
        %p695 = pneg %p50
        %s696 = sand.u32 %s66, 1
        %s697 = sand.u32 %s66, 1
        %s698 = smul.addr %s697, 112
        %s699 = scalar_lea.vmem [#allocation3], %s698
        %p700 = pneg %p79
        %p701 = pneg %p76
        %p702 = pneg %p105
        %p703 = pneg %p102
        %s704 = sand.u32 %s92, 1
        %s705 = sand.u32 %s92, 1
        %s706 = smul.addr %s705, 4
        %s707 = scalar_lea.vmem [#allocation4], %s706
        %s708 = smul.u32 4, %s16
        %s709 = ssub.s32 13, %s708
        %p710 = scmp.lt.s32.totalorder %s709, 4
        %s711 = scalar_select %p710, %s709, 4
        %s712 = smul.u32 448, %s711
        %s713 = smul.u32 4, %s16
        %s714 = ssub.s32 13, %s713
        %p715 = scmp.lt.s32.totalorder %s714, 4
        %s716 = scalar_select %p715, %s714, 4
        %s717 = smul.u32 16, %s716
        %v719 = vld [vmem:[%s0] sm:$0x1]
        %v720 = vld [vmem:[%s688] sm:$0xff]
        %v721 = vld [vmem:[%s688 + $0x8] sm:$0xff]
        %v722 = vld [vmem:[%s688 + $0x10] sm:$0xff]
        %v723 = vld [vmem:[%s688 + $0x18] sm:$0xff]
        %v724 = vld [vmem:[%s688 + $0x20] sm:$0xff]
        %v725 = vld [vmem:[%s688 + $0x28] sm:$0xff]
        %v726 = vld [vmem:[%s688 + $0x30] sm:$0xff]
        %v727 = vld [vmem:[%s688 + $0x38] sm:$0xff]
        %v728 = vld [vmem:[%s688 + $0x40] sm:$0xff]
        %v729 = vld [vmem:[%s688 + $0x48] sm:$0xff]
        %v730 = vld [vmem:[%s688 + $0x50] sm:$0xff]
        %v731 = vld [vmem:[%s688 + $0x58] sm:$0xff]
        %v732 = vld [vmem:[%s688 + $0x60] sm:$0x11]
        %v733 = vld [vmem:[%s688 + $0x68] sm:$0x11]
        %v734 = vld [vmem:[#allocation2] sm:$0x1]
        %736 = vset.pattern.permute.xlu0 0
        %737 = vperm.xlu0 %736, %v734
        %v738 = vpop.permute.xlu0 %737
        %v740 = vlaneseq
        %v741 = vshrl.u32 %v740, 7
        %v742 = vsub.s32 0, %v741
        %v743 = vrot.slane %v738, %v742
        %v758 = vunpack.c.l.b16 %v720
        %v759 = vunpack.c.h.b16 %v720
        %v760 = vunpack.c.l.b16 %v721
        %v761 = vunpack.c.h.b16 %v721
        %v762 = vunpack.c.l.b16 %v722
        %v763 = vunpack.c.h.b16 %v722
        %v764 = vunpack.c.l.b16 %v723
        %v765 = vunpack.c.h.b16 %v723
        %v766 = vunpack.c.l.b16 %v724
        %v767 = vunpack.c.h.b16 %v724
        %v768 = vunpack.c.l.b16 %v725
        %v769 = vunpack.c.h.b16 %v725
        %v770 = vunpack.c.l.b16 %v726
        %v771 = vunpack.c.h.b16 %v726
        %v772 = vunpack.c.l.b16 %v727
        %v773 = vunpack.c.h.b16 %v727
        %v774 = vunpack.c.l.b16 %v728
        %v775 = vunpack.c.h.b16 %v728
        %v776 = vunpack.c.l.b16 %v729
        %v777 = vunpack.c.h.b16 %v729
        %v778 = vunpack.c.l.b16 %v730
        %v779 = vunpack.c.h.b16 %v730
        %v780 = vunpack.c.l.b16 %v731
        %v781 = vunpack.c.h.b16 %v731
        %v782 = vunpack.c.l.b16 %v732
        %v783 = vunpack.c.h.b16 %v732
        %v784 = vunpack.c.l.b16 %v733
        %v785 = vunpack.c.h.b16 %v733
        %v786 = vpack.c.b16 %v762, %v758
        %v787 = vpack.c.b16 %v763, %v759
        %v788 = vpack.c.b16 %v764, %v760
        %v789 = vpack.c.b16 %v765, %v761
        %v790 = vpack.c.b16 %v770, %v766
        %v791 = vpack.c.b16 %v771, %v767
        %v792 = vpack.c.b16 %v772, %v768
        %v793 = vpack.c.b16 %v773, %v769
        %v794 = vpack.c.b16 %v778, %v774
        %v795 = vpack.c.b16 %v779, %v775
        %v796 = vpack.c.b16 %v780, %v776
        %v797 = vpack.c.b16 %v781, %v777
        %v798 = vpack.c.b16 %v782, %v782
        %v799 = vpack.c.b16 %v783, %v783
        %v800 = vpack.c.b16 %v784, %v784
        %v801 = vpack.c.b16 %v785, %v785
        %vm814 = vcmask 408576
        %v816 = vsel %vm814, %v719, 0
        %vm818 = vcmask 1040384
        %v820 = vsel %vm818, %v798, 0
        %v823 = vsel %vm818, %v799, 0
        %v826 = vsel %vm818, %v800, 0
        %v829 = vsel %vm818, %v801, 0
        %831 = vmatprep.subr.bf16.mxu0 0
        %832 = vmatpush1.bf16.msra.mxu0 0
        %833 = vmatprep.subr.bf16.mxu0 0
        %834 = vmatpush1.bf16.msra.mxu0 0
        %835 = vmatprep.subr.bf16.mxu0 0
        %836 = vmatpush1.bf16.msra.mxu0 0
        %837 = vmatprep.subr.bf16.mxu0 0
        %838 = vmatpush1.bf16.msra.mxu0 0
        %839 = vmatprep.subr.bf16.mxu0 %v823
        %840 = vmatpush1.bf16.msra.mxu0 %v820
        %841 = vmatprep.subr.bf16.mxu0 %v795
        %842 = vmatpush1.bf16.msra.mxu0 %v794
        %843 = vmatprep.subr.bf16.mxu0 %v791
        %844 = vmatpush1.bf16.msra.mxu0 %v790
        %845 = vmatprep.subr.bf16.mxu0 %v787
        %846 = vmatpush1.bf16.msra.mxu0 %v786
        %847 = vmatprep.subr.bf16.mxu0 0
        %848 = vmatpush2.bf16.msra.mxu0 0
        %849 = vmatprep.subr.bf16.mxu0 0
        %850 = vmatpush2.bf16.msra.mxu0 0
        %851 = vmatprep.subr.bf16.mxu0 0
        %852 = vmatpush2.bf16.msra.mxu0 0
        %853 = vmatprep.subr.bf16.mxu0 0
        %854 = vmatpush2.bf16.msra.mxu0 0
        %855 = vmatprep.subr.bf16.mxu0 0
        %856 = vmatpush2.bf16.msra.mxu0 0
        %857 = vmatprep.subr.bf16.mxu0 0
        %858 = vmatpush2.bf16.msra.mxu0 0
        %859 = vmatprep.subr.bf16.mxu0 0
        %860 = vmatpush2.bf16.msra.mxu0 0
        %861 = vmatprep.subr.bf16.mxu0 0
        %862 = vmatpush2.bf16.msra.mxu0 0
        %863 = vmatprep.mubr.bf16.mxu0 0
        %864 = vmatmul.mubr.bf16.gmra.mxu0 %v816
        %v865 = vpop.f32.mrf.mxu0
        %v866 = vadd.f32 %v743, %v865
        %v867 = vpop.f32.mrf.mxu0
        %v868 = vadd.f32 %v743, %v867
        %v869 = vpop.f32.mrf.mxu0
        %v870 = vpop.f32.mrf.mxu0
        %871 = vdwg.mxu0
        %872 = vmatprep.subr.bf16.mxu0 0
        %873 = vmatpush1.bf16.msra.mxu0 0
        %874 = vmatprep.subr.bf16.mxu0 0
        %875 = vmatpush1.bf16.msra.mxu0 0
        %876 = vmatprep.subr.bf16.mxu0 0
        %877 = vmatpush1.bf16.msra.mxu0 0
        %878 = vmatprep.subr.bf16.mxu0 0
        %879 = vmatpush1.bf16.msra.mxu0 0
        %880 = vmatprep.subr.bf16.mxu0 %v829
        %881 = vmatpush1.bf16.msra.mxu0 %v826
        %882 = vmatprep.subr.bf16.mxu0 %v797
        %883 = vmatpush1.bf16.msra.mxu0 %v796
        %884 = vmatprep.subr.bf16.mxu0 %v793
        %885 = vmatpush1.bf16.msra.mxu0 %v792
        %886 = vmatprep.subr.bf16.mxu0 %v789
        %887 = vmatpush1.bf16.msra.mxu0 %v788
        %888 = vmatprep.subr.bf16.mxu0 0
        %889 = vmatpush2.bf16.msra.mxu0 0
        %890 = vmatprep.subr.bf16.mxu0 0
        %891 = vmatpush2.bf16.msra.mxu0 0
        %892 = vmatprep.subr.bf16.mxu0 0
        %893 = vmatpush2.bf16.msra.mxu0 0
        %894 = vmatprep.subr.bf16.mxu0 0
        %895 = vmatpush2.bf16.msra.mxu0 0
        %896 = vmatprep.subr.bf16.mxu0 0
        %897 = vmatpush2.bf16.msra.mxu0 0
        %898 = vmatprep.subr.bf16.mxu0 0
        %899 = vmatpush2.bf16.msra.mxu0 0
        %900 = vmatprep.subr.bf16.mxu0 0
        %901 = vmatpush2.bf16.msra.mxu0 0
        %902 = vmatprep.subr.bf16.mxu0 0
        %903 = vmatpush2.bf16.msra.mxu0 0
        %904 = vmatprep.mubr.bf16.mxu0 0
        %905 = vmatmul.mubr.bf16.gmra.mxu0 %v816
        %v906 = vpop.f32.mrf.mxu0
        %v907 = vadd.f32 %v743, %v906
        %v908 = vpop.f32.mrf.mxu0
        %v909 = vadd.f32 %v743, %v908
        %v910 = vpop.f32.mrf.mxu0
        %v911 = vpop.f32.mrf.mxu0
        %912 = vdwg.mxu0
        %v913 = vmax.f32 %v866, 0.0
        %v914 = vmax.f32 %v868, 0.0
        %v915 = vmax.f32 %v907, 0.0
        %v916 = vmax.f32 %v909, 0.0
        %v917 = vpack.c.bf16 %v913, %v913
        %v918 = vpack.c.bf16 %v914, %v914
        %v919 = vpack.c.bf16 %v915, %v915
        %v920 = vpack.c.bf16 %v916, %v916
        %v925 = vcombine.low %v917, %v918
        %v926 = vcombine.low %v919, %v920
        %v928 = vunpack.c.l.s4 1966171168
        %v929 = vunpack.c.0.s8 %v928
        %v930 = vlaneseq
        %v931 = vshrl.u32 %v930, 7
        %v932 = vsub.s32 %v929, %v931
        %v933 = vrot.slane %v925, %v932
        %v935 = vunpack.c.l.s4 1966171168
        %v936 = vunpack.c.0.s8 %v935
        %v937 = vlaneseq
        %v938 = vshrl.u32 %v937, 7
        %v939 = vsub.s32 %v936, %v938
        %v940 = vrot.slane %v926, %v939
        %v941 = vcombine.low %v933, %v940
        %v943 = vunpack.c.l.s4 1966171168
        %v944 = vunpack.c.0.s8 %v943
        %v945 = vlaneseq
        %v946 = vshrl.u32 %v945, 7
        %v947 = vsub.s32 %v944, %v946
        %v948 = vrot.slane %v941, %v947
        %vm950 = vcmask 1040384
        %vm951 = vsmask.f32 256
        %vm952 = vmand %vm950, %vm951
        %vm953 = vcmask 1041409
        %vm954 = vsmask.f32 1280
        %vm955 = vmand %vm953, %vm954
        %vm956 = vmor %vm955, %vm952
        %vm957 = vcmask 1042434
        %vm958 = vsmask.f32 2304
        %vm959 = vmand %vm957, %vm958
        %vm960 = vmor %vm959, %vm956
        %vm961 = vcmask 1043459
        %vm962 = vsmask.f32 3328
        %vm963 = vmand %vm961, %vm962
        %vm964 = vmor %vm963, %vm960
        %v965 = vld [vmem:[%s707] sm:$0xf]
        %v966 = vsel %vm964, %v948, %v965
        %967 = vst [vmem:[%s707] sm:$0xf] %v966
        %s968 = sand.u32 %s92, 1
        %s969 = sand.u32 %s92, 1
        %s970 = smul.addr %s969, 4
        %s971 = scalar_lea.vmem [#allocation4], %s970
        // Predicated region
        $region99: #{actor_forward.10} parent=93 // pred_check
          %p972 = pneg %p102
        $region100: #{actor_forward.10} parent=93 // pred_check_branch
          %974 = sbr.rel (%p972) target = $region102
        $region101: #{actor_forward.10} parent=93 // pred_region
          %s975 = smul.u32 4, %s16
          %s976 = ssub.s32 13, %s975
          %p977 = scmp.lt.s32.totalorder %s976, 4
          %s978 = scalar_select %p977, %s976, 4
          %s979 = smul.u32 16, %s978
          %p980 = scmp.ne.s32.totalorder 0, %s979
          %s981 = scalar_lea.vmem %s3, %s975
          // Predicated region
          $region103: #{actor_forward.10} parent=101 // pred_check
            %p982 = pneg %p980
          $region104: #{actor_forward.10} parent=101 // pred_check_branch
            %984 = sbr.rel (%p982) target = $region106
          $region105: #{actor_forward.10} parent=101 // pred_region
            %p985 = scmp.lt.u32.totalorder %s978, 8
            %p986 = pneg %p985
            // Predicated region
            $region107: #{actor_forward.10} parent=105 // pred_check
              _
            $region108: #{actor_forward.10} parent=105 // pred_check_branch
              %988 = sbr.rel (%p985) target = $region110
            $region109: #{actor_forward.10} parent=105 // pred_region
              %s1004 = sand.u32 %s978, 7
              %p1005 = scmp.eq.s32.totalorder %s1004, 0
              // Predicated region
              $region122: #{actor_forward.10} parent=109 // pred_check
                %p1006 = pneg %p1005
              $region123: #{actor_forward.10} parent=109 // pred_check_branch
                %1008 = sbr.rel (%p1006) target = $region125
              $region124: #{actor_forward.10} parent=109 // pred_region
                %s1009 = sshrl.u32 %s978, 3
                %s1010 = sshrl.u32 %s1009, 6
                // While loop
                $region126: #{actor_forward.10} parent=124 // loop_pre_header
                  _
                $region127: #{actor_forward.10} parent=124 // loop_header
                  %s1014 = sphi 0, %s1016
                  %p1015 = scmp.ge.s32.totalorder %s1014, %s1010
                  %s1019 = sphi 0, %s1152
                  %s1020 = sphi %s971, %s1155
                  %s1021 = sphi %s981, %s1156
                $region128: #{actor_forward.10} parent=124 // loop_header_branch
                  %1018 = sbr.rel (%p1015) target = $region132
                $region129: #{actor_forward.10} parent=124 // loop_body
                  %v1022 = vld [vmem:[%s1020] sm:$0xff]
                  %1023 = vst [vmem:[%s1021] sm:$0xff] %v1022
                  %v1024 = vld [vmem:[%s1020 + $0x8] sm:$0xff]
                  %1025 = vst [vmem:[%s1021 + $0x8] sm:$0xff] %v1024
                  %v1026 = vld [vmem:[%s1020 + $0x10] sm:$0xff]
                  %1027 = vst [vmem:[%s1021 + $0x10] sm:$0xff] %v1026
                  %v1028 = vld [vmem:[%s1020 + $0x18] sm:$0xff]
                  %1029 = vst [vmem:[%s1021 + $0x18] sm:$0xff] %v1028
                  %v1030 = vld [vmem:[%s1020 + $0x20] sm:$0xff]
                  %1031 = vst [vmem:[%s1021 + $0x20] sm:$0xff] %v1030
                  %v1032 = vld [vmem:[%s1020 + $0x28] sm:$0xff]
                  %1033 = vst [vmem:[%s1021 + $0x28] sm:$0xff] %v1032
                  %v1034 = vld [vmem:[%s1020 + $0x30] sm:$0xff]
                  %1035 = vst [vmem:[%s1021 + $0x30] sm:$0xff] %v1034
                  %v1036 = vld [vmem:[%s1020 + $0x38] sm:$0xff]
                  %1037 = vst [vmem:[%s1021 + $0x38] sm:$0xff] %v1036
                  %v1038 = vld [vmem:[%s1020 + $0x40] sm:$0xff]
                  %1039 = vst [vmem:[%s1021 + $0x40] sm:$0xff] %v1038
                  %v1040 = vld [vmem:[%s1020 + $0x48] sm:$0xff]
                  %1041 = vst [vmem:[%s1021 + $0x48] sm:$0xff] %v1040
                  %v1042 = vld [vmem:[%s1020 + $0x50] sm:$0xff]
                  %1043 = vst [vmem:[%s1021 + $0x50] sm:$0xff] %v1042
                  %v1044 = vld [vmem:[%s1020 + $0x58] sm:$0xff]
                  %1045 = vst [vmem:[%s1021 + $0x58] sm:$0xff] %v1044
                  %v1046 = vld [vmem:[%s1020 + $0x60] sm:$0xff]
                  %1047 = vst [vmem:[%s1021 + $0x60] sm:$0xff] %v1046
                  %v1048 = vld [vmem:[%s1020 + $0x68] sm:$0xff]
                  %1049 = vst [vmem:[%s1021 + $0x68] sm:$0xff] %v1048
                  %v1050 = vld [vmem:[%s1020 + $0x70] sm:$0xff]
                  %1051 = vst [vmem:[%s1021 + $0x70] sm:$0xff] %v1050
                  %v1052 = vld [vmem:[%s1020 + $0x78] sm:$0xff]
                  %1053 = vst [vmem:[%s1021 + $0x78] sm:$0xff] %v1052
                  %v1054 = vld [vmem:[%s1020 + $0x80] sm:$0xff]
                  %1055 = vst [vmem:[%s1021 + $0x80] sm:$0xff] %v1054
                  %v1056 = vld [vmem:[%s1020 + $0x88] sm:$0xff]
                  %1057 = vst [vmem:[%s1021 + $0x88] sm:$0xff] %v1056
                  %v1058 = vld [vmem:[%s1020 + $0x90] sm:$0xff]
                  %1059 = vst [vmem:[%s1021 + $0x90] sm:$0xff] %v1058
                  %v1060 = vld [vmem:[%s1020 + $0x98] sm:$0xff]
                  %1061 = vst [vmem:[%s1021 + $0x98] sm:$0xff] %v1060
                  %v1062 = vld [vmem:[%s1020 + $0xa0] sm:$0xff]
                  %1063 = vst [vmem:[%s1021 + $0xa0] sm:$0xff] %v1062
                  %v1064 = vld [vmem:[%s1020 + $0xa8] sm:$0xff]
                  %1065 = vst [vmem:[%s1021 + $0xa8] sm:$0xff] %v1064
                  %v1066 = vld [vmem:[%s1020 + $0xb0] sm:$0xff]
                  %1067 = vst [vmem:[%s1021 + $0xb0] sm:$0xff] %v1066
                  %v1068 = vld [vmem:[%s1020 + $0xb8] sm:$0xff]
                  %1069 = vst [vmem:[%s1021 + $0xb8] sm:$0xff] %v1068
                  %v1070 = vld [vmem:[%s1020 + $0xc0] sm:$0xff]
                  %1071 = vst [vmem:[%s1021 + $0xc0] sm:$0xff] %v1070
                  %v1072 = vld [vmem:[%s1020 + $0xc8] sm:$0xff]
                  %1073 = vst [vmem:[%s1021 + $0xc8] sm:$0xff] %v1072
                  %v1074 = vld [vmem:[%s1020 + $0xd0] sm:$0xff]
                  %1075 = vst [vmem:[%s1021 + $0xd0] sm:$0xff] %v1074
                  %v1076 = vld [vmem:[%s1020 + $0xd8] sm:$0xff]
                  %1077 = vst [vmem:[%s1021 + $0xd8] sm:$0xff] %v1076
                  %v1078 = vld [vmem:[%s1020 + $0xe0] sm:$0xff]
                  %1079 = vst [vmem:[%s1021 + $0xe0] sm:$0xff] %v1078
                  %v1080 = vld [vmem:[%s1020 + $0xe8] sm:$0xff]
                  %1081 = vst [vmem:[%s1021 + $0xe8] sm:$0xff] %v1080
                  %v1082 = vld [vmem:[%s1020 + $0xf0] sm:$0xff]
                  %1083 = vst [vmem:[%s1021 + $0xf0] sm:$0xff] %v1082
                  %v1084 = vld [vmem:[%s1020 + $0xf8] sm:$0xff]
                  %1085 = vst [vmem:[%s1021 + $0xf8] sm:$0xff] %v1084
                  %v1086 = vld [vmem:[%s1020 + $0x100] sm:$0xff]
                  %1087 = vst [vmem:[%s1021 + $0x100] sm:$0xff] %v1086
                  %v1088 = vld [vmem:[%s1020 + $0x108] sm:$0xff]
                  %1089 = vst [vmem:[%s1021 + $0x108] sm:$0xff] %v1088
                  %v1090 = vld [vmem:[%s1020 + $0x110] sm:$0xff]
                  %1091 = vst [vmem:[%s1021 + $0x110] sm:$0xff] %v1090
                  %v1092 = vld [vmem:[%s1020 + $0x118] sm:$0xff]
                  %1093 = vst [vmem:[%s1021 + $0x118] sm:$0xff] %v1092
                  %v1094 = vld [vmem:[%s1020 + $0x120] sm:$0xff]
                  %1095 = vst [vmem:[%s1021 + $0x120] sm:$0xff] %v1094
                  %v1096 = vld [vmem:[%s1020 + $0x128] sm:$0xff]
                  %1097 = vst [vmem:[%s1021 + $0x128] sm:$0xff] %v1096
                  %v1098 = vld [vmem:[%s1020 + $0x130] sm:$0xff]
                  %1099 = vst [vmem:[%s1021 + $0x130] sm:$0xff] %v1098
                  %v1100 = vld [vmem:[%s1020 + $0x138] sm:$0xff]
                  %1101 = vst [vmem:[%s1021 + $0x138] sm:$0xff] %v1100
                  %v1102 = vld [vmem:[%s1020 + $0x140] sm:$0xff]
                  %1103 = vst [vmem:[%s1021 + $0x140] sm:$0xff] %v1102
                  %v1104 = vld [vmem:[%s1020 + $0x148] sm:$0xff]
                  %1105 = vst [vmem:[%s1021 + $0x148] sm:$0xff] %v1104
                  %v1106 = vld [vmem:[%s1020 + $0x150] sm:$0xff]
                  %1107 = vst [vmem:[%s1021 + $0x150] sm:$0xff] %v1106
                  %v1108 = vld [vmem:[%s1020 + $0x158] sm:$0xff]
                  %1109 = vst [vmem:[%s1021 + $0x158] sm:$0xff] %v1108
                  %v1110 = vld [vmem:[%s1020 + $0x160] sm:$0xff]
                  %1111 = vst [vmem:[%s1021 + $0x160] sm:$0xff] %v1110
                  %v1112 = vld [vmem:[%s1020 + $0x168] sm:$0xff]
                  %1113 = vst [vmem:[%s1021 + $0x168] sm:$0xff] %v1112
                  %v1114 = vld [vmem:[%s1020 + $0x170] sm:$0xff]
                  %1115 = vst [vmem:[%s1021 + $0x170] sm:$0xff] %v1114
                  %v1116 = vld [vmem:[%s1020 + $0x178] sm:$0xff]
                  %1117 = vst [vmem:[%s1021 + $0x178] sm:$0xff] %v1116
                  %v1118 = vld [vmem:[%s1020 + $0x180] sm:$0xff]
                  %1119 = vst [vmem:[%s1021 + $0x180] sm:$0xff] %v1118
                  %v1120 = vld [vmem:[%s1020 + $0x188] sm:$0xff]
                  %1121 = vst [vmem:[%s1021 + $0x188] sm:$0xff] %v1120
                  %v1122 = vld [vmem:[%s1020 + $0x190] sm:$0xff]
                  %1123 = vst [vmem:[%s1021 + $0x190] sm:$0xff] %v1122
                  %v1124 = vld [vmem:[%s1020 + $0x198] sm:$0xff]
                  %1125 = vst [vmem:[%s1021 + $0x198] sm:$0xff] %v1124
                  %v1126 = vld [vmem:[%s1020 + $0x1a0] sm:$0xff]
                  %1127 = vst [vmem:[%s1021 + $0x1a0] sm:$0xff] %v1126
                  %v1128 = vld [vmem:[%s1020 + $0x1a8] sm:$0xff]
                  %1129 = vst [vmem:[%s1021 + $0x1a8] sm:$0xff] %v1128
                  %v1130 = vld [vmem:[%s1020 + $0x1b0] sm:$0xff]
                  %1131 = vst [vmem:[%s1021 + $0x1b0] sm:$0xff] %v1130
                  %v1132 = vld [vmem:[%s1020 + $0x1b8] sm:$0xff]
                  %1133 = vst [vmem:[%s1021 + $0x1b8] sm:$0xff] %v1132
                  %v1134 = vld [vmem:[%s1020 + $0x1c0] sm:$0xff]
                  %1135 = vst [vmem:[%s1021 + $0x1c0] sm:$0xff] %v1134
                  %v1136 = vld [vmem:[%s1020 + $0x1c8] sm:$0xff]
                  %1137 = vst [vmem:[%s1021 + $0x1c8] sm:$0xff] %v1136
                  %v1138 = vld [vmem:[%s1020 + $0x1d0] sm:$0xff]
                  %1139 = vst [vmem:[%s1021 + $0x1d0] sm:$0xff] %v1138
                  %v1140 = vld [vmem:[%s1020 + $0x1d8] sm:$0xff]
                  %1141 = vst [vmem:[%s1021 + $0x1d8] sm:$0xff] %v1140
                  %v1142 = vld [vmem:[%s1020 + $0x1e0] sm:$0xff]
                  %1143 = vst [vmem:[%s1021 + $0x1e0] sm:$0xff] %v1142
                  %v1144 = vld [vmem:[%s1020 + $0x1e8] sm:$0xff]
                  %1145 = vst [vmem:[%s1021 + $0x1e8] sm:$0xff] %v1144
                  %v1146 = vld [vmem:[%s1020 + $0x1f0] sm:$0xff]
                  %1147 = vst [vmem:[%s1021 + $0x1f0] sm:$0xff] %v1146
                  %v1148 = vld [vmem:[%s1020 + $0x1f8] sm:$0xff]
                  %1149 = vst [vmem:[%s1021 + $0x1f8] sm:$0xff] %v1148
                  %s1150 = sadd.s32 1, %s1019
                  %p1151 = scmp.ge.s32.totalorder %s1150, %s1010
                  %s1152 = scalar_select %p1151, 0, %s1150
                  %s1153 = smul.u32 %s1152, 512
                  %s1154 = smul.u32 %s1152, 512
                  %s1155 = scalar_lea.vmem %s971, %s1153 [#allocation4]
                  %s1156 = scalar_lea.vmem %s981, %s1154
                $region130: #{actor_forward.10} parent=124 // loop_footer
                  %s1016 = sadd.s32 %s1014, 1
                $region131: #{actor_forward.10} parent=124 // loop_footer_branch
                  %1013 = sbr.rel target = $region127
                $region132: #{actor_forward.10} parent=124 // loop_exit
                  _
                %s1157 = sshrl.u32 %s1009, 6
                %s1158 = sand.u32 %s1009, 63
                %s1159 = smul.u32 %s1157, 64
                %s1160 = smul.u32 128, %s1159
                %s1161 = sshra.s32 %s1160, 4
                %s1162 = scalar_lea.vmem %s971, %s1161 [#allocation4]
                %s1163 = smul.u32 128, %s1159
                %s1164 = sshra.s32 %s1163, 4
                %s1165 = scalar_lea.vmem %s981, %s1164
                // While loop
                $region133: #{actor_forward.10} parent=124 // loop_pre_header
                  _
                $region134: #{actor_forward.10} parent=124 // loop_header
                  %s1169 = sphi 0, %s1171
                  %p1170 = scmp.ge.s32.totalorder %s1169, %s1158
                  %s1174 = sphi 0, %s1181
                  %s1175 = sphi %s1162, %s1184
                  %s1176 = sphi %s1165, %s1185
                $region135: #{actor_forward.10} parent=124 // loop_header_branch
                  %1173 = sbr.rel (%p1170) target = $region139
                $region136: #{actor_forward.10} parent=124 // loop_body
                  %v1177 = vld [vmem:[%s1175] sm:$0xff]
                  %1178 = vst [vmem:[%s1176] sm:$0xff] %v1177
                  %s1179 = sadd.s32 1, %s1174
                  %p1180 = scmp.ge.s32.totalorder %s1179, %s1158
                  %s1181 = scalar_select %p1180, 0, %s1179
                  %s1182 = smul.u32 %s1181, 8
                  %s1183 = smul.u32 %s1181, 8
                  %s1184 = scalar_lea.vmem %s1162, %s1182 [#allocation4]
                  %s1185 = scalar_lea.vmem %s1165, %s1183
                $region137: #{actor_forward.10} parent=124 // loop_footer
                  %s1171 = sadd.s32 %s1169, 1
                $region138: #{actor_forward.10} parent=124 // loop_footer_branch
                  %1168 = sbr.rel target = $region134
                $region139: #{actor_forward.10} parent=124 // loop_exit
                  _
              $region125: #{actor_forward.10} parent=109 // pred_fallthru
                _
              %p1186 = pneg %p1005
              // Predicated region
              $region140: #{actor_forward.10} parent=109 // pred_check
                _
              $region141: #{actor_forward.10} parent=109 // pred_check_branch
                %1188 = sbr.rel (%p1005) target = $region143
              $region142: #{actor_forward.10} parent=109 // pred_region
                %s1189 = sand.u32 %s978, 7
                %s1190 = ssub.s32 %s978, %s1189
                %s1191 = scalar_lea.vmem %s971, %s1190 [#allocation4]
                %s1192 = ssub.s32 %s978, %s1189
                %s1193 = scalar_lea.vmem %s981, %s1192
                %s1194 = sshrl.u32 %s978, 3
                %s1195 = sshrl.u32 %s1194, 6
                // While loop
                $region144: #{actor_forward.10} parent=142 // loop_pre_header
                  _
                $region145: #{actor_forward.10} parent=142 // loop_header
                  %s1199 = sphi 0, %s1201
                  %p1200 = scmp.ge.s32.totalorder %s1199, %s1195
                  %s1204 = sphi 0, %s1337
                  %s1205 = sphi %s971, %s1340
                  %s1206 = sphi %s981, %s1341
                $region146: #{actor_forward.10} parent=142 // loop_header_branch
                  %1203 = sbr.rel (%p1200) target = $region150
                $region147: #{actor_forward.10} parent=142 // loop_body
                  %v1207 = vld [vmem:[%s1205] sm:$0xff]
                  %1208 = vst [vmem:[%s1206] sm:$0xff] %v1207
                  %v1209 = vld [vmem:[%s1205 + $0x8] sm:$0xff]
                  %1210 = vst [vmem:[%s1206 + $0x8] sm:$0xff] %v1209
                  %v1211 = vld [vmem:[%s1205 + $0x10] sm:$0xff]
                  %1212 = vst [vmem:[%s1206 + $0x10] sm:$0xff] %v1211
                  %v1213 = vld [vmem:[%s1205 + $0x18] sm:$0xff]
                  %1214 = vst [vmem:[%s1206 + $0x18] sm:$0xff] %v1213
                  %v1215 = vld [vmem:[%s1205 + $0x20] sm:$0xff]
                  %1216 = vst [vmem:[%s1206 + $0x20] sm:$0xff] %v1215
                  %v1217 = vld [vmem:[%s1205 + $0x28] sm:$0xff]
                  %1218 = vst [vmem:[%s1206 + $0x28] sm:$0xff] %v1217
                  %v1219 = vld [vmem:[%s1205 + $0x30] sm:$0xff]
                  %1220 = vst [vmem:[%s1206 + $0x30] sm:$0xff] %v1219
                  %v1221 = vld [vmem:[%s1205 + $0x38] sm:$0xff]
                  %1222 = vst [vmem:[%s1206 + $0x38] sm:$0xff] %v1221
                  %v1223 = vld [vmem:[%s1205 + $0x40] sm:$0xff]
                  %1224 = vst [vmem:[%s1206 + $0x40] sm:$0xff] %v1223
                  %v1225 = vld [vmem:[%s1205 + $0x48] sm:$0xff]
                  %1226 = vst [vmem:[%s1206 + $0x48] sm:$0xff] %v1225
                  %v1227 = vld [vmem:[%s1205 + $0x50] sm:$0xff]
                  %1228 = vst [vmem:[%s1206 + $0x50] sm:$0xff] %v1227
                  %v1229 = vld [vmem:[%s1205 + $0x58] sm:$0xff]
                  %1230 = vst [vmem:[%s1206 + $0x58] sm:$0xff] %v1229
                  %v1231 = vld [vmem:[%s1205 + $0x60] sm:$0xff]
                  %1232 = vst [vmem:[%s1206 + $0x60] sm:$0xff] %v1231
                  %v1233 = vld [vmem:[%s1205 + $0x68] sm:$0xff]
                  %1234 = vst [vmem:[%s1206 + $0x68] sm:$0xff] %v1233
                  %v1235 = vld [vmem:[%s1205 + $0x70] sm:$0xff]
                  %1236 = vst [vmem:[%s1206 + $0x70] sm:$0xff] %v1235
                  %v1237 = vld [vmem:[%s1205 + $0x78] sm:$0xff]
                  %1238 = vst [vmem:[%s1206 + $0x78] sm:$0xff] %v1237
                  %v1239 = vld [vmem:[%s1205 + $0x80] sm:$0xff]
                  %1240 = vst [vmem:[%s1206 + $0x80] sm:$0xff] %v1239
                  %v1241 = vld [vmem:[%s1205 + $0x88] sm:$0xff]
                  %1242 = vst [vmem:[%s1206 + $0x88] sm:$0xff] %v1241
                  %v1243 = vld [vmem:[%s1205 + $0x90] sm:$0xff]
                  %1244 = vst [vmem:[%s1206 + $0x90] sm:$0xff] %v1243
                  %v1245 = vld [vmem:[%s1205 + $0x98] sm:$0xff]
                  %1246 = vst [vmem:[%s1206 + $0x98] sm:$0xff] %v1245
                  %v1247 = vld [vmem:[%s1205 + $0xa0] sm:$0xff]
                  %1248 = vst [vmem:[%s1206 + $0xa0] sm:$0xff] %v1247
                  %v1249 = vld [vmem:[%s1205 + $0xa8] sm:$0xff]
                  %1250 = vst [vmem:[%s1206 + $0xa8] sm:$0xff] %v1249
                  %v1251 = vld [vmem:[%s1205 + $0xb0] sm:$0xff]
                  %1252 = vst [vmem:[%s1206 + $0xb0] sm:$0xff] %v1251
                  %v1253 = vld [vmem:[%s1205 + $0xb8] sm:$0xff]
                  %1254 = vst [vmem:[%s1206 + $0xb8] sm:$0xff] %v1253
                  %v1255 = vld [vmem:[%s1205 + $0xc0] sm:$0xff]
                  %1256 = vst [vmem:[%s1206 + $0xc0] sm:$0xff] %v1255
                  %v1257 = vld [vmem:[%s1205 + $0xc8] sm:$0xff]
                  %1258 = vst [vmem:[%s1206 + $0xc8] sm:$0xff] %v1257
                  %v1259 = vld [vmem:[%s1205 + $0xd0] sm:$0xff]
                  %1260 = vst [vmem:[%s1206 + $0xd0] sm:$0xff] %v1259
                  %v1261 = vld [vmem:[%s1205 + $0xd8] sm:$0xff]
                  %1262 = vst [vmem:[%s1206 + $0xd8] sm:$0xff] %v1261
                  %v1263 = vld [vmem:[%s1205 + $0xe0] sm:$0xff]
                  %1264 = vst [vmem:[%s1206 + $0xe0] sm:$0xff] %v1263
                  %v1265 = vld [vmem:[%s1205 + $0xe8] sm:$0xff]
                  %1266 = vst [vmem:[%s1206 + $0xe8] sm:$0xff] %v1265
                  %v1267 = vld [vmem:[%s1205 + $0xf0] sm:$0xff]
                  %1268 = vst [vmem:[%s1206 + $0xf0] sm:$0xff] %v1267
                  %v1269 = vld [vmem:[%s1205 + $0xf8] sm:$0xff]
                  %1270 = vst [vmem:[%s1206 + $0xf8] sm:$0xff] %v1269
                  %v1271 = vld [vmem:[%s1205 + $0x100] sm:$0xff]
                  %1272 = vst [vmem:[%s1206 + $0x100] sm:$0xff] %v1271
                  %v1273 = vld [vmem:[%s1205 + $0x108] sm:$0xff]
                  %1274 = vst [vmem:[%s1206 + $0x108] sm:$0xff] %v1273
                  %v1275 = vld [vmem:[%s1205 + $0x110] sm:$0xff]
                  %1276 = vst [vmem:[%s1206 + $0x110] sm:$0xff] %v1275
                  %v1277 = vld [vmem:[%s1205 + $0x118] sm:$0xff]
                  %1278 = vst [vmem:[%s1206 + $0x118] sm:$0xff] %v1277
                  %v1279 = vld [vmem:[%s1205 + $0x120] sm:$0xff]
                  %1280 = vst [vmem:[%s1206 + $0x120] sm:$0xff] %v1279
                  %v1281 = vld [vmem:[%s1205 + $0x128] sm:$0xff]
                  %1282 = vst [vmem:[%s1206 + $0x128] sm:$0xff] %v1281
                  %v1283 = vld [vmem:[%s1205 + $0x130] sm:$0xff]
                  %1284 = vst [vmem:[%s1206 + $0x130] sm:$0xff] %v1283
                  %v1285 = vld [vmem:[%s1205 + $0x138] sm:$0xff]
                  %1286 = vst [vmem:[%s1206 + $0x138] sm:$0xff] %v1285
                  %v1287 = vld [vmem:[%s1205 + $0x140] sm:$0xff]
                  %1288 = vst [vmem:[%s1206 + $0x140] sm:$0xff] %v1287
                  %v1289 = vld [vmem:[%s1205 + $0x148] sm:$0xff]
                  %1290 = vst [vmem:[%s1206 + $0x148] sm:$0xff] %v1289
                  %v1291 = vld [vmem:[%s1205 + $0x150] sm:$0xff]
                  %1292 = vst [vmem:[%s1206 + $0x150] sm:$0xff] %v1291
                  %v1293 = vld [vmem:[%s1205 + $0x158] sm:$0xff]
                  %1294 = vst [vmem:[%s1206 + $0x158] sm:$0xff] %v1293
                  %v1295 = vld [vmem:[%s1205 + $0x160] sm:$0xff]
                  %1296 = vst [vmem:[%s1206 + $0x160] sm:$0xff] %v1295
                  %v1297 = vld [vmem:[%s1205 + $0x168] sm:$0xff]
                  %1298 = vst [vmem:[%s1206 + $0x168] sm:$0xff] %v1297
                  %v1299 = vld [vmem:[%s1205 + $0x170] sm:$0xff]
                  %1300 = vst [vmem:[%s1206 + $0x170] sm:$0xff] %v1299
                  %v1301 = vld [vmem:[%s1205 + $0x178] sm:$0xff]
                  %1302 = vst [vmem:[%s1206 + $0x178] sm:$0xff] %v1301
                  %v1303 = vld [vmem:[%s1205 + $0x180] sm:$0xff]
                  %1304 = vst [vmem:[%s1206 + $0x180] sm:$0xff] %v1303
                  %v1305 = vld [vmem:[%s1205 + $0x188] sm:$0xff]
                  %1306 = vst [vmem:[%s1206 + $0x188] sm:$0xff] %v1305
                  %v1307 = vld [vmem:[%s1205 + $0x190] sm:$0xff]
                  %1308 = vst [vmem:[%s1206 + $0x190] sm:$0xff] %v1307
                  %v1309 = vld [vmem:[%s1205 + $0x198] sm:$0xff]
                  %1310 = vst [vmem:[%s1206 + $0x198] sm:$0xff] %v1309
                  %v1311 = vld [vmem:[%s1205 + $0x1a0] sm:$0xff]
                  %1312 = vst [vmem:[%s1206 + $0x1a0] sm:$0xff] %v1311
                  %v1313 = vld [vmem:[%s1205 + $0x1a8] sm:$0xff]
                  %1314 = vst [vmem:[%s1206 + $0x1a8] sm:$0xff] %v1313
                  %v1315 = vld [vmem:[%s1205 + $0x1b0] sm:$0xff]
                  %1316 = vst [vmem:[%s1206 + $0x1b0] sm:$0xff] %v1315
                  %v1317 = vld [vmem:[%s1205 + $0x1b8] sm:$0xff]
                  %1318 = vst [vmem:[%s1206 + $0x1b8] sm:$0xff] %v1317
                  %v1319 = vld [vmem:[%s1205 + $0x1c0] sm:$0xff]
                  %1320 = vst [vmem:[%s1206 + $0x1c0] sm:$0xff] %v1319
                  %v1321 = vld [vmem:[%s1205 + $0x1c8] sm:$0xff]
                  %1322 = vst [vmem:[%s1206 + $0x1c8] sm:$0xff] %v1321
                  %v1323 = vld [vmem:[%s1205 + $0x1d0] sm:$0xff]
                  %1324 = vst [vmem:[%s1206 + $0x1d0] sm:$0xff] %v1323
                  %v1325 = vld [vmem:[%s1205 + $0x1d8] sm:$0xff]
                  %1326 = vst [vmem:[%s1206 + $0x1d8] sm:$0xff] %v1325
                  %v1327 = vld [vmem:[%s1205 + $0x1e0] sm:$0xff]
                  %1328 = vst [vmem:[%s1206 + $0x1e0] sm:$0xff] %v1327
                  %v1329 = vld [vmem:[%s1205 + $0x1e8] sm:$0xff]
                  %1330 = vst [vmem:[%s1206 + $0x1e8] sm:$0xff] %v1329
                  %v1331 = vld [vmem:[%s1205 + $0x1f0] sm:$0xff]
                  %1332 = vst [vmem:[%s1206 + $0x1f0] sm:$0xff] %v1331
                  %v1333 = vld [vmem:[%s1205 + $0x1f8] sm:$0xff]
                  %1334 = vst [vmem:[%s1206 + $0x1f8] sm:$0xff] %v1333
                  %s1335 = sadd.s32 1, %s1204
                  %p1336 = scmp.ge.s32.totalorder %s1335, %s1195
                  %s1337 = scalar_select %p1336, 0, %s1335
                  %s1338 = smul.u32 %s1337, 512
                  %s1339 = smul.u32 %s1337, 512
                  %s1340 = scalar_lea.vmem %s971, %s1338 [#allocation4]
                  %s1341 = scalar_lea.vmem %s981, %s1339
                $region148: #{actor_forward.10} parent=142 // loop_footer
                  %s1201 = sadd.s32 %s1199, 1
                $region149: #{actor_forward.10} parent=142 // loop_footer_branch
                  %1198 = sbr.rel target = $region145
                $region150: #{actor_forward.10} parent=142 // loop_exit
                  _
                %s1342 = sshrl.u32 %s1194, 6
                %s1343 = sand.u32 %s1194, 63
                %s1344 = smul.u32 %s1342, 64
                %s1345 = smul.u32 128, %s1344
                %s1346 = sshra.s32 %s1345, 4
                %s1347 = scalar_lea.vmem %s971, %s1346 [#allocation4]
                %s1348 = smul.u32 128, %s1344
                %s1349 = sshra.s32 %s1348, 4
                %s1350 = scalar_lea.vmem %s981, %s1349
                // While loop
                $region151: #{actor_forward.10} parent=142 // loop_pre_header
                  _
                $region152: #{actor_forward.10} parent=142 // loop_header
                  %s1354 = sphi 0, %s1356
                  %p1355 = scmp.ge.s32.totalorder %s1354, %s1343
                  %s1359 = sphi 0, %s1366
                  %s1360 = sphi %s1347, %s1369
                  %s1361 = sphi %s1350, %s1370
                $region153: #{actor_forward.10} parent=142 // loop_header_branch
                  %1358 = sbr.rel (%p1355) target = $region157
                $region154: #{actor_forward.10} parent=142 // loop_body
                  %v1362 = vld [vmem:[%s1360] sm:$0xff]
                  %1363 = vst [vmem:[%s1361] sm:$0xff] %v1362
                  %s1364 = sadd.s32 1, %s1359
                  %p1365 = scmp.ge.s32.totalorder %s1364, %s1343
                  %s1366 = scalar_select %p1365, 0, %s1364
                  %s1367 = smul.u32 %s1366, 8
                  %s1368 = smul.u32 %s1366, 8
                  %s1369 = scalar_lea.vmem %s1347, %s1367 [#allocation4]
                  %s1370 = scalar_lea.vmem %s1350, %s1368
                $region155: #{actor_forward.10} parent=142 // loop_footer
                  %s1356 = sadd.s32 %s1354, 1
                $region156: #{actor_forward.10} parent=142 // loop_footer_branch
                  %1353 = sbr.rel target = $region152
                $region157: #{actor_forward.10} parent=142 // loop_exit
                  _
                %s1371 = sshll.u32 1, %s1189
                %s1372 = ssub.s32 %s1371, 1
                loop: start=0, step=1, limit=1
                $region158: #{actor_forward.10} parent=142 // loop_pre_header
                  _
                $region159: #{actor_forward.10} parent=142 // loop_header
                  %s1374 = sphi 0, %s1378
                  %p1375 = scmp.ge.s32.totalorder %s1374, 1
                  %s1379 = sphi %s1191, %s1191
                  %s1380 = sphi %s1193, %s1193
                $region160: #{actor_forward.10} parent=142 // loop_header_branch
                  %1377 = sbr.rel (%p1375) target = $region164
                $region161: #{actor_forward.10} parent=142 // loop_body
                  %v1381 = vld [vmem:[%s1379] sm:%s1372]
                  %1382 = vst [vmem:[%s1380] sm:%s1372] %v1381
                $region162: #{actor_forward.10} parent=142 // loop_footer
                  %s1378 = sadd.s32 1, %s1374
                $region163: #{actor_forward.10} parent=142 // loop_footer_branch
                  %1373 = sbr.rel target = $region159
                $region164: #{actor_forward.10} parent=142 // loop_exit
                  _
              $region143: #{actor_forward.10} parent=109 // pred_fallthru
                _
            $region110: #{actor_forward.10} parent=105 // pred_fallthru
              _
            // Predicated region
            $region111: #{actor_forward.10} parent=105 // pred_check
              %p989 = pneg %p985
            $region112: #{actor_forward.10} parent=105 // pred_check_branch
              %991 = sbr.rel (%p989) target = $region114
            $region113: #{actor_forward.10} parent=105 // pred_region
              %s992 = sshll.u32 1, %s978
              %s993 = ssub.s32 %s992, 1
              loop: start=0, step=1, limit=1
              $region115: #{actor_forward.10} parent=113 // loop_pre_header
                _
              $region116: #{actor_forward.10} parent=113 // loop_header
                %s995 = sphi 0, %s999
                %p996 = scmp.ge.s32.totalorder %s995, 1
                %s1000 = sphi %s971, %s971
                %s1001 = sphi %s981, %s981
              $region117: #{actor_forward.10} parent=113 // loop_header_branch
                %998 = sbr.rel (%p996) target = $region121
              $region118: #{actor_forward.10} parent=113 // loop_body
                %v1002 = vld [vmem:[%s1000] sm:%s993]
                %1003 = vst [vmem:[%s1001] sm:%s993] %v1002
              $region119: #{actor_forward.10} parent=113 // loop_footer
                %s999 = sadd.s32 1, %s995
              $region120: #{actor_forward.10} parent=113 // loop_footer_branch
                %994 = sbr.rel target = $region116
              $region121: #{actor_forward.10} parent=113 // loop_exit
                _
            $region114: #{actor_forward.10} parent=105 // pred_fallthru
              _
          $region106: #{actor_forward.10} parent=101 // pred_fallthru
            _
          %1383 = vnop
        $region102: #{actor_forward.10} parent=93 // pred_fallthru
          _
      $region94: #{actor_forward.10} parent=5 // pred_fallthru
        _
      %p1384 = scmp.le.s32.totalorder 2, %s11
      // Predicated region
      $region165: #{actor_forward.10} parent=5 // pred_check
        %p1385 = pneg %p1384
      $region166: #{actor_forward.10} parent=5 // pred_check_branch
        %1387 = sbr.rel (%p1385) target = $region168
      $region167: #{actor_forward.10} parent=5 // pred_region
        %s1388 = ssub.s32 %s11, 2
        // Predicated region
        $region169: #{actor_forward.10} parent=167 // pred_check
          %p1389 = pneg %p108
        $region170: #{actor_forward.10} parent=167 // pred_check_branch
          %1391 = sbr.rel (%p1389) target = $region172
        $region171: #{actor_forward.10} parent=167 // pred_region
          %s1392 = sand.u32 %s93, 1
          %s1393 = sand.u32 %s93, 1
          %s1394 = smul.addr %s1393, 4
          %s1395 = scalar_lea.vmem [#allocation4], %s1394
        $region172: #{actor_forward.10} parent=167 // pred_fallthru
          _
      $region168: #{actor_forward.10} parent=5 // pred_fallthru
        _
    $region6: #{actor_forward.10} parent=1 // loop_footer
      %s15 = sadd.s32 1, %s11
    $region7: #{actor_forward.10} parent=1 // loop_footer_branch
      %10 = sbr.rel target = $region3
    $region8: #{actor_forward.10} parent=1 // loop_exit
      _

// kernel: actor_forward.11
$region0: #{actor_forward.11}
  #allocation0 [shape = 'u32[]', space=smem, size = 0x4, offset = 0x4, fixed_abs, tag = 'smem constant byte address 0x4 - core index']
  #allocation1 [shape = 'u32[144,128]{1,0:T(1,128)}', space=vmem, size = 0x12000, scoped, tag = 'internal scratch']
  %s0 = inlined_call_operand.vmem [shape: bf16[2,770], index: 0, kind: input, shape index: {}]
  %s1 = inlined_call_operand.vmem [shape: bf16[770,500], index: 1, kind: input, shape index: {}]
  %s2 = inlined_call_operand.vmem [shape: f32[1,500], index: 2, kind: input, shape index: {}]
  %s3 = inlined_call_operand.vmem [shape: bf16[500,100], index: 3, kind: input, shape index: {}]
  %s4 = inlined_call_operand.vmem [shape: f32[1,100], index: 4, kind: input, shape index: {}]
  %s5 = inlined_call_operand.vmem [shape: bf16[100,5], index: 5, kind: input, shape index: {}]
  %s6 = inlined_call_operand.vmem [shape: f32[1,5], index: 6, kind: input, shape index: {}]
  %s7 = inlined_call_operand.hbm [shape: f32[2,5], index: 7, kind: output, shape index: {}]
  %s8 = sld [smem:[#allocation0]]
  $region38: #{actor_forward.11} parent=0
    _
  %s10 = ssub.s32 1, %s8
  %s11 = scalar_select 0, %s10, %s8
  $region1: #{actor_forward.11} parent=0
    #allocation2 [shape = 'u8[1024]{0}', space=vmem, size = 0x400, scoped, tag = 'output window, operand 0, single buffered']
    #allocation3 [shape = 's32[1]{0}', space=sflag, size = 0x4, scoped, tag = 'scoped memory for actor_forward.11']
    %12 = vsyncpa [#allocation3], 0
    // Predicated region
    $region2: #{actor_forward.11} parent=1 // pred_check
      _
    $region3: #{actor_forward.11} parent=1 // pred_check_branch
      %14 = sbr.rel (0) target = $region5
    $region4: #{actor_forward.11} parent=1 // pred_region
      _
    $region5: #{actor_forward.11} parent=1 // pred_fallthru
      _
    // Predicated region
    $region6: #{actor_forward.11} parent=1 // pred_check
      _
    $region7: #{actor_forward.11} parent=1 // pred_check_branch
      %16 = sbr.rel (0) target = $region9
    $region8: #{actor_forward.11} parent=1 // pred_region
      _
    $region9: #{actor_forward.11} parent=1 // pred_fallthru
      _
    // Predicated region
    $region10: #{actor_forward.11} parent=1 // pred_check
      _
    $region11: #{actor_forward.11} parent=1 // pred_check_branch
      %18 = sbr.rel (0) target = $region13
    $region12: #{actor_forward.11} parent=1 // pred_region
      _
    $region13: #{actor_forward.11} parent=1 // pred_fallthru
      _
    // Predicated region
    $region14: #{actor_forward.11} parent=1 // pred_check
      _
    $region15: #{actor_forward.11} parent=1 // pred_check_branch
      %20 = sbr.rel (0) target = $region17
    $region16: #{actor_forward.11} parent=1 // pred_region
      _
    $region17: #{actor_forward.11} parent=1 // pred_fallthru
      _
    // Predicated region
    $region18: #{actor_forward.11} parent=1 // pred_check
      _
    $region19: #{actor_forward.11} parent=1 // pred_check_branch
      %22 = sbr.rel (0) target = $region21
    $region20: #{actor_forward.11} parent=1 // pred_region
      _
    $region21: #{actor_forward.11} parent=1 // pred_fallthru
      _
    // Predicated region
    $region22: #{actor_forward.11} parent=1 // pred_check
      _
    $region23: #{actor_forward.11} parent=1 // pred_check_branch
      %24 = sbr.rel (0) target = $region25
    $region24: #{actor_forward.11} parent=1 // pred_region
      _
    $region25: #{actor_forward.11} parent=1 // pred_fallthru
      _
    // Predicated region
    $region26: #{actor_forward.11} parent=1 // pred_check
      _
    $region27: #{actor_forward.11} parent=1 // pred_check_branch
      %26 = sbr.rel (0) target = $region29
    $region28: #{actor_forward.11} parent=1 // pred_region
      _
    $region29: #{actor_forward.11} parent=1 // pred_fallthru
      _
    %v28 = vld [vmem:[%s0] sm:$0x7f]
    %v29 = vld [vmem:[%s1] sm:$0xff]
    %v30 = vld [vmem:[%s1 + $0x8] sm:$0xff]
    %v31 = vld [vmem:[%s1 + $0x10] sm:$0xff]
    %v32 = vld [vmem:[%s1 + $0x18] sm:$0xff]
    %v33 = vld [vmem:[%s1 + $0x20] sm:$0xff]
    %v34 = vld [vmem:[%s1 + $0x28] sm:$0xff]
    %v35 = vld [vmem:[%s1 + $0x30] sm:$0xff]
    %v36 = vld [vmem:[%s1 + $0x38] sm:$0xff]
    %v37 = vld [vmem:[%s1 + $0x40] sm:$0xff]
    %v38 = vld [vmem:[%s1 + $0x48] sm:$0xff]
    %v39 = vld [vmem:[%s1 + $0x50] sm:$0xff]
    %v40 = vld [vmem:[%s1 + $0x58] sm:$0xff]
    %v41 = vld [vmem:[%s1 + $0x60] sm:$0xff]
    %v42 = vld [vmem:[%s1 + $0x68] sm:$0xff]
    %v43 = vld [vmem:[%s1 + $0x70] sm:$0xff]
    %v44 = vld [vmem:[%s1 + $0x78] sm:$0xff]
    %v45 = vld [vmem:[%s1 + $0x80] sm:$0xff]
    %v46 = vld [vmem:[%s1 + $0x88] sm:$0xff]
    %v47 = vld [vmem:[%s1 + $0x90] sm:$0xff]
    %v48 = vld [vmem:[%s1 + $0x98] sm:$0xff]
    %v49 = vld [vmem:[%s1 + $0xa0] sm:$0xff]
    %v50 = vld [vmem:[%s1 + $0xa8] sm:$0xff]
    %v51 = vld [vmem:[%s1 + $0xb0] sm:$0xff]
    %v52 = vld [vmem:[%s1 + $0xb8] sm:$0xff]
    %v53 = vld [vmem:[%s1 + $0xc0] sm:$0xff]
    %v54 = vld [vmem:[%s1 + $0xc8] sm:$0xff]
    %v55 = vld [vmem:[%s1 + $0xd0] sm:$0xff]
    %v56 = vld [vmem:[%s1 + $0xd8] sm:$0xff]
    %v57 = vld [vmem:[%s1 + $0xe0] sm:$0xff]
    %v58 = vld [vmem:[%s1 + $0xe8] sm:$0xff]
    %v59 = vld [vmem:[%s1 + $0xf0] sm:$0xff]
    %v60 = vld [vmem:[%s1 + $0xf8] sm:$0xff]
    %v61 = vld [vmem:[%s1 + $0x100] sm:$0xff]
    %v62 = vld [vmem:[%s1 + $0x108] sm:$0xff]
    %v63 = vld [vmem:[%s1 + $0x110] sm:$0xff]
    %v64 = vld [vmem:[%s1 + $0x118] sm:$0xff]
    %v65 = vld [vmem:[%s1 + $0x120] sm:$0xff]
    %v66 = vld [vmem:[%s1 + $0x128] sm:$0xff]
    %v67 = vld [vmem:[%s1 + $0x130] sm:$0xff]
    %v68 = vld [vmem:[%s1 + $0x138] sm:$0xff]
    %v69 = vld [vmem:[%s1 + $0x140] sm:$0xff]
    %v70 = vld [vmem:[%s1 + $0x148] sm:$0xff]
    %v71 = vld [vmem:[%s1 + $0x150] sm:$0xff]
    %v72 = vld [vmem:[%s1 + $0x158] sm:$0xff]
    %v73 = vld [vmem:[%s1 + $0x160] sm:$0xff]
    %v74 = vld [vmem:[%s1 + $0x168] sm:$0xff]
    %v75 = vld [vmem:[%s1 + $0x170] sm:$0xff]
    %v76 = vld [vmem:[%s1 + $0x178] sm:$0xff]
    %v77 = vld [vmem:[%s1 + $0x180] sm:$0xff]
    %v78 = vld [vmem:[%s1 + $0x188] sm:$0xff]
    %v79 = vld [vmem:[%s1 + $0x190] sm:$0xff]
    %v80 = vld [vmem:[%s1 + $0x198] sm:$0xff]
    %v81 = vld [vmem:[%s1 + $0x1a0] sm:$0xff]
    %v82 = vld [vmem:[%s1 + $0x1a8] sm:$0xff]
    %v83 = vld [vmem:[%s1 + $0x1b0] sm:$0xff]
    %v84 = vld [vmem:[%s1 + $0x1b8] sm:$0xff]
    %v85 = vld [vmem:[%s1 + $0x1c0] sm:$0xff]
    %v86 = vld [vmem:[%s1 + $0x1c8] sm:$0xff]
    %v87 = vld [vmem:[%s1 + $0x1d0] sm:$0xff]
    %v88 = vld [vmem:[%s1 + $0x1d8] sm:$0xff]
    %v89 = vld [vmem:[%s1 + $0x1e0] sm:$0xff]
    %v90 = vld [vmem:[%s1 + $0x1e8] sm:$0xff]
    %v91 = vld [vmem:[%s1 + $0x1f0] sm:$0xff]
    %v92 = vld [vmem:[%s1 + $0x1f8] sm:$0xff]
    %v93 = vld [vmem:[%s1 + $0x200] sm:$0xff]
    %v94 = vld [vmem:[%s1 + $0x208] sm:$0xff]
    %v95 = vld [vmem:[%s1 + $0x210] sm:$0xff]
    %v96 = vld [vmem:[%s1 + $0x218] sm:$0xff]
    %v97 = vld [vmem:[%s1 + $0x220] sm:$0xff]
    %v98 = vld [vmem:[%s1 + $0x228] sm:$0xff]
    %v99 = vld [vmem:[%s1 + $0x230] sm:$0xff]
    %v100 = vld [vmem:[%s1 + $0x238] sm:$0xff]
    %v101 = vld [vmem:[%s1 + $0x240] sm:$0xff]
    %v102 = vld [vmem:[%s1 + $0x248] sm:$0xff]
    %v103 = vld [vmem:[%s1 + $0x250] sm:$0xff]
    %v104 = vld [vmem:[%s1 + $0x258] sm:$0xff]
    %v105 = vld [vmem:[%s1 + $0x260] sm:$0xff]
    %v106 = vld [vmem:[%s1 + $0x268] sm:$0xff]
    %v107 = vld [vmem:[%s1 + $0x270] sm:$0xff]
    %v108 = vld [vmem:[%s1 + $0x278] sm:$0xff]
    %v109 = vld [vmem:[%s1 + $0x280] sm:$0xff]
    %v110 = vld [vmem:[%s1 + $0x288] sm:$0xff]
    %v111 = vld [vmem:[%s1 + $0x290] sm:$0xff]
    %v112 = vld [vmem:[%s1 + $0x298] sm:$0xff]
    %v113 = vld [vmem:[%s1 + $0x2a0] sm:$0xff]
    %v114 = vld [vmem:[%s1 + $0x2a8] sm:$0xff]
    %v115 = vld [vmem:[%s1 + $0x2b0] sm:$0xff]
    %v116 = vld [vmem:[%s1 + $0x2b8] sm:$0xff]
    %v117 = vld [vmem:[%s1 + $0x2c0] sm:$0xff]
    %v118 = vld [vmem:[%s1 + $0x2c8] sm:$0xff]
    %v119 = vld [vmem:[%s1 + $0x2d0] sm:$0xff]
    %v120 = vld [vmem:[%s1 + $0x2d8] sm:$0xff]
    %v121 = vld [vmem:[%s1 + $0x2e0] sm:$0xff]
    %v122 = vld [vmem:[%s1 + $0x2e8] sm:$0xff]
    %v123 = vld [vmem:[%s1 + $0x2f0] sm:$0xff]
    %v124 = vld [vmem:[%s1 + $0x2f8] sm:$0xff]
    %v125 = vld [vmem:[%s1 + $0x300] sm:$0xff]
    %v126 = vld [vmem:[%s1 + $0x308] sm:$0xff]
    %v127 = vld [vmem:[%s1 + $0x310] sm:$0xff]
    %v128 = vld [vmem:[%s1 + $0x318] sm:$0xff]
    %v129 = vld [vmem:[%s1 + $0x320] sm:$0xff]
    %v130 = vld [vmem:[%s1 + $0x328] sm:$0xff]
    %v131 = vld [vmem:[%s1 + $0x330] sm:$0xff]
    %v132 = vld [vmem:[%s1 + $0x338] sm:$0xff]
    %v133 = vld [vmem:[%s1 + $0x340] sm:$0xff]
    %v134 = vld [vmem:[%s1 + $0x348] sm:$0xff]
    %v135 = vld [vmem:[%s1 + $0x350] sm:$0xff]
    %v136 = vld [vmem:[%s1 + $0x358] sm:$0xff]
    %v137 = vld [vmem:[%s1 + $0x360] sm:$0xff]
    %v138 = vld [vmem:[%s1 + $0x368] sm:$0xff]
    %v139 = vld [vmem:[%s1 + $0x370] sm:$0xff]
    %v140 = vld [vmem:[%s1 + $0x378] sm:$0xff]
    %v141 = vld [vmem:[%s1 + $0x380] sm:$0xff]
    %v142 = vld [vmem:[%s1 + $0x388] sm:$0xff]
    %v143 = vld [vmem:[%s1 + $0x390] sm:$0xff]
    %v144 = vld [vmem:[%s1 + $0x398] sm:$0xff]
    %v145 = vld [vmem:[%s1 + $0x3a0] sm:$0xff]
    %v146 = vld [vmem:[%s1 + $0x3a8] sm:$0xff]
    %v147 = vld [vmem:[%s1 + $0x3b0] sm:$0xff]
    %v148 = vld [vmem:[%s1 + $0x3b8] sm:$0xff]
    %v149 = vld [vmem:[%s1 + $0x3c0] sm:$0xff]
    %v150 = vld [vmem:[%s1 + $0x3c8] sm:$0xff]
    %v151 = vld [vmem:[%s1 + $0x3d0] sm:$0xff]
    %v152 = vld [vmem:[%s1 + $0x3d8] sm:$0xff]
    %v153 = vld [vmem:[%s1 + $0x3e0] sm:$0xff]
    %v154 = vld [vmem:[%s1 + $0x3e8] sm:$0xff]
    %v155 = vld [vmem:[%s1 + $0x3f0] sm:$0xff]
    %v156 = vld [vmem:[%s1 + $0x3f8] sm:$0xff]
    %v157 = vld [vmem:[%s1 + $0x400] sm:$0xff]
    %v158 = vld [vmem:[%s1 + $0x408] sm:$0xff]
    %v159 = vld [vmem:[%s1 + $0x410] sm:$0xff]
    %v160 = vld [vmem:[%s1 + $0x418] sm:$0xff]
    %v161 = vld [vmem:[%s1 + $0x420] sm:$0xff]
    %v162 = vld [vmem:[%s1 + $0x428] sm:$0xff]
    %v163 = vld [vmem:[%s1 + $0x430] sm:$0xff]
    %v164 = vld [vmem:[%s1 + $0x438] sm:$0xff]
    %v165 = vld [vmem:[%s1 + $0x440] sm:$0xff]
    %v166 = vld [vmem:[%s1 + $0x448] sm:$0xff]
    %v167 = vld [vmem:[%s1 + $0x450] sm:$0xff]
    %v168 = vld [vmem:[%s1 + $0x458] sm:$0xff]
    %v169 = vld [vmem:[%s1 + $0x460] sm:$0xff]
    %v170 = vld [vmem:[%s1 + $0x468] sm:$0xff]
    %v171 = vld [vmem:[%s1 + $0x470] sm:$0xff]
    %v172 = vld [vmem:[%s1 + $0x478] sm:$0xff]
    %v173 = vld [vmem:[%s1 + $0x480] sm:$0xff]
    %v174 = vld [vmem:[%s1 + $0x488] sm:$0xff]
    %v175 = vld [vmem:[%s1 + $0x490] sm:$0xff]
    %v176 = vld [vmem:[%s1 + $0x498] sm:$0xff]
    %v177 = vld [vmem:[%s1 + $0x4a0] sm:$0xff]
    %v178 = vld [vmem:[%s1 + $0x4a8] sm:$0xff]
    %v179 = vld [vmem:[%s1 + $0x4b0] sm:$0xff]
    %v180 = vld [vmem:[%s1 + $0x4b8] sm:$0xff]
    %v181 = vld [vmem:[%s1 + $0x4c0] sm:$0xff]
    %v182 = vld [vmem:[%s1 + $0x4c8] sm:$0xff]
    %v183 = vld [vmem:[%s1 + $0x4d0] sm:$0xff]
    %v184 = vld [vmem:[%s1 + $0x4d8] sm:$0xff]
    %v185 = vld [vmem:[%s1 + $0x4e0] sm:$0xff]
    %v186 = vld [vmem:[%s1 + $0x4e8] sm:$0xff]
    %v187 = vld [vmem:[%s1 + $0x4f0] sm:$0xff]
    %v188 = vld [vmem:[%s1 + $0x4f8] sm:$0xff]
    %v189 = vld [vmem:[%s1 + $0x500] sm:$0xff]
    %v190 = vld [vmem:[%s1 + $0x508] sm:$0xff]
    %v191 = vld [vmem:[%s1 + $0x510] sm:$0xff]
    %v192 = vld [vmem:[%s1 + $0x518] sm:$0xff]
    %v193 = vld [vmem:[%s1 + $0x520] sm:$0xff]
    %v194 = vld [vmem:[%s1 + $0x528] sm:$0xff]
    %v195 = vld [vmem:[%s1 + $0x530] sm:$0xff]
    %v196 = vld [vmem:[%s1 + $0x538] sm:$0xff]
    %v197 = vld [vmem:[%s1 + $0x540] sm:$0xff]
    %v198 = vld [vmem:[%s1 + $0x548] sm:$0xff]
    %v199 = vld [vmem:[%s1 + $0x550] sm:$0xff]
    %v200 = vld [vmem:[%s1 + $0x558] sm:$0xff]
    %v201 = vld [vmem:[%s1 + $0x560] sm:$0xff]
    %v202 = vld [vmem:[%s1 + $0x568] sm:$0xff]
    %v203 = vld [vmem:[%s1 + $0x570] sm:$0xff]
    %v204 = vld [vmem:[%s1 + $0x578] sm:$0xff]
    %v205 = vld [vmem:[%s1 + $0x580] sm:$0xff]
    %v206 = vld [vmem:[%s1 + $0x588] sm:$0xff]
    %v207 = vld [vmem:[%s1 + $0x590] sm:$0xff]
    %v208 = vld [vmem:[%s1 + $0x598] sm:$0xff]
    %v209 = vld [vmem:[%s1 + $0x5a0] sm:$0xff]
    %v210 = vld [vmem:[%s1 + $0x5a8] sm:$0xff]
    %v211 = vld [vmem:[%s1 + $0x5b0] sm:$0xff]
    %v212 = vld [vmem:[%s1 + $0x5b8] sm:$0xff]
    %v213 = vld [vmem:[%s1 + $0x5c0] sm:$0xff]
    %v214 = vld [vmem:[%s1 + $0x5c8] sm:$0xff]
    %v215 = vld [vmem:[%s1 + $0x5d0] sm:$0xff]
    %v216 = vld [vmem:[%s1 + $0x5d8] sm:$0xff]
    %v217 = vld [vmem:[%s1 + $0x5e0] sm:$0xff]
    %v218 = vld [vmem:[%s1 + $0x5e8] sm:$0xff]
    %v219 = vld [vmem:[%s1 + $0x5f0] sm:$0xff]
    %v220 = vld [vmem:[%s1 + $0x5f8] sm:$0xff]
    %v221 = vld [vmem:[%s1 + $0x600] sm:$0x11]
    %v222 = vld [vmem:[%s1 + $0x608] sm:$0x11]
    %v223 = vld [vmem:[%s2] sm:$0xf]
    %v225 = vlaneseq
    %v226 = vshrl.u32 %v225, 7
    %v227 = vsub.s32 0, %v226
    %v228 = vrot.slane %v223, %v227
    %v229 = vlaneseq
    %v230 = vshrl.u32 %v229, 7
    %v231 = vsub.s32 1, %v230
    %v232 = vrot.slane %v223, %v231
    %v233 = vlaneseq
    %v234 = vshrl.u32 %v233, 7
    %v235 = vsub.s32 2, %v234
    %v236 = vrot.slane %v223, %v235
    %v237 = vlaneseq
    %v238 = vshrl.u32 %v237, 7
    %v239 = vsub.s32 3, %v238
    %v240 = vrot.slane %v223, %v239
    %v246 = vcombine.high %v28, %v28
    %v248 = vunpack.c.l.s4 1966171168
    %v249 = vunpack.c.0.s8 %v248
    %v250 = vlaneseq
    %v251 = vshrl.u32 %v250, 7
    %v252 = vsub.s32 %v249, %v251
    %v253 = vrot.slane %v28, %v252
    %v255 = vunpack.c.l.s4 1966171168
    %v256 = vunpack.c.0.s8 %v255
    %v257 = vlaneseq
    %v258 = vshrl.u32 %v257, 7
    %v259 = vsub.s32 %v256, %v258
    %v260 = vrot.slane %v246, %v259
    %v261 = vcombine.high %v253, %v253
    %v262 = vcombine.high %v260, %v260
    %v264 = vunpack.c.l.s4 1966171168
    %v265 = vunpack.c.0.s8 %v264
    %v266 = vlaneseq
    %v267 = vshrl.u32 %v266, 7
    %v268 = vsub.s32 %v265, %v267
    %v269 = vrot.slane %v253, %v268
    %v271 = vunpack.c.l.s4 1966171168
    %v272 = vunpack.c.0.s8 %v271
    %v273 = vlaneseq
    %v274 = vshrl.u32 %v273, 7
    %v275 = vsub.s32 %v272, %v274
    %v276 = vrot.slane %v260, %v275
    %v278 = vunpack.c.l.s4 1966171168
    %v279 = vunpack.c.0.s8 %v278
    %v280 = vlaneseq
    %v281 = vshrl.u32 %v280, 7
    %v282 = vsub.s32 %v279, %v281
    %v283 = vrot.slane %v261, %v282
    %v285 = vunpack.c.l.s4 1966171168
    %v286 = vunpack.c.0.s8 %v285
    %v287 = vlaneseq
    %v288 = vshrl.u32 %v287, 7
    %v289 = vsub.s32 %v286, %v288
    %v290 = vrot.slane %v262, %v289
    %v291 = vcombine.high %v269, %v269
    %v292 = vcombine.high %v276, %v276
    %v293 = vcombine.high %v283, %v283
    %v494 = vunpack.c.l.b16 %v29
    %v495 = vunpack.c.h.b16 %v29
    %v496 = vunpack.c.l.b16 %v30
    %v497 = vunpack.c.h.b16 %v30
    %v498 = vunpack.c.l.b16 %v31
    %v499 = vunpack.c.h.b16 %v31
    %v500 = vunpack.c.l.b16 %v32
    %v501 = vunpack.c.h.b16 %v32
    %v502 = vunpack.c.l.b16 %v33
    %v503 = vunpack.c.h.b16 %v33
    %v504 = vunpack.c.l.b16 %v34
    %v505 = vunpack.c.h.b16 %v34
    %v506 = vunpack.c.l.b16 %v35
    %v507 = vunpack.c.h.b16 %v35
    %v508 = vunpack.c.l.b16 %v36
    %v509 = vunpack.c.h.b16 %v36
    %v510 = vunpack.c.l.b16 %v37
    %v511 = vunpack.c.h.b16 %v37
    %v512 = vunpack.c.l.b16 %v38
    %v513 = vunpack.c.h.b16 %v38
    %v514 = vunpack.c.l.b16 %v39
    %v515 = vunpack.c.h.b16 %v39
    %v516 = vunpack.c.l.b16 %v40
    %v517 = vunpack.c.h.b16 %v40
    %v518 = vunpack.c.l.b16 %v41
    %v519 = vunpack.c.h.b16 %v41
    %v520 = vunpack.c.l.b16 %v42
    %v521 = vunpack.c.h.b16 %v42
    %v522 = vunpack.c.l.b16 %v43
    %v523 = vunpack.c.h.b16 %v43
    %v524 = vunpack.c.l.b16 %v44
    %v525 = vunpack.c.h.b16 %v44
    %v526 = vunpack.c.l.b16 %v45
    %v527 = vunpack.c.h.b16 %v45
    %v528 = vunpack.c.l.b16 %v46
    %v529 = vunpack.c.h.b16 %v46
    %v530 = vunpack.c.l.b16 %v47
    %v531 = vunpack.c.h.b16 %v47
    %v532 = vunpack.c.l.b16 %v48
    %v533 = vunpack.c.h.b16 %v48
    %v534 = vunpack.c.l.b16 %v49
    %v535 = vunpack.c.h.b16 %v49
    %v536 = vunpack.c.l.b16 %v50
    %v537 = vunpack.c.h.b16 %v50
    %v538 = vunpack.c.l.b16 %v51
    %v539 = vunpack.c.h.b16 %v51
    %v540 = vunpack.c.l.b16 %v52
    %v541 = vunpack.c.h.b16 %v52
    %v542 = vunpack.c.l.b16 %v53
    %v543 = vunpack.c.h.b16 %v53
    %v544 = vunpack.c.l.b16 %v54
    %v545 = vunpack.c.h.b16 %v54
    %v546 = vunpack.c.l.b16 %v55
    %v547 = vunpack.c.h.b16 %v55
    %v548 = vunpack.c.l.b16 %v56
    %v549 = vunpack.c.h.b16 %v56
    %v550 = vunpack.c.l.b16 %v57
    %v551 = vunpack.c.h.b16 %v57
    %v552 = vunpack.c.l.b16 %v58
    %v553 = vunpack.c.h.b16 %v58
    %v554 = vunpack.c.l.b16 %v59
    %v555 = vunpack.c.h.b16 %v59
    %v556 = vunpack.c.l.b16 %v60
    %v557 = vunpack.c.h.b16 %v60
    %v558 = vunpack.c.l.b16 %v61
    %v559 = vunpack.c.h.b16 %v61
    %v560 = vunpack.c.l.b16 %v62
    %v561 = vunpack.c.h.b16 %v62
    %v562 = vunpack.c.l.b16 %v63
    %v563 = vunpack.c.h.b16 %v63
    %v564 = vunpack.c.l.b16 %v64
    %v565 = vunpack.c.h.b16 %v64
    %v566 = vunpack.c.l.b16 %v65
    %v567 = vunpack.c.h.b16 %v65
    %v568 = vunpack.c.l.b16 %v66
    %v569 = vunpack.c.h.b16 %v66
    %v570 = vunpack.c.l.b16 %v67
    %v571 = vunpack.c.h.b16 %v67
    %v572 = vunpack.c.l.b16 %v68
    %v573 = vunpack.c.h.b16 %v68
    %v574 = vunpack.c.l.b16 %v69
    %v575 = vunpack.c.h.b16 %v69
    %v576 = vunpack.c.l.b16 %v70
    %v577 = vunpack.c.h.b16 %v70
    %v578 = vunpack.c.l.b16 %v71
    %v579 = vunpack.c.h.b16 %v71
    %v580 = vunpack.c.l.b16 %v72
    %v581 = vunpack.c.h.b16 %v72
    %v582 = vunpack.c.l.b16 %v73
    %v583 = vunpack.c.h.b16 %v73
    %v584 = vunpack.c.l.b16 %v74
    %v585 = vunpack.c.h.b16 %v74
    %v586 = vunpack.c.l.b16 %v75
    %v587 = vunpack.c.h.b16 %v75
    %v588 = vunpack.c.l.b16 %v76
    %v589 = vunpack.c.h.b16 %v76
    %v590 = vunpack.c.l.b16 %v77
    %v591 = vunpack.c.h.b16 %v77
    %v592 = vunpack.c.l.b16 %v78
    %v593 = vunpack.c.h.b16 %v78
    %v594 = vunpack.c.l.b16 %v79
    %v595 = vunpack.c.h.b16 %v79
    %v596 = vunpack.c.l.b16 %v80
    %v597 = vunpack.c.h.b16 %v80
    %v598 = vunpack.c.l.b16 %v81
    %v599 = vunpack.c.h.b16 %v81
    %v600 = vunpack.c.l.b16 %v82
    %v601 = vunpack.c.h.b16 %v82
    %v602 = vunpack.c.l.b16 %v83
    %v603 = vunpack.c.h.b16 %v83
    %v604 = vunpack.c.l.b16 %v84
    %v605 = vunpack.c.h.b16 %v84
    %v606 = vunpack.c.l.b16 %v85
    %v607 = vunpack.c.h.b16 %v85
    %v608 = vunpack.c.l.b16 %v86
    %v609 = vunpack.c.h.b16 %v86
    %v610 = vunpack.c.l.b16 %v87
    %v611 = vunpack.c.h.b16 %v87
    %v612 = vunpack.c.l.b16 %v88
    %v613 = vunpack.c.h.b16 %v88
    %v614 = vunpack.c.l.b16 %v89
    %v615 = vunpack.c.h.b16 %v89
    %v616 = vunpack.c.l.b16 %v90
    %v617 = vunpack.c.h.b16 %v90
    %v618 = vunpack.c.l.b16 %v91
    %v619 = vunpack.c.h.b16 %v91
    %v620 = vunpack.c.l.b16 %v92
    %v621 = vunpack.c.h.b16 %v92
    %v622 = vunpack.c.l.b16 %v93
    %v623 = vunpack.c.h.b16 %v93
    %v624 = vunpack.c.l.b16 %v94
    %v625 = vunpack.c.h.b16 %v94
    %v626 = vunpack.c.l.b16 %v95
    %v627 = vunpack.c.h.b16 %v95
    %v628 = vunpack.c.l.b16 %v96
    %v629 = vunpack.c.h.b16 %v96
    %v630 = vunpack.c.l.b16 %v97
    %v631 = vunpack.c.h.b16 %v97
    %v632 = vunpack.c.l.b16 %v98
    %v633 = vunpack.c.h.b16 %v98
    %v634 = vunpack.c.l.b16 %v99
    %v635 = vunpack.c.h.b16 %v99
    %v636 = vunpack.c.l.b16 %v100
    %v637 = vunpack.c.h.b16 %v100
    %v638 = vunpack.c.l.b16 %v101
    %v639 = vunpack.c.h.b16 %v101
    %v640 = vunpack.c.l.b16 %v102
    %v641 = vunpack.c.h.b16 %v102
    %v642 = vunpack.c.l.b16 %v103
    %v643 = vunpack.c.h.b16 %v103
    %v644 = vunpack.c.l.b16 %v104
    %v645 = vunpack.c.h.b16 %v104
    %v646 = vunpack.c.l.b16 %v105
    %v647 = vunpack.c.h.b16 %v105
    %v648 = vunpack.c.l.b16 %v106
    %v649 = vunpack.c.h.b16 %v106
    %v650 = vunpack.c.l.b16 %v107
    %v651 = vunpack.c.h.b16 %v107
    %v652 = vunpack.c.l.b16 %v108
    %v653 = vunpack.c.h.b16 %v108
    %v654 = vunpack.c.l.b16 %v109
    %v655 = vunpack.c.h.b16 %v109
    %v656 = vunpack.c.l.b16 %v110
    %v657 = vunpack.c.h.b16 %v110
    %v658 = vunpack.c.l.b16 %v111
    %v659 = vunpack.c.h.b16 %v111
    %v660 = vunpack.c.l.b16 %v112
    %v661 = vunpack.c.h.b16 %v112
    %v662 = vunpack.c.l.b16 %v113
    %v663 = vunpack.c.h.b16 %v113
    %v664 = vunpack.c.l.b16 %v114
    %v665 = vunpack.c.h.b16 %v114
    %v666 = vunpack.c.l.b16 %v115
    %v667 = vunpack.c.h.b16 %v115
    %v668 = vunpack.c.l.b16 %v116
    %v669 = vunpack.c.h.b16 %v116
    %v670 = vunpack.c.l.b16 %v117
    %v671 = vunpack.c.h.b16 %v117
    %v672 = vunpack.c.l.b16 %v118
    %v673 = vunpack.c.h.b16 %v118
    %v674 = vunpack.c.l.b16 %v119
    %v675 = vunpack.c.h.b16 %v119
    %v676 = vunpack.c.l.b16 %v120
    %v677 = vunpack.c.h.b16 %v120
    %v678 = vunpack.c.l.b16 %v121
    %v679 = vunpack.c.h.b16 %v121
    %v680 = vunpack.c.l.b16 %v122
    %v681 = vunpack.c.h.b16 %v122
    %v682 = vunpack.c.l.b16 %v123
    %v683 = vunpack.c.h.b16 %v123
    %v684 = vunpack.c.l.b16 %v124
    %v685 = vunpack.c.h.b16 %v124
    %v686 = vunpack.c.l.b16 %v125
    %v687 = vunpack.c.h.b16 %v125
    %v688 = vunpack.c.l.b16 %v126
    %v689 = vunpack.c.h.b16 %v126
    %v690 = vunpack.c.l.b16 %v127
    %v691 = vunpack.c.h.b16 %v127
    %v692 = vunpack.c.l.b16 %v128
    %v693 = vunpack.c.h.b16 %v128
    %v694 = vunpack.c.l.b16 %v129
    %v695 = vunpack.c.h.b16 %v129
    %v696 = vunpack.c.l.b16 %v130
    %v697 = vunpack.c.h.b16 %v130
    %v698 = vunpack.c.l.b16 %v131
    %v699 = vunpack.c.h.b16 %v131
    %v700 = vunpack.c.l.b16 %v132
    %v701 = vunpack.c.h.b16 %v132
    %v702 = vunpack.c.l.b16 %v133
    %v703 = vunpack.c.h.b16 %v133
    %v704 = vunpack.c.l.b16 %v134
    %v705 = vunpack.c.h.b16 %v134
    %v706 = vunpack.c.l.b16 %v135
    %v707 = vunpack.c.h.b16 %v135
    %v708 = vunpack.c.l.b16 %v136
    %v709 = vunpack.c.h.b16 %v136
    %v710 = vunpack.c.l.b16 %v137
    %v711 = vunpack.c.h.b16 %v137
    %v712 = vunpack.c.l.b16 %v138
    %v713 = vunpack.c.h.b16 %v138
    %v714 = vunpack.c.l.b16 %v139
    %v715 = vunpack.c.h.b16 %v139
    %v716 = vunpack.c.l.b16 %v140
    %v717 = vunpack.c.h.b16 %v140
    %v718 = vunpack.c.l.b16 %v141
    %v719 = vunpack.c.h.b16 %v141
    %v720 = vunpack.c.l.b16 %v142
    %v721 = vunpack.c.h.b16 %v142
    %v722 = vunpack.c.l.b16 %v143
    %v723 = vunpack.c.h.b16 %v143
    %v724 = vunpack.c.l.b16 %v144
    %v725 = vunpack.c.h.b16 %v144
    %v726 = vunpack.c.l.b16 %v145
    %v727 = vunpack.c.h.b16 %v145
    %v728 = vunpack.c.l.b16 %v146
    %v729 = vunpack.c.h.b16 %v146
    %v730 = vunpack.c.l.b16 %v147
    %v731 = vunpack.c.h.b16 %v147
    %v732 = vunpack.c.l.b16 %v148
    %v733 = vunpack.c.h.b16 %v148
    %v734 = vunpack.c.l.b16 %v149
    %v735 = vunpack.c.h.b16 %v149
    %v736 = vunpack.c.l.b16 %v150
    %v737 = vunpack.c.h.b16 %v150
    %v738 = vunpack.c.l.b16 %v151
    %v739 = vunpack.c.h.b16 %v151
    %v740 = vunpack.c.l.b16 %v152
    %v741 = vunpack.c.h.b16 %v152
    %v742 = vunpack.c.l.b16 %v153
    %v743 = vunpack.c.h.b16 %v153
    %v744 = vunpack.c.l.b16 %v154
    %v745 = vunpack.c.h.b16 %v154
    %v746 = vunpack.c.l.b16 %v155
    %v747 = vunpack.c.h.b16 %v155
    %v748 = vunpack.c.l.b16 %v156
    %v749 = vunpack.c.h.b16 %v156
    %v750 = vunpack.c.l.b16 %v157
    %v751 = vunpack.c.h.b16 %v157
    %v752 = vunpack.c.l.b16 %v158
    %v753 = vunpack.c.h.b16 %v158
    %v754 = vunpack.c.l.b16 %v159
    %v755 = vunpack.c.h.b16 %v159
    %v756 = vunpack.c.l.b16 %v160
    %v757 = vunpack.c.h.b16 %v160
    %v758 = vunpack.c.l.b16 %v161
    %v759 = vunpack.c.h.b16 %v161
    %v760 = vunpack.c.l.b16 %v162
    %v761 = vunpack.c.h.b16 %v162
    %v762 = vunpack.c.l.b16 %v163
    %v763 = vunpack.c.h.b16 %v163
    %v764 = vunpack.c.l.b16 %v164
    %v765 = vunpack.c.h.b16 %v164
    %v766 = vunpack.c.l.b16 %v165
    %v767 = vunpack.c.h.b16 %v165
    %v768 = vunpack.c.l.b16 %v166
    %v769 = vunpack.c.h.b16 %v166
    %v770 = vunpack.c.l.b16 %v167
    %v771 = vunpack.c.h.b16 %v167
    %v772 = vunpack.c.l.b16 %v168
    %v773 = vunpack.c.h.b16 %v168
    %v774 = vunpack.c.l.b16 %v169
    %v775 = vunpack.c.h.b16 %v169
    %v776 = vunpack.c.l.b16 %v170
    %v777 = vunpack.c.h.b16 %v170
    %v778 = vunpack.c.l.b16 %v171
    %v779 = vunpack.c.h.b16 %v171
    %v780 = vunpack.c.l.b16 %v172
    %v781 = vunpack.c.h.b16 %v172
    %v782 = vunpack.c.l.b16 %v173
    %v783 = vunpack.c.h.b16 %v173
    %v784 = vunpack.c.l.b16 %v174
    %v785 = vunpack.c.h.b16 %v174
    %v786 = vunpack.c.l.b16 %v175
    %v787 = vunpack.c.h.b16 %v175
    %v788 = vunpack.c.l.b16 %v176
    %v789 = vunpack.c.h.b16 %v176
    %v790 = vunpack.c.l.b16 %v177
    %v791 = vunpack.c.h.b16 %v177
    %v792 = vunpack.c.l.b16 %v178
    %v793 = vunpack.c.h.b16 %v178
    %v794 = vunpack.c.l.b16 %v179
    %v795 = vunpack.c.h.b16 %v179
    %v796 = vunpack.c.l.b16 %v180
    %v797 = vunpack.c.h.b16 %v180
    %v798 = vunpack.c.l.b16 %v181
    %v799 = vunpack.c.h.b16 %v181
    %v800 = vunpack.c.l.b16 %v182
    %v801 = vunpack.c.h.b16 %v182
    %v802 = vunpack.c.l.b16 %v183
    %v803 = vunpack.c.h.b16 %v183
    %v804 = vunpack.c.l.b16 %v184
    %v805 = vunpack.c.h.b16 %v184
    %v806 = vunpack.c.l.b16 %v185
    %v807 = vunpack.c.h.b16 %v185
    %v808 = vunpack.c.l.b16 %v186
    %v809 = vunpack.c.h.b16 %v186
    %v810 = vunpack.c.l.b16 %v187
    %v811 = vunpack.c.h.b16 %v187
    %v812 = vunpack.c.l.b16 %v188
    %v813 = vunpack.c.h.b16 %v188
    %v814 = vunpack.c.l.b16 %v189
    %v815 = vunpack.c.h.b16 %v189
    %v816 = vunpack.c.l.b16 %v190
    %v817 = vunpack.c.h.b16 %v190
    %v818 = vunpack.c.l.b16 %v191
    %v819 = vunpack.c.h.b16 %v191
    %v820 = vunpack.c.l.b16 %v192
    %v821 = vunpack.c.h.b16 %v192
    %v822 = vunpack.c.l.b16 %v193
    %v823 = vunpack.c.h.b16 %v193
    %v824 = vunpack.c.l.b16 %v194
    %v825 = vunpack.c.h.b16 %v194
    %v826 = vunpack.c.l.b16 %v195
    %v827 = vunpack.c.h.b16 %v195
    %v828 = vunpack.c.l.b16 %v196
    %v829 = vunpack.c.h.b16 %v196
    %v830 = vunpack.c.l.b16 %v197
    %v831 = vunpack.c.h.b16 %v197
    %v832 = vunpack.c.l.b16 %v198
    %v833 = vunpack.c.h.b16 %v198
    %v834 = vunpack.c.l.b16 %v199
    %v835 = vunpack.c.h.b16 %v199
    %v836 = vunpack.c.l.b16 %v200
    %v837 = vunpack.c.h.b16 %v200
    %v838 = vunpack.c.l.b16 %v201
    %v839 = vunpack.c.h.b16 %v201
    %v840 = vunpack.c.l.b16 %v202
    %v841 = vunpack.c.h.b16 %v202
    %v842 = vunpack.c.l.b16 %v203
    %v843 = vunpack.c.h.b16 %v203
    %v844 = vunpack.c.l.b16 %v204
    %v845 = vunpack.c.h.b16 %v204
    %v846 = vunpack.c.l.b16 %v205
    %v847 = vunpack.c.h.b16 %v205
    %v848 = vunpack.c.l.b16 %v206
    %v849 = vunpack.c.h.b16 %v206
    %v850 = vunpack.c.l.b16 %v207
    %v851 = vunpack.c.h.b16 %v207
    %v852 = vunpack.c.l.b16 %v208
    %v853 = vunpack.c.h.b16 %v208
    %v854 = vunpack.c.l.b16 %v209
    %v855 = vunpack.c.h.b16 %v209
    %v856 = vunpack.c.l.b16 %v210
    %v857 = vunpack.c.h.b16 %v210
    %v858 = vunpack.c.l.b16 %v211
    %v859 = vunpack.c.h.b16 %v211
    %v860 = vunpack.c.l.b16 %v212
    %v861 = vunpack.c.h.b16 %v212
    %v862 = vunpack.c.l.b16 %v213
    %v863 = vunpack.c.h.b16 %v213
    %v864 = vunpack.c.l.b16 %v214
    %v865 = vunpack.c.h.b16 %v214
    %v866 = vunpack.c.l.b16 %v215
    %v867 = vunpack.c.h.b16 %v215
    %v868 = vunpack.c.l.b16 %v216
    %v869 = vunpack.c.h.b16 %v216
    %v870 = vunpack.c.l.b16 %v217
    %v871 = vunpack.c.h.b16 %v217
    %v872 = vunpack.c.l.b16 %v218
    %v873 = vunpack.c.h.b16 %v218
    %v874 = vunpack.c.l.b16 %v219
    %v875 = vunpack.c.h.b16 %v219
    %v876 = vunpack.c.l.b16 %v220
    %v877 = vunpack.c.h.b16 %v220
    %v878 = vunpack.c.l.b16 %v221
    %v879 = vunpack.c.h.b16 %v221
    %v880 = vunpack.c.l.b16 %v222
    %v881 = vunpack.c.h.b16 %v222
    %v882 = vpack.c.b16 %v498, %v494
    %v883 = vpack.c.b16 %v499, %v495
    %v884 = vpack.c.b16 %v500, %v496
    %v885 = vpack.c.b16 %v501, %v497
    %v886 = vpack.c.b16 %v506, %v502
    %v887 = vpack.c.b16 %v507, %v503
    %v888 = vpack.c.b16 %v508, %v504
    %v889 = vpack.c.b16 %v509, %v505
    %v890 = vpack.c.b16 %v514, %v510
    %v891 = vpack.c.b16 %v515, %v511
    %v892 = vpack.c.b16 %v516, %v512
    %v893 = vpack.c.b16 %v517, %v513
    %v894 = vpack.c.b16 %v522, %v518
    %v895 = vpack.c.b16 %v523, %v519
    %v896 = vpack.c.b16 %v524, %v520
    %v897 = vpack.c.b16 %v525, %v521
    %v898 = vpack.c.b16 %v530, %v526
    %v899 = vpack.c.b16 %v531, %v527
    %v900 = vpack.c.b16 %v532, %v528
    %v901 = vpack.c.b16 %v533, %v529
    %v902 = vpack.c.b16 %v538, %v534
    %v903 = vpack.c.b16 %v539, %v535
    %v904 = vpack.c.b16 %v540, %v536
    %v905 = vpack.c.b16 %v541, %v537
    %v906 = vpack.c.b16 %v546, %v542
    %v907 = vpack.c.b16 %v547, %v543
    %v908 = vpack.c.b16 %v548, %v544
    %v909 = vpack.c.b16 %v549, %v545
    %v910 = vpack.c.b16 %v554, %v550
    %v911 = vpack.c.b16 %v555, %v551
    %v912 = vpack.c.b16 %v556, %v552
    %v913 = vpack.c.b16 %v557, %v553
    %v914 = vpack.c.b16 %v562, %v558
    %v915 = vpack.c.b16 %v563, %v559
    %v916 = vpack.c.b16 %v564, %v560
    %v917 = vpack.c.b16 %v565, %v561
    %v918 = vpack.c.b16 %v570, %v566
    %v919 = vpack.c.b16 %v571, %v567
    %v920 = vpack.c.b16 %v572, %v568
    %v921 = vpack.c.b16 %v573, %v569
    %v922 = vpack.c.b16 %v578, %v574
    %v923 = vpack.c.b16 %v579, %v575
    %v924 = vpack.c.b16 %v580, %v576
    %v925 = vpack.c.b16 %v581, %v577
    %v926 = vpack.c.b16 %v586, %v582
    %v927 = vpack.c.b16 %v587, %v583
    %v928 = vpack.c.b16 %v588, %v584
    %v929 = vpack.c.b16 %v589, %v585
    %v930 = vpack.c.b16 %v594, %v590
    %v931 = vpack.c.b16 %v595, %v591
    %v932 = vpack.c.b16 %v596, %v592
    %v933 = vpack.c.b16 %v597, %v593
    %v934 = vpack.c.b16 %v602, %v598
    %v935 = vpack.c.b16 %v603, %v599
    %v936 = vpack.c.b16 %v604, %v600
    %v937 = vpack.c.b16 %v605, %v601
    %v938 = vpack.c.b16 %v610, %v606
    %v939 = vpack.c.b16 %v611, %v607
    %v940 = vpack.c.b16 %v612, %v608
    %v941 = vpack.c.b16 %v613, %v609
    %v942 = vpack.c.b16 %v618, %v614
    %v943 = vpack.c.b16 %v619, %v615
    %v944 = vpack.c.b16 %v620, %v616
    %v945 = vpack.c.b16 %v621, %v617
    %v946 = vpack.c.b16 %v626, %v622
    %v947 = vpack.c.b16 %v627, %v623
    %v948 = vpack.c.b16 %v628, %v624
    %v949 = vpack.c.b16 %v629, %v625
    %v950 = vpack.c.b16 %v634, %v630
    %v951 = vpack.c.b16 %v635, %v631
    %v952 = vpack.c.b16 %v636, %v632
    %v953 = vpack.c.b16 %v637, %v633
    %v954 = vpack.c.b16 %v642, %v638
    %v955 = vpack.c.b16 %v643, %v639
    %v956 = vpack.c.b16 %v644, %v640
    %v957 = vpack.c.b16 %v645, %v641
    %v958 = vpack.c.b16 %v650, %v646
    %v959 = vpack.c.b16 %v651, %v647
    %v960 = vpack.c.b16 %v652, %v648
    %v961 = vpack.c.b16 %v653, %v649
    %v962 = vpack.c.b16 %v658, %v654
    %v963 = vpack.c.b16 %v659, %v655
    %v964 = vpack.c.b16 %v660, %v656
    %v965 = vpack.c.b16 %v661, %v657
    %v966 = vpack.c.b16 %v666, %v662
    %v967 = vpack.c.b16 %v667, %v663
    %v968 = vpack.c.b16 %v668, %v664
    %v969 = vpack.c.b16 %v669, %v665
    %v970 = vpack.c.b16 %v674, %v670
    %v971 = vpack.c.b16 %v675, %v671
    %v972 = vpack.c.b16 %v676, %v672
    %v973 = vpack.c.b16 %v677, %v673
    %v974 = vpack.c.b16 %v682, %v678
    %v975 = vpack.c.b16 %v683, %v679
    %v976 = vpack.c.b16 %v684, %v680
    %v977 = vpack.c.b16 %v685, %v681
    %v978 = vpack.c.b16 %v690, %v686
    %v979 = vpack.c.b16 %v691, %v687
    %v980 = vpack.c.b16 %v692, %v688
    %v981 = vpack.c.b16 %v693, %v689
    %v982 = vpack.c.b16 %v698, %v694
    %v983 = vpack.c.b16 %v699, %v695
    %v984 = vpack.c.b16 %v700, %v696
    %v985 = vpack.c.b16 %v701, %v697
    %v986 = vpack.c.b16 %v706, %v702
    %v987 = vpack.c.b16 %v707, %v703
    %v988 = vpack.c.b16 %v708, %v704
    %v989 = vpack.c.b16 %v709, %v705
    %v990 = vpack.c.b16 %v714, %v710
    %v991 = vpack.c.b16 %v715, %v711
    %v992 = vpack.c.b16 %v716, %v712
    %v993 = vpack.c.b16 %v717, %v713
    %v994 = vpack.c.b16 %v722, %v718
    %v995 = vpack.c.b16 %v723, %v719
    %v996 = vpack.c.b16 %v724, %v720
    %v997 = vpack.c.b16 %v725, %v721
    %v998 = vpack.c.b16 %v730, %v726
    %v999 = vpack.c.b16 %v731, %v727
    %v1000 = vpack.c.b16 %v732, %v728
    %v1001 = vpack.c.b16 %v733, %v729
    %v1002 = vpack.c.b16 %v738, %v734
    %v1003 = vpack.c.b16 %v739, %v735
    %v1004 = vpack.c.b16 %v740, %v736
    %v1005 = vpack.c.b16 %v741, %v737
    %v1006 = vpack.c.b16 %v746, %v742
    %v1007 = vpack.c.b16 %v747, %v743
    %v1008 = vpack.c.b16 %v748, %v744
    %v1009 = vpack.c.b16 %v749, %v745
    %v1010 = vpack.c.b16 %v754, %v750
    %v1011 = vpack.c.b16 %v755, %v751
    %v1012 = vpack.c.b16 %v756, %v752
    %v1013 = vpack.c.b16 %v757, %v753
    %v1014 = vpack.c.b16 %v762, %v758
    %v1015 = vpack.c.b16 %v763, %v759
    %v1016 = vpack.c.b16 %v764, %v760
    %v1017 = vpack.c.b16 %v765, %v761
    %v1018 = vpack.c.b16 %v770, %v766
    %v1019 = vpack.c.b16 %v771, %v767
    %v1020 = vpack.c.b16 %v772, %v768
    %v1021 = vpack.c.b16 %v773, %v769
    %v1022 = vpack.c.b16 %v778, %v774
    %v1023 = vpack.c.b16 %v779, %v775
    %v1024 = vpack.c.b16 %v780, %v776
    %v1025 = vpack.c.b16 %v781, %v777
    %v1026 = vpack.c.b16 %v786, %v782
    %v1027 = vpack.c.b16 %v787, %v783
    %v1028 = vpack.c.b16 %v788, %v784
    %v1029 = vpack.c.b16 %v789, %v785
    %v1030 = vpack.c.b16 %v794, %v790
    %v1031 = vpack.c.b16 %v795, %v791
    %v1032 = vpack.c.b16 %v796, %v792
    %v1033 = vpack.c.b16 %v797, %v793
    %v1034 = vpack.c.b16 %v802, %v798
    %v1035 = vpack.c.b16 %v803, %v799
    %v1036 = vpack.c.b16 %v804, %v800
    %v1037 = vpack.c.b16 %v805, %v801
    %v1038 = vpack.c.b16 %v810, %v806
    %v1039 = vpack.c.b16 %v811, %v807
    %v1040 = vpack.c.b16 %v812, %v808
    %v1041 = vpack.c.b16 %v813, %v809
    %v1042 = vpack.c.b16 %v818, %v814
    %v1043 = vpack.c.b16 %v819, %v815
    %v1044 = vpack.c.b16 %v820, %v816
    %v1045 = vpack.c.b16 %v821, %v817
    %v1046 = vpack.c.b16 %v826, %v822
    %v1047 = vpack.c.b16 %v827, %v823
    %v1048 = vpack.c.b16 %v828, %v824
    %v1049 = vpack.c.b16 %v829, %v825
    %v1050 = vpack.c.b16 %v834, %v830
    %v1051 = vpack.c.b16 %v835, %v831
    %v1052 = vpack.c.b16 %v836, %v832
    %v1053 = vpack.c.b16 %v837, %v833
    %v1054 = vpack.c.b16 %v842, %v838
    %v1055 = vpack.c.b16 %v843, %v839
    %v1056 = vpack.c.b16 %v844, %v840
    %v1057 = vpack.c.b16 %v845, %v841
    %v1058 = vpack.c.b16 %v850, %v846
    %v1059 = vpack.c.b16 %v851, %v847
    %v1060 = vpack.c.b16 %v852, %v848
    %v1061 = vpack.c.b16 %v853, %v849
    %v1062 = vpack.c.b16 %v858, %v854
    %v1063 = vpack.c.b16 %v859, %v855
    %v1064 = vpack.c.b16 %v860, %v856
    %v1065 = vpack.c.b16 %v861, %v857
    %v1066 = vpack.c.b16 %v866, %v862
    %v1067 = vpack.c.b16 %v867, %v863
    %v1068 = vpack.c.b16 %v868, %v864
    %v1069 = vpack.c.b16 %v869, %v865
    %v1070 = vpack.c.b16 %v874, %v870
    %v1071 = vpack.c.b16 %v875, %v871
    %v1072 = vpack.c.b16 %v876, %v872
    %v1073 = vpack.c.b16 %v877, %v873
    %v1074 = vpack.c.b16 %v878, %v878
    %v1075 = vpack.c.b16 %v879, %v879
    %v1076 = vpack.c.b16 %v880, %v880
    %v1077 = vpack.c.b16 %v881, %v881
    %vm1270 = vcmask 15360
    %v1272 = vsel %vm1270, %v292, 0
    %vm1274 = vcmask 1040384
    %v1276 = vsel %vm1274, %v1074, 0
    %v1279 = vsel %vm1274, %v1075, 0
    %v1282 = vsel %vm1274, %v1076, 0
    %v1285 = vsel %vm1274, %v1077, 0
    %1287 = vmatprep.subr.bf16.mxu0 %v911
    %1288 = vmatpush1.bf16.msra.mxu0 %v910
    %1289 = vmatprep.subr.bf16.mxu0 %v907
    %1290 = vmatpush1.bf16.msra.mxu0 %v906
    %1291 = vmatprep.subr.bf16.mxu0 %v903
    %1292 = vmatpush1.bf16.msra.mxu0 %v902
    %1293 = vmatprep.subr.bf16.mxu0 %v899
    %1294 = vmatpush1.bf16.msra.mxu0 %v898
    %1295 = vmatprep.subr.bf16.mxu0 %v895
    %1296 = vmatpush1.bf16.msra.mxu0 %v894
    %1297 = vmatprep.subr.bf16.mxu0 %v891
    %1298 = vmatpush1.bf16.msra.mxu0 %v890
    %1299 = vmatprep.subr.bf16.mxu0 %v887
    %1300 = vmatpush1.bf16.msra.mxu0 %v886
    %1301 = vmatprep.subr.bf16.mxu0 %v883
    %1302 = vmatpush1.bf16.msra.mxu0 %v882
    %1303 = vmatprep.subr.bf16.mxu0 %v943
    %1304 = vmatpush2.bf16.msra.mxu0 %v942
    %1305 = vmatprep.subr.bf16.mxu0 %v939
    %1306 = vmatpush2.bf16.msra.mxu0 %v938
    %1307 = vmatprep.subr.bf16.mxu0 %v935
    %1308 = vmatpush2.bf16.msra.mxu0 %v934
    %1309 = vmatprep.subr.bf16.mxu0 %v931
    %1310 = vmatpush2.bf16.msra.mxu0 %v930
    %1311 = vmatprep.subr.bf16.mxu0 %v927
    %1312 = vmatpush2.bf16.msra.mxu0 %v926
    %1313 = vmatprep.subr.bf16.mxu0 %v923
    %1314 = vmatpush2.bf16.msra.mxu0 %v922
    %1315 = vmatprep.subr.bf16.mxu0 %v919
    %1316 = vmatpush2.bf16.msra.mxu0 %v918
    %1317 = vmatprep.subr.bf16.mxu0 %v915
    %1318 = vmatpush2.bf16.msra.mxu0 %v914
    %1319 = vmatprep.mubr.bf16.mxu0 %v283
    %1320 = vmatmul.mubr.bf16.gmra.mxu0 %v269
    %v1321 = vpop.f32.mrf.mxu0
    %v1322 = vadd.f32 %v228, %v1321
    %v1323 = vpop.f32.mrf.mxu0
    %v1324 = vadd.f32 %v232, %v1323
    %v1325 = vpop.f32.mrf.mxu0
    %v1326 = vpop.f32.mrf.mxu0
    %1327 = vdwg.mxu0
    %1328 = vmatprep.subr.bf16.mxu0 %v975
    %1329 = vmatpush1.bf16.msra.mxu0 %v974
    %1330 = vmatprep.subr.bf16.mxu0 %v971
    %1331 = vmatpush1.bf16.msra.mxu0 %v970
    %1332 = vmatprep.subr.bf16.mxu0 %v967
    %1333 = vmatpush1.bf16.msra.mxu0 %v966
    %1334 = vmatprep.subr.bf16.mxu0 %v963
    %1335 = vmatpush1.bf16.msra.mxu0 %v962
    %1336 = vmatprep.subr.bf16.mxu0 %v959
    %1337 = vmatpush1.bf16.msra.mxu0 %v958
    %1338 = vmatprep.subr.bf16.mxu0 %v955
    %1339 = vmatpush1.bf16.msra.mxu0 %v954
    %1340 = vmatprep.subr.bf16.mxu0 %v951
    %1341 = vmatpush1.bf16.msra.mxu0 %v950
    %1342 = vmatprep.subr.bf16.mxu0 %v947
    %1343 = vmatpush1.bf16.msra.mxu0 %v946
    %1344 = vmatprep.subr.bf16.mxu0 %v1007
    %1345 = vmatpush2.bf16.msra.mxu0 %v1006
    %1346 = vmatprep.subr.bf16.mxu0 %v1003
    %1347 = vmatpush2.bf16.msra.mxu0 %v1002
    %1348 = vmatprep.subr.bf16.mxu0 %v999
    %1349 = vmatpush2.bf16.msra.mxu0 %v998
    %1350 = vmatprep.subr.bf16.mxu0 %v995
    %1351 = vmatpush2.bf16.msra.mxu0 %v994
    %1352 = vmatprep.subr.bf16.mxu0 %v991
    %1353 = vmatpush2.bf16.msra.mxu0 %v990
    %1354 = vmatprep.subr.bf16.mxu0 %v987
    %1355 = vmatpush2.bf16.msra.mxu0 %v986
    %1356 = vmatprep.subr.bf16.mxu0 %v983
    %1357 = vmatpush2.bf16.msra.mxu0 %v982
    %1358 = vmatprep.subr.bf16.mxu0 %v979
    %1359 = vmatpush2.bf16.msra.mxu0 %v978
    %1360 = vmatprep.mubr.bf16.mxu0 %v293
    %1361 = vmatmul.mubr.bf16.gmra.mxu0 %v291
    %v1362 = vpop.f32.mrf.mxu0
    %v1363 = vadd.f32 %v1322, %v1362
    %v1364 = vpop.f32.mrf.mxu0
    %v1365 = vadd.f32 %v1324, %v1364
    %v1366 = vpop.f32.mrf.mxu0
    %v1367 = vpop.f32.mrf.mxu0
    %1368 = vdwg.mxu0
    %1369 = vmatprep.subr.bf16.mxu0 %v1039
    %1370 = vmatpush1.bf16.msra.mxu0 %v1038
    %1371 = vmatprep.subr.bf16.mxu0 %v1035
    %1372 = vmatpush1.bf16.msra.mxu0 %v1034
    %1373 = vmatprep.subr.bf16.mxu0 %v1031
    %1374 = vmatpush1.bf16.msra.mxu0 %v1030
    %1375 = vmatprep.subr.bf16.mxu0 %v1027
    %1376 = vmatpush1.bf16.msra.mxu0 %v1026
    %1377 = vmatprep.subr.bf16.mxu0 %v1023
    %1378 = vmatpush1.bf16.msra.mxu0 %v1022
    %1379 = vmatprep.subr.bf16.mxu0 %v1019
    %1380 = vmatpush1.bf16.msra.mxu0 %v1018
    %1381 = vmatprep.subr.bf16.mxu0 %v1015
    %1382 = vmatpush1.bf16.msra.mxu0 %v1014
    %1383 = vmatprep.subr.bf16.mxu0 %v1011
    %1384 = vmatpush1.bf16.msra.mxu0 %v1010
    %1385 = vmatprep.subr.bf16.mxu0 %v1071
    %1386 = vmatpush2.bf16.msra.mxu0 %v1070
    %1387 = vmatprep.subr.bf16.mxu0 %v1067
    %1388 = vmatpush2.bf16.msra.mxu0 %v1066
    %1389 = vmatprep.subr.bf16.mxu0 %v1063
    %1390 = vmatpush2.bf16.msra.mxu0 %v1062
    %1391 = vmatprep.subr.bf16.mxu0 %v1059
    %1392 = vmatpush2.bf16.msra.mxu0 %v1058
    %1393 = vmatprep.subr.bf16.mxu0 %v1055
    %1394 = vmatpush2.bf16.msra.mxu0 %v1054
    %1395 = vmatprep.subr.bf16.mxu0 %v1051
    %1396 = vmatpush2.bf16.msra.mxu0 %v1050
    %1397 = vmatprep.subr.bf16.mxu0 %v1047
    %1398 = vmatpush2.bf16.msra.mxu0 %v1046
    %1399 = vmatprep.subr.bf16.mxu0 %v1043
    %1400 = vmatpush2.bf16.msra.mxu0 %v1042
    %1401 = vmatprep.mubr.bf16.mxu0 %v290
    %1402 = vmatmul.mubr.bf16.gmra.mxu0 %v276
    %v1403 = vpop.f32.mrf.mxu0
    %v1404 = vadd.f32 %v1363, %v1403
    %v1405 = vpop.f32.mrf.mxu0
    %v1406 = vadd.f32 %v1365, %v1405
    %v1407 = vpop.f32.mrf.mxu0
    %v1408 = vpop.f32.mrf.mxu0
    %1409 = vdwg.mxu0
    %1410 = vmatprep.subr.bf16.mxu0 0
    %1411 = vmatpush1.bf16.msra.mxu0 0
    %1412 = vmatprep.subr.bf16.mxu0 0
    %1413 = vmatpush1.bf16.msra.mxu0 0
    %1414 = vmatprep.subr.bf16.mxu0 0
    %1415 = vmatpush1.bf16.msra.mxu0 0
    %1416 = vmatprep.subr.bf16.mxu0 0
    %1417 = vmatpush1.bf16.msra.mxu0 0
    %1418 = vmatprep.subr.bf16.mxu0 0
    %1419 = vmatpush1.bf16.msra.mxu0 0
    %1420 = vmatprep.subr.bf16.mxu0 0
    %1421 = vmatpush1.bf16.msra.mxu0 0
    %1422 = vmatprep.subr.bf16.mxu0 0
    %1423 = vmatpush1.bf16.msra.mxu0 0
    %1424 = vmatprep.subr.bf16.mxu0 %v1279
    %1425 = vmatpush1.bf16.msra.mxu0 %v1276
    %1426 = vmatprep.subr.bf16.mxu0 0
    %1427 = vmatpush2.bf16.msra.mxu0 0
    %1428 = vmatprep.subr.bf16.mxu0 0
    %1429 = vmatpush2.bf16.msra.mxu0 0
    %1430 = vmatprep.subr.bf16.mxu0 0
    %1431 = vmatpush2.bf16.msra.mxu0 0
    %1432 = vmatprep.subr.bf16.mxu0 0
    %1433 = vmatpush2.bf16.msra.mxu0 0
    %1434 = vmatprep.subr.bf16.mxu0 0
    %1435 = vmatpush2.bf16.msra.mxu0 0
    %1436 = vmatprep.subr.bf16.mxu0 0
    %1437 = vmatpush2.bf16.msra.mxu0 0
    %1438 = vmatprep.subr.bf16.mxu0 0
    %1439 = vmatpush2.bf16.msra.mxu0 0
    %1440 = vmatprep.subr.bf16.mxu0 0
    %1441 = vmatpush2.bf16.msra.mxu0 0
    %1442 = vmatprep.mubr.bf16.mxu0 0
    %1443 = vmatmul.mubr.bf16.gmra.mxu0 %v1272
    %v1444 = vpop.f32.mrf.mxu0
    %v1445 = vadd.f32 %v1404, %v1444
    %v1446 = vpop.f32.mrf.mxu0
    %v1447 = vadd.f32 %v1406, %v1446
    %v1448 = vpop.f32.mrf.mxu0
    %v1449 = vpop.f32.mrf.mxu0
    %1450 = vdwg.mxu0
    %1451 = vmatprep.subr.bf16.mxu0 %v913
    %1452 = vmatpush1.bf16.msra.mxu0 %v912
    %1453 = vmatprep.subr.bf16.mxu0 %v909
    %1454 = vmatpush1.bf16.msra.mxu0 %v908
    %1455 = vmatprep.subr.bf16.mxu0 %v905
    %1456 = vmatpush1.bf16.msra.mxu0 %v904
    %1457 = vmatprep.subr.bf16.mxu0 %v901
    %1458 = vmatpush1.bf16.msra.mxu0 %v900
    %1459 = vmatprep.subr.bf16.mxu0 %v897
    %1460 = vmatpush1.bf16.msra.mxu0 %v896
    %1461 = vmatprep.subr.bf16.mxu0 %v893
    %1462 = vmatpush1.bf16.msra.mxu0 %v892
    %1463 = vmatprep.subr.bf16.mxu0 %v889
    %1464 = vmatpush1.bf16.msra.mxu0 %v888
    %1465 = vmatprep.subr.bf16.mxu0 %v885
    %1466 = vmatpush1.bf16.msra.mxu0 %v884
    %1467 = vmatprep.subr.bf16.mxu0 %v945
    %1468 = vmatpush2.bf16.msra.mxu0 %v944
    %1469 = vmatprep.subr.bf16.mxu0 %v941
    %1470 = vmatpush2.bf16.msra.mxu0 %v940
    %1471 = vmatprep.subr.bf16.mxu0 %v937
    %1472 = vmatpush2.bf16.msra.mxu0 %v936
    %1473 = vmatprep.subr.bf16.mxu0 %v933
    %1474 = vmatpush2.bf16.msra.mxu0 %v932
    %1475 = vmatprep.subr.bf16.mxu0 %v929
    %1476 = vmatpush2.bf16.msra.mxu0 %v928
    %1477 = vmatprep.subr.bf16.mxu0 %v925
    %1478 = vmatpush2.bf16.msra.mxu0 %v924
    %1479 = vmatprep.subr.bf16.mxu0 %v921
    %1480 = vmatpush2.bf16.msra.mxu0 %v920
    %1481 = vmatprep.subr.bf16.mxu0 %v917
    %1482 = vmatpush2.bf16.msra.mxu0 %v916
    %1483 = vmatprep.mubr.bf16.mxu0 %v283
    %1484 = vmatmul.mubr.bf16.gmra.mxu0 %v269
    %v1485 = vpop.f32.mrf.mxu0
    %v1486 = vadd.f32 %v236, %v1485
    %v1487 = vpop.f32.mrf.mxu0
    %v1488 = vadd.f32 %v240, %v1487
    %v1489 = vpop.f32.mrf.mxu0
    %v1490 = vpop.f32.mrf.mxu0
    %1491 = vdwg.mxu0
    %1492 = vmatprep.subr.bf16.mxu0 %v977
    %1493 = vmatpush1.bf16.msra.mxu0 %v976
    %1494 = vmatprep.subr.bf16.mxu0 %v973
    %1495 = vmatpush1.bf16.msra.mxu0 %v972
    %1496 = vmatprep.subr.bf16.mxu0 %v969
    %1497 = vmatpush1.bf16.msra.mxu0 %v968
    %1498 = vmatprep.subr.bf16.mxu0 %v965
    %1499 = vmatpush1.bf16.msra.mxu0 %v964
    %1500 = vmatprep.subr.bf16.mxu0 %v961
    %1501 = vmatpush1.bf16.msra.mxu0 %v960
    %1502 = vmatprep.subr.bf16.mxu0 %v957
    %1503 = vmatpush1.bf16.msra.mxu0 %v956
    %1504 = vmatprep.subr.bf16.mxu0 %v953
    %1505 = vmatpush1.bf16.msra.mxu0 %v952
    %1506 = vmatprep.subr.bf16.mxu0 %v949
    %1507 = vmatpush1.bf16.msra.mxu0 %v948
    %1508 = vmatprep.subr.bf16.mxu0 %v1009
    %1509 = vmatpush2.bf16.msra.mxu0 %v1008
    %1510 = vmatprep.subr.bf16.mxu0 %v1005
    %1511 = vmatpush2.bf16.msra.mxu0 %v1004
    %1512 = vmatprep.subr.bf16.mxu0 %v1001
    %1513 = vmatpush2.bf16.msra.mxu0 %v1000
    %1514 = vmatprep.subr.bf16.mxu0 %v997
    %1515 = vmatpush2.bf16.msra.mxu0 %v996
    %1516 = vmatprep.subr.bf16.mxu0 %v993
    %1517 = vmatpush2.bf16.msra.mxu0 %v992
    %1518 = vmatprep.subr.bf16.mxu0 %v989
    %1519 = vmatpush2.bf16.msra.mxu0 %v988
    %1520 = vmatprep.subr.bf16.mxu0 %v985
    %1521 = vmatpush2.bf16.msra.mxu0 %v984
    %1522 = vmatprep.subr.bf16.mxu0 %v981
    %1523 = vmatpush2.bf16.msra.mxu0 %v980
    %1524 = vmatprep.mubr.bf16.mxu0 %v293
    %1525 = vmatmul.mubr.bf16.gmra.mxu0 %v291
    %v1526 = vpop.f32.mrf.mxu0
    %v1527 = vadd.f32 %v1486, %v1526
    %v1528 = vpop.f32.mrf.mxu0
    %v1529 = vadd.f32 %v1488, %v1528
    %v1530 = vpop.f32.mrf.mxu0
    %v1531 = vpop.f32.mrf.mxu0
    %1532 = vdwg.mxu0
    %1533 = vmatprep.subr.bf16.mxu0 %v1041
    %1534 = vmatpush1.bf16.msra.mxu0 %v1040
    %1535 = vmatprep.subr.bf16.mxu0 %v1037
    %1536 = vmatpush1.bf16.msra.mxu0 %v1036
    %1537 = vmatprep.subr.bf16.mxu0 %v1033
    %1538 = vmatpush1.bf16.msra.mxu0 %v1032
    %1539 = vmatprep.subr.bf16.mxu0 %v1029
    %1540 = vmatpush1.bf16.msra.mxu0 %v1028
    %1541 = vmatprep.subr.bf16.mxu0 %v1025
    %1542 = vmatpush1.bf16.msra.mxu0 %v1024
    %1543 = vmatprep.subr.bf16.mxu0 %v1021
    %1544 = vmatpush1.bf16.msra.mxu0 %v1020
    %1545 = vmatprep.subr.bf16.mxu0 %v1017
    %1546 = vmatpush1.bf16.msra.mxu0 %v1016
    %1547 = vmatprep.subr.bf16.mxu0 %v1013
    %1548 = vmatpush1.bf16.msra.mxu0 %v1012
    %1549 = vmatprep.subr.bf16.mxu0 %v1073
    %1550 = vmatpush2.bf16.msra.mxu0 %v1072
    %1551 = vmatprep.subr.bf16.mxu0 %v1069
    %1552 = vmatpush2.bf16.msra.mxu0 %v1068
    %1553 = vmatprep.subr.bf16.mxu0 %v1065
    %1554 = vmatpush2.bf16.msra.mxu0 %v1064
    %1555 = vmatprep.subr.bf16.mxu0 %v1061
    %1556 = vmatpush2.bf16.msra.mxu0 %v1060
    %1557 = vmatprep.subr.bf16.mxu0 %v1057
    %1558 = vmatpush2.bf16.msra.mxu0 %v1056
    %1559 = vmatprep.subr.bf16.mxu0 %v1053
    %1560 = vmatpush2.bf16.msra.mxu0 %v1052
    %1561 = vmatprep.subr.bf16.mxu0 %v1049
    %1562 = vmatpush2.bf16.msra.mxu0 %v1048
    %1563 = vmatprep.subr.bf16.mxu0 %v1045
    %1564 = vmatpush2.bf16.msra.mxu0 %v1044
    %1565 = vmatprep.mubr.bf16.mxu0 %v290
    %1566 = vmatmul.mubr.bf16.gmra.mxu0 %v276
    %v1567 = vpop.f32.mrf.mxu0
    %v1568 = vadd.f32 %v1527, %v1567
    %v1569 = vpop.f32.mrf.mxu0
    %v1570 = vadd.f32 %v1529, %v1569
    %v1571 = vpop.f32.mrf.mxu0
    %v1572 = vpop.f32.mrf.mxu0
    %1573 = vdwg.mxu0
    %1574 = vmatprep.subr.bf16.mxu0 0
    %1575 = vmatpush1.bf16.msra.mxu0 0
    %1576 = vmatprep.subr.bf16.mxu0 0
    %1577 = vmatpush1.bf16.msra.mxu0 0
    %1578 = vmatprep.subr.bf16.mxu0 0
    %1579 = vmatpush1.bf16.msra.mxu0 0
    %1580 = vmatprep.subr.bf16.mxu0 0
    %1581 = vmatpush1.bf16.msra.mxu0 0
    %1582 = vmatprep.subr.bf16.mxu0 0
    %1583 = vmatpush1.bf16.msra.mxu0 0
    %1584 = vmatprep.subr.bf16.mxu0 0
    %1585 = vmatpush1.bf16.msra.mxu0 0
    %1586 = vmatprep.subr.bf16.mxu0 0
    %1587 = vmatpush1.bf16.msra.mxu0 0
    %1588 = vmatprep.subr.bf16.mxu0 %v1285
    %1589 = vmatpush1.bf16.msra.mxu0 %v1282
    %1590 = vmatprep.subr.bf16.mxu0 0
    %1591 = vmatpush2.bf16.msra.mxu0 0
    %1592 = vmatprep.subr.bf16.mxu0 0
    %1593 = vmatpush2.bf16.msra.mxu0 0
    %1594 = vmatprep.subr.bf16.mxu0 0
    %1595 = vmatpush2.bf16.msra.mxu0 0
    %1596 = vmatprep.subr.bf16.mxu0 0
    %1597 = vmatpush2.bf16.msra.mxu0 0
    %1598 = vmatprep.subr.bf16.mxu0 0
    %1599 = vmatpush2.bf16.msra.mxu0 0
    %1600 = vmatprep.subr.bf16.mxu0 0
    %1601 = vmatpush2.bf16.msra.mxu0 0
    %1602 = vmatprep.subr.bf16.mxu0 0
    %1603 = vmatpush2.bf16.msra.mxu0 0
    %1604 = vmatprep.subr.bf16.mxu0 0
    %1605 = vmatpush2.bf16.msra.mxu0 0
    %1606 = vmatprep.mubr.bf16.mxu0 0
    %1607 = vmatmul.mubr.bf16.gmra.mxu0 %v1272
    %v1608 = vpop.f32.mrf.mxu0
    %v1609 = vadd.f32 %v1568, %v1608
    %v1610 = vpop.f32.mrf.mxu0
    %v1611 = vadd.f32 %v1570, %v1610
    %v1612 = vpop.f32.mrf.mxu0
    %v1613 = vpop.f32.mrf.mxu0
    %1614 = vdwg.mxu0
    %v1615 = vmax.f32 %v1445, 0.0
    %v1616 = vmax.f32 %v1447, 0.0
    %v1617 = vmax.f32 %v1609, 0.0
    %v1618 = vmax.f32 %v1611, 0.0
    %v1619 = vpack.c.bf16 %v1615, %v1615
    %v1620 = vpack.c.bf16 %v1616, %v1616
    %v1621 = vpack.c.bf16 %v1617, %v1617
    %v1622 = vpack.c.bf16 %v1618, %v1618
    %v1623 = vld [vmem:[%s3] sm:$0xf]
    %v1624 = vld [vmem:[%s3 + $0x4] sm:$0xf]
    %v1625 = vld [vmem:[%s3 + $0x8] sm:$0xf]
    %v1626 = vld [vmem:[%s3 + $0xc] sm:$0xf]
    %v1627 = vld [vmem:[%s3 + $0x10] sm:$0xf]
    %v1628 = vld [vmem:[%s3 + $0x14] sm:$0xf]
    %v1629 = vld [vmem:[%s3 + $0x18] sm:$0xf]
    %v1630 = vld [vmem:[%s3 + $0x1c] sm:$0xf]
    %v1631 = vld [vmem:[%s3 + $0x20] sm:$0xf]
    %v1632 = vld [vmem:[%s3 + $0x24] sm:$0xf]
    %v1633 = vld [vmem:[%s3 + $0x28] sm:$0xf]
    %v1634 = vld [vmem:[%s3 + $0x2c] sm:$0xf]
    %v1635 = vld [vmem:[%s3 + $0x30] sm:$0xf]
    %v1636 = vld [vmem:[%s3 + $0x34] sm:$0xf]
    %v1637 = vld [vmem:[%s3 + $0x38] sm:$0xf]
    %v1638 = vld [vmem:[%s3 + $0x3c] sm:$0xf]
    %v1639 = vld [vmem:[%s3 + $0x40] sm:$0xf]
    %v1640 = vld [vmem:[%s3 + $0x44] sm:$0xf]
    %v1641 = vld [vmem:[%s3 + $0x48] sm:$0xf]
    %v1642 = vld [vmem:[%s3 + $0x4c] sm:$0xf]
    %v1643 = vld [vmem:[%s3 + $0x50] sm:$0xf]
    %v1644 = vld [vmem:[%s3 + $0x54] sm:$0xf]
    %v1645 = vld [vmem:[%s3 + $0x58] sm:$0xf]
    %v1646 = vld [vmem:[%s3 + $0x5c] sm:$0xf]
    %v1647 = vld [vmem:[%s3 + $0x60] sm:$0xf]
    %v1648 = vld [vmem:[%s3 + $0x64] sm:$0xf]
    %v1649 = vld [vmem:[%s3 + $0x68] sm:$0xf]
    %v1650 = vld [vmem:[%s3 + $0x6c] sm:$0xf]
    %v1651 = vld [vmem:[%s3 + $0x70] sm:$0xf]
    %v1652 = vld [vmem:[%s3 + $0x74] sm:$0xf]
    %v1653 = vld [vmem:[%s3 + $0x78] sm:$0xf]
    %v1654 = vld [vmem:[%s3 + $0x7c] sm:$0xf]
    %v1655 = vld [vmem:[%s3 + $0x80] sm:$0xf]
    %v1656 = vld [vmem:[%s3 + $0x84] sm:$0xf]
    %v1657 = vld [vmem:[%s3 + $0x88] sm:$0xf]
    %v1658 = vld [vmem:[%s3 + $0x8c] sm:$0xf]
    %v1659 = vld [vmem:[%s3 + $0x90] sm:$0xf]
    %v1660 = vld [vmem:[%s3 + $0x94] sm:$0xf]
    %v1661 = vld [vmem:[%s3 + $0x98] sm:$0xf]
    %v1662 = vld [vmem:[%s3 + $0x9c] sm:$0xf]
    %v1663 = vld [vmem:[%s3 + $0xa0] sm:$0xf]
    %v1664 = vld [vmem:[%s3 + $0xa4] sm:$0xf]
    %v1665 = vld [vmem:[%s3 + $0xa8] sm:$0xf]
    %v1666 = vld [vmem:[%s3 + $0xac] sm:$0xf]
    %v1667 = vld [vmem:[%s3 + $0xb0] sm:$0xf]
    %v1668 = vld [vmem:[%s3 + $0xb4] sm:$0xf]
    %v1669 = vld [vmem:[%s3 + $0xb8] sm:$0xf]
    %v1670 = vld [vmem:[%s3 + $0xbc] sm:$0xf]
    %v1671 = vld [vmem:[%s3 + $0xc0] sm:$0xf]
    %v1672 = vld [vmem:[%s3 + $0xc4] sm:$0xf]
    %v1673 = vld [vmem:[%s3 + $0xc8] sm:$0xf]
    %v1674 = vld [vmem:[%s3 + $0xcc] sm:$0xf]
    %v1675 = vld [vmem:[%s3 + $0xd0] sm:$0xf]
    %v1676 = vld [vmem:[%s3 + $0xd4] sm:$0xf]
    %v1677 = vld [vmem:[%s3 + $0xd8] sm:$0xf]
    %v1678 = vld [vmem:[%s3 + $0xdc] sm:$0xf]
    %v1679 = vld [vmem:[%s3 + $0xe0] sm:$0xf]
    %v1680 = vld [vmem:[%s3 + $0xe4] sm:$0xf]
    %v1681 = vld [vmem:[%s3 + $0xe8] sm:$0xf]
    %v1682 = vld [vmem:[%s3 + $0xec] sm:$0xf]
    %v1683 = vld [vmem:[%s3 + $0xf0] sm:$0xf]
    %v1684 = vld [vmem:[%s3 + $0xf4] sm:$0xf]
    %v1685 = vld [vmem:[%s3 + $0xf8] sm:$0x3]
    %v1686 = vld [vmem:[%s4] sm:$0x1]
    %v1688 = vlaneseq
    %v1689 = vshrl.u32 %v1688, 7
    %v1690 = vsub.s32 0, %v1689
    %v1691 = vrot.slane %v1686, %v1690
    %v1756 = vunpack.c.l.b16 %v1623
    %v1757 = vunpack.c.l.b16 %v1624
    %v1758 = vunpack.c.l.b16 %v1625
    %v1759 = vunpack.c.l.b16 %v1626
    %v1760 = vunpack.c.l.b16 %v1627
    %v1761 = vunpack.c.l.b16 %v1628
    %v1762 = vunpack.c.l.b16 %v1629
    %v1763 = vunpack.c.l.b16 %v1630
    %v1764 = vunpack.c.l.b16 %v1631
    %v1765 = vunpack.c.l.b16 %v1632
    %v1766 = vunpack.c.l.b16 %v1633
    %v1767 = vunpack.c.l.b16 %v1634
    %v1768 = vunpack.c.l.b16 %v1635
    %v1769 = vunpack.c.l.b16 %v1636
    %v1770 = vunpack.c.l.b16 %v1637
    %v1771 = vunpack.c.l.b16 %v1638
    %v1772 = vunpack.c.l.b16 %v1639
    %v1773 = vunpack.c.l.b16 %v1640
    %v1774 = vunpack.c.l.b16 %v1641
    %v1775 = vunpack.c.l.b16 %v1642
    %v1776 = vunpack.c.l.b16 %v1643
    %v1777 = vunpack.c.l.b16 %v1644
    %v1778 = vunpack.c.l.b16 %v1645
    %v1779 = vunpack.c.l.b16 %v1646
    %v1780 = vunpack.c.l.b16 %v1647
    %v1781 = vunpack.c.l.b16 %v1648
    %v1782 = vunpack.c.l.b16 %v1649
    %v1783 = vunpack.c.l.b16 %v1650
    %v1784 = vunpack.c.l.b16 %v1651
    %v1785 = vunpack.c.l.b16 %v1652
    %v1786 = vunpack.c.l.b16 %v1653
    %v1787 = vunpack.c.l.b16 %v1654
    %v1788 = vunpack.c.l.b16 %v1655
    %v1789 = vunpack.c.l.b16 %v1656
    %v1790 = vunpack.c.l.b16 %v1657
    %v1791 = vunpack.c.l.b16 %v1658
    %v1792 = vunpack.c.l.b16 %v1659
    %v1793 = vunpack.c.l.b16 %v1660
    %v1794 = vunpack.c.l.b16 %v1661
    %v1795 = vunpack.c.l.b16 %v1662
    %v1796 = vunpack.c.l.b16 %v1663
    %v1797 = vunpack.c.l.b16 %v1664
    %v1798 = vunpack.c.l.b16 %v1665
    %v1799 = vunpack.c.l.b16 %v1666
    %v1800 = vunpack.c.l.b16 %v1667
    %v1801 = vunpack.c.l.b16 %v1668
    %v1802 = vunpack.c.l.b16 %v1669
    %v1803 = vunpack.c.l.b16 %v1670
    %v1804 = vunpack.c.l.b16 %v1671
    %v1805 = vunpack.c.l.b16 %v1672
    %v1806 = vunpack.c.l.b16 %v1673
    %v1807 = vunpack.c.l.b16 %v1674
    %v1808 = vunpack.c.l.b16 %v1675
    %v1809 = vunpack.c.l.b16 %v1676
    %v1810 = vunpack.c.l.b16 %v1677
    %v1811 = vunpack.c.l.b16 %v1678
    %v1812 = vunpack.c.l.b16 %v1679
    %v1813 = vunpack.c.l.b16 %v1680
    %v1814 = vunpack.c.l.b16 %v1681
    %v1815 = vunpack.c.l.b16 %v1682
    %v1816 = vunpack.c.l.b16 %v1683
    %v1817 = vunpack.c.l.b16 %v1684
    %v1818 = vunpack.c.l.b16 %v1685
    %v1819 = vpack.c.b16 %v1757, %v1756
    %v1820 = vpack.c.b16 %v1759, %v1758
    %v1821 = vpack.c.b16 %v1761, %v1760
    %v1822 = vpack.c.b16 %v1763, %v1762
    %v1823 = vpack.c.b16 %v1765, %v1764
    %v1824 = vpack.c.b16 %v1767, %v1766
    %v1825 = vpack.c.b16 %v1769, %v1768
    %v1826 = vpack.c.b16 %v1771, %v1770
    %v1827 = vpack.c.b16 %v1773, %v1772
    %v1828 = vpack.c.b16 %v1775, %v1774
    %v1829 = vpack.c.b16 %v1777, %v1776
    %v1830 = vpack.c.b16 %v1779, %v1778
    %v1831 = vpack.c.b16 %v1781, %v1780
    %v1832 = vpack.c.b16 %v1783, %v1782
    %v1833 = vpack.c.b16 %v1785, %v1784
    %v1834 = vpack.c.b16 %v1787, %v1786
    %v1835 = vpack.c.b16 %v1789, %v1788
    %v1836 = vpack.c.b16 %v1791, %v1790
    %v1837 = vpack.c.b16 %v1793, %v1792
    %v1838 = vpack.c.b16 %v1795, %v1794
    %v1839 = vpack.c.b16 %v1797, %v1796
    %v1840 = vpack.c.b16 %v1799, %v1798
    %v1841 = vpack.c.b16 %v1801, %v1800
    %v1842 = vpack.c.b16 %v1803, %v1802
    %v1843 = vpack.c.b16 %v1805, %v1804
    %v1844 = vpack.c.b16 %v1807, %v1806
    %v1845 = vpack.c.b16 %v1809, %v1808
    %v1846 = vpack.c.b16 %v1811, %v1810
    %v1847 = vpack.c.b16 %v1813, %v1812
    %v1848 = vpack.c.b16 %v1815, %v1814
    %v1849 = vpack.c.b16 %v1817, %v1816
    %v1850 = vpack.c.b16 %v1818, %v1818
    %vm1882 = vcmask 949248
    %v1884 = vsel %vm1882, %v1622, 0
    %vm1886 = vcmask 1041408
    %v1888 = vsel %vm1886, %v1850, 0
    %1890 = vmatprep.subr.bf16.mxu0 0
    %1891 = vmatpush1.bf16.msra.mxu0 %v1826
    %1892 = vmatprep.subr.bf16.mxu0 0
    %1893 = vmatpush1.bf16.msra.mxu0 %v1825
    %1894 = vmatprep.subr.bf16.mxu0 0
    %1895 = vmatpush1.bf16.msra.mxu0 %v1824
    %1896 = vmatprep.subr.bf16.mxu0 0
    %1897 = vmatpush1.bf16.msra.mxu0 %v1823
    %1898 = vmatprep.subr.bf16.mxu0 0
    %1899 = vmatpush1.bf16.msra.mxu0 %v1822
    %1900 = vmatprep.subr.bf16.mxu0 0
    %1901 = vmatpush1.bf16.msra.mxu0 %v1821
    %1902 = vmatprep.subr.bf16.mxu0 0
    %1903 = vmatpush1.bf16.msra.mxu0 %v1820
    %1904 = vmatprep.subr.bf16.mxu0 0
    %1905 = vmatpush1.bf16.msra.mxu0 %v1819
    %1906 = vmatprep.subr.bf16.mxu0 0
    %1907 = vmatpush2.bf16.msra.mxu0 %v1834
    %1908 = vmatprep.subr.bf16.mxu0 0
    %1909 = vmatpush2.bf16.msra.mxu0 %v1833
    %1910 = vmatprep.subr.bf16.mxu0 0
    %1911 = vmatpush2.bf16.msra.mxu0 %v1832
    %1912 = vmatprep.subr.bf16.mxu0 0
    %1913 = vmatpush2.bf16.msra.mxu0 %v1831
    %1914 = vmatprep.subr.bf16.mxu0 0
    %1915 = vmatpush2.bf16.msra.mxu0 %v1830
    %1916 = vmatprep.subr.bf16.mxu0 0
    %1917 = vmatpush2.bf16.msra.mxu0 %v1829
    %1918 = vmatprep.subr.bf16.mxu0 0
    %1919 = vmatpush2.bf16.msra.mxu0 %v1828
    %1920 = vmatprep.subr.bf16.mxu0 0
    %1921 = vmatpush2.bf16.msra.mxu0 %v1827
    %1922 = vmatprep.mubr.bf16.mxu0 %v1620
    %1923 = vmatmul.mubr.bf16.gmra.mxu0 %v1619
    %v1924 = vpop.f32.mrf.mxu0
    %v1925 = vadd.f32 %v1691, %v1924
    %v1926 = vpop.f32.mrf.mxu0
    %v1927 = vpop.f32.mrf.mxu0
    %v1928 = vpop.f32.mrf.mxu0
    %1929 = vdwg.mxu0
    %1930 = vmatprep.subr.bf16.mxu0 0
    %1931 = vmatpush1.bf16.msra.mxu0 %v1842
    %1932 = vmatprep.subr.bf16.mxu0 0
    %1933 = vmatpush1.bf16.msra.mxu0 %v1841
    %1934 = vmatprep.subr.bf16.mxu0 0
    %1935 = vmatpush1.bf16.msra.mxu0 %v1840
    %1936 = vmatprep.subr.bf16.mxu0 0
    %1937 = vmatpush1.bf16.msra.mxu0 %v1839
    %1938 = vmatprep.subr.bf16.mxu0 0
    %1939 = vmatpush1.bf16.msra.mxu0 %v1838
    %1940 = vmatprep.subr.bf16.mxu0 0
    %1941 = vmatpush1.bf16.msra.mxu0 %v1837
    %1942 = vmatprep.subr.bf16.mxu0 0
    %1943 = vmatpush1.bf16.msra.mxu0 %v1836
    %1944 = vmatprep.subr.bf16.mxu0 0
    %1945 = vmatpush1.bf16.msra.mxu0 %v1835
    %1946 = vmatprep.subr.bf16.mxu0 0
    %1947 = vmatpush2.bf16.msra.mxu0 %v1888
    %1948 = vmatprep.subr.bf16.mxu0 0
    %1949 = vmatpush2.bf16.msra.mxu0 %v1849
    %1950 = vmatprep.subr.bf16.mxu0 0
    %1951 = vmatpush2.bf16.msra.mxu0 %v1848
    %1952 = vmatprep.subr.bf16.mxu0 0
    %1953 = vmatpush2.bf16.msra.mxu0 %v1847
    %1954 = vmatprep.subr.bf16.mxu0 0
    %1955 = vmatpush2.bf16.msra.mxu0 %v1846
    %1956 = vmatprep.subr.bf16.mxu0 0
    %1957 = vmatpush2.bf16.msra.mxu0 %v1845
    %1958 = vmatprep.subr.bf16.mxu0 0
    %1959 = vmatpush2.bf16.msra.mxu0 %v1844
    %1960 = vmatprep.subr.bf16.mxu0 0
    %1961 = vmatpush2.bf16.msra.mxu0 %v1843
    %1962 = vmatprep.mubr.bf16.mxu0 %v1884
    %1963 = vmatmul.mubr.bf16.gmra.mxu0 %v1621
    %v1964 = vpop.f32.mrf.mxu0
    %v1965 = vadd.f32 %v1925, %v1964
    %v1966 = vpop.f32.mrf.mxu0
    %v1967 = vpop.f32.mrf.mxu0
    %v1968 = vpop.f32.mrf.mxu0
    %1969 = vdwg.mxu0
    %v1970 = vmax.f32 %v1965, 0.0
    %v1971 = vpack.c.bf16 %v1970, %v1970
    %v1972 = vld [vmem:[%s5] sm:$0xf]
    %v1973 = vld [vmem:[%s5 + $0x4] sm:$0xf]
    %v1974 = vld [vmem:[%s5 + $0x8] sm:$0xf]
    %v1975 = vld [vmem:[%s5 + $0xc] sm:$0xf]
    %v1976 = vld [vmem:[%s5 + $0x10] sm:$0xf]
    %v1977 = vld [vmem:[%s5 + $0x14] sm:$0xf]
    %v1978 = vld [vmem:[%s5 + $0x18] sm:$0xf]
    %v1979 = vld [vmem:[%s5 + $0x1c] sm:$0xf]
    %v1980 = vld [vmem:[%s5 + $0x20] sm:$0xf]
    %v1981 = vld [vmem:[%s5 + $0x24] sm:$0xf]
    %v1982 = vld [vmem:[%s5 + $0x28] sm:$0xf]
    %v1983 = vld [vmem:[%s5 + $0x2c] sm:$0xf]
    %v1984 = vld [vmem:[%s5 + $0x30] sm:$0x3]
    %v1985 = vld [vmem:[%s6] sm:$0x1]
    %v1987 = vlaneseq
    %v1988 = vshrl.u32 %v1987, 7
    %v1989 = vsub.s32 0, %v1988
    %v1990 = vrot.slane %v1985, %v1989
    %v2005 = vunpack.c.l.b16 %v1972
    %v2006 = vunpack.c.l.b16 %v1973
    %v2007 = vunpack.c.l.b16 %v1974
    %v2008 = vunpack.c.l.b16 %v1975
    %v2009 = vunpack.c.l.b16 %v1976
    %v2010 = vunpack.c.l.b16 %v1977
    %v2011 = vunpack.c.l.b16 %v1978
    %v2012 = vunpack.c.l.b16 %v1979
    %v2013 = vunpack.c.l.b16 %v1980
    %v2014 = vunpack.c.l.b16 %v1981
    %v2015 = vunpack.c.l.b16 %v1982
    %v2016 = vunpack.c.l.b16 %v1983
    %v2017 = vunpack.c.l.b16 %v1984
    %v2018 = vpack.c.b16 %v2006, %v2005
    %v2019 = vpack.c.b16 %v2008, %v2007
    %v2020 = vpack.c.b16 %v2010, %v2009
    %v2021 = vpack.c.b16 %v2012, %v2011
    %v2022 = vpack.c.b16 %v2014, %v2013
    %v2023 = vpack.c.b16 %v2016, %v2015
    %v2024 = vpack.c.b16 %v2017, %v2017
    %vm2031 = vcmask 818176
    %v2033 = vsel %vm2031, %v1971, 0
    %v2036 = vsel %vm1886, %v2024, 0
    %2038 = vmatprep.subr.bf16.mxu0 0
    %2039 = vmatpush1.bf16.msra.mxu0 0
    %2040 = vmatprep.subr.bf16.mxu0 0
    %2041 = vmatpush1.bf16.msra.mxu0 %v2036
    %2042 = vmatprep.subr.bf16.mxu0 0
    %2043 = vmatpush1.bf16.msra.mxu0 %v2023
    %2044 = vmatprep.subr.bf16.mxu0 0
    %2045 = vmatpush1.bf16.msra.mxu0 %v2022
    %2046 = vmatprep.subr.bf16.mxu0 0
    %2047 = vmatpush1.bf16.msra.mxu0 %v2021
    %2048 = vmatprep.subr.bf16.mxu0 0
    %2049 = vmatpush1.bf16.msra.mxu0 %v2020
    %2050 = vmatprep.subr.bf16.mxu0 0
    %2051 = vmatpush1.bf16.msra.mxu0 %v2019
    %2052 = vmatprep.subr.bf16.mxu0 0
    %2053 = vmatpush1.bf16.msra.mxu0 %v2018
    %2054 = vmatprep.subr.bf16.mxu0 0
    %2055 = vmatpush2.bf16.msra.mxu0 0
    %2056 = vmatprep.subr.bf16.mxu0 0
    %2057 = vmatpush2.bf16.msra.mxu0 0
    %2058 = vmatprep.subr.bf16.mxu0 0
    %2059 = vmatpush2.bf16.msra.mxu0 0
    %2060 = vmatprep.subr.bf16.mxu0 0
    %2061 = vmatpush2.bf16.msra.mxu0 0
    %2062 = vmatprep.subr.bf16.mxu0 0
    %2063 = vmatpush2.bf16.msra.mxu0 0
    %2064 = vmatprep.subr.bf16.mxu0 0
    %2065 = vmatpush2.bf16.msra.mxu0 0
    %2066 = vmatprep.subr.bf16.mxu0 0
    %2067 = vmatpush2.bf16.msra.mxu0 0
    %2068 = vmatprep.subr.bf16.mxu0 0
    %2069 = vmatpush2.bf16.msra.mxu0 0
    %2070 = vmatprep.mubr.bf16.mxu0 0
    %2071 = vmatmul.mubr.bf16.gmra.mxu0 %v2033
    %v2072 = vpop.f32.mrf.mxu0
    %v2073 = vadd.f32 %v1990, %v2072
    %v2074 = vpop.f32.mrf.mxu0
    %v2075 = vpop.f32.mrf.mxu0
    %v2076 = vpop.f32.mrf.mxu0
    %2077 = vdwg.mxu0
    %vm2078 = vcmask 33792
    %v2079 = vsel %vm2078, %v2073, -inf
    %2080 = vmax.xlane.f32.xlu0 %v2079
    %v2081 = vpop.xlane.xlu0 %2080
    %v2082 = vsub.f32 %v2073, %v2081
    %v2083 = vmul.f32 %v2082, 1.442695
    %v2084 = vpow.pop %v2083
    %v2085 = vsel %vm2078, %v2084, 0.0
    %2086 = vadd.xlane.f32.xlu0 %v2085
    %v2087 = vpop.xlane.xlu0 %2086
    %v2088 = vrcp.pop %v2087
    %v2089 = vmul.f32 %v2084, %v2088
    %2090 = vst.msk [vmem:[#allocation2] sm:$0x3] %vm2078, %v2089
    // Predicated region
    $region30: #{actor_forward.11} parent=1 // pred_check
      _
    $region31: #{actor_forward.11} parent=1 // pred_check_branch
      %2092 = sbr.rel (0) target = $region33
    $region32: #{actor_forward.11} parent=1 // pred_region
      %s2094 = ssub.s32 32, 32
      %2095 = vsyncadd [#allocation3], %s2094
      %s2097 = sshll.u32 [#allocation2], 4
      %s2098 = int_to_ptr.vmem [resolvable:$true] %s2097
      %2100 = dma.vmem_to_hbm [thread:$0]  %s2098, 32, %s7, [#allocation3]
    $region33: #{actor_forward.11} parent=1 // pred_fallthru
      _
    // Predicated region
    $region34: #{actor_forward.11} parent=1 // pred_check
      _
    $region35: #{actor_forward.11} parent=1 // pred_check_branch
      %2102 = sbr.rel (0) target = $region37
    $region36: #{actor_forward.11} parent=1 // pred_region
      %2103 = dma.done [#allocation3], 32
    $region37: #{actor_forward.11} parent=1 // pred_fallthru
      _
    %2104 = vsyncpa [#allocation3], 1

</llo_original>
